<compile_context>
chip_gen: v6e
topology: v6e:2x2x1
jax: 0.10.0
libtpu: 0.0.40
codegen_flags: <defaults>
</compile_context>

<pallas_src>
import jax
import jax.numpy as jnp
from jax.experimental import pallas as pl
from jax.experimental.pallas import tpu as pltpu

EPS = 1e-5


def _stage1_kernel(x_ref, g0_ref, be0_ref, w0_ref, b0_ref, h1_ref, acc_ref):
    """Grid step (j, k): bn0 on this K-slice, partial matmul into acc.

    j (parallel) indexes the H1 column half, k (arbitrary) the K reduction tile.
    """
    k = pl.program_id(1)

    @pl.when(k == 0)
    def _():
        acc_ref[...] = jnp.zeros_like(acc_ref)

    # bn0 with training-mode batch statistics. Per-feature stats are exact even
    # when computed per K-tile (the reduction is over the batch axis only).
    # Keep all BN math in f32 (no bf16 VPU/EUP path on v5e).
    x = x_ref[...]                                              # (B, tk) f32
    mean0 = jnp.mean(x, axis=0, keepdims=True)                  # (1, tk)
    var0 = jnp.mean((x - mean0) ** 2, axis=0, keepdims=True)    # biased var
    xn = (x - mean0) * jax.lax.rsqrt(var0 + EPS)
    xn = xn * g0_ref[...] + be0_ref[...]

    # Stream both matmul operands to the MXU in bf16, accumulate in f32.
    acc_ref[...] += jnp.dot(xn.astype(jnp.bfloat16), w0_ref[...],
                            preferred_element_type=jnp.float32)

    @pl.when(k == pl.num_programs(1) - 1)
    def _():
        h1_ref[...] = jnp.maximum(acc_ref[...] + b0_ref[...], 0.0)


def _tail_kernel(h1_ref, g1_ref, be1_ref, w1_ref, b1_ref,
                 g2_ref, be2_ref, w2_ref, b2_ref, out_ref):
    """bn1 -> linear1 -> relu -> bn2 -> linear2 (tiny, all resident in VMEM)."""
    h1 = h1_ref[...]
    m1 = jnp.mean(h1, axis=0, keepdims=True)
    v1 = jnp.mean((h1 - m1) ** 2, axis=0, keepdims=True)
    h1n = (h1 - m1) * jax.lax.rsqrt(v1 + EPS) * g1_ref[...] + be1_ref[...]

    h2 = jnp.dot(h1n, w1_ref[...], preferred_element_type=jnp.float32)
    h2 = jnp.maximum(h2 + b1_ref[...], 0.0)
    m2 = jnp.mean(h2, axis=0, keepdims=True)
    v2 = jnp.mean((h2 - m2) ** 2, axis=0, keepdims=True)
    h2n = (h2 - m2) * jax.lax.rsqrt(v2 + EPS) * g2_ref[...] + be2_ref[...]

    out = jnp.dot(h2n, w2_ref[...], preferred_element_type=jnp.float32)
    out_ref[...] = (out + b2_ref[...]).astype(out_ref.dtype)


def two_layer_model_forward(x_nchw, params, *, tk=12288):
    """x_nchw: (B, 3, 128, 128) float32.  Returns (B, n_classes) float32."""
    B = x_nchw.shape[0]
    K = 128 * 128 * 3
    x = x_nchw.reshape(B, K)                                    # glue reshape

    (g0, be0, w0, b0, g1, be1, w1, b1, g2, be2, w2, b2) = params
    H1 = w0.shape[1]
    H2 = w1.shape[1]
    C = w2.shape[1]
    assert K % tk == 0, "tk must divide 128*128*3"
    assert H1 % 2 == 0, "H1 must be even for the two-half column split"
    n_k = K // tk
    H1h = H1 // 2

    w0_bf16 = w0.astype(jnp.bfloat16)           # halve the dominant HBM stream
    row = lambda v: v.reshape(1, -1)            # (1, N) views for vectors

    # ---- Stage 1: h1 = relu(bn0(x) @ w0 + b0), K-tiled, H1 split in halves.
    h1 = pl.pallas_call(
        _stage1_kernel,
        out_shape=jax.ShapeDtypeStruct((B, H1), jnp.float32),
        grid_spec=pltpu.PrefetchScalarGridSpec(
            num_scalar_prefetch=0,
            grid=(2, n_k),                                   # (H1 half, K tile)
            in_specs=[
                pl.BlockSpec((B, tk), lambda j, k: (0, k)),      # x
                pl.BlockSpec((1, tk), lambda j, k: (0, k)),      # gamma0
                pl.BlockSpec((1, tk), lambda j, k: (0, k)),      # beta0
                pl.BlockSpec((tk, H1h), lambda j, k: (k, j)),    # w0 (bf16)
                pl.BlockSpec((1, H1h), lambda j, k: (0, j)),     # b0
            ],
            out_specs=pl.BlockSpec((B, H1h), lambda j, k: (0, j)),
            scratch_shapes=[pltpu.VMEM((B, H1h), jnp.float32)],
        ),
        compiler_params=pltpu.CompilerParams(
            dimension_semantics=("parallel", "arbitrary"),
            vmem_limit_bytes=32 * 1024 * 1024),
    )(x, row(g0), row(be0), w0_bf16, row(b0))

    # ---- Stage 2: tiny tail, single shot (everything fits in VMEM).
    out = pl.pallas_call(
        _tail_kernel,
        out_shape=jax.ShapeDtypeStruct((B, C), jnp.float32),
    )(h1, row(g1), row(be1), w1, row(b1), row(g2), row(be2), w2, row(b2))
    return out


def reference_forward(x_nchw, params, *, w0_dtype=jnp.float32):
    """Pure-JAX reference matching PyTorch training-mode forward.

    w0_dtype=jnp.bfloat16 reproduces the kernel's reduced-precision first
    matmul (operands cast to bf16, f32 accumulation) for a matched comparison.
    """
    (g0, be0, w0, b0, g1, be1, w1, b1, g2, be2, w2, b2) = params
    x = x_nchw.reshape(x_nchw.shape[0], -1)

    def bn(h, g, b):
        m = jnp.mean(h, axis=0, keepdims=True)
        v = jnp.mean((h - m) ** 2, axis=0, keepdims=True)
        return (h - m) * jax.lax.rsqrt(v + EPS) * g + b

    h = bn(x, g0, be0)
    h = jnp.dot(h.astype(w0_dtype), w0.astype(w0_dtype),
                preferred_element_type=jnp.float32) + b0
    h = jnp.maximum(h, 0.0)
    h = bn(h, g1, be1)
    h = jnp.maximum(h @ w1 + b1, 0.0)
    h = bn(h, g2, be2)
    return h @ w2 + b2


def init_params(key, n_input, n_hidden1, n_hidden2, n_classes):
    """Deterministic init (uniform fan-in bound, like torch.nn.Linear's range)."""
    ks = jax.random.split(key, 6)

    def linear(kw, kb, fan_in, fan_out):
        bound = 1.0 / jnp.sqrt(fan_in)
        w = jax.random.uniform(kw, (fan_in, fan_out), jnp.float32, -bound, bound)
        b = jax.random.uniform(kb, (fan_out,), jnp.float32, -bound, bound)
        return w, b

    w0, b0 = linear(ks[0], ks[1], n_input, n_hidden1)
    w1, b1 = linear(ks[2], ks[3], n_hidden1, n_hidden2)
    w2, b2 = linear(ks[4], ks[5], n_hidden2, n_classes)

    g0, be0 = jnp.ones((n_input,), jnp.float32), jnp.zeros((n_input,), jnp.float32)
    g1, be1 = jnp.ones((n_hidden1,), jnp.float32), jnp.zeros((n_hidden1,), jnp.float32)
    g2, be2 = jnp.ones((n_hidden2,), jnp.float32), jnp.zeros((n_hidden2,), jnp.float32)
    return (g0, be0, w0, b0, g1, be1, w1, b1, g2, be2, w2, b2)


if __name__ == "__main__":
    # Shapes implied by forward(): n_input is hard-coded to 128*128*3.
    B = 8
    N_INPUT = 128 * 128 * 3
    N_HIDDEN1 = 256
    N_HIDDEN2 = 128
    N_CLASSES = 16   # TODO(synk): stand-in for len(get_class_map()) (dataset-dependent)

    key = jax.random.PRNGKey(0)
    kx, kp = jax.random.split(key)
    x = jax.random.normal(kx, (B, 3, 128, 128), jnp.float32)   # NCHW input
    params = init_params(kp, N_INPUT, N_HIDDEN1, N_HIDDEN2, N_CLASSES)

    out = jax.block_until_ready(two_layer_model_forward(x, params))
    assert out.shape == (B, N_CLASSES)

    # Tight check against a reference that uses the same bf16-operand first
    # matmul (isolates kernel/tiling correctness from the deliberate bf16 cast).
    ref_bf16 = jax.block_until_ready(
        reference_forward(x, params, w0_dtype=jnp.bfloat16))
    assert jnp.allclose(out, ref_bf16, rtol=2e-3, atol=2e-3), \
        "mismatch vs bf16-w0 reference"

    # Loose sanity check against the full-f32 reference (bf16 operands over a
    # 49k-long contraction, plus BN amplification of near-dead features, can
    # legitimately differ by a few 1e-2).
    ref_f32 = jax.block_until_ready(reference_forward(x, params))
    assert jnp.allclose(out, ref_f32, rtol=2.5e-1, atol=2.5e-1), \
        "mismatch vs f32 reference"

    print("KERNEL_OK")
</pallas_src>

<mosaic_0001>
module attributes {stable_mosaic.version = 11 : i64} {
  func.func @_stage1_kernel(%arg0: i32, %arg1: i32, %arg2: memref<8x12288xf32, #tpu.memory_space<vmem>>, %arg3: memref<1x12288xf32, #tpu.memory_space<vmem>>, %arg4: memref<1x12288xf32, #tpu.memory_space<vmem>>, %arg5: memref<12288x128xbf16, #tpu.memory_space<vmem>>, %arg6: memref<1x128xf32, #tpu.memory_space<vmem>>, %arg7: memref<8x128xf32, #tpu.memory_space<vmem>>, %arg8: memref<8x128xf32, #tpu.memory_space<vmem>>) attributes {dimension_semantics = [#tpu.dimension_semantics<parallel>, #tpu.dimension_semantics<arbitrary>], iteration_bounds = array<i64: 2, 4>, scalar_prefetch = 0 : i64, scratch_operands = 1 : i64, tpu.core_type = #tpu.core_type<tc>, window_params = [{transform_indices = @transform_0, window_bounds = array<i64: 8, 12288>}, {transform_indices = @transform_1, window_bounds = array<i64: 1, 12288>}, {transform_indices = @transform_2, window_bounds = array<i64: 1, 12288>}, {transform_indices = @transform_3, window_bounds = array<i64: 12288, 128>}, {transform_indices = @transform_4, window_bounds = array<i64: 1, 128>}, {transform_indices = @transform_5, window_bounds = array<i64: 8, 128>}]} {
    %c0_i32 = arith.constant 0 : i32
    %0 = arith.cmpi eq, %arg1, %c0_i32 : i32
    %1 = arith.extui %0 : i1 to i32
    %c0_i32_0 = arith.constant 0 : i32
    %2 = arith.cmpi ne, %1, %c0_i32_0 : i32
    scf.if %2 {
      %cst_18 = arith.constant 0.000000e+00 : f32
      %37 = vector.broadcast %cst_18 : f32 to vector<8x128xf32>
      %c0_19 = arith.constant 0 : index
      %c0_20 = arith.constant 0 : index
      %38 = vector.load %arg8[%c0_19, %c0_20] : memref<8x128xf32, #tpu.memory_space<vmem>>, vector<8x128xf32>
      tpu.vector_store %arg8[%c0_19, %c0_20], %37 {strides = array<i32>} : memref<8x128xf32, #tpu.memory_space<vmem>>, vector<8x128xf32>,
    } else {
    }
    %c0 = arith.constant 0 : index
    %c0_1 = arith.constant 0 : index
    %3 = vector.load %arg2[%c0, %c0_1] : memref<8x12288xf32, #tpu.memory_space<vmem>>, vector<8x12288xf32>
    %cst = arith.constant dense<0.000000e+00> : vector<12288xf32>
    %4 = vector.multi_reduction <add>, %3, %cst [0] : vector<8x12288xf32> to vector<12288xf32>
    %5 = vector.shape_cast %4 : vector<12288xf32> to vector<1x12288xf32>
    %cst_2 = arith.constant 8.000000e+00 : f32
    %6 = vector.broadcast %cst_2 : f32 to vector<1x12288xf32>
    %7 = arith.divf %5, %6 : vector<1x12288xf32>
    %8 = vector.broadcast %7 : vector<1x12288xf32> to vector<8x12288xf32>
    %9 = arith.subf %3, %8 : vector<8x12288xf32>
    %10 = arith.mulf %9, %9 : vector<8x12288xf32>
    %cst_3 = arith.constant dense<0.000000e+00> : vector<12288xf32>
    %11 = vector.multi_reduction <add>, %10, %cst_3 [0] : vector<8x12288xf32> to vector<12288xf32>
    %12 = vector.shape_cast %11 : vector<12288xf32> to vector<1x12288xf32>
    %cst_4 = arith.constant 8.000000e+00 : f32
    %13 = vector.broadcast %cst_4 : f32 to vector<1x12288xf32>
    %14 = arith.divf %12, %13 : vector<1x12288xf32>
    %15 = vector.broadcast %7 : vector<1x12288xf32> to vector<8x12288xf32>
    %16 = arith.subf %3, %15 : vector<8x12288xf32>
    %cst_5 = arith.constant 9.99999974E-6 : f32
    %17 = vector.broadcast %cst_5 : f32 to vector<1x12288xf32>
    %18 = arith.addf %14, %17 : vector<1x12288xf32>
    %19 = math.rsqrt %18 : vector<1x12288xf32>
    %20 = vector.broadcast %19 : vector<1x12288xf32> to vector<8x12288xf32>
    %21 = arith.mulf %16, %20 : vector<8x12288xf32>
    %c0_6 = arith.constant 0 : index
    %c0_7 = arith.constant 0 : index
    %22 = vector.load %arg3[%c0_6, %c0_7] : memref<1x12288xf32, #tpu.memory_space<vmem>>, vector<1x12288xf32>
    %23 = vector.broadcast %22 : vector<1x12288xf32> to vector<8x12288xf32>
    %24 = arith.mulf %21, %23 : vector<8x12288xf32>
    %c0_8 = arith.constant 0 : index
    %c0_9 = arith.constant 0 : index
    %25 = vector.load %arg4[%c0_8, %c0_9] : memref<1x12288xf32, #tpu.memory_space<vmem>>, vector<1x12288xf32>
    %26 = vector.broadcast %25 : vector<1x12288xf32> to vector<8x12288xf32>
    %27 = arith.addf %24, %26 : vector<8x12288xf32>
    %c0_10 = arith.constant 0 : index
    %c0_11 = arith.constant 0 : index
    %28 = vector.load %arg8[%c0_10, %c0_11] : memref<8x128xf32, #tpu.memory_space<vmem>>, vector<8x128xf32>
    %29 = arith.truncf %27 : vector<8x12288xf32> to vector<8x12288xbf16>
    %c0_12 = arith.constant 0 : index
    %c0_13 = arith.constant 0 : index
    %30 = vector.load %arg5[%c0_12, %c0_13] : memref<12288x128xbf16, #tpu.memory_space<vmem>>, vector<12288x128xbf16>
    %cst_14 = arith.constant dense<0.000000e+00> : vector<8x128xf32>
    %31 = tpu.matmul %29, %30, %cst_14 {dimension_numbers = #tpu.dot_dimension_numbers<[1], [0], [0], [1], [0, 0, 1, 1], [], []>} : vector<8x12288xbf16>, vector<12288x128xbf16>, vector<8x128xf32> -> vector<8x128xf32>
    %32 = arith.addf %28, %31 : vector<8x128xf32>
    %c0_15 = arith.constant 0 : index
    %c0_16 = arith.constant 0 : index
    %33 = vector.load %arg8[%c0_15, %c0_16] : memref<8x128xf32, #tpu.memory_space<vmem>>, vector<8x128xf32>
    tpu.vector_store %arg8[%c0_15, %c0_16], %32 {strides = array<i32>} : memref<8x128xf32, #tpu.memory_space<vmem>>, vector<8x128xf32>,
    %c3_i32 = arith.constant 3 : i32
    %34 = arith.cmpi eq, %arg1, %c3_i32 : i32
    %35 = arith.extui %34 : i1 to i32
    %c0_i32_17 = arith.constant 0 : i32
    %36 = arith.cmpi ne, %35, %c0_i32_17 : i32
    scf.if %36 {
      %c0_18 = arith.constant 0 : index
      %c0_19 = arith.constant 0 : index
      %37 = vector.load %arg8[%c0_18, %c0_19] : memref<8x128xf32, #tpu.memory_space<vmem>>, vector<8x128xf32>
      %c0_20 = arith.constant 0 : index
      %c0_21 = arith.constant 0 : index
      %38 = vector.load %arg6[%c0_20, %c0_21] : memref<1x128xf32, #tpu.memory_space<vmem>>, vector<1x128xf32>
      %39 = vector.broadcast %38 : vector<1x128xf32> to vector<8x128xf32>
      %40 = arith.addf %37, %39 : vector<8x128xf32>
      %cst_22 = arith.constant 0.000000e+00 : f32
      %41 = vector.broadcast %cst_22 : f32 to vector<8x128xf32>
      %42 = arith.maximumf %40, %41 : vector<8x128xf32>
      %c0_23 = arith.constant 0 : index
      %c0_24 = arith.constant 0 : index
      %43 = vector.load %arg7[%c0_23, %c0_24] : memref<8x128xf32, #tpu.memory_space<vmem>>, vector<8x128xf32>
      tpu.vector_store %arg7[%c0_23, %c0_24], %42 {strides = array<i32>} : memref<8x128xf32, #tpu.memory_space<vmem>>, vector<8x128xf32>,
    } else {
    }
    return
  }
  func.func @transform_0(%arg0: i32, %arg1: i32) -> (i32, i32) {
    %c0_i32 = arith.constant 0 : i32
    %c0_i32_0 = arith.constant 0 : i32
    return %c0_i32, %arg1 : i32, i32
  }
  func.func @transform_1(%arg0: i32, %arg1: i32) -> (i32, i32) {
    %c0_i32 = arith.constant 0 : i32
    %c0_i32_0 = arith.constant 0 : i32
    return %c0_i32, %arg1 : i32, i32
  }
  func.func @transform_2(%arg0: i32, %arg1: i32) -> (i32, i32) {
    %c0_i32 = arith.constant 0 : i32
    %c0_i32_0 = arith.constant 0 : i32
    return %c0_i32, %arg1 : i32, i32
  }
  func.func @transform_3(%arg0: i32, %arg1: i32) -> (i32, i32) {
    %c0_i32 = arith.constant 0 : i32
    return %arg1, %arg0 : i32, i32
  }
  func.func @transform_4(%arg0: i32, %arg1: i32) -> (i32, i32) {
    %c0_i32 = arith.constant 0 : i32
    %c0_i32_0 = arith.constant 0 : i32
    return %c0_i32, %arg0 : i32, i32
  }
  func.func @transform_5(%arg0: i32, %arg1: i32) -> (i32, i32) {
    %c0_i32 = arith.constant 0 : i32
    %c0_i32_0 = arith.constant 0 : i32
    return %c0_i32, %arg0 : i32, i32
  }
}

</mosaic_0001>

<llo_original>
// kernel: tpu_custom_call.1
$region0: #{tpu_custom_call.1}
  #allocation0 [shape = 'u32[]', space=smem, size = 0x4, offset = 0x4, fixed_abs, tag = 'smem constant byte address 0x4 - core index']
  #allocation1 [shape = 'u32[144,128]{1,0:T(1,128)}', space=vmem, size = 0x12000, scoped, tag = 'internal scratch']
  #allocation2 [shape = 'f32[8,128]{1,0:T(8,128)}', space=vmem, size = 0x1000, scoped, tag = 'scratch operand']
  %s0 = inlined_call_operand.hbm [shape: f32[8,49152], index: 0, kind: input, shape index: {}]
  %s1 = inlined_call_operand.hbm [shape: f32[1,49152], index: 1, kind: input, shape index: {}]
  %s2 = inlined_call_operand.hbm [shape: f32[1,49152], index: 2, kind: input, shape index: {}]
  %s3 = inlined_call_operand.hbm [shape: bf16[49152,256], index: 3, kind: input, shape index: {}]
  %s4 = inlined_call_operand.hbm [shape: f32[1,256], index: 4, kind: input, shape index: {}]
  %s5 = inlined_call_operand.hbm [shape: f32[8,256], index: 5, kind: output, shape index: {}]
  %s6 = sld [smem:[#allocation0]]
  $region81: #{tpu_custom_call.1} parent=0
    _
  %s8 = ssub.s32 1, %s6
  %s9 = scalar_select 0, %s8, %s6
  $region1: #{tpu_custom_call.1} parent=0
    #allocation3 [shape = 'u8[786432]{0}', space=vmem, size = 0xc0000, scoped, tag = 'input window, operand 0']
    #allocation4 [shape = 's32[2]{0}', space=sflag, size = 0x8, scoped, tag = 'scoped memory for tpu_custom_call.1']
    #allocation5 [shape = 's32[2]{0}', space=sflag, size = 0x8, scoped, tag = 'scoped memory for tpu_custom_call.1']
    #allocation6 [shape = 'u8[98304]{0}', space=vmem, size = 0x18000, scoped, tag = 'input window, operand 1']
    #allocation7 [shape = 's32[2]{0}', space=sflag, size = 0x8, scoped, tag = 'scoped memory for tpu_custom_call.1']
    #allocation8 [shape = 'u8[98304]{0}', space=vmem, size = 0x18000, scoped, tag = 'input window, operand 2']
    #allocation9 [shape = 'u8[6291456]{0}', space=vmem, size = 0x600000, scoped, tag = 'input window, operand 3']
    #allocation10 [shape = 's32[2]{0}', space=sflag, size = 0x8, scoped, tag = 'scoped memory for tpu_custom_call.1']
    #allocation11 [shape = 'u8[1024]{0}', space=vmem, size = 0x400, scoped, tag = 'input window, operand 4']
    #allocation12 [shape = 'u8[8192]{0}', space=vmem, size = 0x2000, scoped, tag = 'output window, operand 0']
    %10 = vsyncpa [#allocation4], 0
    %s11 = scalar_lea.sflag [#allocation4], 1
    %12 = vsyncpa %s11, 0
    %13 = vsyncpa [#allocation7], 0
    %s14 = scalar_lea.sflag [#allocation7], 1
    %15 = vsyncpa %s14, 0
    %16 = vsyncpa [#allocation10], 0
    %s17 = scalar_lea.sflag [#allocation10], 1
    %18 = vsyncpa %s17, 0
    %19 = vsyncpa [#allocation5], 0
    %s20 = scalar_lea.sflag [#allocation5], 1
    %21 = vsyncpa %s20, 0
    loop: start=0, step=1, limit=10
    $region2: #{tpu_custom_call.1} parent=1 // loop_pre_header
      _
    $region3: #{tpu_custom_call.1} parent=1 // loop_header
      %s23 = sphi 0, %s27
      %p24 = scmp.ge.s32.totalorder %s23, 10
      %s30 = sphi 0, %s42
      %s31 = sphi 0, %s38
      %s32 = sphi 0, %s30
      %s33 = sphi 0, %s31
      %s34 = sphi 0, %s32
      %s35 = sphi 0, %s33
      %s45 = sphi 0, %s47
      %s48 = sphi 0, %s45
      %s49 = sphi 0, %s48
      %s65 = sphi 0, %s49
      %s71 = sphi 0, %s73
      %s74 = sphi 0, %s71
      %s75 = sphi 0, %s74
      %s91 = sphi 0, %s75
      %s97 = sphi 0, %s99
      %s100 = sphi 0, %s97
      %s101 = sphi 0, %s100
      %s117 = sphi 0, %s101
      %s125 = sphi 0, %s127
      %s128 = sphi 0, %s125
      %s129 = sphi 0, %s128
      %s145 = sphi 0, %s129
      %s151 = sphi 0, %s153
      %s154 = sphi 0, %s151
      %s155 = sphi 0, %s154
      %s171 = sphi 0, %s155
      %s177 = sphi 0, %s179
      %s180 = sphi 0, %s177
      %s181 = sphi 0, %s180
      %s197 = sphi 0, %s181
    $region4: #{tpu_custom_call.1} parent=1 // loop_header_branch
      %26 = sbr.rel (%p24) target = $region8
    $region5: #{tpu_custom_call.1} parent=1 // loop_body
      %s28 = ssub.s32 %s23, 1
      %s29 = ssub.s32 %s23, 2
      %s36 = sadd.s32 1, %s31
      %p37 = scmp.ge.s32.totalorder %s36, 4
      %s38 = scalar_select %p37, 0, %s36
      %s39 = sadd.s32 1, %s30
      %s40 = scalar_select %p37, %s39, %s30
      %p41 = scmp.ge.s32.totalorder %s40, 2
      %s42 = scalar_select %p41, 0, %s40
      %s43 = ssub.s32 %s31, %s38
      %p44 = scmp.eq.s32.totalorder %s43, 0
      %s46 = sadd.s32 %s45, 1
      %s47 = scalar_select %p44, %s45, %s46
      %p50 = pneg %p44
      %p51 = scmp.eq.s32.totalorder %s23, 7
      %p52 = por %p50, %p51
      %p53 = scmp.ne.s32.totalorder %s45, %s48
      %p54 = scmp.eq.s32.totalorder %s23, 0
      %p55 = por %p53, %p54
      %p56 = scmp.ne.s32.totalorder %s45, %s48
      %p57 = scmp.eq.s32.totalorder %s28, 7
      %p58 = por %p56, %p57
      %p59 = scmp.ne.s32.totalorder %s48, %s49
      %p60 = scmp.eq.s32.totalorder %s28, 0
      %p61 = por %p59, %p60
      %p62 = scmp.ne.s32.totalorder %s48, %s49
      %p63 = scmp.eq.s32.totalorder %s29, 7
      %p64 = por %p62, %p63
      %p66 = scmp.ne.s32.totalorder %s49, %s65
      %p67 = scmp.eq.s32.totalorder %s29, 0
      %p68 = por %p66, %p67
      %s69 = ssub.s32 %s31, %s38
      %p70 = scmp.eq.s32.totalorder %s69, 0
      %s72 = sadd.s32 %s71, 1
      %s73 = scalar_select %p70, %s71, %s72
      %p76 = pneg %p70
      %p77 = scmp.eq.s32.totalorder %s23, 7
      %p78 = por %p76, %p77
      %p79 = scmp.ne.s32.totalorder %s71, %s74
      %p80 = scmp.eq.s32.totalorder %s23, 0
      %p81 = por %p79, %p80
      %p82 = scmp.ne.s32.totalorder %s71, %s74
      %p83 = scmp.eq.s32.totalorder %s28, 7
      %p84 = por %p82, %p83
      %p85 = scmp.ne.s32.totalorder %s74, %s75
      %p86 = scmp.eq.s32.totalorder %s28, 0
      %p87 = por %p85, %p86
      %p88 = scmp.ne.s32.totalorder %s74, %s75
      %p89 = scmp.eq.s32.totalorder %s29, 7
      %p90 = por %p88, %p89
      %p92 = scmp.ne.s32.totalorder %s75, %s91
      %p93 = scmp.eq.s32.totalorder %s29, 0
      %p94 = por %p92, %p93
      %s95 = ssub.s32 %s31, %s38
      %p96 = scmp.eq.s32.totalorder %s95, 0
      %s98 = sadd.s32 %s97, 1
      %s99 = scalar_select %p96, %s97, %s98
      %p102 = pneg %p96
      %p103 = scmp.eq.s32.totalorder %s23, 7
      %p104 = por %p102, %p103
      %p105 = scmp.ne.s32.totalorder %s97, %s100
      %p106 = scmp.eq.s32.totalorder %s23, 0
      %p107 = por %p105, %p106
      %p108 = scmp.ne.s32.totalorder %s97, %s100
      %p109 = scmp.eq.s32.totalorder %s28, 7
      %p110 = por %p108, %p109
      %p111 = scmp.ne.s32.totalorder %s100, %s101
      %p112 = scmp.eq.s32.totalorder %s28, 0
      %p113 = por %p111, %p112
      %p114 = scmp.ne.s32.totalorder %s100, %s101
      %p115 = scmp.eq.s32.totalorder %s29, 7
      %p116 = por %p114, %p115
      %p118 = scmp.ne.s32.totalorder %s101, %s117
      %p119 = scmp.eq.s32.totalorder %s29, 0
      %p120 = por %p118, %p119
      %s121 = ssub.s32 %s31, %s38
      %s122 = ssub.s32 %s30, %s42
      %s123 = sor.u32 %s121, %s122
      %p124 = scmp.eq.s32.totalorder %s123, 0
      %s126 = sadd.s32 %s125, 1
      %s127 = scalar_select %p124, %s125, %s126
      %p130 = pneg %p124
      %p131 = scmp.eq.s32.totalorder %s23, 7
      %p132 = por %p130, %p131
      %p133 = scmp.ne.s32.totalorder %s125, %s128
      %p134 = scmp.eq.s32.totalorder %s23, 0
      %p135 = por %p133, %p134
      %p136 = scmp.ne.s32.totalorder %s125, %s128
      %p137 = scmp.eq.s32.totalorder %s28, 7
      %p138 = por %p136, %p137
      %p139 = scmp.ne.s32.totalorder %s128, %s129
      %p140 = scmp.eq.s32.totalorder %s28, 0
      %p141 = por %p139, %p140
      %p142 = scmp.ne.s32.totalorder %s128, %s129
      %p143 = scmp.eq.s32.totalorder %s29, 7
      %p144 = por %p142, %p143
      %p146 = scmp.ne.s32.totalorder %s129, %s145
      %p147 = scmp.eq.s32.totalorder %s29, 0
      %p148 = por %p146, %p147
      %s149 = ssub.s32 %s30, %s42
      %p150 = scmp.eq.s32.totalorder %s149, 0
      %s152 = sadd.s32 %s151, 1
      %s153 = scalar_select %p150, %s151, %s152
      %p156 = pneg %p150
      %p157 = scmp.eq.s32.totalorder %s23, 7
      %p158 = por %p156, %p157
      %p159 = scmp.ne.s32.totalorder %s151, %s154
      %p160 = scmp.eq.s32.totalorder %s23, 0
      %p161 = por %p159, %p160
      %p162 = scmp.ne.s32.totalorder %s151, %s154
      %p163 = scmp.eq.s32.totalorder %s28, 7
      %p164 = por %p162, %p163
      %p165 = scmp.ne.s32.totalorder %s154, %s155
      %p166 = scmp.eq.s32.totalorder %s28, 0
      %p167 = por %p165, %p166
      %p168 = scmp.ne.s32.totalorder %s154, %s155
      %p169 = scmp.eq.s32.totalorder %s29, 7
      %p170 = por %p168, %p169
      %p172 = scmp.ne.s32.totalorder %s155, %s171
      %p173 = scmp.eq.s32.totalorder %s29, 0
      %p174 = por %p172, %p173
      %s175 = ssub.s32 %s30, %s42
      %p176 = scmp.eq.s32.totalorder %s175, 0
      %s178 = sadd.s32 %s177, 1
      %s179 = scalar_select %p176, %s177, %s178
      %p182 = pneg %p176
      %p183 = scmp.eq.s32.totalorder %s23, 7
      %p184 = por %p182, %p183
      %p185 = scmp.ne.s32.totalorder %s177, %s180
      %p186 = scmp.eq.s32.totalorder %s23, 0
      %p187 = por %p185, %p186
      %p188 = scmp.ne.s32.totalorder %s177, %s180
      %p189 = scmp.eq.s32.totalorder %s28, 7
      %p190 = por %p188, %p189
      %p191 = scmp.ne.s32.totalorder %s180, %s181
      %p192 = scmp.eq.s32.totalorder %s28, 0
      %p193 = por %p191, %p192
      %p194 = scmp.ne.s32.totalorder %s180, %s181
      %p195 = scmp.eq.s32.totalorder %s29, 7
      %p196 = por %p194, %p195
      %p198 = scmp.ne.s32.totalorder %s181, %s197
      %p199 = scmp.eq.s32.totalorder %s29, 0
      %p200 = por %p198, %p199
      %p201 = scmp.le.s32.totalorder 1, %s23
      %p202 = scmp.lt.s32.totalorder %s23, 9
      %p203 = pnand %p201, %p202
      %p204 = pneg %p203
      // Predicated region
      $region9: #{tpu_custom_call.1} parent=5 // pred_check
        _
      $region10: #{tpu_custom_call.1} parent=5 // pred_check_branch
        %206 = sbr.rel (%p203) target = $region12
      $region11: #{tpu_custom_call.1} parent=5 // pred_region
        %s207 = ssub.s32 %s23, 1
      $region12: #{tpu_custom_call.1} parent=5 // pred_fallthru
        _
      %p208 = scmp.lt.s32.totalorder %s23, 8
      // Predicated region
      $region13: #{tpu_custom_call.1} parent=5 // pred_check
        %p209 = pneg %p208
      $region14: #{tpu_custom_call.1} parent=5 // pred_check_branch
        %211 = sbr.rel (%p209) target = $region16
      $region15: #{tpu_custom_call.1} parent=5 // pred_region
        // Predicated region
        $region17: #{tpu_custom_call.1} parent=15 // pred_check
          %p212 = pneg %p55
        $region18: #{tpu_custom_call.1} parent=15 // pred_check_branch
          %214 = sbr.rel (%p212) target = $region20
        $region19: #{tpu_custom_call.1} parent=15 // pred_region
          %s215 = sand.u32 %s45, 1
          %s216 = scalar_lea.sflag [#allocation4], %s215
          %s217 = sand.u32 %s45, 1
          %s218 = smul.addr %s217, 768
          %s219 = scalar_lea.vmem [#allocation3], %s218
          %s220 = smul.u32 96, %s31
          %s222 = ssub.s32 12288, 12288
          %223 = vsyncadd %s216, %s222
          %s224 = smul.addr %s220, 128
          %s225 = scalar_lea.hbm %s0, %s224
          %s227 = sshll.u32 %s219, 4
          %s228 = int_to_ptr.vmem [resolvable:$true] %s227
          %230 = dma.hbm_to_vmem [thread:$0]  %s225, 12288, %s228, %s216
        $region20: #{tpu_custom_call.1} parent=15 // pred_fallthru
          _
        // Predicated region
        $region21: #{tpu_custom_call.1} parent=15 // pred_check
          %p231 = pneg %p81
        $region22: #{tpu_custom_call.1} parent=15 // pred_check_branch
          %233 = sbr.rel (%p231) target = $region24
        $region23: #{tpu_custom_call.1} parent=15 // pred_region
          %s234 = sand.u32 %s23, 1
          %s235 = scalar_lea.sflag [#allocation7], %s234
          %s236 = sand.u32 %s71, 1
          %s237 = smul.addr %s236, 96
          %s238 = scalar_lea.vmem [#allocation6], %s237
          %s239 = smul.u32 96, %s31
          %s241 = ssub.s32 1536, 1536
          %242 = vsyncadd %s235, %s241
          %s243 = smul.addr %s239, 16
          %s244 = scalar_lea.hbm %s1, %s243
          %s246 = sshll.u32 %s238, 4
          %s247 = int_to_ptr.vmem [resolvable:$true] %s246
          %249 = dma.hbm_to_vmem [thread:$0]  %s244, 1536, %s247, %s235
        $region24: #{tpu_custom_call.1} parent=15 // pred_fallthru
          _
        // Predicated region
        $region25: #{tpu_custom_call.1} parent=15 // pred_check
          %p250 = pneg %p107
        $region26: #{tpu_custom_call.1} parent=15 // pred_check_branch
          %252 = sbr.rel (%p250) target = $region28
        $region27: #{tpu_custom_call.1} parent=15 // pred_region
          %s253 = sand.u32 %s23, 1
          %s254 = scalar_lea.sflag [#allocation7], %s253
          %s255 = sand.u32 %s97, 1
          %s256 = smul.addr %s255, 96
          %s257 = scalar_lea.vmem [#allocation8], %s256
          %s258 = smul.u32 96, %s31
          %s260 = ssub.s32 1536, 1536
          %261 = vsyncadd %s254, %s260
          %s262 = smul.addr %s258, 16
          %s263 = scalar_lea.hbm %s2, %s262
          %s265 = sshll.u32 %s257, 4
          %s266 = int_to_ptr.vmem [resolvable:$true] %s265
          %268 = dma.hbm_to_vmem [thread:$0]  %s263, 1536, %s266, %s254
        $region28: #{tpu_custom_call.1} parent=15 // pred_fallthru
          _
        // Predicated region
        $region29: #{tpu_custom_call.1} parent=15 // pred_check
          %p269 = pneg %p135
        $region30: #{tpu_custom_call.1} parent=15 // pred_check_branch
          %271 = sbr.rel (%p269) target = $region32
        $region31: #{tpu_custom_call.1} parent=15 // pred_region
          %s272 = sand.u32 %s23, 1
          %s273 = scalar_lea.sflag [#allocation10], %s272
          %s274 = sand.u32 %s125, 1
          %s275 = smul.addr %s274, 6144
          %s276 = scalar_lea.vmem [#allocation9], %s275
          %s277 = smul.u32 1536, %s31
          %s279 = ssub.s32 98304, 98304
          %280 = vsyncadd %s273, %s279
          %s281 = smul.addr %s277, 2
          %s282 = sadd.s32 %s30, %s281
          %s283 = smul.addr %s282, 64
          %s284 = scalar_lea.hbm %s3, %s283
          %s285 = sshll.u32 %s276, 4
          %s286 = int_to_ptr.vmem [resolvable:$true] %s285
          %291 = dma.hbm_to_vmem [thread:$0]  %s284, 98304, %s286, %s273, 128, 64, 4
        $region32: #{tpu_custom_call.1} parent=15 // pred_fallthru
          _
        // Predicated region
        $region33: #{tpu_custom_call.1} parent=15 // pred_check
          %p292 = pneg %p161
        $region34: #{tpu_custom_call.1} parent=15 // pred_check_branch
          %294 = sbr.rel (%p292) target = $region36
        $region35: #{tpu_custom_call.1} parent=15 // pred_region
          %s295 = sand.u32 %s23, 1
          %s296 = scalar_lea.sflag [#allocation10], %s295
          %s297 = sand.u32 %s151, 1
          %s298 = scalar_lea.vmem [#allocation11], %s297
          %s300 = ssub.s32 16, 16
          %301 = vsyncadd %s296, %s300
          %s302 = smul.addr %s30, 16
          %s303 = scalar_lea.hbm %s4, %s302
          %s305 = sshll.u32 %s298, 4
          %s306 = int_to_ptr.vmem [resolvable:$true] %s305
          %308 = dma.hbm_to_vmem [thread:$0]  %s303, 16, %s306, %s296
        $region36: #{tpu_custom_call.1} parent=15 // pred_fallthru
          _
      $region16: #{tpu_custom_call.1} parent=5 // pred_fallthru
        _
      %p309 = scmp.le.s32.totalorder 1, %s23
      %p310 = scmp.lt.s32.totalorder %s23, 9
      %p311 = pnand %p309, %p310
      %p312 = pneg %p311
      // Predicated region
      $region37: #{tpu_custom_call.1} parent=5 // pred_check
        _
      $region38: #{tpu_custom_call.1} parent=5 // pred_check_branch
        %314 = sbr.rel (%p311) target = $region40
      $region39: #{tpu_custom_call.1} parent=5 // pred_region
        %s315 = ssub.s32 %s23, 1
        %s316 = sand.u32 %s48, 1
        %s317 = scalar_lea.sflag [#allocation4], %s316
        %s318 = sand.u32 %s48, 1
        %s319 = smul.addr %s318, 768
        %s320 = scalar_lea.vmem [#allocation3], %s319
        // Predicated region
        $region41: #{tpu_custom_call.1} parent=39 // pred_check
          %p321 = pneg %p61
        $region42: #{tpu_custom_call.1} parent=39 // pred_check_branch
          %323 = sbr.rel (%p321) target = $region44
        $region43: #{tpu_custom_call.1} parent=39 // pred_region
          %324 = dma.done %s317, 12288
        $region44: #{tpu_custom_call.1} parent=39 // pred_fallthru
          _
        %s325 = sand.u32 %s28, 1
        %s326 = scalar_lea.sflag [#allocation7], %s325
        %s327 = sand.u32 %s74, 1
        %s328 = smul.addr %s327, 96
        %s329 = scalar_lea.vmem [#allocation6], %s328
        // Predicated region
        $region45: #{tpu_custom_call.1} parent=39 // pred_check
          %p330 = pneg %p87
        $region46: #{tpu_custom_call.1} parent=39 // pred_check_branch
          %332 = sbr.rel (%p330) target = $region48
        $region47: #{tpu_custom_call.1} parent=39 // pred_region
          %333 = dma.done %s326, 1536
        $region48: #{tpu_custom_call.1} parent=39 // pred_fallthru
          _
        %s334 = sand.u32 %s28, 1
        %s335 = scalar_lea.sflag [#allocation7], %s334
        %s336 = sand.u32 %s100, 1
        %s337 = smul.addr %s336, 96
        %s338 = scalar_lea.vmem [#allocation8], %s337
        // Predicated region
        $region49: #{tpu_custom_call.1} parent=39 // pred_check
          %p339 = pneg %p113
        $region50: #{tpu_custom_call.1} parent=39 // pred_check_branch
          %341 = sbr.rel (%p339) target = $region52
        $region51: #{tpu_custom_call.1} parent=39 // pred_region
          %342 = dma.done %s335, 1536
        $region52: #{tpu_custom_call.1} parent=39 // pred_fallthru
          _
        %s343 = sand.u32 %s28, 1
        %s344 = scalar_lea.sflag [#allocation10], %s343
        %s345 = sand.u32 %s128, 1
        %s346 = smul.addr %s345, 6144
        %s347 = scalar_lea.vmem [#allocation9], %s346
        // Predicated region
        $region53: #{tpu_custom_call.1} parent=39 // pred_check
          %p348 = pneg %p141
        $region54: #{tpu_custom_call.1} parent=39 // pred_check_branch
          %350 = sbr.rel (%p348) target = $region56
        $region55: #{tpu_custom_call.1} parent=39 // pred_region
          %351 = dma.done %s344, 98304
        $region56: #{tpu_custom_call.1} parent=39 // pred_fallthru
          _
        %s352 = sand.u32 %s28, 1
        %s353 = scalar_lea.sflag [#allocation10], %s352
        %s354 = sand.u32 %s154, 1
        %s355 = scalar_lea.vmem [#allocation11], %s354
        // Predicated region
        $region57: #{tpu_custom_call.1} parent=39 // pred_check
          %p356 = pneg %p167
        $region58: #{tpu_custom_call.1} parent=39 // pred_check_branch
          %358 = sbr.rel (%p356) target = $region60
        $region59: #{tpu_custom_call.1} parent=39 // pred_region
          %359 = dma.done %s353, 16
        $region60: #{tpu_custom_call.1} parent=39 // pred_fallthru
          _
        %s360 = sand.u32 %s48, 1
        %s361 = scalar_lea.sflag [#allocation4], %s360
        %s362 = sand.u32 %s48, 1
        %s363 = smul.addr %s362, 768
        %s364 = scalar_lea.vmem [#allocation3], %s363
        %p365 = pneg %p61
        %p366 = pneg %p58
        %s367 = sand.u32 %s28, 1
        %s368 = scalar_lea.sflag [#allocation7], %s367
        %s369 = sand.u32 %s74, 1
        %s370 = smul.addr %s369, 96
        %s371 = scalar_lea.vmem [#allocation6], %s370
        %p372 = pneg %p87
        %p373 = pneg %p84
        %s374 = sand.u32 %s28, 1
        %s375 = scalar_lea.sflag [#allocation7], %s374
        %s376 = sand.u32 %s100, 1
        %s377 = smul.addr %s376, 96
        %s378 = scalar_lea.vmem [#allocation8], %s377
        %p379 = pneg %p113
        %p380 = pneg %p110
        %s381 = sand.u32 %s28, 1
        %s382 = scalar_lea.sflag [#allocation10], %s381
        %s383 = sand.u32 %s128, 1
        %s384 = smul.addr %s383, 6144
        %s385 = scalar_lea.vmem [#allocation9], %s384
        %p386 = pneg %p141
        %p387 = pneg %p138
        %s388 = sand.u32 %s28, 1
        %s389 = scalar_lea.sflag [#allocation10], %s388
        %s390 = sand.u32 %s154, 1
        %s391 = scalar_lea.vmem [#allocation11], %s390
        %p392 = pneg %p167
        %p393 = pneg %p164
        %p394 = pneg %p193
        %p395 = pneg %p190
        %s396 = sand.u32 %s180, 1
        %s397 = scalar_lea.sflag [#allocation5], %s396
        %s398 = sand.u32 %s180, 1
        %s399 = smul.addr %s398, 8
        %s400 = scalar_lea.vmem [#allocation12], %s399
        %s401 = smul.u32 96, %s33
        %s402 = smul.u32 96, %s33
        %s403 = smul.u32 96, %s33
        %s404 = smul.u32 1536, %s33
        %p406 = scmp.eq.s32.totalorder %s33, 0
        // Predicated region
        $region61: #{tpu_custom_call.1} parent=39 // pred_check
          %p407 = pneg %p406
        $region62: #{tpu_custom_call.1} parent=39 // pred_check_branch
          %409 = sbr.rel (%p407) target = $region64
        $region63: #{tpu_custom_call.1} parent=39 // pred_region
          %410 = vst [vmem:[#allocation2] sm:$0xff] 0.0
        $region64: #{tpu_custom_call.1} parent=39 // pred_fallthru
          _
        %v411 = vld [vmem:[%s320] sm:$0xff]
        %v412 = vld [vmem:[%s320 + $0x8] sm:$0xff]
        %v413 = vld [vmem:[%s320 + $0x10] sm:$0xff]
        %v414 = vld [vmem:[%s320 + $0x18] sm:$0xff]
        %v415 = vld [vmem:[%s320 + $0x20] sm:$0xff]
        %v416 = vld [vmem:[%s320 + $0x28] sm:$0xff]
        %v417 = vld [vmem:[%s320 + $0x30] sm:$0xff]
        %v418 = vld [vmem:[%s320 + $0x38] sm:$0xff]
        %v419 = vld [vmem:[%s320 + $0x40] sm:$0xff]
        %v420 = vld [vmem:[%s320 + $0x48] sm:$0xff]
        %v421 = vld [vmem:[%s320 + $0x50] sm:$0xff]
        %v422 = vld [vmem:[%s320 + $0x58] sm:$0xff]
        %v423 = vld [vmem:[%s320 + $0x60] sm:$0xff]
        %v424 = vld [vmem:[%s320 + $0x68] sm:$0xff]
        %v425 = vld [vmem:[%s320 + $0x70] sm:$0xff]
        %v426 = vld [vmem:[%s320 + $0x78] sm:$0xff]
        %v427 = vld [vmem:[%s320 + $0x80] sm:$0xff]
        %v428 = vld [vmem:[%s320 + $0x88] sm:$0xff]
        %v429 = vld [vmem:[%s320 + $0x90] sm:$0xff]
        %v430 = vld [vmem:[%s320 + $0x98] sm:$0xff]
        %v431 = vld [vmem:[%s320 + $0xa0] sm:$0xff]
        %v432 = vld [vmem:[%s320 + $0xa8] sm:$0xff]
        %v433 = vld [vmem:[%s320 + $0xb0] sm:$0xff]
        %v434 = vld [vmem:[%s320 + $0xb8] sm:$0xff]
        %v435 = vld [vmem:[%s320 + $0xc0] sm:$0xff]
        %v436 = vld [vmem:[%s320 + $0xc8] sm:$0xff]
        %v437 = vld [vmem:[%s320 + $0xd0] sm:$0xff]
        %v438 = vld [vmem:[%s320 + $0xd8] sm:$0xff]
        %v439 = vld [vmem:[%s320 + $0xe0] sm:$0xff]
        %v440 = vld [vmem:[%s320 + $0xe8] sm:$0xff]
        %v441 = vld [vmem:[%s320 + $0xf0] sm:$0xff]
        %v442 = vld [vmem:[%s320 + $0xf8] sm:$0xff]
        %v443 = vld [vmem:[%s320 + $0x100] sm:$0xff]
        %v444 = vld [vmem:[%s320 + $0x108] sm:$0xff]
        %v445 = vld [vmem:[%s320 + $0x110] sm:$0xff]
        %v446 = vld [vmem:[%s320 + $0x118] sm:$0xff]
        %v447 = vld [vmem:[%s320 + $0x120] sm:$0xff]
        %v448 = vld [vmem:[%s320 + $0x128] sm:$0xff]
        %v449 = vld [vmem:[%s320 + $0x130] sm:$0xff]
        %v450 = vld [vmem:[%s320 + $0x138] sm:$0xff]
        %v451 = vld [vmem:[%s320 + $0x140] sm:$0xff]
        %v452 = vld [vmem:[%s320 + $0x148] sm:$0xff]
        %v453 = vld [vmem:[%s320 + $0x150] sm:$0xff]
        %v454 = vld [vmem:[%s320 + $0x158] sm:$0xff]
        %v455 = vld [vmem:[%s320 + $0x160] sm:$0xff]
        %v456 = vld [vmem:[%s320 + $0x168] sm:$0xff]
        %v457 = vld [vmem:[%s320 + $0x170] sm:$0xff]
        %v458 = vld [vmem:[%s320 + $0x178] sm:$0xff]
        %v459 = vld [vmem:[%s320 + $0x180] sm:$0xff]
        %v460 = vld [vmem:[%s320 + $0x188] sm:$0xff]
        %v461 = vld [vmem:[%s320 + $0x190] sm:$0xff]
        %v462 = vld [vmem:[%s320 + $0x198] sm:$0xff]
        %v463 = vld [vmem:[%s320 + $0x1a0] sm:$0xff]
        %v464 = vld [vmem:[%s320 + $0x1a8] sm:$0xff]
        %v465 = vld [vmem:[%s320 + $0x1b0] sm:$0xff]
        %v466 = vld [vmem:[%s320 + $0x1b8] sm:$0xff]
        %v467 = vld [vmem:[%s320 + $0x1c0] sm:$0xff]
        %v468 = vld [vmem:[%s320 + $0x1c8] sm:$0xff]
        %v469 = vld [vmem:[%s320 + $0x1d0] sm:$0xff]
        %v470 = vld [vmem:[%s320 + $0x1d8] sm:$0xff]
        %v471 = vld [vmem:[%s320 + $0x1e0] sm:$0xff]
        %v472 = vld [vmem:[%s320 + $0x1e8] sm:$0xff]
        %v473 = vld [vmem:[%s320 + $0x1f0] sm:$0xff]
        %v474 = vld [vmem:[%s320 + $0x1f8] sm:$0xff]
        %v475 = vld [vmem:[%s320 + $0x200] sm:$0xff]
        %v476 = vld [vmem:[%s320 + $0x208] sm:$0xff]
        %v477 = vld [vmem:[%s320 + $0x210] sm:$0xff]
        %v478 = vld [vmem:[%s320 + $0x218] sm:$0xff]
        %v479 = vld [vmem:[%s320 + $0x220] sm:$0xff]
        %v480 = vld [vmem:[%s320 + $0x228] sm:$0xff]
        %v481 = vld [vmem:[%s320 + $0x230] sm:$0xff]
        %v482 = vld [vmem:[%s320 + $0x238] sm:$0xff]
        %v483 = vld [vmem:[%s320 + $0x240] sm:$0xff]
        %v484 = vld [vmem:[%s320 + $0x248] sm:$0xff]
        %v485 = vld [vmem:[%s320 + $0x250] sm:$0xff]
        %v486 = vld [vmem:[%s320 + $0x258] sm:$0xff]
        %v487 = vld [vmem:[%s320 + $0x260] sm:$0xff]
        %v488 = vld [vmem:[%s320 + $0x268] sm:$0xff]
        %v489 = vld [vmem:[%s320 + $0x270] sm:$0xff]
        %v490 = vld [vmem:[%s320 + $0x278] sm:$0xff]
        %v491 = vld [vmem:[%s320 + $0x280] sm:$0xff]
        %v492 = vld [vmem:[%s320 + $0x288] sm:$0xff]
        %v493 = vld [vmem:[%s320 + $0x290] sm:$0xff]
        %v494 = vld [vmem:[%s320 + $0x298] sm:$0xff]
        %v495 = vld [vmem:[%s320 + $0x2a0] sm:$0xff]
        %v496 = vld [vmem:[%s320 + $0x2a8] sm:$0xff]
        %v497 = vld [vmem:[%s320 + $0x2b0] sm:$0xff]
        %v498 = vld [vmem:[%s320 + $0x2b8] sm:$0xff]
        %v499 = vld [vmem:[%s320 + $0x2c0] sm:$0xff]
        %v500 = vld [vmem:[%s320 + $0x2c8] sm:$0xff]
        %v501 = vld [vmem:[%s320 + $0x2d0] sm:$0xff]
        %v502 = vld [vmem:[%s320 + $0x2d8] sm:$0xff]
        %v503 = vld [vmem:[%s320 + $0x2e0] sm:$0xff]
        %v504 = vld [vmem:[%s320 + $0x2e8] sm:$0xff]
        %v505 = vld [vmem:[%s320 + $0x2f0] sm:$0xff]
        %v506 = vld [vmem:[%s320 + $0x2f8] sm:$0xff]
        %v507 = vrot.slane %v411, 4
        %v508 = vadd.f32 %v411, %v507
        %v509 = vrot.slane %v508, 2
        %v510 = vadd.f32 %v508, %v509
        %v511 = vrot.slane %v510, 1
        %v512 = vadd.f32 %v510, %v511
        %v513 = vrot.slane %v412, 4
        %v514 = vadd.f32 %v412, %v513
        %v515 = vrot.slane %v514, 2
        %v516 = vadd.f32 %v514, %v515
        %v517 = vrot.slane %v516, 1
        %v518 = vadd.f32 %v516, %v517
        %v519 = vrot.slane %v413, 4
        %v520 = vadd.f32 %v413, %v519
        %v521 = vrot.slane %v520, 2
        %v522 = vadd.f32 %v520, %v521
        %v523 = vrot.slane %v522, 1
        %v524 = vadd.f32 %v522, %v523
        %v525 = vrot.slane %v414, 4
        %v526 = vadd.f32 %v414, %v525
        %v527 = vrot.slane %v526, 2
        %v528 = vadd.f32 %v526, %v527
        %v529 = vrot.slane %v528, 1
        %v530 = vadd.f32 %v528, %v529
        %v531 = vrot.slane %v415, 4
        %v532 = vadd.f32 %v415, %v531
        %v533 = vrot.slane %v532, 2
        %v534 = vadd.f32 %v532, %v533
        %v535 = vrot.slane %v534, 1
        %v536 = vadd.f32 %v534, %v535
        %v537 = vrot.slane %v416, 4
        %v538 = vadd.f32 %v416, %v537
        %v539 = vrot.slane %v538, 2
        %v540 = vadd.f32 %v538, %v539
        %v541 = vrot.slane %v540, 1
        %v542 = vadd.f32 %v540, %v541
        %v543 = vrot.slane %v417, 4
        %v544 = vadd.f32 %v417, %v543
        %v545 = vrot.slane %v544, 2
        %v546 = vadd.f32 %v544, %v545
        %v547 = vrot.slane %v546, 1
        %v548 = vadd.f32 %v546, %v547
        %v549 = vrot.slane %v418, 4
        %v550 = vadd.f32 %v418, %v549
        %v551 = vrot.slane %v550, 2
        %v552 = vadd.f32 %v550, %v551
        %v553 = vrot.slane %v552, 1
        %v554 = vadd.f32 %v552, %v553
        %v555 = vrot.slane %v419, 4
        %v556 = vadd.f32 %v419, %v555
        %v557 = vrot.slane %v556, 2
        %v558 = vadd.f32 %v556, %v557
        %v559 = vrot.slane %v558, 1
        %v560 = vadd.f32 %v558, %v559
        %v561 = vrot.slane %v420, 4
        %v562 = vadd.f32 %v420, %v561
        %v563 = vrot.slane %v562, 2
        %v564 = vadd.f32 %v562, %v563
        %v565 = vrot.slane %v564, 1
        %v566 = vadd.f32 %v564, %v565
        %v567 = vrot.slane %v421, 4
        %v568 = vadd.f32 %v421, %v567
        %v569 = vrot.slane %v568, 2
        %v570 = vadd.f32 %v568, %v569
        %v571 = vrot.slane %v570, 1
        %v572 = vadd.f32 %v570, %v571
        %v573 = vrot.slane %v422, 4
        %v574 = vadd.f32 %v422, %v573
        %v575 = vrot.slane %v574, 2
        %v576 = vadd.f32 %v574, %v575
        %v577 = vrot.slane %v576, 1
        %v578 = vadd.f32 %v576, %v577
        %v579 = vrot.slane %v423, 4
        %v580 = vadd.f32 %v423, %v579
        %v581 = vrot.slane %v580, 2
        %v582 = vadd.f32 %v580, %v581
        %v583 = vrot.slane %v582, 1
        %v584 = vadd.f32 %v582, %v583
        %v585 = vrot.slane %v424, 4
        %v586 = vadd.f32 %v424, %v585
        %v587 = vrot.slane %v586, 2
        %v588 = vadd.f32 %v586, %v587
        %v589 = vrot.slane %v588, 1
        %v590 = vadd.f32 %v588, %v589
        %v591 = vrot.slane %v425, 4
        %v592 = vadd.f32 %v425, %v591
        %v593 = vrot.slane %v592, 2
        %v594 = vadd.f32 %v592, %v593
        %v595 = vrot.slane %v594, 1
        %v596 = vadd.f32 %v594, %v595
        %v597 = vrot.slane %v426, 4
        %v598 = vadd.f32 %v426, %v597
        %v599 = vrot.slane %v598, 2
        %v600 = vadd.f32 %v598, %v599
        %v601 = vrot.slane %v600, 1
        %v602 = vadd.f32 %v600, %v601
        %v603 = vrot.slane %v427, 4
        %v604 = vadd.f32 %v427, %v603
        %v605 = vrot.slane %v604, 2
        %v606 = vadd.f32 %v604, %v605
        %v607 = vrot.slane %v606, 1
        %v608 = vadd.f32 %v606, %v607
        %v609 = vrot.slane %v428, 4
        %v610 = vadd.f32 %v428, %v609
        %v611 = vrot.slane %v610, 2
        %v612 = vadd.f32 %v610, %v611
        %v613 = vrot.slane %v612, 1
        %v614 = vadd.f32 %v612, %v613
        %v615 = vrot.slane %v429, 4
        %v616 = vadd.f32 %v429, %v615
        %v617 = vrot.slane %v616, 2
        %v618 = vadd.f32 %v616, %v617
        %v619 = vrot.slane %v618, 1
        %v620 = vadd.f32 %v618, %v619
        %v621 = vrot.slane %v430, 4
        %v622 = vadd.f32 %v430, %v621
        %v623 = vrot.slane %v622, 2
        %v624 = vadd.f32 %v622, %v623
        %v625 = vrot.slane %v624, 1
        %v626 = vadd.f32 %v624, %v625
        %v627 = vrot.slane %v431, 4
        %v628 = vadd.f32 %v431, %v627
        %v629 = vrot.slane %v628, 2
        %v630 = vadd.f32 %v628, %v629
        %v631 = vrot.slane %v630, 1
        %v632 = vadd.f32 %v630, %v631
        %v633 = vrot.slane %v432, 4
        %v634 = vadd.f32 %v432, %v633
        %v635 = vrot.slane %v634, 2
        %v636 = vadd.f32 %v634, %v635
        %v637 = vrot.slane %v636, 1
        %v638 = vadd.f32 %v636, %v637
        %v639 = vrot.slane %v433, 4
        %v640 = vadd.f32 %v433, %v639
        %v641 = vrot.slane %v640, 2
        %v642 = vadd.f32 %v640, %v641
        %v643 = vrot.slane %v642, 1
        %v644 = vadd.f32 %v642, %v643
        %v645 = vrot.slane %v434, 4
        %v646 = vadd.f32 %v434, %v645
        %v647 = vrot.slane %v646, 2
        %v648 = vadd.f32 %v646, %v647
        %v649 = vrot.slane %v648, 1
        %v650 = vadd.f32 %v648, %v649
        %v651 = vrot.slane %v435, 4
        %v652 = vadd.f32 %v435, %v651
        %v653 = vrot.slane %v652, 2
        %v654 = vadd.f32 %v652, %v653
        %v655 = vrot.slane %v654, 1
        %v656 = vadd.f32 %v654, %v655
        %v657 = vrot.slane %v436, 4
        %v658 = vadd.f32 %v436, %v657
        %v659 = vrot.slane %v658, 2
        %v660 = vadd.f32 %v658, %v659
        %v661 = vrot.slane %v660, 1
        %v662 = vadd.f32 %v660, %v661
        %v663 = vrot.slane %v437, 4
        %v664 = vadd.f32 %v437, %v663
        %v665 = vrot.slane %v664, 2
        %v666 = vadd.f32 %v664, %v665
        %v667 = vrot.slane %v666, 1
        %v668 = vadd.f32 %v666, %v667
        %v669 = vrot.slane %v438, 4
        %v670 = vadd.f32 %v438, %v669
        %v671 = vrot.slane %v670, 2
        %v672 = vadd.f32 %v670, %v671
        %v673 = vrot.slane %v672, 1
        %v674 = vadd.f32 %v672, %v673
        %v675 = vrot.slane %v439, 4
        %v676 = vadd.f32 %v439, %v675
        %v677 = vrot.slane %v676, 2
        %v678 = vadd.f32 %v676, %v677
        %v679 = vrot.slane %v678, 1
        %v680 = vadd.f32 %v678, %v679
        %v681 = vrot.slane %v440, 4
        %v682 = vadd.f32 %v440, %v681
        %v683 = vrot.slane %v682, 2
        %v684 = vadd.f32 %v682, %v683
        %v685 = vrot.slane %v684, 1
        %v686 = vadd.f32 %v684, %v685
        %v687 = vrot.slane %v441, 4
        %v688 = vadd.f32 %v441, %v687
        %v689 = vrot.slane %v688, 2
        %v690 = vadd.f32 %v688, %v689
        %v691 = vrot.slane %v690, 1
        %v692 = vadd.f32 %v690, %v691
        %v693 = vrot.slane %v442, 4
        %v694 = vadd.f32 %v442, %v693
        %v695 = vrot.slane %v694, 2
        %v696 = vadd.f32 %v694, %v695
        %v697 = vrot.slane %v696, 1
        %v698 = vadd.f32 %v696, %v697
        %v699 = vrot.slane %v443, 4
        %v700 = vadd.f32 %v443, %v699
        %v701 = vrot.slane %v700, 2
        %v702 = vadd.f32 %v700, %v701
        %v703 = vrot.slane %v702, 1
        %v704 = vadd.f32 %v702, %v703
        %v705 = vrot.slane %v444, 4
        %v706 = vadd.f32 %v444, %v705
        %v707 = vrot.slane %v706, 2
        %v708 = vadd.f32 %v706, %v707
        %v709 = vrot.slane %v708, 1
        %v710 = vadd.f32 %v708, %v709
        %v711 = vrot.slane %v445, 4
        %v712 = vadd.f32 %v445, %v711
        %v713 = vrot.slane %v712, 2
        %v714 = vadd.f32 %v712, %v713
        %v715 = vrot.slane %v714, 1
        %v716 = vadd.f32 %v714, %v715
        %v717 = vrot.slane %v446, 4
        %v718 = vadd.f32 %v446, %v717
        %v719 = vrot.slane %v718, 2
        %v720 = vadd.f32 %v718, %v719
        %v721 = vrot.slane %v720, 1
        %v722 = vadd.f32 %v720, %v721
        %v723 = vrot.slane %v447, 4
        %v724 = vadd.f32 %v447, %v723
        %v725 = vrot.slane %v724, 2
        %v726 = vadd.f32 %v724, %v725
        %v727 = vrot.slane %v726, 1
        %v728 = vadd.f32 %v726, %v727
        %v729 = vrot.slane %v448, 4
        %v730 = vadd.f32 %v448, %v729
        %v731 = vrot.slane %v730, 2
        %v732 = vadd.f32 %v730, %v731
        %v733 = vrot.slane %v732, 1
        %v734 = vadd.f32 %v732, %v733
        %v735 = vrot.slane %v449, 4
        %v736 = vadd.f32 %v449, %v735
        %v737 = vrot.slane %v736, 2
        %v738 = vadd.f32 %v736, %v737
        %v739 = vrot.slane %v738, 1
        %v740 = vadd.f32 %v738, %v739
        %v741 = vrot.slane %v450, 4
        %v742 = vadd.f32 %v450, %v741
        %v743 = vrot.slane %v742, 2
        %v744 = vadd.f32 %v742, %v743
        %v745 = vrot.slane %v744, 1
        %v746 = vadd.f32 %v744, %v745
        %v747 = vrot.slane %v451, 4
        %v748 = vadd.f32 %v451, %v747
        %v749 = vrot.slane %v748, 2
        %v750 = vadd.f32 %v748, %v749
        %v751 = vrot.slane %v750, 1
        %v752 = vadd.f32 %v750, %v751
        %v753 = vrot.slane %v452, 4
        %v754 = vadd.f32 %v452, %v753
        %v755 = vrot.slane %v754, 2
        %v756 = vadd.f32 %v754, %v755
        %v757 = vrot.slane %v756, 1
        %v758 = vadd.f32 %v756, %v757
        %v759 = vrot.slane %v453, 4
        %v760 = vadd.f32 %v453, %v759
        %v761 = vrot.slane %v760, 2
        %v762 = vadd.f32 %v760, %v761
        %v763 = vrot.slane %v762, 1
        %v764 = vadd.f32 %v762, %v763
        %v765 = vrot.slane %v454, 4
        %v766 = vadd.f32 %v454, %v765
        %v767 = vrot.slane %v766, 2
        %v768 = vadd.f32 %v766, %v767
        %v769 = vrot.slane %v768, 1
        %v770 = vadd.f32 %v768, %v769
        %v771 = vrot.slane %v455, 4
        %v772 = vadd.f32 %v455, %v771
        %v773 = vrot.slane %v772, 2
        %v774 = vadd.f32 %v772, %v773
        %v775 = vrot.slane %v774, 1
        %v776 = vadd.f32 %v774, %v775
        %v777 = vrot.slane %v456, 4
        %v778 = vadd.f32 %v456, %v777
        %v779 = vrot.slane %v778, 2
        %v780 = vadd.f32 %v778, %v779
        %v781 = vrot.slane %v780, 1
        %v782 = vadd.f32 %v780, %v781
        %v783 = vrot.slane %v457, 4
        %v784 = vadd.f32 %v457, %v783
        %v785 = vrot.slane %v784, 2
        %v786 = vadd.f32 %v784, %v785
        %v787 = vrot.slane %v786, 1
        %v788 = vadd.f32 %v786, %v787
        %v789 = vrot.slane %v458, 4
        %v790 = vadd.f32 %v458, %v789
        %v791 = vrot.slane %v790, 2
        %v792 = vadd.f32 %v790, %v791
        %v793 = vrot.slane %v792, 1
        %v794 = vadd.f32 %v792, %v793
        %v795 = vrot.slane %v459, 4
        %v796 = vadd.f32 %v459, %v795
        %v797 = vrot.slane %v796, 2
        %v798 = vadd.f32 %v796, %v797
        %v799 = vrot.slane %v798, 1
        %v800 = vadd.f32 %v798, %v799
        %v801 = vrot.slane %v460, 4
        %v802 = vadd.f32 %v460, %v801
        %v803 = vrot.slane %v802, 2
        %v804 = vadd.f32 %v802, %v803
        %v805 = vrot.slane %v804, 1
        %v806 = vadd.f32 %v804, %v805
        %v807 = vrot.slane %v461, 4
        %v808 = vadd.f32 %v461, %v807
        %v809 = vrot.slane %v808, 2
        %v810 = vadd.f32 %v808, %v809
        %v811 = vrot.slane %v810, 1
        %v812 = vadd.f32 %v810, %v811
        %v813 = vrot.slane %v462, 4
        %v814 = vadd.f32 %v462, %v813
        %v815 = vrot.slane %v814, 2
        %v816 = vadd.f32 %v814, %v815
        %v817 = vrot.slane %v816, 1
        %v818 = vadd.f32 %v816, %v817
        %v819 = vrot.slane %v463, 4
        %v820 = vadd.f32 %v463, %v819
        %v821 = vrot.slane %v820, 2
        %v822 = vadd.f32 %v820, %v821
        %v823 = vrot.slane %v822, 1
        %v824 = vadd.f32 %v822, %v823
        %v825 = vrot.slane %v464, 4
        %v826 = vadd.f32 %v464, %v825
        %v827 = vrot.slane %v826, 2
        %v828 = vadd.f32 %v826, %v827
        %v829 = vrot.slane %v828, 1
        %v830 = vadd.f32 %v828, %v829
        %v831 = vrot.slane %v465, 4
        %v832 = vadd.f32 %v465, %v831
        %v833 = vrot.slane %v832, 2
        %v834 = vadd.f32 %v832, %v833
        %v835 = vrot.slane %v834, 1
        %v836 = vadd.f32 %v834, %v835
        %v837 = vrot.slane %v466, 4
        %v838 = vadd.f32 %v466, %v837
        %v839 = vrot.slane %v838, 2
        %v840 = vadd.f32 %v838, %v839
        %v841 = vrot.slane %v840, 1
        %v842 = vadd.f32 %v840, %v841
        %v843 = vrot.slane %v467, 4
        %v844 = vadd.f32 %v467, %v843
        %v845 = vrot.slane %v844, 2
        %v846 = vadd.f32 %v844, %v845
        %v847 = vrot.slane %v846, 1
        %v848 = vadd.f32 %v846, %v847
        %v849 = vrot.slane %v468, 4
        %v850 = vadd.f32 %v468, %v849
        %v851 = vrot.slane %v850, 2
        %v852 = vadd.f32 %v850, %v851
        %v853 = vrot.slane %v852, 1
        %v854 = vadd.f32 %v852, %v853
        %v855 = vrot.slane %v469, 4
        %v856 = vadd.f32 %v469, %v855
        %v857 = vrot.slane %v856, 2
        %v858 = vadd.f32 %v856, %v857
        %v859 = vrot.slane %v858, 1
        %v860 = vadd.f32 %v858, %v859
        %v861 = vrot.slane %v470, 4
        %v862 = vadd.f32 %v470, %v861
        %v863 = vrot.slane %v862, 2
        %v864 = vadd.f32 %v862, %v863
        %v865 = vrot.slane %v864, 1
        %v866 = vadd.f32 %v864, %v865
        %v867 = vrot.slane %v471, 4
        %v868 = vadd.f32 %v471, %v867
        %v869 = vrot.slane %v868, 2
        %v870 = vadd.f32 %v868, %v869
        %v871 = vrot.slane %v870, 1
        %v872 = vadd.f32 %v870, %v871
        %v873 = vrot.slane %v472, 4
        %v874 = vadd.f32 %v472, %v873
        %v875 = vrot.slane %v874, 2
        %v876 = vadd.f32 %v874, %v875
        %v877 = vrot.slane %v876, 1
        %v878 = vadd.f32 %v876, %v877
        %v879 = vrot.slane %v473, 4
        %v880 = vadd.f32 %v473, %v879
        %v881 = vrot.slane %v880, 2
        %v882 = vadd.f32 %v880, %v881
        %v883 = vrot.slane %v882, 1
        %v884 = vadd.f32 %v882, %v883
        %v885 = vrot.slane %v474, 4
        %v886 = vadd.f32 %v474, %v885
        %v887 = vrot.slane %v886, 2
        %v888 = vadd.f32 %v886, %v887
        %v889 = vrot.slane %v888, 1
        %v890 = vadd.f32 %v888, %v889
        %v891 = vrot.slane %v475, 4
        %v892 = vadd.f32 %v475, %v891
        %v893 = vrot.slane %v892, 2
        %v894 = vadd.f32 %v892, %v893
        %v895 = vrot.slane %v894, 1
        %v896 = vadd.f32 %v894, %v895
        %v897 = vrot.slane %v476, 4
        %v898 = vadd.f32 %v476, %v897
        %v899 = vrot.slane %v898, 2
        %v900 = vadd.f32 %v898, %v899
        %v901 = vrot.slane %v900, 1
        %v902 = vadd.f32 %v900, %v901
        %v903 = vrot.slane %v477, 4
        %v904 = vadd.f32 %v477, %v903
        %v905 = vrot.slane %v904, 2
        %v906 = vadd.f32 %v904, %v905
        %v907 = vrot.slane %v906, 1
        %v908 = vadd.f32 %v906, %v907
        %v909 = vrot.slane %v478, 4
        %v910 = vadd.f32 %v478, %v909
        %v911 = vrot.slane %v910, 2
        %v912 = vadd.f32 %v910, %v911
        %v913 = vrot.slane %v912, 1
        %v914 = vadd.f32 %v912, %v913
        %v915 = vrot.slane %v479, 4
        %v916 = vadd.f32 %v479, %v915
        %v917 = vrot.slane %v916, 2
        %v918 = vadd.f32 %v916, %v917
        %v919 = vrot.slane %v918, 1
        %v920 = vadd.f32 %v918, %v919
        %v921 = vrot.slane %v480, 4
        %v922 = vadd.f32 %v480, %v921
        %v923 = vrot.slane %v922, 2
        %v924 = vadd.f32 %v922, %v923
        %v925 = vrot.slane %v924, 1
        %v926 = vadd.f32 %v924, %v925
        %v927 = vrot.slane %v481, 4
        %v928 = vadd.f32 %v481, %v927
        %v929 = vrot.slane %v928, 2
        %v930 = vadd.f32 %v928, %v929
        %v931 = vrot.slane %v930, 1
        %v932 = vadd.f32 %v930, %v931
        %v933 = vrot.slane %v482, 4
        %v934 = vadd.f32 %v482, %v933
        %v935 = vrot.slane %v934, 2
        %v936 = vadd.f32 %v934, %v935
        %v937 = vrot.slane %v936, 1
        %v938 = vadd.f32 %v936, %v937
        %v939 = vrot.slane %v483, 4
        %v940 = vadd.f32 %v483, %v939
        %v941 = vrot.slane %v940, 2
        %v942 = vadd.f32 %v940, %v941
        %v943 = vrot.slane %v942, 1
        %v944 = vadd.f32 %v942, %v943
        %v945 = vrot.slane %v484, 4
        %v946 = vadd.f32 %v484, %v945
        %v947 = vrot.slane %v946, 2
        %v948 = vadd.f32 %v946, %v947
        %v949 = vrot.slane %v948, 1
        %v950 = vadd.f32 %v948, %v949
        %v951 = vrot.slane %v485, 4
        %v952 = vadd.f32 %v485, %v951
        %v953 = vrot.slane %v952, 2
        %v954 = vadd.f32 %v952, %v953
        %v955 = vrot.slane %v954, 1
        %v956 = vadd.f32 %v954, %v955
        %v957 = vrot.slane %v486, 4
        %v958 = vadd.f32 %v486, %v957
        %v959 = vrot.slane %v958, 2
        %v960 = vadd.f32 %v958, %v959
        %v961 = vrot.slane %v960, 1
        %v962 = vadd.f32 %v960, %v961
        %v963 = vrot.slane %v487, 4
        %v964 = vadd.f32 %v487, %v963
        %v965 = vrot.slane %v964, 2
        %v966 = vadd.f32 %v964, %v965
        %v967 = vrot.slane %v966, 1
        %v968 = vadd.f32 %v966, %v967
        %v969 = vrot.slane %v488, 4
        %v970 = vadd.f32 %v488, %v969
        %v971 = vrot.slane %v970, 2
        %v972 = vadd.f32 %v970, %v971
        %v973 = vrot.slane %v972, 1
        %v974 = vadd.f32 %v972, %v973
        %v975 = vrot.slane %v489, 4
        %v976 = vadd.f32 %v489, %v975
        %v977 = vrot.slane %v976, 2
        %v978 = vadd.f32 %v976, %v977
        %v979 = vrot.slane %v978, 1
        %v980 = vadd.f32 %v978, %v979
        %v981 = vrot.slane %v490, 4
        %v982 = vadd.f32 %v490, %v981
        %v983 = vrot.slane %v982, 2
        %v984 = vadd.f32 %v982, %v983
        %v985 = vrot.slane %v984, 1
        %v986 = vadd.f32 %v984, %v985
        %v987 = vrot.slane %v491, 4
        %v988 = vadd.f32 %v491, %v987
        %v989 = vrot.slane %v988, 2
        %v990 = vadd.f32 %v988, %v989
        %v991 = vrot.slane %v990, 1
        %v992 = vadd.f32 %v990, %v991
        %v993 = vrot.slane %v492, 4
        %v994 = vadd.f32 %v492, %v993
        %v995 = vrot.slane %v994, 2
        %v996 = vadd.f32 %v994, %v995
        %v997 = vrot.slane %v996, 1
        %v998 = vadd.f32 %v996, %v997
        %v999 = vrot.slane %v493, 4
        %v1000 = vadd.f32 %v493, %v999
        %v1001 = vrot.slane %v1000, 2
        %v1002 = vadd.f32 %v1000, %v1001
        %v1003 = vrot.slane %v1002, 1
        %v1004 = vadd.f32 %v1002, %v1003
        %v1005 = vrot.slane %v494, 4
        %v1006 = vadd.f32 %v494, %v1005
        %v1007 = vrot.slane %v1006, 2
        %v1008 = vadd.f32 %v1006, %v1007
        %v1009 = vrot.slane %v1008, 1
        %v1010 = vadd.f32 %v1008, %v1009
        %v1011 = vrot.slane %v495, 4
        %v1012 = vadd.f32 %v495, %v1011
        %v1013 = vrot.slane %v1012, 2
        %v1014 = vadd.f32 %v1012, %v1013
        %v1015 = vrot.slane %v1014, 1
        %v1016 = vadd.f32 %v1014, %v1015
        %v1017 = vrot.slane %v496, 4
        %v1018 = vadd.f32 %v496, %v1017
        %v1019 = vrot.slane %v1018, 2
        %v1020 = vadd.f32 %v1018, %v1019
        %v1021 = vrot.slane %v1020, 1
        %v1022 = vadd.f32 %v1020, %v1021
        %v1023 = vrot.slane %v497, 4
        %v1024 = vadd.f32 %v497, %v1023
        %v1025 = vrot.slane %v1024, 2
        %v1026 = vadd.f32 %v1024, %v1025
        %v1027 = vrot.slane %v1026, 1
        %v1028 = vadd.f32 %v1026, %v1027
        %v1029 = vrot.slane %v498, 4
        %v1030 = vadd.f32 %v498, %v1029
        %v1031 = vrot.slane %v1030, 2
        %v1032 = vadd.f32 %v1030, %v1031
        %v1033 = vrot.slane %v1032, 1
        %v1034 = vadd.f32 %v1032, %v1033
        %v1035 = vrot.slane %v499, 4
        %v1036 = vadd.f32 %v499, %v1035
        %v1037 = vrot.slane %v1036, 2
        %v1038 = vadd.f32 %v1036, %v1037
        %v1039 = vrot.slane %v1038, 1
        %v1040 = vadd.f32 %v1038, %v1039
        %v1041 = vrot.slane %v500, 4
        %v1042 = vadd.f32 %v500, %v1041
        %v1043 = vrot.slane %v1042, 2
        %v1044 = vadd.f32 %v1042, %v1043
        %v1045 = vrot.slane %v1044, 1
        %v1046 = vadd.f32 %v1044, %v1045
        %v1047 = vrot.slane %v501, 4
        %v1048 = vadd.f32 %v501, %v1047
        %v1049 = vrot.slane %v1048, 2
        %v1050 = vadd.f32 %v1048, %v1049
        %v1051 = vrot.slane %v1050, 1
        %v1052 = vadd.f32 %v1050, %v1051
        %v1053 = vrot.slane %v502, 4
        %v1054 = vadd.f32 %v502, %v1053
        %v1055 = vrot.slane %v1054, 2
        %v1056 = vadd.f32 %v1054, %v1055
        %v1057 = vrot.slane %v1056, 1
        %v1058 = vadd.f32 %v1056, %v1057
        %v1059 = vrot.slane %v503, 4
        %v1060 = vadd.f32 %v503, %v1059
        %v1061 = vrot.slane %v1060, 2
        %v1062 = vadd.f32 %v1060, %v1061
        %v1063 = vrot.slane %v1062, 1
        %v1064 = vadd.f32 %v1062, %v1063
        %v1065 = vrot.slane %v504, 4
        %v1066 = vadd.f32 %v504, %v1065
        %v1067 = vrot.slane %v1066, 2
        %v1068 = vadd.f32 %v1066, %v1067
        %v1069 = vrot.slane %v1068, 1
        %v1070 = vadd.f32 %v1068, %v1069
        %v1071 = vrot.slane %v505, 4
        %v1072 = vadd.f32 %v505, %v1071
        %v1073 = vrot.slane %v1072, 2
        %v1074 = vadd.f32 %v1072, %v1073
        %v1075 = vrot.slane %v1074, 1
        %v1076 = vadd.f32 %v1074, %v1075
        %v1077 = vrot.slane %v506, 4
        %v1078 = vadd.f32 %v506, %v1077
        %v1079 = vrot.slane %v1078, 2
        %v1080 = vadd.f32 %v1078, %v1079
        %v1081 = vrot.slane %v1080, 1
        %v1082 = vadd.f32 %v1080, %v1081
        %v1083 = vrcp.pop 8.0
        %v1084 = vmul.f32 %v512, %v1083
        %v1085 = vmul.f32 %v518, %v1083
        %v1086 = vmul.f32 %v524, %v1083
        %v1087 = vmul.f32 %v530, %v1083
        %v1088 = vmul.f32 %v536, %v1083
        %v1089 = vmul.f32 %v542, %v1083
        %v1090 = vmul.f32 %v548, %v1083
        %v1091 = vmul.f32 %v554, %v1083
        %v1092 = vmul.f32 %v560, %v1083
        %v1093 = vmul.f32 %v566, %v1083
        %v1094 = vmul.f32 %v572, %v1083
        %v1095 = vmul.f32 %v578, %v1083
        %v1096 = vmul.f32 %v584, %v1083
        %v1097 = vmul.f32 %v590, %v1083
        %v1098 = vmul.f32 %v596, %v1083
        %v1099 = vmul.f32 %v602, %v1083
        %v1100 = vmul.f32 %v608, %v1083
        %v1101 = vmul.f32 %v614, %v1083
        %v1102 = vmul.f32 %v620, %v1083
        %v1103 = vmul.f32 %v626, %v1083
        %v1104 = vmul.f32 %v632, %v1083
        %v1105 = vmul.f32 %v638, %v1083
        %v1106 = vmul.f32 %v644, %v1083
        %v1107 = vmul.f32 %v650, %v1083
        %v1108 = vmul.f32 %v656, %v1083
        %v1109 = vmul.f32 %v662, %v1083
        %v1110 = vmul.f32 %v668, %v1083
        %v1111 = vmul.f32 %v674, %v1083
        %v1112 = vmul.f32 %v680, %v1083
        %v1113 = vmul.f32 %v686, %v1083
        %v1114 = vmul.f32 %v692, %v1083
        %v1115 = vmul.f32 %v698, %v1083
        %v1116 = vmul.f32 %v704, %v1083
        %v1117 = vmul.f32 %v710, %v1083
        %v1118 = vmul.f32 %v716, %v1083
        %v1119 = vmul.f32 %v722, %v1083
        %v1120 = vmul.f32 %v728, %v1083
        %v1121 = vmul.f32 %v734, %v1083
        %v1122 = vmul.f32 %v740, %v1083
        %v1123 = vmul.f32 %v746, %v1083
        %v1124 = vmul.f32 %v752, %v1083
        %v1125 = vmul.f32 %v758, %v1083
        %v1126 = vmul.f32 %v764, %v1083
        %v1127 = vmul.f32 %v770, %v1083
        %v1128 = vmul.f32 %v776, %v1083
        %v1129 = vmul.f32 %v782, %v1083
        %v1130 = vmul.f32 %v788, %v1083
        %v1131 = vmul.f32 %v794, %v1083
        %v1132 = vmul.f32 %v800, %v1083
        %v1133 = vmul.f32 %v806, %v1083
        %v1134 = vmul.f32 %v812, %v1083
        %v1135 = vmul.f32 %v818, %v1083
        %v1136 = vmul.f32 %v824, %v1083
        %v1137 = vmul.f32 %v830, %v1083
        %v1138 = vmul.f32 %v836, %v1083
        %v1139 = vmul.f32 %v842, %v1083
        %v1140 = vmul.f32 %v848, %v1083
        %v1141 = vmul.f32 %v854, %v1083
        %v1142 = vmul.f32 %v860, %v1083
        %v1143 = vmul.f32 %v866, %v1083
        %v1144 = vmul.f32 %v872, %v1083
        %v1145 = vmul.f32 %v878, %v1083
        %v1146 = vmul.f32 %v884, %v1083
        %v1147 = vmul.f32 %v890, %v1083
        %v1148 = vmul.f32 %v896, %v1083
        %v1149 = vmul.f32 %v902, %v1083
        %v1150 = vmul.f32 %v908, %v1083
        %v1151 = vmul.f32 %v914, %v1083
        %v1152 = vmul.f32 %v920, %v1083
        %v1153 = vmul.f32 %v926, %v1083
        %v1154 = vmul.f32 %v932, %v1083
        %v1155 = vmul.f32 %v938, %v1083
        %v1156 = vmul.f32 %v944, %v1083
        %v1157 = vmul.f32 %v950, %v1083
        %v1158 = vmul.f32 %v956, %v1083
        %v1159 = vmul.f32 %v962, %v1083
        %v1160 = vmul.f32 %v968, %v1083
        %v1161 = vmul.f32 %v974, %v1083
        %v1162 = vmul.f32 %v980, %v1083
        %v1163 = vmul.f32 %v986, %v1083
        %v1164 = vmul.f32 %v992, %v1083
        %v1165 = vmul.f32 %v998, %v1083
        %v1166 = vmul.f32 %v1004, %v1083
        %v1167 = vmul.f32 %v1010, %v1083
        %v1168 = vmul.f32 %v1016, %v1083
        %v1169 = vmul.f32 %v1022, %v1083
        %v1170 = vmul.f32 %v1028, %v1083
        %v1171 = vmul.f32 %v1034, %v1083
        %v1172 = vmul.f32 %v1040, %v1083
        %v1173 = vmul.f32 %v1046, %v1083
        %v1174 = vmul.f32 %v1052, %v1083
        %v1175 = vmul.f32 %v1058, %v1083
        %v1176 = vmul.f32 %v1064, %v1083
        %v1177 = vmul.f32 %v1070, %v1083
        %v1178 = vmul.f32 %v1076, %v1083
        %v1179 = vmul.f32 %v1082, %v1083
        %v1180 = vsub.f32 %v411, %v1084
        %v1181 = vsub.f32 %v412, %v1085
        %v1182 = vsub.f32 %v413, %v1086
        %v1183 = vsub.f32 %v414, %v1087
        %v1184 = vsub.f32 %v415, %v1088
        %v1185 = vsub.f32 %v416, %v1089
        %v1186 = vsub.f32 %v417, %v1090
        %v1187 = vsub.f32 %v418, %v1091
        %v1188 = vsub.f32 %v419, %v1092
        %v1189 = vsub.f32 %v420, %v1093
        %v1190 = vsub.f32 %v421, %v1094
        %v1191 = vsub.f32 %v422, %v1095
        %v1192 = vsub.f32 %v423, %v1096
        %v1193 = vsub.f32 %v424, %v1097
        %v1194 = vsub.f32 %v425, %v1098
        %v1195 = vsub.f32 %v426, %v1099
        %v1196 = vsub.f32 %v427, %v1100
        %v1197 = vsub.f32 %v428, %v1101
        %v1198 = vsub.f32 %v429, %v1102
        %v1199 = vsub.f32 %v430, %v1103
        %v1200 = vsub.f32 %v431, %v1104
        %v1201 = vsub.f32 %v432, %v1105
        %v1202 = vsub.f32 %v433, %v1106
        %v1203 = vsub.f32 %v434, %v1107
        %v1204 = vsub.f32 %v435, %v1108
        %v1205 = vsub.f32 %v436, %v1109
        %v1206 = vsub.f32 %v437, %v1110
        %v1207 = vsub.f32 %v438, %v1111
        %v1208 = vsub.f32 %v439, %v1112
        %v1209 = vsub.f32 %v440, %v1113
        %v1210 = vsub.f32 %v441, %v1114
        %v1211 = vsub.f32 %v442, %v1115
        %v1212 = vsub.f32 %v443, %v1116
        %v1213 = vsub.f32 %v444, %v1117
        %v1214 = vsub.f32 %v445, %v1118
        %v1215 = vsub.f32 %v446, %v1119
        %v1216 = vsub.f32 %v447, %v1120
        %v1217 = vsub.f32 %v448, %v1121
        %v1218 = vsub.f32 %v449, %v1122
        %v1219 = vsub.f32 %v450, %v1123
        %v1220 = vsub.f32 %v451, %v1124
        %v1221 = vsub.f32 %v452, %v1125
        %v1222 = vsub.f32 %v453, %v1126
        %v1223 = vsub.f32 %v454, %v1127
        %v1224 = vsub.f32 %v455, %v1128
        %v1225 = vsub.f32 %v456, %v1129
        %v1226 = vsub.f32 %v457, %v1130
        %v1227 = vsub.f32 %v458, %v1131
        %v1228 = vsub.f32 %v459, %v1132
        %v1229 = vsub.f32 %v460, %v1133
        %v1230 = vsub.f32 %v461, %v1134
        %v1231 = vsub.f32 %v462, %v1135
        %v1232 = vsub.f32 %v463, %v1136
        %v1233 = vsub.f32 %v464, %v1137
        %v1234 = vsub.f32 %v465, %v1138
        %v1235 = vsub.f32 %v466, %v1139
        %v1236 = vsub.f32 %v467, %v1140
        %v1237 = vsub.f32 %v468, %v1141
        %v1238 = vsub.f32 %v469, %v1142
        %v1239 = vsub.f32 %v470, %v1143
        %v1240 = vsub.f32 %v471, %v1144
        %v1241 = vsub.f32 %v472, %v1145
        %v1242 = vsub.f32 %v473, %v1146
        %v1243 = vsub.f32 %v474, %v1147
        %v1244 = vsub.f32 %v475, %v1148
        %v1245 = vsub.f32 %v476, %v1149
        %v1246 = vsub.f32 %v477, %v1150
        %v1247 = vsub.f32 %v478, %v1151
        %v1248 = vsub.f32 %v479, %v1152
        %v1249 = vsub.f32 %v480, %v1153
        %v1250 = vsub.f32 %v481, %v1154
        %v1251 = vsub.f32 %v482, %v1155
        %v1252 = vsub.f32 %v483, %v1156
        %v1253 = vsub.f32 %v484, %v1157
        %v1254 = vsub.f32 %v485, %v1158
        %v1255 = vsub.f32 %v486, %v1159
        %v1256 = vsub.f32 %v487, %v1160
        %v1257 = vsub.f32 %v488, %v1161
        %v1258 = vsub.f32 %v489, %v1162
        %v1259 = vsub.f32 %v490, %v1163
        %v1260 = vsub.f32 %v491, %v1164
        %v1261 = vsub.f32 %v492, %v1165
        %v1262 = vsub.f32 %v493, %v1166
        %v1263 = vsub.f32 %v494, %v1167
        %v1264 = vsub.f32 %v495, %v1168
        %v1265 = vsub.f32 %v496, %v1169
        %v1266 = vsub.f32 %v497, %v1170
        %v1267 = vsub.f32 %v498, %v1171
        %v1268 = vsub.f32 %v499, %v1172
        %v1269 = vsub.f32 %v500, %v1173
        %v1270 = vsub.f32 %v501, %v1174
        %v1271 = vsub.f32 %v502, %v1175
        %v1272 = vsub.f32 %v503, %v1176
        %v1273 = vsub.f32 %v504, %v1177
        %v1274 = vsub.f32 %v505, %v1178
        %v1275 = vsub.f32 %v506, %v1179
        %v1276 = vmul.f32 %v1180, %v1180
        %v1277 = vmul.f32 %v1181, %v1181
        %v1278 = vmul.f32 %v1182, %v1182
        %v1279 = vmul.f32 %v1183, %v1183
        %v1280 = vmul.f32 %v1184, %v1184
        %v1281 = vmul.f32 %v1185, %v1185
        %v1282 = vmul.f32 %v1186, %v1186
        %v1283 = vmul.f32 %v1187, %v1187
        %v1284 = vmul.f32 %v1188, %v1188
        %v1285 = vmul.f32 %v1189, %v1189
        %v1286 = vmul.f32 %v1190, %v1190
        %v1287 = vmul.f32 %v1191, %v1191
        %v1288 = vmul.f32 %v1192, %v1192
        %v1289 = vmul.f32 %v1193, %v1193
        %v1290 = vmul.f32 %v1194, %v1194
        %v1291 = vmul.f32 %v1195, %v1195
        %v1292 = vmul.f32 %v1196, %v1196
        %v1293 = vmul.f32 %v1197, %v1197
        %v1294 = vmul.f32 %v1198, %v1198
        %v1295 = vmul.f32 %v1199, %v1199
        %v1296 = vmul.f32 %v1200, %v1200
        %v1297 = vmul.f32 %v1201, %v1201
        %v1298 = vmul.f32 %v1202, %v1202
        %v1299 = vmul.f32 %v1203, %v1203
        %v1300 = vmul.f32 %v1204, %v1204
        %v1301 = vmul.f32 %v1205, %v1205
        %v1302 = vmul.f32 %v1206, %v1206
        %v1303 = vmul.f32 %v1207, %v1207
        %v1304 = vmul.f32 %v1208, %v1208
        %v1305 = vmul.f32 %v1209, %v1209
        %v1306 = vmul.f32 %v1210, %v1210
        %v1307 = vmul.f32 %v1211, %v1211
        %v1308 = vmul.f32 %v1212, %v1212
        %v1309 = vmul.f32 %v1213, %v1213
        %v1310 = vmul.f32 %v1214, %v1214
        %v1311 = vmul.f32 %v1215, %v1215
        %v1312 = vmul.f32 %v1216, %v1216
        %v1313 = vmul.f32 %v1217, %v1217
        %v1314 = vmul.f32 %v1218, %v1218
        %v1315 = vmul.f32 %v1219, %v1219
        %v1316 = vmul.f32 %v1220, %v1220
        %v1317 = vmul.f32 %v1221, %v1221
        %v1318 = vmul.f32 %v1222, %v1222
        %v1319 = vmul.f32 %v1223, %v1223
        %v1320 = vmul.f32 %v1224, %v1224
        %v1321 = vmul.f32 %v1225, %v1225
        %v1322 = vmul.f32 %v1226, %v1226
        %v1323 = vmul.f32 %v1227, %v1227
        %v1324 = vmul.f32 %v1228, %v1228
        %v1325 = vmul.f32 %v1229, %v1229
        %v1326 = vmul.f32 %v1230, %v1230
        %v1327 = vmul.f32 %v1231, %v1231
        %v1328 = vmul.f32 %v1232, %v1232
        %v1329 = vmul.f32 %v1233, %v1233
        %v1330 = vmul.f32 %v1234, %v1234
        %v1331 = vmul.f32 %v1235, %v1235
        %v1332 = vmul.f32 %v1236, %v1236
        %v1333 = vmul.f32 %v1237, %v1237
        %v1334 = vmul.f32 %v1238, %v1238
        %v1335 = vmul.f32 %v1239, %v1239
        %v1336 = vmul.f32 %v1240, %v1240
        %v1337 = vmul.f32 %v1241, %v1241
        %v1338 = vmul.f32 %v1242, %v1242
        %v1339 = vmul.f32 %v1243, %v1243
        %v1340 = vmul.f32 %v1244, %v1244
        %v1341 = vmul.f32 %v1245, %v1245
        %v1342 = vmul.f32 %v1246, %v1246
        %v1343 = vmul.f32 %v1247, %v1247
        %v1344 = vmul.f32 %v1248, %v1248
        %v1345 = vmul.f32 %v1249, %v1249
        %v1346 = vmul.f32 %v1250, %v1250
        %v1347 = vmul.f32 %v1251, %v1251
        %v1348 = vmul.f32 %v1252, %v1252
        %v1349 = vmul.f32 %v1253, %v1253
        %v1350 = vmul.f32 %v1254, %v1254
        %v1351 = vmul.f32 %v1255, %v1255
        %v1352 = vmul.f32 %v1256, %v1256
        %v1353 = vmul.f32 %v1257, %v1257
        %v1354 = vmul.f32 %v1258, %v1258
        %v1355 = vmul.f32 %v1259, %v1259
        %v1356 = vmul.f32 %v1260, %v1260
        %v1357 = vmul.f32 %v1261, %v1261
        %v1358 = vmul.f32 %v1262, %v1262
        %v1359 = vmul.f32 %v1263, %v1263
        %v1360 = vmul.f32 %v1264, %v1264
        %v1361 = vmul.f32 %v1265, %v1265
        %v1362 = vmul.f32 %v1266, %v1266
        %v1363 = vmul.f32 %v1267, %v1267
        %v1364 = vmul.f32 %v1268, %v1268
        %v1365 = vmul.f32 %v1269, %v1269
        %v1366 = vmul.f32 %v1270, %v1270
        %v1367 = vmul.f32 %v1271, %v1271
        %v1368 = vmul.f32 %v1272, %v1272
        %v1369 = vmul.f32 %v1273, %v1273
        %v1370 = vmul.f32 %v1274, %v1274
        %v1371 = vmul.f32 %v1275, %v1275
        %v1372 = vrot.slane %v1276, 4
        %v1373 = vadd.f32 %v1276, %v1372
        %v1374 = vrot.slane %v1373, 2
        %v1375 = vadd.f32 %v1373, %v1374
        %v1376 = vrot.slane %v1375, 1
        %v1377 = vadd.f32 %v1375, %v1376
        %v1378 = vrot.slane %v1277, 4
        %v1379 = vadd.f32 %v1277, %v1378
        %v1380 = vrot.slane %v1379, 2
        %v1381 = vadd.f32 %v1379, %v1380
        %v1382 = vrot.slane %v1381, 1
        %v1383 = vadd.f32 %v1381, %v1382
        %v1384 = vrot.slane %v1278, 4
        %v1385 = vadd.f32 %v1278, %v1384
        %v1386 = vrot.slane %v1385, 2
        %v1387 = vadd.f32 %v1385, %v1386
        %v1388 = vrot.slane %v1387, 1
        %v1389 = vadd.f32 %v1387, %v1388
        %v1390 = vrot.slane %v1279, 4
        %v1391 = vadd.f32 %v1279, %v1390
        %v1392 = vrot.slane %v1391, 2
        %v1393 = vadd.f32 %v1391, %v1392
        %v1394 = vrot.slane %v1393, 1
        %v1395 = vadd.f32 %v1393, %v1394
        %v1396 = vrot.slane %v1280, 4
        %v1397 = vadd.f32 %v1280, %v1396
        %v1398 = vrot.slane %v1397, 2
        %v1399 = vadd.f32 %v1397, %v1398
        %v1400 = vrot.slane %v1399, 1
        %v1401 = vadd.f32 %v1399, %v1400
        %v1402 = vrot.slane %v1281, 4
        %v1403 = vadd.f32 %v1281, %v1402
        %v1404 = vrot.slane %v1403, 2
        %v1405 = vadd.f32 %v1403, %v1404
        %v1406 = vrot.slane %v1405, 1
        %v1407 = vadd.f32 %v1405, %v1406
        %v1408 = vrot.slane %v1282, 4
        %v1409 = vadd.f32 %v1282, %v1408
        %v1410 = vrot.slane %v1409, 2
        %v1411 = vadd.f32 %v1409, %v1410
        %v1412 = vrot.slane %v1411, 1
        %v1413 = vadd.f32 %v1411, %v1412
        %v1414 = vrot.slane %v1283, 4
        %v1415 = vadd.f32 %v1283, %v1414
        %v1416 = vrot.slane %v1415, 2
        %v1417 = vadd.f32 %v1415, %v1416
        %v1418 = vrot.slane %v1417, 1
        %v1419 = vadd.f32 %v1417, %v1418
        %v1420 = vrot.slane %v1284, 4
        %v1421 = vadd.f32 %v1284, %v1420
        %v1422 = vrot.slane %v1421, 2
        %v1423 = vadd.f32 %v1421, %v1422
        %v1424 = vrot.slane %v1423, 1
        %v1425 = vadd.f32 %v1423, %v1424
        %v1426 = vrot.slane %v1285, 4
        %v1427 = vadd.f32 %v1285, %v1426
        %v1428 = vrot.slane %v1427, 2
        %v1429 = vadd.f32 %v1427, %v1428
        %v1430 = vrot.slane %v1429, 1
        %v1431 = vadd.f32 %v1429, %v1430
        %v1432 = vrot.slane %v1286, 4
        %v1433 = vadd.f32 %v1286, %v1432
        %v1434 = vrot.slane %v1433, 2
        %v1435 = vadd.f32 %v1433, %v1434
        %v1436 = vrot.slane %v1435, 1
        %v1437 = vadd.f32 %v1435, %v1436
        %v1438 = vrot.slane %v1287, 4
        %v1439 = vadd.f32 %v1287, %v1438
        %v1440 = vrot.slane %v1439, 2
        %v1441 = vadd.f32 %v1439, %v1440
        %v1442 = vrot.slane %v1441, 1
        %v1443 = vadd.f32 %v1441, %v1442
        %v1444 = vrot.slane %v1288, 4
        %v1445 = vadd.f32 %v1288, %v1444
        %v1446 = vrot.slane %v1445, 2
        %v1447 = vadd.f32 %v1445, %v1446
        %v1448 = vrot.slane %v1447, 1
        %v1449 = vadd.f32 %v1447, %v1448
        %v1450 = vrot.slane %v1289, 4
        %v1451 = vadd.f32 %v1289, %v1450
        %v1452 = vrot.slane %v1451, 2
        %v1453 = vadd.f32 %v1451, %v1452
        %v1454 = vrot.slane %v1453, 1
        %v1455 = vadd.f32 %v1453, %v1454
        %v1456 = vrot.slane %v1290, 4
        %v1457 = vadd.f32 %v1290, %v1456
        %v1458 = vrot.slane %v1457, 2
        %v1459 = vadd.f32 %v1457, %v1458
        %v1460 = vrot.slane %v1459, 1
        %v1461 = vadd.f32 %v1459, %v1460
        %v1462 = vrot.slane %v1291, 4
        %v1463 = vadd.f32 %v1291, %v1462
        %v1464 = vrot.slane %v1463, 2
        %v1465 = vadd.f32 %v1463, %v1464
        %v1466 = vrot.slane %v1465, 1
        %v1467 = vadd.f32 %v1465, %v1466
        %v1468 = vrot.slane %v1292, 4
        %v1469 = vadd.f32 %v1292, %v1468
        %v1470 = vrot.slane %v1469, 2
        %v1471 = vadd.f32 %v1469, %v1470
        %v1472 = vrot.slane %v1471, 1
        %v1473 = vadd.f32 %v1471, %v1472
        %v1474 = vrot.slane %v1293, 4
        %v1475 = vadd.f32 %v1293, %v1474
        %v1476 = vrot.slane %v1475, 2
        %v1477 = vadd.f32 %v1475, %v1476
        %v1478 = vrot.slane %v1477, 1
        %v1479 = vadd.f32 %v1477, %v1478
        %v1480 = vrot.slane %v1294, 4
        %v1481 = vadd.f32 %v1294, %v1480
        %v1482 = vrot.slane %v1481, 2
        %v1483 = vadd.f32 %v1481, %v1482
        %v1484 = vrot.slane %v1483, 1
        %v1485 = vadd.f32 %v1483, %v1484
        %v1486 = vrot.slane %v1295, 4
        %v1487 = vadd.f32 %v1295, %v1486
        %v1488 = vrot.slane %v1487, 2
        %v1489 = vadd.f32 %v1487, %v1488
        %v1490 = vrot.slane %v1489, 1
        %v1491 = vadd.f32 %v1489, %v1490
        %v1492 = vrot.slane %v1296, 4
        %v1493 = vadd.f32 %v1296, %v1492
        %v1494 = vrot.slane %v1493, 2
        %v1495 = vadd.f32 %v1493, %v1494
        %v1496 = vrot.slane %v1495, 1
        %v1497 = vadd.f32 %v1495, %v1496
        %v1498 = vrot.slane %v1297, 4
        %v1499 = vadd.f32 %v1297, %v1498
        %v1500 = vrot.slane %v1499, 2
        %v1501 = vadd.f32 %v1499, %v1500
        %v1502 = vrot.slane %v1501, 1
        %v1503 = vadd.f32 %v1501, %v1502
        %v1504 = vrot.slane %v1298, 4
        %v1505 = vadd.f32 %v1298, %v1504
        %v1506 = vrot.slane %v1505, 2
        %v1507 = vadd.f32 %v1505, %v1506
        %v1508 = vrot.slane %v1507, 1
        %v1509 = vadd.f32 %v1507, %v1508
        %v1510 = vrot.slane %v1299, 4
        %v1511 = vadd.f32 %v1299, %v1510
        %v1512 = vrot.slane %v1511, 2
        %v1513 = vadd.f32 %v1511, %v1512
        %v1514 = vrot.slane %v1513, 1
        %v1515 = vadd.f32 %v1513, %v1514
        %v1516 = vrot.slane %v1300, 4
        %v1517 = vadd.f32 %v1300, %v1516
        %v1518 = vrot.slane %v1517, 2
        %v1519 = vadd.f32 %v1517, %v1518
        %v1520 = vrot.slane %v1519, 1
        %v1521 = vadd.f32 %v1519, %v1520
        %v1522 = vrot.slane %v1301, 4
        %v1523 = vadd.f32 %v1301, %v1522
        %v1524 = vrot.slane %v1523, 2
        %v1525 = vadd.f32 %v1523, %v1524
        %v1526 = vrot.slane %v1525, 1
        %v1527 = vadd.f32 %v1525, %v1526
        %v1528 = vrot.slane %v1302, 4
        %v1529 = vadd.f32 %v1302, %v1528
        %v1530 = vrot.slane %v1529, 2
        %v1531 = vadd.f32 %v1529, %v1530
        %v1532 = vrot.slane %v1531, 1
        %v1533 = vadd.f32 %v1531, %v1532
        %v1534 = vrot.slane %v1303, 4
        %v1535 = vadd.f32 %v1303, %v1534
        %v1536 = vrot.slane %v1535, 2
        %v1537 = vadd.f32 %v1535, %v1536
        %v1538 = vrot.slane %v1537, 1
        %v1539 = vadd.f32 %v1537, %v1538
        %v1540 = vrot.slane %v1304, 4
        %v1541 = vadd.f32 %v1304, %v1540
        %v1542 = vrot.slane %v1541, 2
        %v1543 = vadd.f32 %v1541, %v1542
        %v1544 = vrot.slane %v1543, 1
        %v1545 = vadd.f32 %v1543, %v1544
        %v1546 = vrot.slane %v1305, 4
        %v1547 = vadd.f32 %v1305, %v1546
        %v1548 = vrot.slane %v1547, 2
        %v1549 = vadd.f32 %v1547, %v1548
        %v1550 = vrot.slane %v1549, 1
        %v1551 = vadd.f32 %v1549, %v1550
        %v1552 = vrot.slane %v1306, 4
        %v1553 = vadd.f32 %v1306, %v1552
        %v1554 = vrot.slane %v1553, 2
        %v1555 = vadd.f32 %v1553, %v1554
        %v1556 = vrot.slane %v1555, 1
        %v1557 = vadd.f32 %v1555, %v1556
        %v1558 = vrot.slane %v1307, 4
        %v1559 = vadd.f32 %v1307, %v1558
        %v1560 = vrot.slane %v1559, 2
        %v1561 = vadd.f32 %v1559, %v1560
        %v1562 = vrot.slane %v1561, 1
        %v1563 = vadd.f32 %v1561, %v1562
        %v1564 = vrot.slane %v1308, 4
        %v1565 = vadd.f32 %v1308, %v1564
        %v1566 = vrot.slane %v1565, 2
        %v1567 = vadd.f32 %v1565, %v1566
        %v1568 = vrot.slane %v1567, 1
        %v1569 = vadd.f32 %v1567, %v1568
        %v1570 = vrot.slane %v1309, 4
        %v1571 = vadd.f32 %v1309, %v1570
        %v1572 = vrot.slane %v1571, 2
        %v1573 = vadd.f32 %v1571, %v1572
        %v1574 = vrot.slane %v1573, 1
        %v1575 = vadd.f32 %v1573, %v1574
        %v1576 = vrot.slane %v1310, 4
        %v1577 = vadd.f32 %v1310, %v1576
        %v1578 = vrot.slane %v1577, 2
        %v1579 = vadd.f32 %v1577, %v1578
        %v1580 = vrot.slane %v1579, 1
        %v1581 = vadd.f32 %v1579, %v1580
        %v1582 = vrot.slane %v1311, 4
        %v1583 = vadd.f32 %v1311, %v1582
        %v1584 = vrot.slane %v1583, 2
        %v1585 = vadd.f32 %v1583, %v1584
        %v1586 = vrot.slane %v1585, 1
        %v1587 = vadd.f32 %v1585, %v1586
        %v1588 = vrot.slane %v1312, 4
        %v1589 = vadd.f32 %v1312, %v1588
        %v1590 = vrot.slane %v1589, 2
        %v1591 = vadd.f32 %v1589, %v1590
        %v1592 = vrot.slane %v1591, 1
        %v1593 = vadd.f32 %v1591, %v1592
        %v1594 = vrot.slane %v1313, 4
        %v1595 = vadd.f32 %v1313, %v1594
        %v1596 = vrot.slane %v1595, 2
        %v1597 = vadd.f32 %v1595, %v1596
        %v1598 = vrot.slane %v1597, 1
        %v1599 = vadd.f32 %v1597, %v1598
        %v1600 = vrot.slane %v1314, 4
        %v1601 = vadd.f32 %v1314, %v1600
        %v1602 = vrot.slane %v1601, 2
        %v1603 = vadd.f32 %v1601, %v1602
        %v1604 = vrot.slane %v1603, 1
        %v1605 = vadd.f32 %v1603, %v1604
        %v1606 = vrot.slane %v1315, 4
        %v1607 = vadd.f32 %v1315, %v1606
        %v1608 = vrot.slane %v1607, 2
        %v1609 = vadd.f32 %v1607, %v1608
        %v1610 = vrot.slane %v1609, 1
        %v1611 = vadd.f32 %v1609, %v1610
        %v1612 = vrot.slane %v1316, 4
        %v1613 = vadd.f32 %v1316, %v1612
        %v1614 = vrot.slane %v1613, 2
        %v1615 = vadd.f32 %v1613, %v1614
        %v1616 = vrot.slane %v1615, 1
        %v1617 = vadd.f32 %v1615, %v1616
        %v1618 = vrot.slane %v1317, 4
        %v1619 = vadd.f32 %v1317, %v1618
        %v1620 = vrot.slane %v1619, 2
        %v1621 = vadd.f32 %v1619, %v1620
        %v1622 = vrot.slane %v1621, 1
        %v1623 = vadd.f32 %v1621, %v1622
        %v1624 = vrot.slane %v1318, 4
        %v1625 = vadd.f32 %v1318, %v1624
        %v1626 = vrot.slane %v1625, 2
        %v1627 = vadd.f32 %v1625, %v1626
        %v1628 = vrot.slane %v1627, 1
        %v1629 = vadd.f32 %v1627, %v1628
        %v1630 = vrot.slane %v1319, 4
        %v1631 = vadd.f32 %v1319, %v1630
        %v1632 = vrot.slane %v1631, 2
        %v1633 = vadd.f32 %v1631, %v1632
        %v1634 = vrot.slane %v1633, 1
        %v1635 = vadd.f32 %v1633, %v1634
        %v1636 = vrot.slane %v1320, 4
        %v1637 = vadd.f32 %v1320, %v1636
        %v1638 = vrot.slane %v1637, 2
        %v1639 = vadd.f32 %v1637, %v1638
        %v1640 = vrot.slane %v1639, 1
        %v1641 = vadd.f32 %v1639, %v1640
        %v1642 = vrot.slane %v1321, 4
        %v1643 = vadd.f32 %v1321, %v1642
        %v1644 = vrot.slane %v1643, 2
        %v1645 = vadd.f32 %v1643, %v1644
        %v1646 = vrot.slane %v1645, 1
        %v1647 = vadd.f32 %v1645, %v1646
        %v1648 = vrot.slane %v1322, 4
        %v1649 = vadd.f32 %v1322, %v1648
        %v1650 = vrot.slane %v1649, 2
        %v1651 = vadd.f32 %v1649, %v1650
        %v1652 = vrot.slane %v1651, 1
        %v1653 = vadd.f32 %v1651, %v1652
        %v1654 = vrot.slane %v1323, 4
        %v1655 = vadd.f32 %v1323, %v1654
        %v1656 = vrot.slane %v1655, 2
        %v1657 = vadd.f32 %v1655, %v1656
        %v1658 = vrot.slane %v1657, 1
        %v1659 = vadd.f32 %v1657, %v1658
        %v1660 = vrot.slane %v1324, 4
        %v1661 = vadd.f32 %v1324, %v1660
        %v1662 = vrot.slane %v1661, 2
        %v1663 = vadd.f32 %v1661, %v1662
        %v1664 = vrot.slane %v1663, 1
        %v1665 = vadd.f32 %v1663, %v1664
        %v1666 = vrot.slane %v1325, 4
        %v1667 = vadd.f32 %v1325, %v1666
        %v1668 = vrot.slane %v1667, 2
        %v1669 = vadd.f32 %v1667, %v1668
        %v1670 = vrot.slane %v1669, 1
        %v1671 = vadd.f32 %v1669, %v1670
        %v1672 = vrot.slane %v1326, 4
        %v1673 = vadd.f32 %v1326, %v1672
        %v1674 = vrot.slane %v1673, 2
        %v1675 = vadd.f32 %v1673, %v1674
        %v1676 = vrot.slane %v1675, 1
        %v1677 = vadd.f32 %v1675, %v1676
        %v1678 = vrot.slane %v1327, 4
        %v1679 = vadd.f32 %v1327, %v1678
        %v1680 = vrot.slane %v1679, 2
        %v1681 = vadd.f32 %v1679, %v1680
        %v1682 = vrot.slane %v1681, 1
        %v1683 = vadd.f32 %v1681, %v1682
        %v1684 = vrot.slane %v1328, 4
        %v1685 = vadd.f32 %v1328, %v1684
        %v1686 = vrot.slane %v1685, 2
        %v1687 = vadd.f32 %v1685, %v1686
        %v1688 = vrot.slane %v1687, 1
        %v1689 = vadd.f32 %v1687, %v1688
        %v1690 = vrot.slane %v1329, 4
        %v1691 = vadd.f32 %v1329, %v1690
        %v1692 = vrot.slane %v1691, 2
        %v1693 = vadd.f32 %v1691, %v1692
        %v1694 = vrot.slane %v1693, 1
        %v1695 = vadd.f32 %v1693, %v1694
        %v1696 = vrot.slane %v1330, 4
        %v1697 = vadd.f32 %v1330, %v1696
        %v1698 = vrot.slane %v1697, 2
        %v1699 = vadd.f32 %v1697, %v1698
        %v1700 = vrot.slane %v1699, 1
        %v1701 = vadd.f32 %v1699, %v1700
        %v1702 = vrot.slane %v1331, 4
        %v1703 = vadd.f32 %v1331, %v1702
        %v1704 = vrot.slane %v1703, 2
        %v1705 = vadd.f32 %v1703, %v1704
        %v1706 = vrot.slane %v1705, 1
        %v1707 = vadd.f32 %v1705, %v1706
        %v1708 = vrot.slane %v1332, 4
        %v1709 = vadd.f32 %v1332, %v1708
        %v1710 = vrot.slane %v1709, 2
        %v1711 = vadd.f32 %v1709, %v1710
        %v1712 = vrot.slane %v1711, 1
        %v1713 = vadd.f32 %v1711, %v1712
        %v1714 = vrot.slane %v1333, 4
        %v1715 = vadd.f32 %v1333, %v1714
        %v1716 = vrot.slane %v1715, 2
        %v1717 = vadd.f32 %v1715, %v1716
        %v1718 = vrot.slane %v1717, 1
        %v1719 = vadd.f32 %v1717, %v1718
        %v1720 = vrot.slane %v1334, 4
        %v1721 = vadd.f32 %v1334, %v1720
        %v1722 = vrot.slane %v1721, 2
        %v1723 = vadd.f32 %v1721, %v1722
        %v1724 = vrot.slane %v1723, 1
        %v1725 = vadd.f32 %v1723, %v1724
        %v1726 = vrot.slane %v1335, 4
        %v1727 = vadd.f32 %v1335, %v1726
        %v1728 = vrot.slane %v1727, 2
        %v1729 = vadd.f32 %v1727, %v1728
        %v1730 = vrot.slane %v1729, 1
        %v1731 = vadd.f32 %v1729, %v1730
        %v1732 = vrot.slane %v1336, 4
        %v1733 = vadd.f32 %v1336, %v1732
        %v1734 = vrot.slane %v1733, 2
        %v1735 = vadd.f32 %v1733, %v1734
        %v1736 = vrot.slane %v1735, 1
        %v1737 = vadd.f32 %v1735, %v1736
        %v1738 = vrot.slane %v1337, 4
        %v1739 = vadd.f32 %v1337, %v1738
        %v1740 = vrot.slane %v1739, 2
        %v1741 = vadd.f32 %v1739, %v1740
        %v1742 = vrot.slane %v1741, 1
        %v1743 = vadd.f32 %v1741, %v1742
        %v1744 = vrot.slane %v1338, 4
        %v1745 = vadd.f32 %v1338, %v1744
        %v1746 = vrot.slane %v1745, 2
        %v1747 = vadd.f32 %v1745, %v1746
        %v1748 = vrot.slane %v1747, 1
        %v1749 = vadd.f32 %v1747, %v1748
        %v1750 = vrot.slane %v1339, 4
        %v1751 = vadd.f32 %v1339, %v1750
        %v1752 = vrot.slane %v1751, 2
        %v1753 = vadd.f32 %v1751, %v1752
        %v1754 = vrot.slane %v1753, 1
        %v1755 = vadd.f32 %v1753, %v1754
        %v1756 = vrot.slane %v1340, 4
        %v1757 = vadd.f32 %v1340, %v1756
        %v1758 = vrot.slane %v1757, 2
        %v1759 = vadd.f32 %v1757, %v1758
        %v1760 = vrot.slane %v1759, 1
        %v1761 = vadd.f32 %v1759, %v1760
        %v1762 = vrot.slane %v1341, 4
        %v1763 = vadd.f32 %v1341, %v1762
        %v1764 = vrot.slane %v1763, 2
        %v1765 = vadd.f32 %v1763, %v1764
        %v1766 = vrot.slane %v1765, 1
        %v1767 = vadd.f32 %v1765, %v1766
        %v1768 = vrot.slane %v1342, 4
        %v1769 = vadd.f32 %v1342, %v1768
        %v1770 = vrot.slane %v1769, 2
        %v1771 = vadd.f32 %v1769, %v1770
        %v1772 = vrot.slane %v1771, 1
        %v1773 = vadd.f32 %v1771, %v1772
        %v1774 = vrot.slane %v1343, 4
        %v1775 = vadd.f32 %v1343, %v1774
        %v1776 = vrot.slane %v1775, 2
        %v1777 = vadd.f32 %v1775, %v1776
        %v1778 = vrot.slane %v1777, 1
        %v1779 = vadd.f32 %v1777, %v1778
        %v1780 = vrot.slane %v1344, 4
        %v1781 = vadd.f32 %v1344, %v1780
        %v1782 = vrot.slane %v1781, 2
        %v1783 = vadd.f32 %v1781, %v1782
        %v1784 = vrot.slane %v1783, 1
        %v1785 = vadd.f32 %v1783, %v1784
        %v1786 = vrot.slane %v1345, 4
        %v1787 = vadd.f32 %v1345, %v1786
        %v1788 = vrot.slane %v1787, 2
        %v1789 = vadd.f32 %v1787, %v1788
        %v1790 = vrot.slane %v1789, 1
        %v1791 = vadd.f32 %v1789, %v1790
        %v1792 = vrot.slane %v1346, 4
        %v1793 = vadd.f32 %v1346, %v1792
        %v1794 = vrot.slane %v1793, 2
        %v1795 = vadd.f32 %v1793, %v1794
        %v1796 = vrot.slane %v1795, 1
        %v1797 = vadd.f32 %v1795, %v1796
        %v1798 = vrot.slane %v1347, 4
        %v1799 = vadd.f32 %v1347, %v1798
        %v1800 = vrot.slane %v1799, 2
        %v1801 = vadd.f32 %v1799, %v1800
        %v1802 = vrot.slane %v1801, 1
        %v1803 = vadd.f32 %v1801, %v1802
        %v1804 = vrot.slane %v1348, 4
        %v1805 = vadd.f32 %v1348, %v1804
        %v1806 = vrot.slane %v1805, 2
        %v1807 = vadd.f32 %v1805, %v1806
        %v1808 = vrot.slane %v1807, 1
        %v1809 = vadd.f32 %v1807, %v1808
        %v1810 = vrot.slane %v1349, 4
        %v1811 = vadd.f32 %v1349, %v1810
        %v1812 = vrot.slane %v1811, 2
        %v1813 = vadd.f32 %v1811, %v1812
        %v1814 = vrot.slane %v1813, 1
        %v1815 = vadd.f32 %v1813, %v1814
        %v1816 = vrot.slane %v1350, 4
        %v1817 = vadd.f32 %v1350, %v1816
        %v1818 = vrot.slane %v1817, 2
        %v1819 = vadd.f32 %v1817, %v1818
        %v1820 = vrot.slane %v1819, 1
        %v1821 = vadd.f32 %v1819, %v1820
        %v1822 = vrot.slane %v1351, 4
        %v1823 = vadd.f32 %v1351, %v1822
        %v1824 = vrot.slane %v1823, 2
        %v1825 = vadd.f32 %v1823, %v1824
        %v1826 = vrot.slane %v1825, 1
        %v1827 = vadd.f32 %v1825, %v1826
        %v1828 = vrot.slane %v1352, 4
        %v1829 = vadd.f32 %v1352, %v1828
        %v1830 = vrot.slane %v1829, 2
        %v1831 = vadd.f32 %v1829, %v1830
        %v1832 = vrot.slane %v1831, 1
        %v1833 = vadd.f32 %v1831, %v1832
        %v1834 = vrot.slane %v1353, 4
        %v1835 = vadd.f32 %v1353, %v1834
        %v1836 = vrot.slane %v1835, 2
        %v1837 = vadd.f32 %v1835, %v1836
        %v1838 = vrot.slane %v1837, 1
        %v1839 = vadd.f32 %v1837, %v1838
        %v1840 = vrot.slane %v1354, 4
        %v1841 = vadd.f32 %v1354, %v1840
        %v1842 = vrot.slane %v1841, 2
        %v1843 = vadd.f32 %v1841, %v1842
        %v1844 = vrot.slane %v1843, 1
        %v1845 = vadd.f32 %v1843, %v1844
        %v1846 = vrot.slane %v1355, 4
        %v1847 = vadd.f32 %v1355, %v1846
        %v1848 = vrot.slane %v1847, 2
        %v1849 = vadd.f32 %v1847, %v1848
        %v1850 = vrot.slane %v1849, 1
        %v1851 = vadd.f32 %v1849, %v1850
        %v1852 = vrot.slane %v1356, 4
        %v1853 = vadd.f32 %v1356, %v1852
        %v1854 = vrot.slane %v1853, 2
        %v1855 = vadd.f32 %v1853, %v1854
        %v1856 = vrot.slane %v1855, 1
        %v1857 = vadd.f32 %v1855, %v1856
        %v1858 = vrot.slane %v1357, 4
        %v1859 = vadd.f32 %v1357, %v1858
        %v1860 = vrot.slane %v1859, 2
        %v1861 = vadd.f32 %v1859, %v1860
        %v1862 = vrot.slane %v1861, 1
        %v1863 = vadd.f32 %v1861, %v1862
        %v1864 = vrot.slane %v1358, 4
        %v1865 = vadd.f32 %v1358, %v1864
        %v1866 = vrot.slane %v1865, 2
        %v1867 = vadd.f32 %v1865, %v1866
        %v1868 = vrot.slane %v1867, 1
        %v1869 = vadd.f32 %v1867, %v1868
        %v1870 = vrot.slane %v1359, 4
        %v1871 = vadd.f32 %v1359, %v1870
        %v1872 = vrot.slane %v1871, 2
        %v1873 = vadd.f32 %v1871, %v1872
        %v1874 = vrot.slane %v1873, 1
        %v1875 = vadd.f32 %v1873, %v1874
        %v1876 = vrot.slane %v1360, 4
        %v1877 = vadd.f32 %v1360, %v1876
        %v1878 = vrot.slane %v1877, 2
        %v1879 = vadd.f32 %v1877, %v1878
        %v1880 = vrot.slane %v1879, 1
        %v1881 = vadd.f32 %v1879, %v1880
        %v1882 = vrot.slane %v1361, 4
        %v1883 = vadd.f32 %v1361, %v1882
        %v1884 = vrot.slane %v1883, 2
        %v1885 = vadd.f32 %v1883, %v1884
        %v1886 = vrot.slane %v1885, 1
        %v1887 = vadd.f32 %v1885, %v1886
        %v1888 = vrot.slane %v1362, 4
        %v1889 = vadd.f32 %v1362, %v1888
        %v1890 = vrot.slane %v1889, 2
        %v1891 = vadd.f32 %v1889, %v1890
        %v1892 = vrot.slane %v1891, 1
        %v1893 = vadd.f32 %v1891, %v1892
        %v1894 = vrot.slane %v1363, 4
        %v1895 = vadd.f32 %v1363, %v1894
        %v1896 = vrot.slane %v1895, 2
        %v1897 = vadd.f32 %v1895, %v1896
        %v1898 = vrot.slane %v1897, 1
        %v1899 = vadd.f32 %v1897, %v1898
        %v1900 = vrot.slane %v1364, 4
        %v1901 = vadd.f32 %v1364, %v1900
        %v1902 = vrot.slane %v1901, 2
        %v1903 = vadd.f32 %v1901, %v1902
        %v1904 = vrot.slane %v1903, 1
        %v1905 = vadd.f32 %v1903, %v1904
        %v1906 = vrot.slane %v1365, 4
        %v1907 = vadd.f32 %v1365, %v1906
        %v1908 = vrot.slane %v1907, 2
        %v1909 = vadd.f32 %v1907, %v1908
        %v1910 = vrot.slane %v1909, 1
        %v1911 = vadd.f32 %v1909, %v1910
        %v1912 = vrot.slane %v1366, 4
        %v1913 = vadd.f32 %v1366, %v1912
        %v1914 = vrot.slane %v1913, 2
        %v1915 = vadd.f32 %v1913, %v1914
        %v1916 = vrot.slane %v1915, 1
        %v1917 = vadd.f32 %v1915, %v1916
        %v1918 = vrot.slane %v1367, 4
        %v1919 = vadd.f32 %v1367, %v1918
        %v1920 = vrot.slane %v1919, 2
        %v1921 = vadd.f32 %v1919, %v1920
        %v1922 = vrot.slane %v1921, 1
        %v1923 = vadd.f32 %v1921, %v1922
        %v1924 = vrot.slane %v1368, 4
        %v1925 = vadd.f32 %v1368, %v1924
        %v1926 = vrot.slane %v1925, 2
        %v1927 = vadd.f32 %v1925, %v1926
        %v1928 = vrot.slane %v1927, 1
        %v1929 = vadd.f32 %v1927, %v1928
        %v1930 = vrot.slane %v1369, 4
        %v1931 = vadd.f32 %v1369, %v1930
        %v1932 = vrot.slane %v1931, 2
        %v1933 = vadd.f32 %v1931, %v1932
        %v1934 = vrot.slane %v1933, 1
        %v1935 = vadd.f32 %v1933, %v1934
        %v1936 = vrot.slane %v1370, 4
        %v1937 = vadd.f32 %v1370, %v1936
        %v1938 = vrot.slane %v1937, 2
        %v1939 = vadd.f32 %v1937, %v1938
        %v1940 = vrot.slane %v1939, 1
        %v1941 = vadd.f32 %v1939, %v1940
        %v1942 = vrot.slane %v1371, 4
        %v1943 = vadd.f32 %v1371, %v1942
        %v1944 = vrot.slane %v1943, 2
        %v1945 = vadd.f32 %v1943, %v1944
        %v1946 = vrot.slane %v1945, 1
        %v1947 = vadd.f32 %v1945, %v1946
        %v1948 = vmul.f32 %v1377, %v1083
        %v1949 = vmul.f32 %v1383, %v1083
        %v1950 = vmul.f32 %v1389, %v1083
        %v1951 = vmul.f32 %v1395, %v1083
        %v1952 = vmul.f32 %v1401, %v1083
        %v1953 = vmul.f32 %v1407, %v1083
        %v1954 = vmul.f32 %v1413, %v1083
        %v1955 = vmul.f32 %v1419, %v1083
        %v1956 = vmul.f32 %v1425, %v1083
        %v1957 = vmul.f32 %v1431, %v1083
        %v1958 = vmul.f32 %v1437, %v1083
        %v1959 = vmul.f32 %v1443, %v1083
        %v1960 = vmul.f32 %v1449, %v1083
        %v1961 = vmul.f32 %v1455, %v1083
        %v1962 = vmul.f32 %v1461, %v1083
        %v1963 = vmul.f32 %v1467, %v1083
        %v1964 = vmul.f32 %v1473, %v1083
        %v1965 = vmul.f32 %v1479, %v1083
        %v1966 = vmul.f32 %v1485, %v1083
        %v1967 = vmul.f32 %v1491, %v1083
        %v1968 = vmul.f32 %v1497, %v1083
        %v1969 = vmul.f32 %v1503, %v1083
        %v1970 = vmul.f32 %v1509, %v1083
        %v1971 = vmul.f32 %v1515, %v1083
        %v1972 = vmul.f32 %v1521, %v1083
        %v1973 = vmul.f32 %v1527, %v1083
        %v1974 = vmul.f32 %v1533, %v1083
        %v1975 = vmul.f32 %v1539, %v1083
        %v1976 = vmul.f32 %v1545, %v1083
        %v1977 = vmul.f32 %v1551, %v1083
        %v1978 = vmul.f32 %v1557, %v1083
        %v1979 = vmul.f32 %v1563, %v1083
        %v1980 = vmul.f32 %v1569, %v1083
        %v1981 = vmul.f32 %v1575, %v1083
        %v1982 = vmul.f32 %v1581, %v1083
        %v1983 = vmul.f32 %v1587, %v1083
        %v1984 = vmul.f32 %v1593, %v1083
        %v1985 = vmul.f32 %v1599, %v1083
        %v1986 = vmul.f32 %v1605, %v1083
        %v1987 = vmul.f32 %v1611, %v1083
        %v1988 = vmul.f32 %v1617, %v1083
        %v1989 = vmul.f32 %v1623, %v1083
        %v1990 = vmul.f32 %v1629, %v1083
        %v1991 = vmul.f32 %v1635, %v1083
        %v1992 = vmul.f32 %v1641, %v1083
        %v1993 = vmul.f32 %v1647, %v1083
        %v1994 = vmul.f32 %v1653, %v1083
        %v1995 = vmul.f32 %v1659, %v1083
        %v1996 = vmul.f32 %v1665, %v1083
        %v1997 = vmul.f32 %v1671, %v1083
        %v1998 = vmul.f32 %v1677, %v1083
        %v1999 = vmul.f32 %v1683, %v1083
        %v2000 = vmul.f32 %v1689, %v1083
        %v2001 = vmul.f32 %v1695, %v1083
        %v2002 = vmul.f32 %v1701, %v1083
        %v2003 = vmul.f32 %v1707, %v1083
        %v2004 = vmul.f32 %v1713, %v1083
        %v2005 = vmul.f32 %v1719, %v1083
        %v2006 = vmul.f32 %v1725, %v1083
        %v2007 = vmul.f32 %v1731, %v1083
        %v2008 = vmul.f32 %v1737, %v1083
        %v2009 = vmul.f32 %v1743, %v1083
        %v2010 = vmul.f32 %v1749, %v1083
        %v2011 = vmul.f32 %v1755, %v1083
        %v2012 = vmul.f32 %v1761, %v1083
        %v2013 = vmul.f32 %v1767, %v1083
        %v2014 = vmul.f32 %v1773, %v1083
        %v2015 = vmul.f32 %v1779, %v1083
        %v2016 = vmul.f32 %v1785, %v1083
        %v2017 = vmul.f32 %v1791, %v1083
        %v2018 = vmul.f32 %v1797, %v1083
        %v2019 = vmul.f32 %v1803, %v1083
        %v2020 = vmul.f32 %v1809, %v1083
        %v2021 = vmul.f32 %v1815, %v1083
        %v2022 = vmul.f32 %v1821, %v1083
        %v2023 = vmul.f32 %v1827, %v1083
        %v2024 = vmul.f32 %v1833, %v1083
        %v2025 = vmul.f32 %v1839, %v1083
        %v2026 = vmul.f32 %v1845, %v1083
        %v2027 = vmul.f32 %v1851, %v1083
        %v2028 = vmul.f32 %v1857, %v1083
        %v2029 = vmul.f32 %v1863, %v1083
        %v2030 = vmul.f32 %v1869, %v1083
        %v2031 = vmul.f32 %v1875, %v1083
        %v2032 = vmul.f32 %v1881, %v1083
        %v2033 = vmul.f32 %v1887, %v1083
        %v2034 = vmul.f32 %v1893, %v1083
        %v2035 = vmul.f32 %v1899, %v1083
        %v2036 = vmul.f32 %v1905, %v1083
        %v2037 = vmul.f32 %v1911, %v1083
        %v2038 = vmul.f32 %v1917, %v1083
        %v2039 = vmul.f32 %v1923, %v1083
        %v2040 = vmul.f32 %v1929, %v1083
        %v2041 = vmul.f32 %v1935, %v1083
        %v2042 = vmul.f32 %v1941, %v1083
        %v2043 = vmul.f32 %v1947, %v1083
        %v2044 = vadd.f32 %v1948, 1e-05
        %v2045 = vadd.f32 %v1949, 1e-05
        %v2046 = vadd.f32 %v1950, 1e-05
        %v2047 = vadd.f32 %v1951, 1e-05
        %v2048 = vadd.f32 %v1952, 1e-05
        %v2049 = vadd.f32 %v1953, 1e-05
        %v2050 = vadd.f32 %v1954, 1e-05
        %v2051 = vadd.f32 %v1955, 1e-05
        %v2052 = vadd.f32 %v1956, 1e-05
        %v2053 = vadd.f32 %v1957, 1e-05
        %v2054 = vadd.f32 %v1958, 1e-05
        %v2055 = vadd.f32 %v1959, 1e-05
        %v2056 = vadd.f32 %v1960, 1e-05
        %v2057 = vadd.f32 %v1961, 1e-05
        %v2058 = vadd.f32 %v1962, 1e-05
        %v2059 = vadd.f32 %v1963, 1e-05
        %v2060 = vadd.f32 %v1964, 1e-05
        %v2061 = vadd.f32 %v1965, 1e-05
        %v2062 = vadd.f32 %v1966, 1e-05
        %v2063 = vadd.f32 %v1967, 1e-05
        %v2064 = vadd.f32 %v1968, 1e-05
        %v2065 = vadd.f32 %v1969, 1e-05
        %v2066 = vadd.f32 %v1970, 1e-05
        %v2067 = vadd.f32 %v1971, 1e-05
        %v2068 = vadd.f32 %v1972, 1e-05
        %v2069 = vadd.f32 %v1973, 1e-05
        %v2070 = vadd.f32 %v1974, 1e-05
        %v2071 = vadd.f32 %v1975, 1e-05
        %v2072 = vadd.f32 %v1976, 1e-05
        %v2073 = vadd.f32 %v1977, 1e-05
        %v2074 = vadd.f32 %v1978, 1e-05
        %v2075 = vadd.f32 %v1979, 1e-05
        %v2076 = vadd.f32 %v1980, 1e-05
        %v2077 = vadd.f32 %v1981, 1e-05
        %v2078 = vadd.f32 %v1982, 1e-05
        %v2079 = vadd.f32 %v1983, 1e-05
        %v2080 = vadd.f32 %v1984, 1e-05
        %v2081 = vadd.f32 %v1985, 1e-05
        %v2082 = vadd.f32 %v1986, 1e-05
        %v2083 = vadd.f32 %v1987, 1e-05
        %v2084 = vadd.f32 %v1988, 1e-05
        %v2085 = vadd.f32 %v1989, 1e-05
        %v2086 = vadd.f32 %v1990, 1e-05
        %v2087 = vadd.f32 %v1991, 1e-05
        %v2088 = vadd.f32 %v1992, 1e-05
        %v2089 = vadd.f32 %v1993, 1e-05
        %v2090 = vadd.f32 %v1994, 1e-05
        %v2091 = vadd.f32 %v1995, 1e-05
        %v2092 = vadd.f32 %v1996, 1e-05
        %v2093 = vadd.f32 %v1997, 1e-05
        %v2094 = vadd.f32 %v1998, 1e-05
        %v2095 = vadd.f32 %v1999, 1e-05
        %v2096 = vadd.f32 %v2000, 1e-05
        %v2097 = vadd.f32 %v2001, 1e-05
        %v2098 = vadd.f32 %v2002, 1e-05
        %v2099 = vadd.f32 %v2003, 1e-05
        %v2100 = vadd.f32 %v2004, 1e-05
        %v2101 = vadd.f32 %v2005, 1e-05
        %v2102 = vadd.f32 %v2006, 1e-05
        %v2103 = vadd.f32 %v2007, 1e-05
        %v2104 = vadd.f32 %v2008, 1e-05
        %v2105 = vadd.f32 %v2009, 1e-05
        %v2106 = vadd.f32 %v2010, 1e-05
        %v2107 = vadd.f32 %v2011, 1e-05
        %v2108 = vadd.f32 %v2012, 1e-05
        %v2109 = vadd.f32 %v2013, 1e-05
        %v2110 = vadd.f32 %v2014, 1e-05
        %v2111 = vadd.f32 %v2015, 1e-05
        %v2112 = vadd.f32 %v2016, 1e-05
        %v2113 = vadd.f32 %v2017, 1e-05
        %v2114 = vadd.f32 %v2018, 1e-05
        %v2115 = vadd.f32 %v2019, 1e-05
        %v2116 = vadd.f32 %v2020, 1e-05
        %v2117 = vadd.f32 %v2021, 1e-05
        %v2118 = vadd.f32 %v2022, 1e-05
        %v2119 = vadd.f32 %v2023, 1e-05
        %v2120 = vadd.f32 %v2024, 1e-05
        %v2121 = vadd.f32 %v2025, 1e-05
        %v2122 = vadd.f32 %v2026, 1e-05
        %v2123 = vadd.f32 %v2027, 1e-05
        %v2124 = vadd.f32 %v2028, 1e-05
        %v2125 = vadd.f32 %v2029, 1e-05
        %v2126 = vadd.f32 %v2030, 1e-05
        %v2127 = vadd.f32 %v2031, 1e-05
        %v2128 = vadd.f32 %v2032, 1e-05
        %v2129 = vadd.f32 %v2033, 1e-05
        %v2130 = vadd.f32 %v2034, 1e-05
        %v2131 = vadd.f32 %v2035, 1e-05
        %v2132 = vadd.f32 %v2036, 1e-05
        %v2133 = vadd.f32 %v2037, 1e-05
        %v2134 = vadd.f32 %v2038, 1e-05
        %v2135 = vadd.f32 %v2039, 1e-05
        %v2136 = vadd.f32 %v2040, 1e-05
        %v2137 = vadd.f32 %v2041, 1e-05
        %v2138 = vadd.f32 %v2042, 1e-05
        %v2139 = vadd.f32 %v2043, 1e-05
        %v2140 = vrsqrt.pop %v2044
        %v2141 = vrsqrt.pop %v2045
        %v2142 = vrsqrt.pop %v2046
        %v2143 = vrsqrt.pop %v2047
        %v2144 = vrsqrt.pop %v2048
        %v2145 = vrsqrt.pop %v2049
        %v2146 = vrsqrt.pop %v2050
        %v2147 = vrsqrt.pop %v2051
        %v2148 = vrsqrt.pop %v2052
        %v2149 = vrsqrt.pop %v2053
        %v2150 = vrsqrt.pop %v2054
        %v2151 = vrsqrt.pop %v2055
        %v2152 = vrsqrt.pop %v2056
        %v2153 = vrsqrt.pop %v2057
        %v2154 = vrsqrt.pop %v2058
        %v2155 = vrsqrt.pop %v2059
        %v2156 = vrsqrt.pop %v2060
        %v2157 = vrsqrt.pop %v2061
        %v2158 = vrsqrt.pop %v2062
        %v2159 = vrsqrt.pop %v2063
        %v2160 = vrsqrt.pop %v2064
        %v2161 = vrsqrt.pop %v2065
        %v2162 = vrsqrt.pop %v2066
        %v2163 = vrsqrt.pop %v2067
        %v2164 = vrsqrt.pop %v2068
        %v2165 = vrsqrt.pop %v2069
        %v2166 = vrsqrt.pop %v2070
        %v2167 = vrsqrt.pop %v2071
        %v2168 = vrsqrt.pop %v2072
        %v2169 = vrsqrt.pop %v2073
        %v2170 = vrsqrt.pop %v2074
        %v2171 = vrsqrt.pop %v2075
        %v2172 = vrsqrt.pop %v2076
        %v2173 = vrsqrt.pop %v2077
        %v2174 = vrsqrt.pop %v2078
        %v2175 = vrsqrt.pop %v2079
        %v2176 = vrsqrt.pop %v2080
        %v2177 = vrsqrt.pop %v2081
        %v2178 = vrsqrt.pop %v2082
        %v2179 = vrsqrt.pop %v2083
        %v2180 = vrsqrt.pop %v2084
        %v2181 = vrsqrt.pop %v2085
        %v2182 = vrsqrt.pop %v2086
        %v2183 = vrsqrt.pop %v2087
        %v2184 = vrsqrt.pop %v2088
        %v2185 = vrsqrt.pop %v2089
        %v2186 = vrsqrt.pop %v2090
        %v2187 = vrsqrt.pop %v2091
        %v2188 = vrsqrt.pop %v2092
        %v2189 = vrsqrt.pop %v2093
        %v2190 = vrsqrt.pop %v2094
        %v2191 = vrsqrt.pop %v2095
        %v2192 = vrsqrt.pop %v2096
        %v2193 = vrsqrt.pop %v2097
        %v2194 = vrsqrt.pop %v2098
        %v2195 = vrsqrt.pop %v2099
        %v2196 = vrsqrt.pop %v2100
        %v2197 = vrsqrt.pop %v2101
        %v2198 = vrsqrt.pop %v2102
        %v2199 = vrsqrt.pop %v2103
        %v2200 = vrsqrt.pop %v2104
        %v2201 = vrsqrt.pop %v2105
        %v2202 = vrsqrt.pop %v2106
        %v2203 = vrsqrt.pop %v2107
        %v2204 = vrsqrt.pop %v2108
        %v2205 = vrsqrt.pop %v2109
        %v2206 = vrsqrt.pop %v2110
        %v2207 = vrsqrt.pop %v2111
        %v2208 = vrsqrt.pop %v2112
        %v2209 = vrsqrt.pop %v2113
        %v2210 = vrsqrt.pop %v2114
        %v2211 = vrsqrt.pop %v2115
        %v2212 = vrsqrt.pop %v2116
        %v2213 = vrsqrt.pop %v2117
        %v2214 = vrsqrt.pop %v2118
        %v2215 = vrsqrt.pop %v2119
        %v2216 = vrsqrt.pop %v2120
        %v2217 = vrsqrt.pop %v2121
        %v2218 = vrsqrt.pop %v2122
        %v2219 = vrsqrt.pop %v2123
        %v2220 = vrsqrt.pop %v2124
        %v2221 = vrsqrt.pop %v2125
        %v2222 = vrsqrt.pop %v2126
        %v2223 = vrsqrt.pop %v2127
        %v2224 = vrsqrt.pop %v2128
        %v2225 = vrsqrt.pop %v2129
        %v2226 = vrsqrt.pop %v2130
        %v2227 = vrsqrt.pop %v2131
        %v2228 = vrsqrt.pop %v2132
        %v2229 = vrsqrt.pop %v2133
        %v2230 = vrsqrt.pop %v2134
        %v2231 = vrsqrt.pop %v2135
        %v2232 = vrsqrt.pop %v2136
        %v2233 = vrsqrt.pop %v2137
        %v2234 = vrsqrt.pop %v2138
        %v2235 = vrsqrt.pop %v2139
        %v2236 = vmul.f32 %v1180, %v2140
        %v2237 = vmul.f32 %v1181, %v2141
        %v2238 = vmul.f32 %v1182, %v2142
        %v2239 = vmul.f32 %v1183, %v2143
        %v2240 = vmul.f32 %v1184, %v2144
        %v2241 = vmul.f32 %v1185, %v2145
        %v2242 = vmul.f32 %v1186, %v2146
        %v2243 = vmul.f32 %v1187, %v2147
        %v2244 = vmul.f32 %v1188, %v2148
        %v2245 = vmul.f32 %v1189, %v2149
        %v2246 = vmul.f32 %v1190, %v2150
        %v2247 = vmul.f32 %v1191, %v2151
        %v2248 = vmul.f32 %v1192, %v2152
        %v2249 = vmul.f32 %v1193, %v2153
        %v2250 = vmul.f32 %v1194, %v2154
        %v2251 = vmul.f32 %v1195, %v2155
        %v2252 = vmul.f32 %v1196, %v2156
        %v2253 = vmul.f32 %v1197, %v2157
        %v2254 = vmul.f32 %v1198, %v2158
        %v2255 = vmul.f32 %v1199, %v2159
        %v2256 = vmul.f32 %v1200, %v2160
        %v2257 = vmul.f32 %v1201, %v2161
        %v2258 = vmul.f32 %v1202, %v2162
        %v2259 = vmul.f32 %v1203, %v2163
        %v2260 = vmul.f32 %v1204, %v2164
        %v2261 = vmul.f32 %v1205, %v2165
        %v2262 = vmul.f32 %v1206, %v2166
        %v2263 = vmul.f32 %v1207, %v2167
        %v2264 = vmul.f32 %v1208, %v2168
        %v2265 = vmul.f32 %v1209, %v2169
        %v2266 = vmul.f32 %v1210, %v2170
        %v2267 = vmul.f32 %v1211, %v2171
        %v2268 = vmul.f32 %v1212, %v2172
        %v2269 = vmul.f32 %v1213, %v2173
        %v2270 = vmul.f32 %v1214, %v2174
        %v2271 = vmul.f32 %v1215, %v2175
        %v2272 = vmul.f32 %v1216, %v2176
        %v2273 = vmul.f32 %v1217, %v2177
        %v2274 = vmul.f32 %v1218, %v2178
        %v2275 = vmul.f32 %v1219, %v2179
        %v2276 = vmul.f32 %v1220, %v2180
        %v2277 = vmul.f32 %v1221, %v2181
        %v2278 = vmul.f32 %v1222, %v2182
        %v2279 = vmul.f32 %v1223, %v2183
        %v2280 = vmul.f32 %v1224, %v2184
        %v2281 = vmul.f32 %v1225, %v2185
        %v2282 = vmul.f32 %v1226, %v2186
        %v2283 = vmul.f32 %v1227, %v2187
        %v2284 = vmul.f32 %v1228, %v2188
        %v2285 = vmul.f32 %v1229, %v2189
        %v2286 = vmul.f32 %v1230, %v2190
        %v2287 = vmul.f32 %v1231, %v2191
        %v2288 = vmul.f32 %v1232, %v2192
        %v2289 = vmul.f32 %v1233, %v2193
        %v2290 = vmul.f32 %v1234, %v2194
        %v2291 = vmul.f32 %v1235, %v2195
        %v2292 = vmul.f32 %v1236, %v2196
        %v2293 = vmul.f32 %v1237, %v2197
        %v2294 = vmul.f32 %v1238, %v2198
        %v2295 = vmul.f32 %v1239, %v2199
        %v2296 = vmul.f32 %v1240, %v2200
        %v2297 = vmul.f32 %v1241, %v2201
        %v2298 = vmul.f32 %v1242, %v2202
        %v2299 = vmul.f32 %v1243, %v2203
        %v2300 = vmul.f32 %v1244, %v2204
        %v2301 = vmul.f32 %v1245, %v2205
        %v2302 = vmul.f32 %v1246, %v2206
        %v2303 = vmul.f32 %v1247, %v2207
        %v2304 = vmul.f32 %v1248, %v2208
        %v2305 = vmul.f32 %v1249, %v2209
        %v2306 = vmul.f32 %v1250, %v2210
        %v2307 = vmul.f32 %v1251, %v2211
        %v2308 = vmul.f32 %v1252, %v2212
        %v2309 = vmul.f32 %v1253, %v2213
        %v2310 = vmul.f32 %v1254, %v2214
        %v2311 = vmul.f32 %v1255, %v2215
        %v2312 = vmul.f32 %v1256, %v2216
        %v2313 = vmul.f32 %v1257, %v2217
        %v2314 = vmul.f32 %v1258, %v2218
        %v2315 = vmul.f32 %v1259, %v2219
        %v2316 = vmul.f32 %v1260, %v2220
        %v2317 = vmul.f32 %v1261, %v2221
        %v2318 = vmul.f32 %v1262, %v2222
        %v2319 = vmul.f32 %v1263, %v2223
        %v2320 = vmul.f32 %v1264, %v2224
        %v2321 = vmul.f32 %v1265, %v2225
        %v2322 = vmul.f32 %v1266, %v2226
        %v2323 = vmul.f32 %v1267, %v2227
        %v2324 = vmul.f32 %v1268, %v2228
        %v2325 = vmul.f32 %v1269, %v2229
        %v2326 = vmul.f32 %v1270, %v2230
        %v2327 = vmul.f32 %v1271, %v2231
        %v2328 = vmul.f32 %v1272, %v2232
        %v2329 = vmul.f32 %v1273, %v2233
        %v2330 = vmul.f32 %v1274, %v2234
        %v2331 = vmul.f32 %v1275, %v2235
        %v2332 = vld [vmem:[%s329] sm:$0xff]
        %v2333 = vld [vmem:[%s329 + $0x8] sm:$0xff]
        %v2334 = vld [vmem:[%s329 + $0x10] sm:$0xff]
        %v2335 = vld [vmem:[%s329 + $0x18] sm:$0xff]
        %v2336 = vld [vmem:[%s329 + $0x20] sm:$0xff]
        %v2337 = vld [vmem:[%s329 + $0x28] sm:$0xff]
        %v2338 = vld [vmem:[%s329 + $0x30] sm:$0xff]
        %v2339 = vld [vmem:[%s329 + $0x38] sm:$0xff]
        %v2340 = vld [vmem:[%s329 + $0x40] sm:$0xff]
        %v2341 = vld [vmem:[%s329 + $0x48] sm:$0xff]
        %v2342 = vld [vmem:[%s329 + $0x50] sm:$0xff]
        %v2343 = vld [vmem:[%s329 + $0x58] sm:$0xff]
        %v2356 = vlaneseq
        %v2357 = vshrl.u32 %v2356, 7
        %v2358 = vsub.s32 0, %v2357
        %v2359 = vrot.slane %v2332, %v2358
        %v2360 = vlaneseq
        %v2361 = vshrl.u32 %v2360, 7
        %v2362 = vsub.s32 1, %v2361
        %v2363 = vrot.slane %v2332, %v2362
        %v2364 = vlaneseq
        %v2365 = vshrl.u32 %v2364, 7
        %v2366 = vsub.s32 2, %v2365
        %v2367 = vrot.slane %v2332, %v2366
        %v2368 = vlaneseq
        %v2369 = vshrl.u32 %v2368, 7
        %v2370 = vsub.s32 3, %v2369
        %v2371 = vrot.slane %v2332, %v2370
        %v2372 = vlaneseq
        %v2373 = vshrl.u32 %v2372, 7
        %v2374 = vsub.s32 4, %v2373
        %v2375 = vrot.slane %v2332, %v2374
        %v2376 = vlaneseq
        %v2377 = vshrl.u32 %v2376, 7
        %v2378 = vsub.s32 5, %v2377
        %v2379 = vrot.slane %v2332, %v2378
        %v2380 = vlaneseq
        %v2381 = vshrl.u32 %v2380, 7
        %v2382 = vsub.s32 6, %v2381
        %v2383 = vrot.slane %v2332, %v2382
        %v2384 = vlaneseq
        %v2385 = vshrl.u32 %v2384, 7
        %v2386 = vsub.s32 7, %v2385
        %v2387 = vrot.slane %v2332, %v2386
        %v2388 = vlaneseq
        %v2389 = vshrl.u32 %v2388, 7
        %v2390 = vsub.s32 0, %v2389
        %v2391 = vrot.slane %v2333, %v2390
        %v2392 = vlaneseq
        %v2393 = vshrl.u32 %v2392, 7
        %v2394 = vsub.s32 1, %v2393
        %v2395 = vrot.slane %v2333, %v2394
        %v2396 = vlaneseq
        %v2397 = vshrl.u32 %v2396, 7
        %v2398 = vsub.s32 2, %v2397
        %v2399 = vrot.slane %v2333, %v2398
        %v2400 = vlaneseq
        %v2401 = vshrl.u32 %v2400, 7
        %v2402 = vsub.s32 3, %v2401
        %v2403 = vrot.slane %v2333, %v2402
        %v2404 = vlaneseq
        %v2405 = vshrl.u32 %v2404, 7
        %v2406 = vsub.s32 4, %v2405
        %v2407 = vrot.slane %v2333, %v2406
        %v2408 = vlaneseq
        %v2409 = vshrl.u32 %v2408, 7
        %v2410 = vsub.s32 5, %v2409
        %v2411 = vrot.slane %v2333, %v2410
        %v2412 = vlaneseq
        %v2413 = vshrl.u32 %v2412, 7
        %v2414 = vsub.s32 6, %v2413
        %v2415 = vrot.slane %v2333, %v2414
        %v2416 = vlaneseq
        %v2417 = vshrl.u32 %v2416, 7
        %v2418 = vsub.s32 7, %v2417
        %v2419 = vrot.slane %v2333, %v2418
        %v2420 = vlaneseq
        %v2421 = vshrl.u32 %v2420, 7
        %v2422 = vsub.s32 0, %v2421
        %v2423 = vrot.slane %v2334, %v2422
        %v2424 = vlaneseq
        %v2425 = vshrl.u32 %v2424, 7
        %v2426 = vsub.s32 1, %v2425
        %v2427 = vrot.slane %v2334, %v2426
        %v2428 = vlaneseq
        %v2429 = vshrl.u32 %v2428, 7
        %v2430 = vsub.s32 2, %v2429
        %v2431 = vrot.slane %v2334, %v2430
        %v2432 = vlaneseq
        %v2433 = vshrl.u32 %v2432, 7
        %v2434 = vsub.s32 3, %v2433
        %v2435 = vrot.slane %v2334, %v2434
        %v2436 = vlaneseq
        %v2437 = vshrl.u32 %v2436, 7
        %v2438 = vsub.s32 4, %v2437
        %v2439 = vrot.slane %v2334, %v2438
        %v2440 = vlaneseq
        %v2441 = vshrl.u32 %v2440, 7
        %v2442 = vsub.s32 5, %v2441
        %v2443 = vrot.slane %v2334, %v2442
        %v2444 = vlaneseq
        %v2445 = vshrl.u32 %v2444, 7
        %v2446 = vsub.s32 6, %v2445
        %v2447 = vrot.slane %v2334, %v2446
        %v2448 = vlaneseq
        %v2449 = vshrl.u32 %v2448, 7
        %v2450 = vsub.s32 7, %v2449
        %v2451 = vrot.slane %v2334, %v2450
        %v2452 = vlaneseq
        %v2453 = vshrl.u32 %v2452, 7
        %v2454 = vsub.s32 0, %v2453
        %v2455 = vrot.slane %v2335, %v2454
        %v2456 = vlaneseq
        %v2457 = vshrl.u32 %v2456, 7
        %v2458 = vsub.s32 1, %v2457
        %v2459 = vrot.slane %v2335, %v2458
        %v2460 = vlaneseq
        %v2461 = vshrl.u32 %v2460, 7
        %v2462 = vsub.s32 2, %v2461
        %v2463 = vrot.slane %v2335, %v2462
        %v2464 = vlaneseq
        %v2465 = vshrl.u32 %v2464, 7
        %v2466 = vsub.s32 3, %v2465
        %v2467 = vrot.slane %v2335, %v2466
        %v2468 = vlaneseq
        %v2469 = vshrl.u32 %v2468, 7
        %v2470 = vsub.s32 4, %v2469
        %v2471 = vrot.slane %v2335, %v2470
        %v2472 = vlaneseq
        %v2473 = vshrl.u32 %v2472, 7
        %v2474 = vsub.s32 5, %v2473
        %v2475 = vrot.slane %v2335, %v2474
        %v2476 = vlaneseq
        %v2477 = vshrl.u32 %v2476, 7
        %v2478 = vsub.s32 6, %v2477
        %v2479 = vrot.slane %v2335, %v2478
        %v2480 = vlaneseq
        %v2481 = vshrl.u32 %v2480, 7
        %v2482 = vsub.s32 7, %v2481
        %v2483 = vrot.slane %v2335, %v2482
        %v2484 = vlaneseq
        %v2485 = vshrl.u32 %v2484, 7
        %v2486 = vsub.s32 0, %v2485
        %v2487 = vrot.slane %v2336, %v2486
        %v2488 = vlaneseq
        %v2489 = vshrl.u32 %v2488, 7
        %v2490 = vsub.s32 1, %v2489
        %v2491 = vrot.slane %v2336, %v2490
        %v2492 = vlaneseq
        %v2493 = vshrl.u32 %v2492, 7
        %v2494 = vsub.s32 2, %v2493
        %v2495 = vrot.slane %v2336, %v2494
        %v2496 = vlaneseq
        %v2497 = vshrl.u32 %v2496, 7
        %v2498 = vsub.s32 3, %v2497
        %v2499 = vrot.slane %v2336, %v2498
        %v2500 = vlaneseq
        %v2501 = vshrl.u32 %v2500, 7
        %v2502 = vsub.s32 4, %v2501
        %v2503 = vrot.slane %v2336, %v2502
        %v2504 = vlaneseq
        %v2505 = vshrl.u32 %v2504, 7
        %v2506 = vsub.s32 5, %v2505
        %v2507 = vrot.slane %v2336, %v2506
        %v2508 = vlaneseq
        %v2509 = vshrl.u32 %v2508, 7
        %v2510 = vsub.s32 6, %v2509
        %v2511 = vrot.slane %v2336, %v2510
        %v2512 = vlaneseq
        %v2513 = vshrl.u32 %v2512, 7
        %v2514 = vsub.s32 7, %v2513
        %v2515 = vrot.slane %v2336, %v2514
        %v2516 = vlaneseq
        %v2517 = vshrl.u32 %v2516, 7
        %v2518 = vsub.s32 0, %v2517
        %v2519 = vrot.slane %v2337, %v2518
        %v2520 = vlaneseq
        %v2521 = vshrl.u32 %v2520, 7
        %v2522 = vsub.s32 1, %v2521
        %v2523 = vrot.slane %v2337, %v2522
        %v2524 = vlaneseq
        %v2525 = vshrl.u32 %v2524, 7
        %v2526 = vsub.s32 2, %v2525
        %v2527 = vrot.slane %v2337, %v2526
        %v2528 = vlaneseq
        %v2529 = vshrl.u32 %v2528, 7
        %v2530 = vsub.s32 3, %v2529
        %v2531 = vrot.slane %v2337, %v2530
        %v2532 = vlaneseq
        %v2533 = vshrl.u32 %v2532, 7
        %v2534 = vsub.s32 4, %v2533
        %v2535 = vrot.slane %v2337, %v2534
        %v2536 = vlaneseq
        %v2537 = vshrl.u32 %v2536, 7
        %v2538 = vsub.s32 5, %v2537
        %v2539 = vrot.slane %v2337, %v2538
        %v2540 = vlaneseq
        %v2541 = vshrl.u32 %v2540, 7
        %v2542 = vsub.s32 6, %v2541
        %v2543 = vrot.slane %v2337, %v2542
        %v2544 = vlaneseq
        %v2545 = vshrl.u32 %v2544, 7
        %v2546 = vsub.s32 7, %v2545
        %v2547 = vrot.slane %v2337, %v2546
        %v2548 = vlaneseq
        %v2549 = vshrl.u32 %v2548, 7
        %v2550 = vsub.s32 0, %v2549
        %v2551 = vrot.slane %v2338, %v2550
        %v2552 = vlaneseq
        %v2553 = vshrl.u32 %v2552, 7
        %v2554 = vsub.s32 1, %v2553
        %v2555 = vrot.slane %v2338, %v2554
        %v2556 = vlaneseq
        %v2557 = vshrl.u32 %v2556, 7
        %v2558 = vsub.s32 2, %v2557
        %v2559 = vrot.slane %v2338, %v2558
        %v2560 = vlaneseq
        %v2561 = vshrl.u32 %v2560, 7
        %v2562 = vsub.s32 3, %v2561
        %v2563 = vrot.slane %v2338, %v2562
        %v2564 = vlaneseq
        %v2565 = vshrl.u32 %v2564, 7
        %v2566 = vsub.s32 4, %v2565
        %v2567 = vrot.slane %v2338, %v2566
        %v2568 = vlaneseq
        %v2569 = vshrl.u32 %v2568, 7
        %v2570 = vsub.s32 5, %v2569
        %v2571 = vrot.slane %v2338, %v2570
        %v2572 = vlaneseq
        %v2573 = vshrl.u32 %v2572, 7
        %v2574 = vsub.s32 6, %v2573
        %v2575 = vrot.slane %v2338, %v2574
        %v2576 = vlaneseq
        %v2577 = vshrl.u32 %v2576, 7
        %v2578 = vsub.s32 7, %v2577
        %v2579 = vrot.slane %v2338, %v2578
        %v2580 = vlaneseq
        %v2581 = vshrl.u32 %v2580, 7
        %v2582 = vsub.s32 0, %v2581
        %v2583 = vrot.slane %v2339, %v2582
        %v2584 = vlaneseq
        %v2585 = vshrl.u32 %v2584, 7
        %v2586 = vsub.s32 1, %v2585
        %v2587 = vrot.slane %v2339, %v2586
        %v2588 = vlaneseq
        %v2589 = vshrl.u32 %v2588, 7
        %v2590 = vsub.s32 2, %v2589
        %v2591 = vrot.slane %v2339, %v2590
        %v2592 = vlaneseq
        %v2593 = vshrl.u32 %v2592, 7
        %v2594 = vsub.s32 3, %v2593
        %v2595 = vrot.slane %v2339, %v2594
        %v2596 = vlaneseq
        %v2597 = vshrl.u32 %v2596, 7
        %v2598 = vsub.s32 4, %v2597
        %v2599 = vrot.slane %v2339, %v2598
        %v2600 = vlaneseq
        %v2601 = vshrl.u32 %v2600, 7
        %v2602 = vsub.s32 5, %v2601
        %v2603 = vrot.slane %v2339, %v2602
        %v2604 = vlaneseq
        %v2605 = vshrl.u32 %v2604, 7
        %v2606 = vsub.s32 6, %v2605
        %v2607 = vrot.slane %v2339, %v2606
        %v2608 = vlaneseq
        %v2609 = vshrl.u32 %v2608, 7
        %v2610 = vsub.s32 7, %v2609
        %v2611 = vrot.slane %v2339, %v2610
        %v2612 = vlaneseq
        %v2613 = vshrl.u32 %v2612, 7
        %v2614 = vsub.s32 0, %v2613
        %v2615 = vrot.slane %v2340, %v2614
        %v2616 = vlaneseq
        %v2617 = vshrl.u32 %v2616, 7
        %v2618 = vsub.s32 1, %v2617
        %v2619 = vrot.slane %v2340, %v2618
        %v2620 = vlaneseq
        %v2621 = vshrl.u32 %v2620, 7
        %v2622 = vsub.s32 2, %v2621
        %v2623 = vrot.slane %v2340, %v2622
        %v2624 = vlaneseq
        %v2625 = vshrl.u32 %v2624, 7
        %v2626 = vsub.s32 3, %v2625
        %v2627 = vrot.slane %v2340, %v2626
        %v2628 = vlaneseq
        %v2629 = vshrl.u32 %v2628, 7
        %v2630 = vsub.s32 4, %v2629
        %v2631 = vrot.slane %v2340, %v2630
        %v2632 = vlaneseq
        %v2633 = vshrl.u32 %v2632, 7
        %v2634 = vsub.s32 5, %v2633
        %v2635 = vrot.slane %v2340, %v2634
        %v2636 = vlaneseq
        %v2637 = vshrl.u32 %v2636, 7
        %v2638 = vsub.s32 6, %v2637
        %v2639 = vrot.slane %v2340, %v2638
        %v2640 = vlaneseq
        %v2641 = vshrl.u32 %v2640, 7
        %v2642 = vsub.s32 7, %v2641
        %v2643 = vrot.slane %v2340, %v2642
        %v2644 = vlaneseq
        %v2645 = vshrl.u32 %v2644, 7
        %v2646 = vsub.s32 0, %v2645
        %v2647 = vrot.slane %v2341, %v2646
        %v2648 = vlaneseq
        %v2649 = vshrl.u32 %v2648, 7
        %v2650 = vsub.s32 1, %v2649
        %v2651 = vrot.slane %v2341, %v2650
        %v2652 = vlaneseq
        %v2653 = vshrl.u32 %v2652, 7
        %v2654 = vsub.s32 2, %v2653
        %v2655 = vrot.slane %v2341, %v2654
        %v2656 = vlaneseq
        %v2657 = vshrl.u32 %v2656, 7
        %v2658 = vsub.s32 3, %v2657
        %v2659 = vrot.slane %v2341, %v2658
        %v2660 = vlaneseq
        %v2661 = vshrl.u32 %v2660, 7
        %v2662 = vsub.s32 4, %v2661
        %v2663 = vrot.slane %v2341, %v2662
        %v2664 = vlaneseq
        %v2665 = vshrl.u32 %v2664, 7
        %v2666 = vsub.s32 5, %v2665
        %v2667 = vrot.slane %v2341, %v2666
        %v2668 = vlaneseq
        %v2669 = vshrl.u32 %v2668, 7
        %v2670 = vsub.s32 6, %v2669
        %v2671 = vrot.slane %v2341, %v2670
        %v2672 = vlaneseq
        %v2673 = vshrl.u32 %v2672, 7
        %v2674 = vsub.s32 7, %v2673
        %v2675 = vrot.slane %v2341, %v2674
        %v2676 = vlaneseq
        %v2677 = vshrl.u32 %v2676, 7
        %v2678 = vsub.s32 0, %v2677
        %v2679 = vrot.slane %v2342, %v2678
        %v2680 = vlaneseq
        %v2681 = vshrl.u32 %v2680, 7
        %v2682 = vsub.s32 1, %v2681
        %v2683 = vrot.slane %v2342, %v2682
        %v2684 = vlaneseq
        %v2685 = vshrl.u32 %v2684, 7
        %v2686 = vsub.s32 2, %v2685
        %v2687 = vrot.slane %v2342, %v2686
        %v2688 = vlaneseq
        %v2689 = vshrl.u32 %v2688, 7
        %v2690 = vsub.s32 3, %v2689
        %v2691 = vrot.slane %v2342, %v2690
        %v2692 = vlaneseq
        %v2693 = vshrl.u32 %v2692, 7
        %v2694 = vsub.s32 4, %v2693
        %v2695 = vrot.slane %v2342, %v2694
        %v2696 = vlaneseq
        %v2697 = vshrl.u32 %v2696, 7
        %v2698 = vsub.s32 5, %v2697
        %v2699 = vrot.slane %v2342, %v2698
        %v2700 = vlaneseq
        %v2701 = vshrl.u32 %v2700, 7
        %v2702 = vsub.s32 6, %v2701
        %v2703 = vrot.slane %v2342, %v2702
        %v2704 = vlaneseq
        %v2705 = vshrl.u32 %v2704, 7
        %v2706 = vsub.s32 7, %v2705
        %v2707 = vrot.slane %v2342, %v2706
        %v2708 = vlaneseq
        %v2709 = vshrl.u32 %v2708, 7
        %v2710 = vsub.s32 0, %v2709
        %v2711 = vrot.slane %v2343, %v2710
        %v2712 = vlaneseq
        %v2713 = vshrl.u32 %v2712, 7
        %v2714 = vsub.s32 1, %v2713
        %v2715 = vrot.slane %v2343, %v2714
        %v2716 = vlaneseq
        %v2717 = vshrl.u32 %v2716, 7
        %v2718 = vsub.s32 2, %v2717
        %v2719 = vrot.slane %v2343, %v2718
        %v2720 = vlaneseq
        %v2721 = vshrl.u32 %v2720, 7
        %v2722 = vsub.s32 3, %v2721
        %v2723 = vrot.slane %v2343, %v2722
        %v2724 = vlaneseq
        %v2725 = vshrl.u32 %v2724, 7
        %v2726 = vsub.s32 4, %v2725
        %v2727 = vrot.slane %v2343, %v2726
        %v2728 = vlaneseq
        %v2729 = vshrl.u32 %v2728, 7
        %v2730 = vsub.s32 5, %v2729
        %v2731 = vrot.slane %v2343, %v2730
        %v2732 = vlaneseq
        %v2733 = vshrl.u32 %v2732, 7
        %v2734 = vsub.s32 6, %v2733
        %v2735 = vrot.slane %v2343, %v2734
        %v2736 = vlaneseq
        %v2737 = vshrl.u32 %v2736, 7
        %v2738 = vsub.s32 7, %v2737
        %v2739 = vrot.slane %v2343, %v2738
        %v2836 = vmul.f32 %v2236, %v2359
        %v2837 = vmul.f32 %v2237, %v2363
        %v2838 = vmul.f32 %v2238, %v2367
        %v2839 = vmul.f32 %v2239, %v2371
        %v2840 = vmul.f32 %v2240, %v2375
        %v2841 = vmul.f32 %v2241, %v2379
        %v2842 = vmul.f32 %v2242, %v2383
        %v2843 = vmul.f32 %v2243, %v2387
        %v2844 = vmul.f32 %v2244, %v2391
        %v2845 = vmul.f32 %v2245, %v2395
        %v2846 = vmul.f32 %v2246, %v2399
        %v2847 = vmul.f32 %v2247, %v2403
        %v2848 = vmul.f32 %v2248, %v2407
        %v2849 = vmul.f32 %v2249, %v2411
        %v2850 = vmul.f32 %v2250, %v2415
        %v2851 = vmul.f32 %v2251, %v2419
        %v2852 = vmul.f32 %v2252, %v2423
        %v2853 = vmul.f32 %v2253, %v2427
        %v2854 = vmul.f32 %v2254, %v2431
        %v2855 = vmul.f32 %v2255, %v2435
        %v2856 = vmul.f32 %v2256, %v2439
        %v2857 = vmul.f32 %v2257, %v2443
        %v2858 = vmul.f32 %v2258, %v2447
        %v2859 = vmul.f32 %v2259, %v2451
        %v2860 = vmul.f32 %v2260, %v2455
        %v2861 = vmul.f32 %v2261, %v2459
        %v2862 = vmul.f32 %v2262, %v2463
        %v2863 = vmul.f32 %v2263, %v2467
        %v2864 = vmul.f32 %v2264, %v2471
        %v2865 = vmul.f32 %v2265, %v2475
        %v2866 = vmul.f32 %v2266, %v2479
        %v2867 = vmul.f32 %v2267, %v2483
        %v2868 = vmul.f32 %v2268, %v2487
        %v2869 = vmul.f32 %v2269, %v2491
        %v2870 = vmul.f32 %v2270, %v2495
        %v2871 = vmul.f32 %v2271, %v2499
        %v2872 = vmul.f32 %v2272, %v2503
        %v2873 = vmul.f32 %v2273, %v2507
        %v2874 = vmul.f32 %v2274, %v2511
        %v2875 = vmul.f32 %v2275, %v2515
        %v2876 = vmul.f32 %v2276, %v2519
        %v2877 = vmul.f32 %v2277, %v2523
        %v2878 = vmul.f32 %v2278, %v2527
        %v2879 = vmul.f32 %v2279, %v2531
        %v2880 = vmul.f32 %v2280, %v2535
        %v2881 = vmul.f32 %v2281, %v2539
        %v2882 = vmul.f32 %v2282, %v2543
        %v2883 = vmul.f32 %v2283, %v2547
        %v2884 = vmul.f32 %v2284, %v2551
        %v2885 = vmul.f32 %v2285, %v2555
        %v2886 = vmul.f32 %v2286, %v2559
        %v2887 = vmul.f32 %v2287, %v2563
        %v2888 = vmul.f32 %v2288, %v2567
        %v2889 = vmul.f32 %v2289, %v2571
        %v2890 = vmul.f32 %v2290, %v2575
        %v2891 = vmul.f32 %v2291, %v2579
        %v2892 = vmul.f32 %v2292, %v2583
        %v2893 = vmul.f32 %v2293, %v2587
        %v2894 = vmul.f32 %v2294, %v2591
        %v2895 = vmul.f32 %v2295, %v2595
        %v2896 = vmul.f32 %v2296, %v2599
        %v2897 = vmul.f32 %v2297, %v2603
        %v2898 = vmul.f32 %v2298, %v2607
        %v2899 = vmul.f32 %v2299, %v2611
        %v2900 = vmul.f32 %v2300, %v2615
        %v2901 = vmul.f32 %v2301, %v2619
        %v2902 = vmul.f32 %v2302, %v2623
        %v2903 = vmul.f32 %v2303, %v2627
        %v2904 = vmul.f32 %v2304, %v2631
        %v2905 = vmul.f32 %v2305, %v2635
        %v2906 = vmul.f32 %v2306, %v2639
        %v2907 = vmul.f32 %v2307, %v2643
        %v2908 = vmul.f32 %v2308, %v2647
        %v2909 = vmul.f32 %v2309, %v2651
        %v2910 = vmul.f32 %v2310, %v2655
        %v2911 = vmul.f32 %v2311, %v2659
        %v2912 = vmul.f32 %v2312, %v2663
        %v2913 = vmul.f32 %v2313, %v2667
        %v2914 = vmul.f32 %v2314, %v2671
        %v2915 = vmul.f32 %v2315, %v2675
        %v2916 = vmul.f32 %v2316, %v2679
        %v2917 = vmul.f32 %v2317, %v2683
        %v2918 = vmul.f32 %v2318, %v2687
        %v2919 = vmul.f32 %v2319, %v2691
        %v2920 = vmul.f32 %v2320, %v2695
        %v2921 = vmul.f32 %v2321, %v2699
        %v2922 = vmul.f32 %v2322, %v2703
        %v2923 = vmul.f32 %v2323, %v2707
        %v2924 = vmul.f32 %v2324, %v2711
        %v2925 = vmul.f32 %v2325, %v2715
        %v2926 = vmul.f32 %v2326, %v2719
        %v2927 = vmul.f32 %v2327, %v2723
        %v2928 = vmul.f32 %v2328, %v2727
        %v2929 = vmul.f32 %v2329, %v2731
        %v2930 = vmul.f32 %v2330, %v2735
        %v2931 = vmul.f32 %v2331, %v2739
        %v2932 = vld [vmem:[%s338] sm:$0xff]
        %v2933 = vld [vmem:[%s338 + $0x8] sm:$0xff]
        %v2934 = vld [vmem:[%s338 + $0x10] sm:$0xff]
        %v2935 = vld [vmem:[%s338 + $0x18] sm:$0xff]
        %v2936 = vld [vmem:[%s338 + $0x20] sm:$0xff]
        %v2937 = vld [vmem:[%s338 + $0x28] sm:$0xff]
        %v2938 = vld [vmem:[%s338 + $0x30] sm:$0xff]
        %v2939 = vld [vmem:[%s338 + $0x38] sm:$0xff]
        %v2940 = vld [vmem:[%s338 + $0x40] sm:$0xff]
        %v2941 = vld [vmem:[%s338 + $0x48] sm:$0xff]
        %v2942 = vld [vmem:[%s338 + $0x50] sm:$0xff]
        %v2943 = vld [vmem:[%s338 + $0x58] sm:$0xff]
        %v2956 = vlaneseq
        %v2957 = vshrl.u32 %v2956, 7
        %v2958 = vsub.s32 0, %v2957
        %v2959 = vrot.slane %v2932, %v2958
        %v2960 = vlaneseq
        %v2961 = vshrl.u32 %v2960, 7
        %v2962 = vsub.s32 1, %v2961
        %v2963 = vrot.slane %v2932, %v2962
        %v2964 = vlaneseq
        %v2965 = vshrl.u32 %v2964, 7
        %v2966 = vsub.s32 2, %v2965
        %v2967 = vrot.slane %v2932, %v2966
        %v2968 = vlaneseq
        %v2969 = vshrl.u32 %v2968, 7
        %v2970 = vsub.s32 3, %v2969
        %v2971 = vrot.slane %v2932, %v2970
        %v2972 = vlaneseq
        %v2973 = vshrl.u32 %v2972, 7
        %v2974 = vsub.s32 4, %v2973
        %v2975 = vrot.slane %v2932, %v2974
        %v2976 = vlaneseq
        %v2977 = vshrl.u32 %v2976, 7
        %v2978 = vsub.s32 5, %v2977
        %v2979 = vrot.slane %v2932, %v2978
        %v2980 = vlaneseq
        %v2981 = vshrl.u32 %v2980, 7
        %v2982 = vsub.s32 6, %v2981
        %v2983 = vrot.slane %v2932, %v2982
        %v2984 = vlaneseq
        %v2985 = vshrl.u32 %v2984, 7
        %v2986 = vsub.s32 7, %v2985
        %v2987 = vrot.slane %v2932, %v2986
        %v2988 = vlaneseq
        %v2989 = vshrl.u32 %v2988, 7
        %v2990 = vsub.s32 0, %v2989
        %v2991 = vrot.slane %v2933, %v2990
        %v2992 = vlaneseq
        %v2993 = vshrl.u32 %v2992, 7
        %v2994 = vsub.s32 1, %v2993
        %v2995 = vrot.slane %v2933, %v2994
        %v2996 = vlaneseq
        %v2997 = vshrl.u32 %v2996, 7
        %v2998 = vsub.s32 2, %v2997
        %v2999 = vrot.slane %v2933, %v2998
        %v3000 = vlaneseq
        %v3001 = vshrl.u32 %v3000, 7
        %v3002 = vsub.s32 3, %v3001
        %v3003 = vrot.slane %v2933, %v3002
        %v3004 = vlaneseq
        %v3005 = vshrl.u32 %v3004, 7
        %v3006 = vsub.s32 4, %v3005
        %v3007 = vrot.slane %v2933, %v3006
        %v3008 = vlaneseq
        %v3009 = vshrl.u32 %v3008, 7
        %v3010 = vsub.s32 5, %v3009
        %v3011 = vrot.slane %v2933, %v3010
        %v3012 = vlaneseq
        %v3013 = vshrl.u32 %v3012, 7
        %v3014 = vsub.s32 6, %v3013
        %v3015 = vrot.slane %v2933, %v3014
        %v3016 = vlaneseq
        %v3017 = vshrl.u32 %v3016, 7
        %v3018 = vsub.s32 7, %v3017
        %v3019 = vrot.slane %v2933, %v3018
        %v3020 = vlaneseq
        %v3021 = vshrl.u32 %v3020, 7
        %v3022 = vsub.s32 0, %v3021
        %v3023 = vrot.slane %v2934, %v3022
        %v3024 = vlaneseq
        %v3025 = vshrl.u32 %v3024, 7
        %v3026 = vsub.s32 1, %v3025
        %v3027 = vrot.slane %v2934, %v3026
        %v3028 = vlaneseq
        %v3029 = vshrl.u32 %v3028, 7
        %v3030 = vsub.s32 2, %v3029
        %v3031 = vrot.slane %v2934, %v3030
        %v3032 = vlaneseq
        %v3033 = vshrl.u32 %v3032, 7
        %v3034 = vsub.s32 3, %v3033
        %v3035 = vrot.slane %v2934, %v3034
        %v3036 = vlaneseq
        %v3037 = vshrl.u32 %v3036, 7
        %v3038 = vsub.s32 4, %v3037
        %v3039 = vrot.slane %v2934, %v3038
        %v3040 = vlaneseq
        %v3041 = vshrl.u32 %v3040, 7
        %v3042 = vsub.s32 5, %v3041
        %v3043 = vrot.slane %v2934, %v3042
        %v3044 = vlaneseq
        %v3045 = vshrl.u32 %v3044, 7
        %v3046 = vsub.s32 6, %v3045
        %v3047 = vrot.slane %v2934, %v3046
        %v3048 = vlaneseq
        %v3049 = vshrl.u32 %v3048, 7
        %v3050 = vsub.s32 7, %v3049
        %v3051 = vrot.slane %v2934, %v3050
        %v3052 = vlaneseq
        %v3053 = vshrl.u32 %v3052, 7
        %v3054 = vsub.s32 0, %v3053
        %v3055 = vrot.slane %v2935, %v3054
        %v3056 = vlaneseq
        %v3057 = vshrl.u32 %v3056, 7
        %v3058 = vsub.s32 1, %v3057
        %v3059 = vrot.slane %v2935, %v3058
        %v3060 = vlaneseq
        %v3061 = vshrl.u32 %v3060, 7
        %v3062 = vsub.s32 2, %v3061
        %v3063 = vrot.slane %v2935, %v3062
        %v3064 = vlaneseq
        %v3065 = vshrl.u32 %v3064, 7
        %v3066 = vsub.s32 3, %v3065
        %v3067 = vrot.slane %v2935, %v3066
        %v3068 = vlaneseq
        %v3069 = vshrl.u32 %v3068, 7
        %v3070 = vsub.s32 4, %v3069
        %v3071 = vrot.slane %v2935, %v3070
        %v3072 = vlaneseq
        %v3073 = vshrl.u32 %v3072, 7
        %v3074 = vsub.s32 5, %v3073
        %v3075 = vrot.slane %v2935, %v3074
        %v3076 = vlaneseq
        %v3077 = vshrl.u32 %v3076, 7
        %v3078 = vsub.s32 6, %v3077
        %v3079 = vrot.slane %v2935, %v3078
        %v3080 = vlaneseq
        %v3081 = vshrl.u32 %v3080, 7
        %v3082 = vsub.s32 7, %v3081
        %v3083 = vrot.slane %v2935, %v3082
        %v3084 = vlaneseq
        %v3085 = vshrl.u32 %v3084, 7
        %v3086 = vsub.s32 0, %v3085
        %v3087 = vrot.slane %v2936, %v3086
        %v3088 = vlaneseq
        %v3089 = vshrl.u32 %v3088, 7
        %v3090 = vsub.s32 1, %v3089
        %v3091 = vrot.slane %v2936, %v3090
        %v3092 = vlaneseq
        %v3093 = vshrl.u32 %v3092, 7
        %v3094 = vsub.s32 2, %v3093
        %v3095 = vrot.slane %v2936, %v3094
        %v3096 = vlaneseq
        %v3097 = vshrl.u32 %v3096, 7
        %v3098 = vsub.s32 3, %v3097
        %v3099 = vrot.slane %v2936, %v3098
        %v3100 = vlaneseq
        %v3101 = vshrl.u32 %v3100, 7
        %v3102 = vsub.s32 4, %v3101
        %v3103 = vrot.slane %v2936, %v3102
        %v3104 = vlaneseq
        %v3105 = vshrl.u32 %v3104, 7
        %v3106 = vsub.s32 5, %v3105
        %v3107 = vrot.slane %v2936, %v3106
        %v3108 = vlaneseq
        %v3109 = vshrl.u32 %v3108, 7
        %v3110 = vsub.s32 6, %v3109
        %v3111 = vrot.slane %v2936, %v3110
        %v3112 = vlaneseq
        %v3113 = vshrl.u32 %v3112, 7
        %v3114 = vsub.s32 7, %v3113
        %v3115 = vrot.slane %v2936, %v3114
        %v3116 = vlaneseq
        %v3117 = vshrl.u32 %v3116, 7
        %v3118 = vsub.s32 0, %v3117
        %v3119 = vrot.slane %v2937, %v3118
        %v3120 = vlaneseq
        %v3121 = vshrl.u32 %v3120, 7
        %v3122 = vsub.s32 1, %v3121
        %v3123 = vrot.slane %v2937, %v3122
        %v3124 = vlaneseq
        %v3125 = vshrl.u32 %v3124, 7
        %v3126 = vsub.s32 2, %v3125
        %v3127 = vrot.slane %v2937, %v3126
        %v3128 = vlaneseq
        %v3129 = vshrl.u32 %v3128, 7
        %v3130 = vsub.s32 3, %v3129
        %v3131 = vrot.slane %v2937, %v3130
        %v3132 = vlaneseq
        %v3133 = vshrl.u32 %v3132, 7
        %v3134 = vsub.s32 4, %v3133
        %v3135 = vrot.slane %v2937, %v3134
        %v3136 = vlaneseq
        %v3137 = vshrl.u32 %v3136, 7
        %v3138 = vsub.s32 5, %v3137
        %v3139 = vrot.slane %v2937, %v3138
        %v3140 = vlaneseq
        %v3141 = vshrl.u32 %v3140, 7
        %v3142 = vsub.s32 6, %v3141
        %v3143 = vrot.slane %v2937, %v3142
        %v3144 = vlaneseq
        %v3145 = vshrl.u32 %v3144, 7
        %v3146 = vsub.s32 7, %v3145
        %v3147 = vrot.slane %v2937, %v3146
        %v3148 = vlaneseq
        %v3149 = vshrl.u32 %v3148, 7
        %v3150 = vsub.s32 0, %v3149
        %v3151 = vrot.slane %v2938, %v3150
        %v3152 = vlaneseq
        %v3153 = vshrl.u32 %v3152, 7
        %v3154 = vsub.s32 1, %v3153
        %v3155 = vrot.slane %v2938, %v3154
        %v3156 = vlaneseq
        %v3157 = vshrl.u32 %v3156, 7
        %v3158 = vsub.s32 2, %v3157
        %v3159 = vrot.slane %v2938, %v3158
        %v3160 = vlaneseq
        %v3161 = vshrl.u32 %v3160, 7
        %v3162 = vsub.s32 3, %v3161
        %v3163 = vrot.slane %v2938, %v3162
        %v3164 = vlaneseq
        %v3165 = vshrl.u32 %v3164, 7
        %v3166 = vsub.s32 4, %v3165
        %v3167 = vrot.slane %v2938, %v3166
        %v3168 = vlaneseq
        %v3169 = vshrl.u32 %v3168, 7
        %v3170 = vsub.s32 5, %v3169
        %v3171 = vrot.slane %v2938, %v3170
        %v3172 = vlaneseq
        %v3173 = vshrl.u32 %v3172, 7
        %v3174 = vsub.s32 6, %v3173
        %v3175 = vrot.slane %v2938, %v3174
        %v3176 = vlaneseq
        %v3177 = vshrl.u32 %v3176, 7
        %v3178 = vsub.s32 7, %v3177
        %v3179 = vrot.slane %v2938, %v3178
        %v3180 = vlaneseq
        %v3181 = vshrl.u32 %v3180, 7
        %v3182 = vsub.s32 0, %v3181
        %v3183 = vrot.slane %v2939, %v3182
        %v3184 = vlaneseq
        %v3185 = vshrl.u32 %v3184, 7
        %v3186 = vsub.s32 1, %v3185
        %v3187 = vrot.slane %v2939, %v3186
        %v3188 = vlaneseq
        %v3189 = vshrl.u32 %v3188, 7
        %v3190 = vsub.s32 2, %v3189
        %v3191 = vrot.slane %v2939, %v3190
        %v3192 = vlaneseq
        %v3193 = vshrl.u32 %v3192, 7
        %v3194 = vsub.s32 3, %v3193
        %v3195 = vrot.slane %v2939, %v3194
        %v3196 = vlaneseq
        %v3197 = vshrl.u32 %v3196, 7
        %v3198 = vsub.s32 4, %v3197
        %v3199 = vrot.slane %v2939, %v3198
        %v3200 = vlaneseq
        %v3201 = vshrl.u32 %v3200, 7
        %v3202 = vsub.s32 5, %v3201
        %v3203 = vrot.slane %v2939, %v3202
        %v3204 = vlaneseq
        %v3205 = vshrl.u32 %v3204, 7
        %v3206 = vsub.s32 6, %v3205
        %v3207 = vrot.slane %v2939, %v3206
        %v3208 = vlaneseq
        %v3209 = vshrl.u32 %v3208, 7
        %v3210 = vsub.s32 7, %v3209
        %v3211 = vrot.slane %v2939, %v3210
        %v3212 = vlaneseq
        %v3213 = vshrl.u32 %v3212, 7
        %v3214 = vsub.s32 0, %v3213
        %v3215 = vrot.slane %v2940, %v3214
        %v3216 = vlaneseq
        %v3217 = vshrl.u32 %v3216, 7
        %v3218 = vsub.s32 1, %v3217
        %v3219 = vrot.slane %v2940, %v3218
        %v3220 = vlaneseq
        %v3221 = vshrl.u32 %v3220, 7
        %v3222 = vsub.s32 2, %v3221
        %v3223 = vrot.slane %v2940, %v3222
        %v3224 = vlaneseq
        %v3225 = vshrl.u32 %v3224, 7
        %v3226 = vsub.s32 3, %v3225
        %v3227 = vrot.slane %v2940, %v3226
        %v3228 = vlaneseq
        %v3229 = vshrl.u32 %v3228, 7
        %v3230 = vsub.s32 4, %v3229
        %v3231 = vrot.slane %v2940, %v3230
        %v3232 = vlaneseq
        %v3233 = vshrl.u32 %v3232, 7
        %v3234 = vsub.s32 5, %v3233
        %v3235 = vrot.slane %v2940, %v3234
        %v3236 = vlaneseq
        %v3237 = vshrl.u32 %v3236, 7
        %v3238 = vsub.s32 6, %v3237
        %v3239 = vrot.slane %v2940, %v3238
        %v3240 = vlaneseq
        %v3241 = vshrl.u32 %v3240, 7
        %v3242 = vsub.s32 7, %v3241
        %v3243 = vrot.slane %v2940, %v3242
        %v3244 = vlaneseq
        %v3245 = vshrl.u32 %v3244, 7
        %v3246 = vsub.s32 0, %v3245
        %v3247 = vrot.slane %v2941, %v3246
        %v3248 = vlaneseq
        %v3249 = vshrl.u32 %v3248, 7
        %v3250 = vsub.s32 1, %v3249
        %v3251 = vrot.slane %v2941, %v3250
        %v3252 = vlaneseq
        %v3253 = vshrl.u32 %v3252, 7
        %v3254 = vsub.s32 2, %v3253
        %v3255 = vrot.slane %v2941, %v3254
        %v3256 = vlaneseq
        %v3257 = vshrl.u32 %v3256, 7
        %v3258 = vsub.s32 3, %v3257
        %v3259 = vrot.slane %v2941, %v3258
        %v3260 = vlaneseq
        %v3261 = vshrl.u32 %v3260, 7
        %v3262 = vsub.s32 4, %v3261
        %v3263 = vrot.slane %v2941, %v3262
        %v3264 = vlaneseq
        %v3265 = vshrl.u32 %v3264, 7
        %v3266 = vsub.s32 5, %v3265
        %v3267 = vrot.slane %v2941, %v3266
        %v3268 = vlaneseq
        %v3269 = vshrl.u32 %v3268, 7
        %v3270 = vsub.s32 6, %v3269
        %v3271 = vrot.slane %v2941, %v3270
        %v3272 = vlaneseq
        %v3273 = vshrl.u32 %v3272, 7
        %v3274 = vsub.s32 7, %v3273
        %v3275 = vrot.slane %v2941, %v3274
        %v3276 = vlaneseq
        %v3277 = vshrl.u32 %v3276, 7
        %v3278 = vsub.s32 0, %v3277
        %v3279 = vrot.slane %v2942, %v3278
        %v3280 = vlaneseq
        %v3281 = vshrl.u32 %v3280, 7
        %v3282 = vsub.s32 1, %v3281
        %v3283 = vrot.slane %v2942, %v3282
        %v3284 = vlaneseq
        %v3285 = vshrl.u32 %v3284, 7
        %v3286 = vsub.s32 2, %v3285
        %v3287 = vrot.slane %v2942, %v3286
        %v3288 = vlaneseq
        %v3289 = vshrl.u32 %v3288, 7
        %v3290 = vsub.s32 3, %v3289
        %v3291 = vrot.slane %v2942, %v3290
        %v3292 = vlaneseq
        %v3293 = vshrl.u32 %v3292, 7
        %v3294 = vsub.s32 4, %v3293
        %v3295 = vrot.slane %v2942, %v3294
        %v3296 = vlaneseq
        %v3297 = vshrl.u32 %v3296, 7
        %v3298 = vsub.s32 5, %v3297
        %v3299 = vrot.slane %v2942, %v3298
        %v3300 = vlaneseq
        %v3301 = vshrl.u32 %v3300, 7
        %v3302 = vsub.s32 6, %v3301
        %v3303 = vrot.slane %v2942, %v3302
        %v3304 = vlaneseq
        %v3305 = vshrl.u32 %v3304, 7
        %v3306 = vsub.s32 7, %v3305
        %v3307 = vrot.slane %v2942, %v3306
        %v3308 = vlaneseq
        %v3309 = vshrl.u32 %v3308, 7
        %v3310 = vsub.s32 0, %v3309
        %v3311 = vrot.slane %v2943, %v3310
        %v3312 = vlaneseq
        %v3313 = vshrl.u32 %v3312, 7
        %v3314 = vsub.s32 1, %v3313
        %v3315 = vrot.slane %v2943, %v3314
        %v3316 = vlaneseq
        %v3317 = vshrl.u32 %v3316, 7
        %v3318 = vsub.s32 2, %v3317
        %v3319 = vrot.slane %v2943, %v3318
        %v3320 = vlaneseq
        %v3321 = vshrl.u32 %v3320, 7
        %v3322 = vsub.s32 3, %v3321
        %v3323 = vrot.slane %v2943, %v3322
        %v3324 = vlaneseq
        %v3325 = vshrl.u32 %v3324, 7
        %v3326 = vsub.s32 4, %v3325
        %v3327 = vrot.slane %v2943, %v3326
        %v3328 = vlaneseq
        %v3329 = vshrl.u32 %v3328, 7
        %v3330 = vsub.s32 5, %v3329
        %v3331 = vrot.slane %v2943, %v3330
        %v3332 = vlaneseq
        %v3333 = vshrl.u32 %v3332, 7
        %v3334 = vsub.s32 6, %v3333
        %v3335 = vrot.slane %v2943, %v3334
        %v3336 = vlaneseq
        %v3337 = vshrl.u32 %v3336, 7
        %v3338 = vsub.s32 7, %v3337
        %v3339 = vrot.slane %v2943, %v3338
        %v3436 = vadd.f32 %v2836, %v2959
        %v3437 = vadd.f32 %v2837, %v2963
        %v3438 = vadd.f32 %v2838, %v2967
        %v3439 = vadd.f32 %v2839, %v2971
        %v3440 = vadd.f32 %v2840, %v2975
        %v3441 = vadd.f32 %v2841, %v2979
        %v3442 = vadd.f32 %v2842, %v2983
        %v3443 = vadd.f32 %v2843, %v2987
        %v3444 = vadd.f32 %v2844, %v2991
        %v3445 = vadd.f32 %v2845, %v2995
        %v3446 = vadd.f32 %v2846, %v2999
        %v3447 = vadd.f32 %v2847, %v3003
        %v3448 = vadd.f32 %v2848, %v3007
        %v3449 = vadd.f32 %v2849, %v3011
        %v3450 = vadd.f32 %v2850, %v3015
        %v3451 = vadd.f32 %v2851, %v3019
        %v3452 = vadd.f32 %v2852, %v3023
        %v3453 = vadd.f32 %v2853, %v3027
        %v3454 = vadd.f32 %v2854, %v3031
        %v3455 = vadd.f32 %v2855, %v3035
        %v3456 = vadd.f32 %v2856, %v3039
        %v3457 = vadd.f32 %v2857, %v3043
        %v3458 = vadd.f32 %v2858, %v3047
        %v3459 = vadd.f32 %v2859, %v3051
        %v3460 = vadd.f32 %v2860, %v3055
        %v3461 = vadd.f32 %v2861, %v3059
        %v3462 = vadd.f32 %v2862, %v3063
        %v3463 = vadd.f32 %v2863, %v3067
        %v3464 = vadd.f32 %v2864, %v3071
        %v3465 = vadd.f32 %v2865, %v3075
        %v3466 = vadd.f32 %v2866, %v3079
        %v3467 = vadd.f32 %v2867, %v3083
        %v3468 = vadd.f32 %v2868, %v3087
        %v3469 = vadd.f32 %v2869, %v3091
        %v3470 = vadd.f32 %v2870, %v3095
        %v3471 = vadd.f32 %v2871, %v3099
        %v3472 = vadd.f32 %v2872, %v3103
        %v3473 = vadd.f32 %v2873, %v3107
        %v3474 = vadd.f32 %v2874, %v3111
        %v3475 = vadd.f32 %v2875, %v3115
        %v3476 = vadd.f32 %v2876, %v3119
        %v3477 = vadd.f32 %v2877, %v3123
        %v3478 = vadd.f32 %v2878, %v3127
        %v3479 = vadd.f32 %v2879, %v3131
        %v3480 = vadd.f32 %v2880, %v3135
        %v3481 = vadd.f32 %v2881, %v3139
        %v3482 = vadd.f32 %v2882, %v3143
        %v3483 = vadd.f32 %v2883, %v3147
        %v3484 = vadd.f32 %v2884, %v3151
        %v3485 = vadd.f32 %v2885, %v3155
        %v3486 = vadd.f32 %v2886, %v3159
        %v3487 = vadd.f32 %v2887, %v3163
        %v3488 = vadd.f32 %v2888, %v3167
        %v3489 = vadd.f32 %v2889, %v3171
        %v3490 = vadd.f32 %v2890, %v3175
        %v3491 = vadd.f32 %v2891, %v3179
        %v3492 = vadd.f32 %v2892, %v3183
        %v3493 = vadd.f32 %v2893, %v3187
        %v3494 = vadd.f32 %v2894, %v3191
        %v3495 = vadd.f32 %v2895, %v3195
        %v3496 = vadd.f32 %v2896, %v3199
        %v3497 = vadd.f32 %v2897, %v3203
        %v3498 = vadd.f32 %v2898, %v3207
        %v3499 = vadd.f32 %v2899, %v3211
        %v3500 = vadd.f32 %v2900, %v3215
        %v3501 = vadd.f32 %v2901, %v3219
        %v3502 = vadd.f32 %v2902, %v3223
        %v3503 = vadd.f32 %v2903, %v3227
        %v3504 = vadd.f32 %v2904, %v3231
        %v3505 = vadd.f32 %v2905, %v3235
        %v3506 = vadd.f32 %v2906, %v3239
        %v3507 = vadd.f32 %v2907, %v3243
        %v3508 = vadd.f32 %v2908, %v3247
        %v3509 = vadd.f32 %v2909, %v3251
        %v3510 = vadd.f32 %v2910, %v3255
        %v3511 = vadd.f32 %v2911, %v3259
        %v3512 = vadd.f32 %v2912, %v3263
        %v3513 = vadd.f32 %v2913, %v3267
        %v3514 = vadd.f32 %v2914, %v3271
        %v3515 = vadd.f32 %v2915, %v3275
        %v3516 = vadd.f32 %v2916, %v3279
        %v3517 = vadd.f32 %v2917, %v3283
        %v3518 = vadd.f32 %v2918, %v3287
        %v3519 = vadd.f32 %v2919, %v3291
        %v3520 = vadd.f32 %v2920, %v3295
        %v3521 = vadd.f32 %v2921, %v3299
        %v3522 = vadd.f32 %v2922, %v3303
        %v3523 = vadd.f32 %v2923, %v3307
        %v3524 = vadd.f32 %v2924, %v3311
        %v3525 = vadd.f32 %v2925, %v3315
        %v3526 = vadd.f32 %v2926, %v3319
        %v3527 = vadd.f32 %v2927, %v3323
        %v3528 = vadd.f32 %v2928, %v3327
        %v3529 = vadd.f32 %v2929, %v3331
        %v3530 = vadd.f32 %v2930, %v3335
        %v3531 = vadd.f32 %v2931, %v3339
        %v3532 = vld [vmem:[#allocation2] sm:$0xff]
        %v3533 = vpack.c.bf16 %v3436, %v3436
        %v3534 = vpack.c.bf16 %v3437, %v3437
        %v3535 = vpack.c.bf16 %v3438, %v3438
        %v3536 = vpack.c.bf16 %v3439, %v3439
        %v3537 = vpack.c.bf16 %v3440, %v3440
        %v3538 = vpack.c.bf16 %v3441, %v3441
        %v3539 = vpack.c.bf16 %v3442, %v3442
        %v3540 = vpack.c.bf16 %v3443, %v3443
        %v3541 = vpack.c.bf16 %v3444, %v3444
        %v3542 = vpack.c.bf16 %v3445, %v3445
        %v3543 = vpack.c.bf16 %v3446, %v3446
        %v3544 = vpack.c.bf16 %v3447, %v3447
        %v3545 = vpack.c.bf16 %v3448, %v3448
        %v3546 = vpack.c.bf16 %v3449, %v3449
        %v3547 = vpack.c.bf16 %v3450, %v3450
        %v3548 = vpack.c.bf16 %v3451, %v3451
        %v3549 = vpack.c.bf16 %v3452, %v3452
        %v3550 = vpack.c.bf16 %v3453, %v3453
        %v3551 = vpack.c.bf16 %v3454, %v3454
        %v3552 = vpack.c.bf16 %v3455, %v3455
        %v3553 = vpack.c.bf16 %v3456, %v3456
        %v3554 = vpack.c.bf16 %v3457, %v3457
        %v3555 = vpack.c.bf16 %v3458, %v3458
        %v3556 = vpack.c.bf16 %v3459, %v3459
        %v3557 = vpack.c.bf16 %v3460, %v3460
        %v3558 = vpack.c.bf16 %v3461, %v3461
        %v3559 = vpack.c.bf16 %v3462, %v3462
        %v3560 = vpack.c.bf16 %v3463, %v3463
        %v3561 = vpack.c.bf16 %v3464, %v3464
        %v3562 = vpack.c.bf16 %v3465, %v3465
        %v3563 = vpack.c.bf16 %v3466, %v3466
        %v3564 = vpack.c.bf16 %v3467, %v3467
        %v3565 = vpack.c.bf16 %v3468, %v3468
        %v3566 = vpack.c.bf16 %v3469, %v3469
        %v3567 = vpack.c.bf16 %v3470, %v3470
        %v3568 = vpack.c.bf16 %v3471, %v3471
        %v3569 = vpack.c.bf16 %v3472, %v3472
        %v3570 = vpack.c.bf16 %v3473, %v3473
        %v3571 = vpack.c.bf16 %v3474, %v3474
        %v3572 = vpack.c.bf16 %v3475, %v3475
        %v3573 = vpack.c.bf16 %v3476, %v3476
        %v3574 = vpack.c.bf16 %v3477, %v3477
        %v3575 = vpack.c.bf16 %v3478, %v3478
        %v3576 = vpack.c.bf16 %v3479, %v3479
        %v3577 = vpack.c.bf16 %v3480, %v3480
        %v3578 = vpack.c.bf16 %v3481, %v3481
        %v3579 = vpack.c.bf16 %v3482, %v3482
        %v3580 = vpack.c.bf16 %v3483, %v3483
        %v3581 = vpack.c.bf16 %v3484, %v3484
        %v3582 = vpack.c.bf16 %v3485, %v3485
        %v3583 = vpack.c.bf16 %v3486, %v3486
        %v3584 = vpack.c.bf16 %v3487, %v3487
        %v3585 = vpack.c.bf16 %v3488, %v3488
        %v3586 = vpack.c.bf16 %v3489, %v3489
        %v3587 = vpack.c.bf16 %v3490, %v3490
        %v3588 = vpack.c.bf16 %v3491, %v3491
        %v3589 = vpack.c.bf16 %v3492, %v3492
        %v3590 = vpack.c.bf16 %v3493, %v3493
        %v3591 = vpack.c.bf16 %v3494, %v3494
        %v3592 = vpack.c.bf16 %v3495, %v3495
        %v3593 = vpack.c.bf16 %v3496, %v3496
        %v3594 = vpack.c.bf16 %v3497, %v3497
        %v3595 = vpack.c.bf16 %v3498, %v3498
        %v3596 = vpack.c.bf16 %v3499, %v3499
        %v3597 = vpack.c.bf16 %v3500, %v3500
        %v3598 = vpack.c.bf16 %v3501, %v3501
        %v3599 = vpack.c.bf16 %v3502, %v3502
        %v3600 = vpack.c.bf16 %v3503, %v3503
        %v3601 = vpack.c.bf16 %v3504, %v3504
        %v3602 = vpack.c.bf16 %v3505, %v3505
        %v3603 = vpack.c.bf16 %v3506, %v3506
        %v3604 = vpack.c.bf16 %v3507, %v3507
        %v3605 = vpack.c.bf16 %v3508, %v3508
        %v3606 = vpack.c.bf16 %v3509, %v3509
        %v3607 = vpack.c.bf16 %v3510, %v3510
        %v3608 = vpack.c.bf16 %v3511, %v3511
        %v3609 = vpack.c.bf16 %v3512, %v3512
        %v3610 = vpack.c.bf16 %v3513, %v3513
        %v3611 = vpack.c.bf16 %v3514, %v3514
        %v3612 = vpack.c.bf16 %v3515, %v3515
        %v3613 = vpack.c.bf16 %v3516, %v3516
        %v3614 = vpack.c.bf16 %v3517, %v3517
        %v3615 = vpack.c.bf16 %v3518, %v3518
        %v3616 = vpack.c.bf16 %v3519, %v3519
        %v3617 = vpack.c.bf16 %v3520, %v3520
        %v3618 = vpack.c.bf16 %v3521, %v3521
        %v3619 = vpack.c.bf16 %v3522, %v3522
        %v3620 = vpack.c.bf16 %v3523, %v3523
        %v3621 = vpack.c.bf16 %v3524, %v3524
        %v3622 = vpack.c.bf16 %v3525, %v3525
        %v3623 = vpack.c.bf16 %v3526, %v3526
        %v3624 = vpack.c.bf16 %v3527, %v3527
        %v3625 = vpack.c.bf16 %v3528, %v3528
        %v3626 = vpack.c.bf16 %v3529, %v3529
        %v3627 = vpack.c.bf16 %v3530, %v3530
        %v3628 = vpack.c.bf16 %v3531, %v3531
        %v3629 = vld [vmem:[%s347] sm:$0xf]
        %v3630 = vld [vmem:[%s347 + $0x4] sm:$0xf]
        %v3631 = vld [vmem:[%s347 + $0x8] sm:$0xf]
        %v3632 = vld [vmem:[%s347 + $0xc] sm:$0xf]
        %v3633 = vld [vmem:[%s347 + $0x10] sm:$0xf]
        %v3634 = vld [vmem:[%s347 + $0x14] sm:$0xf]
        %v3635 = vld [vmem:[%s347 + $0x18] sm:$0xf]
        %v3636 = vld [vmem:[%s347 + $0x1c] sm:$0xf]
        %v3637 = vld [vmem:[%s347 + $0x20] sm:$0xf]
        %v3638 = vld [vmem:[%s347 + $0x24] sm:$0xf]
        %v3639 = vld [vmem:[%s347 + $0x28] sm:$0xf]
        %v3640 = vld [vmem:[%s347 + $0x2c] sm:$0xf]
        %v3641 = vld [vmem:[%s347 + $0x30] sm:$0xf]
        %v3642 = vld [vmem:[%s347 + $0x34] sm:$0xf]
        %v3643 = vld [vmem:[%s347 + $0x38] sm:$0xf]
        %v3644 = vld [vmem:[%s347 + $0x3c] sm:$0xf]
        %v3645 = vld [vmem:[%s347 + $0x40] sm:$0xf]
        %v3646 = vld [vmem:[%s347 + $0x44] sm:$0xf]
        %v3647 = vld [vmem:[%s347 + $0x48] sm:$0xf]
        %v3648 = vld [vmem:[%s347 + $0x4c] sm:$0xf]
        %v3649 = vld [vmem:[%s347 + $0x50] sm:$0xf]
        %v3650 = vld [vmem:[%s347 + $0x54] sm:$0xf]
        %v3651 = vld [vmem:[%s347 + $0x58] sm:$0xf]
        %v3652 = vld [vmem:[%s347 + $0x5c] sm:$0xf]
        %v3653 = vld [vmem:[%s347 + $0x60] sm:$0xf]
        %v3654 = vld [vmem:[%s347 + $0x64] sm:$0xf]
        %v3655 = vld [vmem:[%s347 + $0x68] sm:$0xf]
        %v3656 = vld [vmem:[%s347 + $0x6c] sm:$0xf]
        %v3657 = vld [vmem:[%s347 + $0x70] sm:$0xf]
        %v3658 = vld [vmem:[%s347 + $0x74] sm:$0xf]
        %v3659 = vld [vmem:[%s347 + $0x78] sm:$0xf]
        %v3660 = vld [vmem:[%s347 + $0x7c] sm:$0xf]
        %v3661 = vld [vmem:[%s347 + $0x80] sm:$0xf]
        %v3662 = vld [vmem:[%s347 + $0x84] sm:$0xf]
        %v3663 = vld [vmem:[%s347 + $0x88] sm:$0xf]
        %v3664 = vld [vmem:[%s347 + $0x8c] sm:$0xf]
        %v3665 = vld [vmem:[%s347 + $0x90] sm:$0xf]
        %v3666 = vld [vmem:[%s347 + $0x94] sm:$0xf]
        %v3667 = vld [vmem:[%s347 + $0x98] sm:$0xf]
        %v3668 = vld [vmem:[%s347 + $0x9c] sm:$0xf]
        %v3669 = vld [vmem:[%s347 + $0xa0] sm:$0xf]
        %v3670 = vld [vmem:[%s347 + $0xa4] sm:$0xf]
        %v3671 = vld [vmem:[%s347 + $0xa8] sm:$0xf]
        %v3672 = vld [vmem:[%s347 + $0xac] sm:$0xf]
        %v3673 = vld [vmem:[%s347 + $0xb0] sm:$0xf]
        %v3674 = vld [vmem:[%s347 + $0xb4] sm:$0xf]
        %v3675 = vld [vmem:[%s347 + $0xb8] sm:$0xf]
        %v3676 = vld [vmem:[%s347 + $0xbc] sm:$0xf]
        %v3677 = vld [vmem:[%s347 + $0xc0] sm:$0xf]
        %v3678 = vld [vmem:[%s347 + $0xc4] sm:$0xf]
        %v3679 = vld [vmem:[%s347 + $0xc8] sm:$0xf]
        %v3680 = vld [vmem:[%s347 + $0xcc] sm:$0xf]
        %v3681 = vld [vmem:[%s347 + $0xd0] sm:$0xf]
        %v3682 = vld [vmem:[%s347 + $0xd4] sm:$0xf]
        %v3683 = vld [vmem:[%s347 + $0xd8] sm:$0xf]
        %v3684 = vld [vmem:[%s347 + $0xdc] sm:$0xf]
        %v3685 = vld [vmem:[%s347 + $0xe0] sm:$0xf]
        %v3686 = vld [vmem:[%s347 + $0xe4] sm:$0xf]
        %v3687 = vld [vmem:[%s347 + $0xe8] sm:$0xf]
        %v3688 = vld [vmem:[%s347 + $0xec] sm:$0xf]
        %v3689 = vld [vmem:[%s347 + $0xf0] sm:$0xf]
        %v3690 = vld [vmem:[%s347 + $0xf4] sm:$0xf]
        %v3691 = vld [vmem:[%s347 + $0xf8] sm:$0xf]
        %v3692 = vld [vmem:[%s347 + $0xfc] sm:$0xf]
        %v3693 = vld [vmem:[%s347 + $0x100] sm:$0xf]
        %v3694 = vld [vmem:[%s347 + $0x104] sm:$0xf]
        %v3695 = vld [vmem:[%s347 + $0x108] sm:$0xf]
        %v3696 = vld [vmem:[%s347 + $0x10c] sm:$0xf]
        %v3697 = vld [vmem:[%s347 + $0x110] sm:$0xf]
        %v3698 = vld [vmem:[%s347 + $0x114] sm:$0xf]
        %v3699 = vld [vmem:[%s347 + $0x118] sm:$0xf]
        %v3700 = vld [vmem:[%s347 + $0x11c] sm:$0xf]
        %v3701 = vld [vmem:[%s347 + $0x120] sm:$0xf]
        %v3702 = vld [vmem:[%s347 + $0x124] sm:$0xf]
        %v3703 = vld [vmem:[%s347 + $0x128] sm:$0xf]
        %v3704 = vld [vmem:[%s347 + $0x12c] sm:$0xf]
        %v3705 = vld [vmem:[%s347 + $0x130] sm:$0xf]
        %v3706 = vld [vmem:[%s347 + $0x134] sm:$0xf]
        %v3707 = vld [vmem:[%s347 + $0x138] sm:$0xf]
        %v3708 = vld [vmem:[%s347 + $0x13c] sm:$0xf]
        %v3709 = vld [vmem:[%s347 + $0x140] sm:$0xf]
        %v3710 = vld [vmem:[%s347 + $0x144] sm:$0xf]
        %v3711 = vld [vmem:[%s347 + $0x148] sm:$0xf]
        %v3712 = vld [vmem:[%s347 + $0x14c] sm:$0xf]
        %v3713 = vld [vmem:[%s347 + $0x150] sm:$0xf]
        %v3714 = vld [vmem:[%s347 + $0x154] sm:$0xf]
        %v3715 = vld [vmem:[%s347 + $0x158] sm:$0xf]
        %v3716 = vld [vmem:[%s347 + $0x15c] sm:$0xf]
        %v3717 = vld [vmem:[%s347 + $0x160] sm:$0xf]
        %v3718 = vld [vmem:[%s347 + $0x164] sm:$0xf]
        %v3719 = vld [vmem:[%s347 + $0x168] sm:$0xf]
        %v3720 = vld [vmem:[%s347 + $0x16c] sm:$0xf]
        %v3721 = vld [vmem:[%s347 + $0x170] sm:$0xf]
        %v3722 = vld [vmem:[%s347 + $0x174] sm:$0xf]
        %v3723 = vld [vmem:[%s347 + $0x178] sm:$0xf]
        %v3724 = vld [vmem:[%s347 + $0x17c] sm:$0xf]
        %v3725 = vld [vmem:[%s347 + $0x180] sm:$0xf]
        %v3726 = vld [vmem:[%s347 + $0x184] sm:$0xf]
        %v3727 = vld [vmem:[%s347 + $0x188] sm:$0xf]
        %v3728 = vld [vmem:[%s347 + $0x18c] sm:$0xf]
        %v3729 = vld [vmem:[%s347 + $0x190] sm:$0xf]
        %v3730 = vld [vmem:[%s347 + $0x194] sm:$0xf]
        %v3731 = vld [vmem:[%s347 + $0x198] sm:$0xf]
        %v3732 = vld [vmem:[%s347 + $0x19c] sm:$0xf]
        %v3733 = vld [vmem:[%s347 + $0x1a0] sm:$0xf]
        %v3734 = vld [vmem:[%s347 + $0x1a4] sm:$0xf]
        %v3735 = vld [vmem:[%s347 + $0x1a8] sm:$0xf]
        %v3736 = vld [vmem:[%s347 + $0x1ac] sm:$0xf]
        %v3737 = vld [vmem:[%s347 + $0x1b0] sm:$0xf]
        %v3738 = vld [vmem:[%s347 + $0x1b4] sm:$0xf]
        %v3739 = vld [vmem:[%s347 + $0x1b8] sm:$0xf]
        %v3740 = vld [vmem:[%s347 + $0x1bc] sm:$0xf]
        %v3741 = vld [vmem:[%s347 + $0x1c0] sm:$0xf]
        %v3742 = vld [vmem:[%s347 + $0x1c4] sm:$0xf]
        %v3743 = vld [vmem:[%s347 + $0x1c8] sm:$0xf]
        %v3744 = vld [vmem:[%s347 + $0x1cc] sm:$0xf]
        %v3745 = vld [vmem:[%s347 + $0x1d0] sm:$0xf]
        %v3746 = vld [vmem:[%s347 + $0x1d4] sm:$0xf]
        %v3747 = vld [vmem:[%s347 + $0x1d8] sm:$0xf]
        %v3748 = vld [vmem:[%s347 + $0x1dc] sm:$0xf]
        %v3749 = vld [vmem:[%s347 + $0x1e0] sm:$0xf]
        %v3750 = vld [vmem:[%s347 + $0x1e4] sm:$0xf]
        %v3751 = vld [vmem:[%s347 + $0x1e8] sm:$0xf]
        %v3752 = vld [vmem:[%s347 + $0x1ec] sm:$0xf]
        %v3753 = vld [vmem:[%s347 + $0x1f0] sm:$0xf]
        %v3754 = vld [vmem:[%s347 + $0x1f4] sm:$0xf]
        %v3755 = vld [vmem:[%s347 + $0x1f8] sm:$0xf]
        %v3756 = vld [vmem:[%s347 + $0x1fc] sm:$0xf]
        %v3757 = vld [vmem:[%s347 + $0x200] sm:$0xf]
        %v3758 = vld [vmem:[%s347 + $0x204] sm:$0xf]
        %v3759 = vld [vmem:[%s347 + $0x208] sm:$0xf]
        %v3760 = vld [vmem:[%s347 + $0x20c] sm:$0xf]
        %v3761 = vld [vmem:[%s347 + $0x210] sm:$0xf]
        %v3762 = vld [vmem:[%s347 + $0x214] sm:$0xf]
        %v3763 = vld [vmem:[%s347 + $0x218] sm:$0xf]
        %v3764 = vld [vmem:[%s347 + $0x21c] sm:$0xf]
        %v3765 = vld [vmem:[%s347 + $0x220] sm:$0xf]
        %v3766 = vld [vmem:[%s347 + $0x224] sm:$0xf]
        %v3767 = vld [vmem:[%s347 + $0x228] sm:$0xf]
        %v3768 = vld [vmem:[%s347 + $0x22c] sm:$0xf]
        %v3769 = vld [vmem:[%s347 + $0x230] sm:$0xf]
        %v3770 = vld [vmem:[%s347 + $0x234] sm:$0xf]
        %v3771 = vld [vmem:[%s347 + $0x238] sm:$0xf]
        %v3772 = vld [vmem:[%s347 + $0x23c] sm:$0xf]
        %v3773 = vld [vmem:[%s347 + $0x240] sm:$0xf]
        %v3774 = vld [vmem:[%s347 + $0x244] sm:$0xf]
        %v3775 = vld [vmem:[%s347 + $0x248] sm:$0xf]
        %v3776 = vld [vmem:[%s347 + $0x24c] sm:$0xf]
        %v3777 = vld [vmem:[%s347 + $0x250] sm:$0xf]
        %v3778 = vld [vmem:[%s347 + $0x254] sm:$0xf]
        %v3779 = vld [vmem:[%s347 + $0x258] sm:$0xf]
        %v3780 = vld [vmem:[%s347 + $0x25c] sm:$0xf]
        %v3781 = vld [vmem:[%s347 + $0x260] sm:$0xf]
        %v3782 = vld [vmem:[%s347 + $0x264] sm:$0xf]
        %v3783 = vld [vmem:[%s347 + $0x268] sm:$0xf]
        %v3784 = vld [vmem:[%s347 + $0x26c] sm:$0xf]
        %v3785 = vld [vmem:[%s347 + $0x270] sm:$0xf]
        %v3786 = vld [vmem:[%s347 + $0x274] sm:$0xf]
        %v3787 = vld [vmem:[%s347 + $0x278] sm:$0xf]
        %v3788 = vld [vmem:[%s347 + $0x27c] sm:$0xf]
        %v3789 = vld [vmem:[%s347 + $0x280] sm:$0xf]
        %v3790 = vld [vmem:[%s347 + $0x284] sm:$0xf]
        %v3791 = vld [vmem:[%s347 + $0x288] sm:$0xf]
        %v3792 = vld [vmem:[%s347 + $0x28c] sm:$0xf]
        %v3793 = vld [vmem:[%s347 + $0x290] sm:$0xf]
        %v3794 = vld [vmem:[%s347 + $0x294] sm:$0xf]
        %v3795 = vld [vmem:[%s347 + $0x298] sm:$0xf]
        %v3796 = vld [vmem:[%s347 + $0x29c] sm:$0xf]
        %v3797 = vld [vmem:[%s347 + $0x2a0] sm:$0xf]
        %v3798 = vld [vmem:[%s347 + $0x2a4] sm:$0xf]
        %v3799 = vld [vmem:[%s347 + $0x2a8] sm:$0xf]
        %v3800 = vld [vmem:[%s347 + $0x2ac] sm:$0xf]
        %v3801 = vld [vmem:[%s347 + $0x2b0] sm:$0xf]
        %v3802 = vld [vmem:[%s347 + $0x2b4] sm:$0xf]
        %v3803 = vld [vmem:[%s347 + $0x2b8] sm:$0xf]
        %v3804 = vld [vmem:[%s347 + $0x2bc] sm:$0xf]
        %v3805 = vld [vmem:[%s347 + $0x2c0] sm:$0xf]
        %v3806 = vld [vmem:[%s347 + $0x2c4] sm:$0xf]
        %v3807 = vld [vmem:[%s347 + $0x2c8] sm:$0xf]
        %v3808 = vld [vmem:[%s347 + $0x2cc] sm:$0xf]
        %v3809 = vld [vmem:[%s347 + $0x2d0] sm:$0xf]
        %v3810 = vld [vmem:[%s347 + $0x2d4] sm:$0xf]
        %v3811 = vld [vmem:[%s347 + $0x2d8] sm:$0xf]
        %v3812 = vld [vmem:[%s347 + $0x2dc] sm:$0xf]
        %v3813 = vld [vmem:[%s347 + $0x2e0] sm:$0xf]
        %v3814 = vld [vmem:[%s347 + $0x2e4] sm:$0xf]
        %v3815 = vld [vmem:[%s347 + $0x2e8] sm:$0xf]
        %v3816 = vld [vmem:[%s347 + $0x2ec] sm:$0xf]
        %v3817 = vld [vmem:[%s347 + $0x2f0] sm:$0xf]
        %v3818 = vld [vmem:[%s347 + $0x2f4] sm:$0xf]
        %v3819 = vld [vmem:[%s347 + $0x2f8] sm:$0xf]
        %v3820 = vld [vmem:[%s347 + $0x2fc] sm:$0xf]
        %v3821 = vld [vmem:[%s347 + $0x300] sm:$0xf]
        %v3822 = vld [vmem:[%s347 + $0x304] sm:$0xf]
        %v3823 = vld [vmem:[%s347 + $0x308] sm:$0xf]
        %v3824 = vld [vmem:[%s347 + $0x30c] sm:$0xf]
        %v3825 = vld [vmem:[%s347 + $0x310] sm:$0xf]
        %v3826 = vld [vmem:[%s347 + $0x314] sm:$0xf]
        %v3827 = vld [vmem:[%s347 + $0x318] sm:$0xf]
        %v3828 = vld [vmem:[%s347 + $0x31c] sm:$0xf]
        %v3829 = vld [vmem:[%s347 + $0x320] sm:$0xf]
        %v3830 = vld [vmem:[%s347 + $0x324] sm:$0xf]
        %v3831 = vld [vmem:[%s347 + $0x328] sm:$0xf]
        %v3832 = vld [vmem:[%s347 + $0x32c] sm:$0xf]
        %v3833 = vld [vmem:[%s347 + $0x330] sm:$0xf]
        %v3834 = vld [vmem:[%s347 + $0x334] sm:$0xf]
        %v3835 = vld [vmem:[%s347 + $0x338] sm:$0xf]
        %v3836 = vld [vmem:[%s347 + $0x33c] sm:$0xf]
        %v3837 = vld [vmem:[%s347 + $0x340] sm:$0xf]
        %v3838 = vld [vmem:[%s347 + $0x344] sm:$0xf]
        %v3839 = vld [vmem:[%s347 + $0x348] sm:$0xf]
        %v3840 = vld [vmem:[%s347 + $0x34c] sm:$0xf]
        %v3841 = vld [vmem:[%s347 + $0x350] sm:$0xf]
        %v3842 = vld [vmem:[%s347 + $0x354] sm:$0xf]
        %v3843 = vld [vmem:[%s347 + $0x358] sm:$0xf]
        %v3844 = vld [vmem:[%s347 + $0x35c] sm:$0xf]
        %v3845 = vld [vmem:[%s347 + $0x360] sm:$0xf]
        %v3846 = vld [vmem:[%s347 + $0x364] sm:$0xf]
        %v3847 = vld [vmem:[%s347 + $0x368] sm:$0xf]
        %v3848 = vld [vmem:[%s347 + $0x36c] sm:$0xf]
        %v3849 = vld [vmem:[%s347 + $0x370] sm:$0xf]
        %v3850 = vld [vmem:[%s347 + $0x374] sm:$0xf]
        %v3851 = vld [vmem:[%s347 + $0x378] sm:$0xf]
        %v3852 = vld [vmem:[%s347 + $0x37c] sm:$0xf]
        %v3853 = vld [vmem:[%s347 + $0x380] sm:$0xf]
        %v3854 = vld [vmem:[%s347 + $0x384] sm:$0xf]
        %v3855 = vld [vmem:[%s347 + $0x388] sm:$0xf]
        %v3856 = vld [vmem:[%s347 + $0x38c] sm:$0xf]
        %v3857 = vld [vmem:[%s347 + $0x390] sm:$0xf]
        %v3858 = vld [vmem:[%s347 + $0x394] sm:$0xf]
        %v3859 = vld [vmem:[%s347 + $0x398] sm:$0xf]
        %v3860 = vld [vmem:[%s347 + $0x39c] sm:$0xf]
        %v3861 = vld [vmem:[%s347 + $0x3a0] sm:$0xf]
        %v3862 = vld [vmem:[%s347 + $0x3a4] sm:$0xf]
        %v3863 = vld [vmem:[%s347 + $0x3a8] sm:$0xf]
        %v3864 = vld [vmem:[%s347 + $0x3ac] sm:$0xf]
        %v3865 = vld [vmem:[%s347 + $0x3b0] sm:$0xf]
        %v3866 = vld [vmem:[%s347 + $0x3b4] sm:$0xf]
        %v3867 = vld [vmem:[%s347 + $0x3b8] sm:$0xf]
        %v3868 = vld [vmem:[%s347 + $0x3bc] sm:$0xf]
        %v3869 = vld [vmem:[%s347 + $0x3c0] sm:$0xf]
        %v3870 = vld [vmem:[%s347 + $0x3c4] sm:$0xf]
        %v3871 = vld [vmem:[%s347 + $0x3c8] sm:$0xf]
        %v3872 = vld [vmem:[%s347 + $0x3cc] sm:$0xf]
        %v3873 = vld [vmem:[%s347 + $0x3d0] sm:$0xf]
        %v3874 = vld [vmem:[%s347 + $0x3d4] sm:$0xf]
        %v3875 = vld [vmem:[%s347 + $0x3d8] sm:$0xf]
        %v3876 = vld [vmem:[%s347 + $0x3dc] sm:$0xf]
        %v3877 = vld [vmem:[%s347 + $0x3e0] sm:$0xf]
        %v3878 = vld [vmem:[%s347 + $0x3e4] sm:$0xf]
        %v3879 = vld [vmem:[%s347 + $0x3e8] sm:$0xf]
        %v3880 = vld [vmem:[%s347 + $0x3ec] sm:$0xf]
        %v3881 = vld [vmem:[%s347 + $0x3f0] sm:$0xf]
        %v3882 = vld [vmem:[%s347 + $0x3f4] sm:$0xf]
        %v3883 = vld [vmem:[%s347 + $0x3f8] sm:$0xf]
        %v3884 = vld [vmem:[%s347 + $0x3fc] sm:$0xf]
        %v3885 = vld [vmem:[%s347 + $0x400] sm:$0xf]
        %v3886 = vld [vmem:[%s347 + $0x404] sm:$0xf]
        %v3887 = vld [vmem:[%s347 + $0x408] sm:$0xf]
        %v3888 = vld [vmem:[%s347 + $0x40c] sm:$0xf]
        %v3889 = vld [vmem:[%s347 + $0x410] sm:$0xf]
        %v3890 = vld [vmem:[%s347 + $0x414] sm:$0xf]
        %v3891 = vld [vmem:[%s347 + $0x418] sm:$0xf]
        %v3892 = vld [vmem:[%s347 + $0x41c] sm:$0xf]
        %v3893 = vld [vmem:[%s347 + $0x420] sm:$0xf]
        %v3894 = vld [vmem:[%s347 + $0x424] sm:$0xf]
        %v3895 = vld [vmem:[%s347 + $0x428] sm:$0xf]
        %v3896 = vld [vmem:[%s347 + $0x42c] sm:$0xf]
        %v3897 = vld [vmem:[%s347 + $0x430] sm:$0xf]
        %v3898 = vld [vmem:[%s347 + $0x434] sm:$0xf]
        %v3899 = vld [vmem:[%s347 + $0x438] sm:$0xf]
        %v3900 = vld [vmem:[%s347 + $0x43c] sm:$0xf]
        %v3901 = vld [vmem:[%s347 + $0x440] sm:$0xf]
        %v3902 = vld [vmem:[%s347 + $0x444] sm:$0xf]
        %v3903 = vld [vmem:[%s347 + $0x448] sm:$0xf]
        %v3904 = vld [vmem:[%s347 + $0x44c] sm:$0xf]
        %v3905 = vld [vmem:[%s347 + $0x450] sm:$0xf]
        %v3906 = vld [vmem:[%s347 + $0x454] sm:$0xf]
        %v3907 = vld [vmem:[%s347 + $0x458] sm:$0xf]
        %v3908 = vld [vmem:[%s347 + $0x45c] sm:$0xf]
        %v3909 = vld [vmem:[%s347 + $0x460] sm:$0xf]
        %v3910 = vld [vmem:[%s347 + $0x464] sm:$0xf]
        %v3911 = vld [vmem:[%s347 + $0x468] sm:$0xf]
        %v3912 = vld [vmem:[%s347 + $0x46c] sm:$0xf]
        %v3913 = vld [vmem:[%s347 + $0x470] sm:$0xf]
        %v3914 = vld [vmem:[%s347 + $0x474] sm:$0xf]
        %v3915 = vld [vmem:[%s347 + $0x478] sm:$0xf]
        %v3916 = vld [vmem:[%s347 + $0x47c] sm:$0xf]
        %v3917 = vld [vmem:[%s347 + $0x480] sm:$0xf]
        %v3918 = vld [vmem:[%s347 + $0x484] sm:$0xf]
        %v3919 = vld [vmem:[%s347 + $0x488] sm:$0xf]
        %v3920 = vld [vmem:[%s347 + $0x48c] sm:$0xf]
        %v3921 = vld [vmem:[%s347 + $0x490] sm:$0xf]
        %v3922 = vld [vmem:[%s347 + $0x494] sm:$0xf]
        %v3923 = vld [vmem:[%s347 + $0x498] sm:$0xf]
        %v3924 = vld [vmem:[%s347 + $0x49c] sm:$0xf]
        %v3925 = vld [vmem:[%s347 + $0x4a0] sm:$0xf]
        %v3926 = vld [vmem:[%s347 + $0x4a4] sm:$0xf]
        %v3927 = vld [vmem:[%s347 + $0x4a8] sm:$0xf]
        %v3928 = vld [vmem:[%s347 + $0x4ac] sm:$0xf]
        %v3929 = vld [vmem:[%s347 + $0x4b0] sm:$0xf]
        %v3930 = vld [vmem:[%s347 + $0x4b4] sm:$0xf]
        %v3931 = vld [vmem:[%s347 + $0x4b8] sm:$0xf]
        %v3932 = vld [vmem:[%s347 + $0x4bc] sm:$0xf]
        %v3933 = vld [vmem:[%s347 + $0x4c0] sm:$0xf]
        %v3934 = vld [vmem:[%s347 + $0x4c4] sm:$0xf]
        %v3935 = vld [vmem:[%s347 + $0x4c8] sm:$0xf]
        %v3936 = vld [vmem:[%s347 + $0x4cc] sm:$0xf]
        %v3937 = vld [vmem:[%s347 + $0x4d0] sm:$0xf]
        %v3938 = vld [vmem:[%s347 + $0x4d4] sm:$0xf]
        %v3939 = vld [vmem:[%s347 + $0x4d8] sm:$0xf]
        %v3940 = vld [vmem:[%s347 + $0x4dc] sm:$0xf]
        %v3941 = vld [vmem:[%s347 + $0x4e0] sm:$0xf]
        %v3942 = vld [vmem:[%s347 + $0x4e4] sm:$0xf]
        %v3943 = vld [vmem:[%s347 + $0x4e8] sm:$0xf]
        %v3944 = vld [vmem:[%s347 + $0x4ec] sm:$0xf]
        %v3945 = vld [vmem:[%s347 + $0x4f0] sm:$0xf]
        %v3946 = vld [vmem:[%s347 + $0x4f4] sm:$0xf]
        %v3947 = vld [vmem:[%s347 + $0x4f8] sm:$0xf]
        %v3948 = vld [vmem:[%s347 + $0x4fc] sm:$0xf]
        %v3949 = vld [vmem:[%s347 + $0x500] sm:$0xf]
        %v3950 = vld [vmem:[%s347 + $0x504] sm:$0xf]
        %v3951 = vld [vmem:[%s347 + $0x508] sm:$0xf]
        %v3952 = vld [vmem:[%s347 + $0x50c] sm:$0xf]
        %v3953 = vld [vmem:[%s347 + $0x510] sm:$0xf]
        %v3954 = vld [vmem:[%s347 + $0x514] sm:$0xf]
        %v3955 = vld [vmem:[%s347 + $0x518] sm:$0xf]
        %v3956 = vld [vmem:[%s347 + $0x51c] sm:$0xf]
        %v3957 = vld [vmem:[%s347 + $0x520] sm:$0xf]
        %v3958 = vld [vmem:[%s347 + $0x524] sm:$0xf]
        %v3959 = vld [vmem:[%s347 + $0x528] sm:$0xf]
        %v3960 = vld [vmem:[%s347 + $0x52c] sm:$0xf]
        %v3961 = vld [vmem:[%s347 + $0x530] sm:$0xf]
        %v3962 = vld [vmem:[%s347 + $0x534] sm:$0xf]
        %v3963 = vld [vmem:[%s347 + $0x538] sm:$0xf]
        %v3964 = vld [vmem:[%s347 + $0x53c] sm:$0xf]
        %v3965 = vld [vmem:[%s347 + $0x540] sm:$0xf]
        %v3966 = vld [vmem:[%s347 + $0x544] sm:$0xf]
        %v3967 = vld [vmem:[%s347 + $0x548] sm:$0xf]
        %v3968 = vld [vmem:[%s347 + $0x54c] sm:$0xf]
        %v3969 = vld [vmem:[%s347 + $0x550] sm:$0xf]
        %v3970 = vld [vmem:[%s347 + $0x554] sm:$0xf]
        %v3971 = vld [vmem:[%s347 + $0x558] sm:$0xf]
        %v3972 = vld [vmem:[%s347 + $0x55c] sm:$0xf]
        %v3973 = vld [vmem:[%s347 + $0x560] sm:$0xf]
        %v3974 = vld [vmem:[%s347 + $0x564] sm:$0xf]
        %v3975 = vld [vmem:[%s347 + $0x568] sm:$0xf]
        %v3976 = vld [vmem:[%s347 + $0x56c] sm:$0xf]
        %v3977 = vld [vmem:[%s347 + $0x570] sm:$0xf]
        %v3978 = vld [vmem:[%s347 + $0x574] sm:$0xf]
        %v3979 = vld [vmem:[%s347 + $0x578] sm:$0xf]
        %v3980 = vld [vmem:[%s347 + $0x57c] sm:$0xf]
        %v3981 = vld [vmem:[%s347 + $0x580] sm:$0xf]
        %v3982 = vld [vmem:[%s347 + $0x584] sm:$0xf]
        %v3983 = vld [vmem:[%s347 + $0x588] sm:$0xf]
        %v3984 = vld [vmem:[%s347 + $0x58c] sm:$0xf]
        %v3985 = vld [vmem:[%s347 + $0x590] sm:$0xf]
        %v3986 = vld [vmem:[%s347 + $0x594] sm:$0xf]
        %v3987 = vld [vmem:[%s347 + $0x598] sm:$0xf]
        %v3988 = vld [vmem:[%s347 + $0x59c] sm:$0xf]
        %v3989 = vld [vmem:[%s347 + $0x5a0] sm:$0xf]
        %v3990 = vld [vmem:[%s347 + $0x5a4] sm:$0xf]
        %v3991 = vld [vmem:[%s347 + $0x5a8] sm:$0xf]
        %v3992 = vld [vmem:[%s347 + $0x5ac] sm:$0xf]
        %v3993 = vld [vmem:[%s347 + $0x5b0] sm:$0xf]
        %v3994 = vld [vmem:[%s347 + $0x5b4] sm:$0xf]
        %v3995 = vld [vmem:[%s347 + $0x5b8] sm:$0xf]
        %v3996 = vld [vmem:[%s347 + $0x5bc] sm:$0xf]
        %v3997 = vld [vmem:[%s347 + $0x5c0] sm:$0xf]
        %v3998 = vld [vmem:[%s347 + $0x5c4] sm:$0xf]
        %v3999 = vld [vmem:[%s347 + $0x5c8] sm:$0xf]
        %v4000 = vld [vmem:[%s347 + $0x5cc] sm:$0xf]
        %v4001 = vld [vmem:[%s347 + $0x5d0] sm:$0xf]
        %v4002 = vld [vmem:[%s347 + $0x5d4] sm:$0xf]
        %v4003 = vld [vmem:[%s347 + $0x5d8] sm:$0xf]
        %v4004 = vld [vmem:[%s347 + $0x5dc] sm:$0xf]
        %v4005 = vld [vmem:[%s347 + $0x5e0] sm:$0xf]
        %v4006 = vld [vmem:[%s347 + $0x5e4] sm:$0xf]
        %v4007 = vld [vmem:[%s347 + $0x5e8] sm:$0xf]
        %v4008 = vld [vmem:[%s347 + $0x5ec] sm:$0xf]
        %v4009 = vld [vmem:[%s347 + $0x5f0] sm:$0xf]
        %v4010 = vld [vmem:[%s347 + $0x5f4] sm:$0xf]
        %v4011 = vld [vmem:[%s347 + $0x5f8] sm:$0xf]
        %v4012 = vld [vmem:[%s347 + $0x5fc] sm:$0xf]
        %v4013 = vld [vmem:[%s347 + $0x600] sm:$0xf]
        %v4014 = vld [vmem:[%s347 + $0x604] sm:$0xf]
        %v4015 = vld [vmem:[%s347 + $0x608] sm:$0xf]
        %v4016 = vld [vmem:[%s347 + $0x60c] sm:$0xf]
        %v4017 = vld [vmem:[%s347 + $0x610] sm:$0xf]
        %v4018 = vld [vmem:[%s347 + $0x614] sm:$0xf]
        %v4019 = vld [vmem:[%s347 + $0x618] sm:$0xf]
        %v4020 = vld [vmem:[%s347 + $0x61c] sm:$0xf]
        %v4021 = vld [vmem:[%s347 + $0x620] sm:$0xf]
        %v4022 = vld [vmem:[%s347 + $0x624] sm:$0xf]
        %v4023 = vld [vmem:[%s347 + $0x628] sm:$0xf]
        %v4024 = vld [vmem:[%s347 + $0x62c] sm:$0xf]
        %v4025 = vld [vmem:[%s347 + $0x630] sm:$0xf]
        %v4026 = vld [vmem:[%s347 + $0x634] sm:$0xf]
        %v4027 = vld [vmem:[%s347 + $0x638] sm:$0xf]
        %v4028 = vld [vmem:[%s347 + $0x63c] sm:$0xf]
        %v4029 = vld [vmem:[%s347 + $0x640] sm:$0xf]
        %v4030 = vld [vmem:[%s347 + $0x644] sm:$0xf]
        %v4031 = vld [vmem:[%s347 + $0x648] sm:$0xf]
        %v4032 = vld [vmem:[%s347 + $0x64c] sm:$0xf]
        %v4033 = vld [vmem:[%s347 + $0x650] sm:$0xf]
        %v4034 = vld [vmem:[%s347 + $0x654] sm:$0xf]
        %v4035 = vld [vmem:[%s347 + $0x658] sm:$0xf]
        %v4036 = vld [vmem:[%s347 + $0x65c] sm:$0xf]
        %v4037 = vld [vmem:[%s347 + $0x660] sm:$0xf]
        %v4038 = vld [vmem:[%s347 + $0x664] sm:$0xf]
        %v4039 = vld [vmem:[%s347 + $0x668] sm:$0xf]
        %v4040 = vld [vmem:[%s347 + $0x66c] sm:$0xf]
        %v4041 = vld [vmem:[%s347 + $0x670] sm:$0xf]
        %v4042 = vld [vmem:[%s347 + $0x674] sm:$0xf]
        %v4043 = vld [vmem:[%s347 + $0x678] sm:$0xf]
        %v4044 = vld [vmem:[%s347 + $0x67c] sm:$0xf]
        %v4045 = vld [vmem:[%s347 + $0x680] sm:$0xf]
        %v4046 = vld [vmem:[%s347 + $0x684] sm:$0xf]
        %v4047 = vld [vmem:[%s347 + $0x688] sm:$0xf]
        %v4048 = vld [vmem:[%s347 + $0x68c] sm:$0xf]
        %v4049 = vld [vmem:[%s347 + $0x690] sm:$0xf]
        %v4050 = vld [vmem:[%s347 + $0x694] sm:$0xf]
        %v4051 = vld [vmem:[%s347 + $0x698] sm:$0xf]
        %v4052 = vld [vmem:[%s347 + $0x69c] sm:$0xf]
        %v4053 = vld [vmem:[%s347 + $0x6a0] sm:$0xf]
        %v4054 = vld [vmem:[%s347 + $0x6a4] sm:$0xf]
        %v4055 = vld [vmem:[%s347 + $0x6a8] sm:$0xf]
        %v4056 = vld [vmem:[%s347 + $0x6ac] sm:$0xf]
        %v4057 = vld [vmem:[%s347 + $0x6b0] sm:$0xf]
        %v4058 = vld [vmem:[%s347 + $0x6b4] sm:$0xf]
        %v4059 = vld [vmem:[%s347 + $0x6b8] sm:$0xf]
        %v4060 = vld [vmem:[%s347 + $0x6bc] sm:$0xf]
        %v4061 = vld [vmem:[%s347 + $0x6c0] sm:$0xf]
        %v4062 = vld [vmem:[%s347 + $0x6c4] sm:$0xf]
        %v4063 = vld [vmem:[%s347 + $0x6c8] sm:$0xf]
        %v4064 = vld [vmem:[%s347 + $0x6cc] sm:$0xf]
        %v4065 = vld [vmem:[%s347 + $0x6d0] sm:$0xf]
        %v4066 = vld [vmem:[%s347 + $0x6d4] sm:$0xf]
        %v4067 = vld [vmem:[%s347 + $0x6d8] sm:$0xf]
        %v4068 = vld [vmem:[%s347 + $0x6dc] sm:$0xf]
        %v4069 = vld [vmem:[%s347 + $0x6e0] sm:$0xf]
        %v4070 = vld [vmem:[%s347 + $0x6e4] sm:$0xf]
        %v4071 = vld [vmem:[%s347 + $0x6e8] sm:$0xf]
        %v4072 = vld [vmem:[%s347 + $0x6ec] sm:$0xf]
        %v4073 = vld [vmem:[%s347 + $0x6f0] sm:$0xf]
        %v4074 = vld [vmem:[%s347 + $0x6f4] sm:$0xf]
        %v4075 = vld [vmem:[%s347 + $0x6f8] sm:$0xf]
        %v4076 = vld [vmem:[%s347 + $0x6fc] sm:$0xf]
        %v4077 = vld [vmem:[%s347 + $0x700] sm:$0xf]
        %v4078 = vld [vmem:[%s347 + $0x704] sm:$0xf]
        %v4079 = vld [vmem:[%s347 + $0x708] sm:$0xf]
        %v4080 = vld [vmem:[%s347 + $0x70c] sm:$0xf]
        %v4081 = vld [vmem:[%s347 + $0x710] sm:$0xf]
        %v4082 = vld [vmem:[%s347 + $0x714] sm:$0xf]
        %v4083 = vld [vmem:[%s347 + $0x718] sm:$0xf]
        %v4084 = vld [vmem:[%s347 + $0x71c] sm:$0xf]
        %v4085 = vld [vmem:[%s347 + $0x720] sm:$0xf]
        %v4086 = vld [vmem:[%s347 + $0x724] sm:$0xf]
        %v4087 = vld [vmem:[%s347 + $0x728] sm:$0xf]
        %v4088 = vld [vmem:[%s347 + $0x72c] sm:$0xf]
        %v4089 = vld [vmem:[%s347 + $0x730] sm:$0xf]
        %v4090 = vld [vmem:[%s347 + $0x734] sm:$0xf]
        %v4091 = vld [vmem:[%s347 + $0x738] sm:$0xf]
        %v4092 = vld [vmem:[%s347 + $0x73c] sm:$0xf]
        %v4093 = vld [vmem:[%s347 + $0x740] sm:$0xf]
        %v4094 = vld [vmem:[%s347 + $0x744] sm:$0xf]
        %v4095 = vld [vmem:[%s347 + $0x748] sm:$0xf]
        %v4096 = vld [vmem:[%s347 + $0x74c] sm:$0xf]
        %v4097 = vld [vmem:[%s347 + $0x750] sm:$0xf]
        %v4098 = vld [vmem:[%s347 + $0x754] sm:$0xf]
        %v4099 = vld [vmem:[%s347 + $0x758] sm:$0xf]
        %v4100 = vld [vmem:[%s347 + $0x75c] sm:$0xf]
        %v4101 = vld [vmem:[%s347 + $0x760] sm:$0xf]
        %v4102 = vld [vmem:[%s347 + $0x764] sm:$0xf]
        %v4103 = vld [vmem:[%s347 + $0x768] sm:$0xf]
        %v4104 = vld [vmem:[%s347 + $0x76c] sm:$0xf]
        %v4105 = vld [vmem:[%s347 + $0x770] sm:$0xf]
        %v4106 = vld [vmem:[%s347 + $0x774] sm:$0xf]
        %v4107 = vld [vmem:[%s347 + $0x778] sm:$0xf]
        %v4108 = vld [vmem:[%s347 + $0x77c] sm:$0xf]
        %v4109 = vld [vmem:[%s347 + $0x780] sm:$0xf]
        %v4110 = vld [vmem:[%s347 + $0x784] sm:$0xf]
        %v4111 = vld [vmem:[%s347 + $0x788] sm:$0xf]
        %v4112 = vld [vmem:[%s347 + $0x78c] sm:$0xf]
        %v4113 = vld [vmem:[%s347 + $0x790] sm:$0xf]
        %v4114 = vld [vmem:[%s347 + $0x794] sm:$0xf]
        %v4115 = vld [vmem:[%s347 + $0x798] sm:$0xf]
        %v4116 = vld [vmem:[%s347 + $0x79c] sm:$0xf]
        %v4117 = vld [vmem:[%s347 + $0x7a0] sm:$0xf]
        %v4118 = vld [vmem:[%s347 + $0x7a4] sm:$0xf]
        %v4119 = vld [vmem:[%s347 + $0x7a8] sm:$0xf]
        %v4120 = vld [vmem:[%s347 + $0x7ac] sm:$0xf]
        %v4121 = vld [vmem:[%s347 + $0x7b0] sm:$0xf]
        %v4122 = vld [vmem:[%s347 + $0x7b4] sm:$0xf]
        %v4123 = vld [vmem:[%s347 + $0x7b8] sm:$0xf]
        %v4124 = vld [vmem:[%s347 + $0x7bc] sm:$0xf]
        %v4125 = vld [vmem:[%s347 + $0x7c0] sm:$0xf]
        %v4126 = vld [vmem:[%s347 + $0x7c4] sm:$0xf]
        %v4127 = vld [vmem:[%s347 + $0x7c8] sm:$0xf]
        %v4128 = vld [vmem:[%s347 + $0x7cc] sm:$0xf]
        %v4129 = vld [vmem:[%s347 + $0x7d0] sm:$0xf]
        %v4130 = vld [vmem:[%s347 + $0x7d4] sm:$0xf]
        %v4131 = vld [vmem:[%s347 + $0x7d8] sm:$0xf]
        %v4132 = vld [vmem:[%s347 + $0x7dc] sm:$0xf]
        %v4133 = vld [vmem:[%s347 + $0x7e0] sm:$0xf]
        %v4134 = vld [vmem:[%s347 + $0x7e4] sm:$0xf]
        %v4135 = vld [vmem:[%s347 + $0x7e8] sm:$0xf]
        %v4136 = vld [vmem:[%s347 + $0x7ec] sm:$0xf]
        %v4137 = vld [vmem:[%s347 + $0x7f0] sm:$0xf]
        %v4138 = vld [vmem:[%s347 + $0x7f4] sm:$0xf]
        %v4139 = vld [vmem:[%s347 + $0x7f8] sm:$0xf]
        %v4140 = vld [vmem:[%s347 + $0x7fc] sm:$0xf]
        %v4141 = vld [vmem:[%s347 + $0x800] sm:$0xf]
        %v4142 = vld [vmem:[%s347 + $0x804] sm:$0xf]
        %v4143 = vld [vmem:[%s347 + $0x808] sm:$0xf]
        %v4144 = vld [vmem:[%s347 + $0x80c] sm:$0xf]
        %v4145 = vld [vmem:[%s347 + $0x810] sm:$0xf]
        %v4146 = vld [vmem:[%s347 + $0x814] sm:$0xf]
        %v4147 = vld [vmem:[%s347 + $0x818] sm:$0xf]
        %v4148 = vld [vmem:[%s347 + $0x81c] sm:$0xf]
        %v4149 = vld [vmem:[%s347 + $0x820] sm:$0xf]
        %v4150 = vld [vmem:[%s347 + $0x824] sm:$0xf]
        %v4151 = vld [vmem:[%s347 + $0x828] sm:$0xf]
        %v4152 = vld [vmem:[%s347 + $0x82c] sm:$0xf]
        %v4153 = vld [vmem:[%s347 + $0x830] sm:$0xf]
        %v4154 = vld [vmem:[%s347 + $0x834] sm:$0xf]
        %v4155 = vld [vmem:[%s347 + $0x838] sm:$0xf]
        %v4156 = vld [vmem:[%s347 + $0x83c] sm:$0xf]
        %v4157 = vld [vmem:[%s347 + $0x840] sm:$0xf]
        %v4158 = vld [vmem:[%s347 + $0x844] sm:$0xf]
        %v4159 = vld [vmem:[%s347 + $0x848] sm:$0xf]
        %v4160 = vld [vmem:[%s347 + $0x84c] sm:$0xf]
        %v4161 = vld [vmem:[%s347 + $0x850] sm:$0xf]
        %v4162 = vld [vmem:[%s347 + $0x854] sm:$0xf]
        %v4163 = vld [vmem:[%s347 + $0x858] sm:$0xf]
        %v4164 = vld [vmem:[%s347 + $0x85c] sm:$0xf]
        %v4165 = vld [vmem:[%s347 + $0x860] sm:$0xf]
        %v4166 = vld [vmem:[%s347 + $0x864] sm:$0xf]
        %v4167 = vld [vmem:[%s347 + $0x868] sm:$0xf]
        %v4168 = vld [vmem:[%s347 + $0x86c] sm:$0xf]
        %v4169 = vld [vmem:[%s347 + $0x870] sm:$0xf]
        %v4170 = vld [vmem:[%s347 + $0x874] sm:$0xf]
        %v4171 = vld [vmem:[%s347 + $0x878] sm:$0xf]
        %v4172 = vld [vmem:[%s347 + $0x87c] sm:$0xf]
        %v4173 = vld [vmem:[%s347 + $0x880] sm:$0xf]
        %v4174 = vld [vmem:[%s347 + $0x884] sm:$0xf]
        %v4175 = vld [vmem:[%s347 + $0x888] sm:$0xf]
        %v4176 = vld [vmem:[%s347 + $0x88c] sm:$0xf]
        %v4177 = vld [vmem:[%s347 + $0x890] sm:$0xf]
        %v4178 = vld [vmem:[%s347 + $0x894] sm:$0xf]
        %v4179 = vld [vmem:[%s347 + $0x898] sm:$0xf]
        %v4180 = vld [vmem:[%s347 + $0x89c] sm:$0xf]
        %v4181 = vld [vmem:[%s347 + $0x8a0] sm:$0xf]
        %v4182 = vld [vmem:[%s347 + $0x8a4] sm:$0xf]
        %v4183 = vld [vmem:[%s347 + $0x8a8] sm:$0xf]
        %v4184 = vld [vmem:[%s347 + $0x8ac] sm:$0xf]
        %v4185 = vld [vmem:[%s347 + $0x8b0] sm:$0xf]
        %v4186 = vld [vmem:[%s347 + $0x8b4] sm:$0xf]
        %v4187 = vld [vmem:[%s347 + $0x8b8] sm:$0xf]
        %v4188 = vld [vmem:[%s347 + $0x8bc] sm:$0xf]
        %v4189 = vld [vmem:[%s347 + $0x8c0] sm:$0xf]
        %v4190 = vld [vmem:[%s347 + $0x8c4] sm:$0xf]
        %v4191 = vld [vmem:[%s347 + $0x8c8] sm:$0xf]
        %v4192 = vld [vmem:[%s347 + $0x8cc] sm:$0xf]
        %v4193 = vld [vmem:[%s347 + $0x8d0] sm:$0xf]
        %v4194 = vld [vmem:[%s347 + $0x8d4] sm:$0xf]
        %v4195 = vld [vmem:[%s347 + $0x8d8] sm:$0xf]
        %v4196 = vld [vmem:[%s347 + $0x8dc] sm:$0xf]
        %v4197 = vld [vmem:[%s347 + $0x8e0] sm:$0xf]
        %v4198 = vld [vmem:[%s347 + $0x8e4] sm:$0xf]
        %v4199 = vld [vmem:[%s347 + $0x8e8] sm:$0xf]
        %v4200 = vld [vmem:[%s347 + $0x8ec] sm:$0xf]
        %v4201 = vld [vmem:[%s347 + $0x8f0] sm:$0xf]
        %v4202 = vld [vmem:[%s347 + $0x8f4] sm:$0xf]
        %v4203 = vld [vmem:[%s347 + $0x8f8] sm:$0xf]
        %v4204 = vld [vmem:[%s347 + $0x8fc] sm:$0xf]
        %v4205 = vld [vmem:[%s347 + $0x900] sm:$0xf]
        %v4206 = vld [vmem:[%s347 + $0x904] sm:$0xf]
        %v4207 = vld [vmem:[%s347 + $0x908] sm:$0xf]
        %v4208 = vld [vmem:[%s347 + $0x90c] sm:$0xf]
        %v4209 = vld [vmem:[%s347 + $0x910] sm:$0xf]
        %v4210 = vld [vmem:[%s347 + $0x914] sm:$0xf]
        %v4211 = vld [vmem:[%s347 + $0x918] sm:$0xf]
        %v4212 = vld [vmem:[%s347 + $0x91c] sm:$0xf]
        %v4213 = vld [vmem:[%s347 + $0x920] sm:$0xf]
        %v4214 = vld [vmem:[%s347 + $0x924] sm:$0xf]
        %v4215 = vld [vmem:[%s347 + $0x928] sm:$0xf]
        %v4216 = vld [vmem:[%s347 + $0x92c] sm:$0xf]
        %v4217 = vld [vmem:[%s347 + $0x930] sm:$0xf]
        %v4218 = vld [vmem:[%s347 + $0x934] sm:$0xf]
        %v4219 = vld [vmem:[%s347 + $0x938] sm:$0xf]
        %v4220 = vld [vmem:[%s347 + $0x93c] sm:$0xf]
        %v4221 = vld [vmem:[%s347 + $0x940] sm:$0xf]
        %v4222 = vld [vmem:[%s347 + $0x944] sm:$0xf]
        %v4223 = vld [vmem:[%s347 + $0x948] sm:$0xf]
        %v4224 = vld [vmem:[%s347 + $0x94c] sm:$0xf]
        %v4225 = vld [vmem:[%s347 + $0x950] sm:$0xf]
        %v4226 = vld [vmem:[%s347 + $0x954] sm:$0xf]
        %v4227 = vld [vmem:[%s347 + $0x958] sm:$0xf]
        %v4228 = vld [vmem:[%s347 + $0x95c] sm:$0xf]
        %v4229 = vld [vmem:[%s347 + $0x960] sm:$0xf]
        %v4230 = vld [vmem:[%s347 + $0x964] sm:$0xf]
        %v4231 = vld [vmem:[%s347 + $0x968] sm:$0xf]
        %v4232 = vld [vmem:[%s347 + $0x96c] sm:$0xf]
        %v4233 = vld [vmem:[%s347 + $0x970] sm:$0xf]
        %v4234 = vld [vmem:[%s347 + $0x974] sm:$0xf]
        %v4235 = vld [vmem:[%s347 + $0x978] sm:$0xf]
        %v4236 = vld [vmem:[%s347 + $0x97c] sm:$0xf]
        %v4237 = vld [vmem:[%s347 + $0x980] sm:$0xf]
        %v4238 = vld [vmem:[%s347 + $0x984] sm:$0xf]
        %v4239 = vld [vmem:[%s347 + $0x988] sm:$0xf]
        %v4240 = vld [vmem:[%s347 + $0x98c] sm:$0xf]
        %v4241 = vld [vmem:[%s347 + $0x990] sm:$0xf]
        %v4242 = vld [vmem:[%s347 + $0x994] sm:$0xf]
        %v4243 = vld [vmem:[%s347 + $0x998] sm:$0xf]
        %v4244 = vld [vmem:[%s347 + $0x99c] sm:$0xf]
        %v4245 = vld [vmem:[%s347 + $0x9a0] sm:$0xf]
        %v4246 = vld [vmem:[%s347 + $0x9a4] sm:$0xf]
        %v4247 = vld [vmem:[%s347 + $0x9a8] sm:$0xf]
        %v4248 = vld [vmem:[%s347 + $0x9ac] sm:$0xf]
        %v4249 = vld [vmem:[%s347 + $0x9b0] sm:$0xf]
        %v4250 = vld [vmem:[%s347 + $0x9b4] sm:$0xf]
        %v4251 = vld [vmem:[%s347 + $0x9b8] sm:$0xf]
        %v4252 = vld [vmem:[%s347 + $0x9bc] sm:$0xf]
        %v4253 = vld [vmem:[%s347 + $0x9c0] sm:$0xf]
        %v4254 = vld [vmem:[%s347 + $0x9c4] sm:$0xf]
        %v4255 = vld [vmem:[%s347 + $0x9c8] sm:$0xf]
        %v4256 = vld [vmem:[%s347 + $0x9cc] sm:$0xf]
        %v4257 = vld [vmem:[%s347 + $0x9d0] sm:$0xf]
        %v4258 = vld [vmem:[%s347 + $0x9d4] sm:$0xf]
        %v4259 = vld [vmem:[%s347 + $0x9d8] sm:$0xf]
        %v4260 = vld [vmem:[%s347 + $0x9dc] sm:$0xf]
        %v4261 = vld [vmem:[%s347 + $0x9e0] sm:$0xf]
        %v4262 = vld [vmem:[%s347 + $0x9e4] sm:$0xf]
        %v4263 = vld [vmem:[%s347 + $0x9e8] sm:$0xf]
        %v4264 = vld [vmem:[%s347 + $0x9ec] sm:$0xf]
        %v4265 = vld [vmem:[%s347 + $0x9f0] sm:$0xf]
        %v4266 = vld [vmem:[%s347 + $0x9f4] sm:$0xf]
        %v4267 = vld [vmem:[%s347 + $0x9f8] sm:$0xf]
        %v4268 = vld [vmem:[%s347 + $0x9fc] sm:$0xf]
        %v4269 = vld [vmem:[%s347 + $0xa00] sm:$0xf]
        %v4270 = vld [vmem:[%s347 + $0xa04] sm:$0xf]
        %v4271 = vld [vmem:[%s347 + $0xa08] sm:$0xf]
        %v4272 = vld [vmem:[%s347 + $0xa0c] sm:$0xf]
        %v4273 = vld [vmem:[%s347 + $0xa10] sm:$0xf]
        %v4274 = vld [vmem:[%s347 + $0xa14] sm:$0xf]
        %v4275 = vld [vmem:[%s347 + $0xa18] sm:$0xf]
        %v4276 = vld [vmem:[%s347 + $0xa1c] sm:$0xf]
        %v4277 = vld [vmem:[%s347 + $0xa20] sm:$0xf]
        %v4278 = vld [vmem:[%s347 + $0xa24] sm:$0xf]
        %v4279 = vld [vmem:[%s347 + $0xa28] sm:$0xf]
        %v4280 = vld [vmem:[%s347 + $0xa2c] sm:$0xf]
        %v4281 = vld [vmem:[%s347 + $0xa30] sm:$0xf]
        %v4282 = vld [vmem:[%s347 + $0xa34] sm:$0xf]
        %v4283 = vld [vmem:[%s347 + $0xa38] sm:$0xf]
        %v4284 = vld [vmem:[%s347 + $0xa3c] sm:$0xf]
        %v4285 = vld [vmem:[%s347 + $0xa40] sm:$0xf]
        %v4286 = vld [vmem:[%s347 + $0xa44] sm:$0xf]
        %v4287 = vld [vmem:[%s347 + $0xa48] sm:$0xf]
        %v4288 = vld [vmem:[%s347 + $0xa4c] sm:$0xf]
        %v4289 = vld [vmem:[%s347 + $0xa50] sm:$0xf]
        %v4290 = vld [vmem:[%s347 + $0xa54] sm:$0xf]
        %v4291 = vld [vmem:[%s347 + $0xa58] sm:$0xf]
        %v4292 = vld [vmem:[%s347 + $0xa5c] sm:$0xf]
        %v4293 = vld [vmem:[%s347 + $0xa60] sm:$0xf]
        %v4294 = vld [vmem:[%s347 + $0xa64] sm:$0xf]
        %v4295 = vld [vmem:[%s347 + $0xa68] sm:$0xf]
        %v4296 = vld [vmem:[%s347 + $0xa6c] sm:$0xf]
        %v4297 = vld [vmem:[%s347 + $0xa70] sm:$0xf]
        %v4298 = vld [vmem:[%s347 + $0xa74] sm:$0xf]
        %v4299 = vld [vmem:[%s347 + $0xa78] sm:$0xf]
        %v4300 = vld [vmem:[%s347 + $0xa7c] sm:$0xf]
        %v4301 = vld [vmem:[%s347 + $0xa80] sm:$0xf]
        %v4302 = vld [vmem:[%s347 + $0xa84] sm:$0xf]
        %v4303 = vld [vmem:[%s347 + $0xa88] sm:$0xf]
        %v4304 = vld [vmem:[%s347 + $0xa8c] sm:$0xf]
        %v4305 = vld [vmem:[%s347 + $0xa90] sm:$0xf]
        %v4306 = vld [vmem:[%s347 + $0xa94] sm:$0xf]
        %v4307 = vld [vmem:[%s347 + $0xa98] sm:$0xf]
        %v4308 = vld [vmem:[%s347 + $0xa9c] sm:$0xf]
        %v4309 = vld [vmem:[%s347 + $0xaa0] sm:$0xf]
        %v4310 = vld [vmem:[%s347 + $0xaa4] sm:$0xf]
        %v4311 = vld [vmem:[%s347 + $0xaa8] sm:$0xf]
        %v4312 = vld [vmem:[%s347 + $0xaac] sm:$0xf]
        %v4313 = vld [vmem:[%s347 + $0xab0] sm:$0xf]
        %v4314 = vld [vmem:[%s347 + $0xab4] sm:$0xf]
        %v4315 = vld [vmem:[%s347 + $0xab8] sm:$0xf]
        %v4316 = vld [vmem:[%s347 + $0xabc] sm:$0xf]
        %v4317 = vld [vmem:[%s347 + $0xac0] sm:$0xf]
        %v4318 = vld [vmem:[%s347 + $0xac4] sm:$0xf]
        %v4319 = vld [vmem:[%s347 + $0xac8] sm:$0xf]
        %v4320 = vld [vmem:[%s347 + $0xacc] sm:$0xf]
        %v4321 = vld [vmem:[%s347 + $0xad0] sm:$0xf]
        %v4322 = vld [vmem:[%s347 + $0xad4] sm:$0xf]
        %v4323 = vld [vmem:[%s347 + $0xad8] sm:$0xf]
        %v4324 = vld [vmem:[%s347 + $0xadc] sm:$0xf]
        %v4325 = vld [vmem:[%s347 + $0xae0] sm:$0xf]
        %v4326 = vld [vmem:[%s347 + $0xae4] sm:$0xf]
        %v4327 = vld [vmem:[%s347 + $0xae8] sm:$0xf]
        %v4328 = vld [vmem:[%s347 + $0xaec] sm:$0xf]
        %v4329 = vld [vmem:[%s347 + $0xaf0] sm:$0xf]
        %v4330 = vld [vmem:[%s347 + $0xaf4] sm:$0xf]
        %v4331 = vld [vmem:[%s347 + $0xaf8] sm:$0xf]
        %v4332 = vld [vmem:[%s347 + $0xafc] sm:$0xf]
        %v4333 = vld [vmem:[%s347 + $0xb00] sm:$0xf]
        %v4334 = vld [vmem:[%s347 + $0xb04] sm:$0xf]
        %v4335 = vld [vmem:[%s347 + $0xb08] sm:$0xf]
        %v4336 = vld [vmem:[%s347 + $0xb0c] sm:$0xf]
        %v4337 = vld [vmem:[%s347 + $0xb10] sm:$0xf]
        %v4338 = vld [vmem:[%s347 + $0xb14] sm:$0xf]
        %v4339 = vld [vmem:[%s347 + $0xb18] sm:$0xf]
        %v4340 = vld [vmem:[%s347 + $0xb1c] sm:$0xf]
        %v4341 = vld [vmem:[%s347 + $0xb20] sm:$0xf]
        %v4342 = vld [vmem:[%s347 + $0xb24] sm:$0xf]
        %v4343 = vld [vmem:[%s347 + $0xb28] sm:$0xf]
        %v4344 = vld [vmem:[%s347 + $0xb2c] sm:$0xf]
        %v4345 = vld [vmem:[%s347 + $0xb30] sm:$0xf]
        %v4346 = vld [vmem:[%s347 + $0xb34] sm:$0xf]
        %v4347 = vld [vmem:[%s347 + $0xb38] sm:$0xf]
        %v4348 = vld [vmem:[%s347 + $0xb3c] sm:$0xf]
        %v4349 = vld [vmem:[%s347 + $0xb40] sm:$0xf]
        %v4350 = vld [vmem:[%s347 + $0xb44] sm:$0xf]
        %v4351 = vld [vmem:[%s347 + $0xb48] sm:$0xf]
        %v4352 = vld [vmem:[%s347 + $0xb4c] sm:$0xf]
        %v4353 = vld [vmem:[%s347 + $0xb50] sm:$0xf]
        %v4354 = vld [vmem:[%s347 + $0xb54] sm:$0xf]
        %v4355 = vld [vmem:[%s347 + $0xb58] sm:$0xf]
        %v4356 = vld [vmem:[%s347 + $0xb5c] sm:$0xf]
        %v4357 = vld [vmem:[%s347 + $0xb60] sm:$0xf]
        %v4358 = vld [vmem:[%s347 + $0xb64] sm:$0xf]
        %v4359 = vld [vmem:[%s347 + $0xb68] sm:$0xf]
        %v4360 = vld [vmem:[%s347 + $0xb6c] sm:$0xf]
        %v4361 = vld [vmem:[%s347 + $0xb70] sm:$0xf]
        %v4362 = vld [vmem:[%s347 + $0xb74] sm:$0xf]
        %v4363 = vld [vmem:[%s347 + $0xb78] sm:$0xf]
        %v4364 = vld [vmem:[%s347 + $0xb7c] sm:$0xf]
        %v4365 = vld [vmem:[%s347 + $0xb80] sm:$0xf]
        %v4366 = vld [vmem:[%s347 + $0xb84] sm:$0xf]
        %v4367 = vld [vmem:[%s347 + $0xb88] sm:$0xf]
        %v4368 = vld [vmem:[%s347 + $0xb8c] sm:$0xf]
        %v4369 = vld [vmem:[%s347 + $0xb90] sm:$0xf]
        %v4370 = vld [vmem:[%s347 + $0xb94] sm:$0xf]
        %v4371 = vld [vmem:[%s347 + $0xb98] sm:$0xf]
        %v4372 = vld [vmem:[%s347 + $0xb9c] sm:$0xf]
        %v4373 = vld [vmem:[%s347 + $0xba0] sm:$0xf]
        %v4374 = vld [vmem:[%s347 + $0xba4] sm:$0xf]
        %v4375 = vld [vmem:[%s347 + $0xba8] sm:$0xf]
        %v4376 = vld [vmem:[%s347 + $0xbac] sm:$0xf]
        %v4377 = vld [vmem:[%s347 + $0xbb0] sm:$0xf]
        %v4378 = vld [vmem:[%s347 + $0xbb4] sm:$0xf]
        %v4379 = vld [vmem:[%s347 + $0xbb8] sm:$0xf]
        %v4380 = vld [vmem:[%s347 + $0xbbc] sm:$0xf]
        %v4381 = vld [vmem:[%s347 + $0xbc0] sm:$0xf]
        %v4382 = vld [vmem:[%s347 + $0xbc4] sm:$0xf]
        %v4383 = vld [vmem:[%s347 + $0xbc8] sm:$0xf]
        %v4384 = vld [vmem:[%s347 + $0xbcc] sm:$0xf]
        %v4385 = vld [vmem:[%s347 + $0xbd0] sm:$0xf]
        %v4386 = vld [vmem:[%s347 + $0xbd4] sm:$0xf]
        %v4387 = vld [vmem:[%s347 + $0xbd8] sm:$0xf]
        %v4388 = vld [vmem:[%s347 + $0xbdc] sm:$0xf]
        %v4389 = vld [vmem:[%s347 + $0xbe0] sm:$0xf]
        %v4390 = vld [vmem:[%s347 + $0xbe4] sm:$0xf]
        %v4391 = vld [vmem:[%s347 + $0xbe8] sm:$0xf]
        %v4392 = vld [vmem:[%s347 + $0xbec] sm:$0xf]
        %v4393 = vld [vmem:[%s347 + $0xbf0] sm:$0xf]
        %v4394 = vld [vmem:[%s347 + $0xbf4] sm:$0xf]
        %v4395 = vld [vmem:[%s347 + $0xbf8] sm:$0xf]
        %v4396 = vld [vmem:[%s347 + $0xbfc] sm:$0xf]
        %v4397 = vld [vmem:[%s347 + $0xc00] sm:$0xf]
        %v4398 = vld [vmem:[%s347 + $0xc04] sm:$0xf]
        %v4399 = vld [vmem:[%s347 + $0xc08] sm:$0xf]
        %v4400 = vld [vmem:[%s347 + $0xc0c] sm:$0xf]
        %v4401 = vld [vmem:[%s347 + $0xc10] sm:$0xf]
        %v4402 = vld [vmem:[%s347 + $0xc14] sm:$0xf]
        %v4403 = vld [vmem:[%s347 + $0xc18] sm:$0xf]
        %v4404 = vld [vmem:[%s347 + $0xc1c] sm:$0xf]
        %v4405 = vld [vmem:[%s347 + $0xc20] sm:$0xf]
        %v4406 = vld [vmem:[%s347 + $0xc24] sm:$0xf]
        %v4407 = vld [vmem:[%s347 + $0xc28] sm:$0xf]
        %v4408 = vld [vmem:[%s347 + $0xc2c] sm:$0xf]
        %v4409 = vld [vmem:[%s347 + $0xc30] sm:$0xf]
        %v4410 = vld [vmem:[%s347 + $0xc34] sm:$0xf]
        %v4411 = vld [vmem:[%s347 + $0xc38] sm:$0xf]
        %v4412 = vld [vmem:[%s347 + $0xc3c] sm:$0xf]
        %v4413 = vld [vmem:[%s347 + $0xc40] sm:$0xf]
        %v4414 = vld [vmem:[%s347 + $0xc44] sm:$0xf]
        %v4415 = vld [vmem:[%s347 + $0xc48] sm:$0xf]
        %v4416 = vld [vmem:[%s347 + $0xc4c] sm:$0xf]
        %v4417 = vld [vmem:[%s347 + $0xc50] sm:$0xf]
        %v4418 = vld [vmem:[%s347 + $0xc54] sm:$0xf]
        %v4419 = vld [vmem:[%s347 + $0xc58] sm:$0xf]
        %v4420 = vld [vmem:[%s347 + $0xc5c] sm:$0xf]
        %v4421 = vld [vmem:[%s347 + $0xc60] sm:$0xf]
        %v4422 = vld [vmem:[%s347 + $0xc64] sm:$0xf]
        %v4423 = vld [vmem:[%s347 + $0xc68] sm:$0xf]
        %v4424 = vld [vmem:[%s347 + $0xc6c] sm:$0xf]
        %v4425 = vld [vmem:[%s347 + $0xc70] sm:$0xf]
        %v4426 = vld [vmem:[%s347 + $0xc74] sm:$0xf]
        %v4427 = vld [vmem:[%s347 + $0xc78] sm:$0xf]
        %v4428 = vld [vmem:[%s347 + $0xc7c] sm:$0xf]
        %v4429 = vld [vmem:[%s347 + $0xc80] sm:$0xf]
        %v4430 = vld [vmem:[%s347 + $0xc84] sm:$0xf]
        %v4431 = vld [vmem:[%s347 + $0xc88] sm:$0xf]
        %v4432 = vld [vmem:[%s347 + $0xc8c] sm:$0xf]
        %v4433 = vld [vmem:[%s347 + $0xc90] sm:$0xf]
        %v4434 = vld [vmem:[%s347 + $0xc94] sm:$0xf]
        %v4435 = vld [vmem:[%s347 + $0xc98] sm:$0xf]
        %v4436 = vld [vmem:[%s347 + $0xc9c] sm:$0xf]
        %v4437 = vld [vmem:[%s347 + $0xca0] sm:$0xf]
        %v4438 = vld [vmem:[%s347 + $0xca4] sm:$0xf]
        %v4439 = vld [vmem:[%s347 + $0xca8] sm:$0xf]
        %v4440 = vld [vmem:[%s347 + $0xcac] sm:$0xf]
        %v4441 = vld [vmem:[%s347 + $0xcb0] sm:$0xf]
        %v4442 = vld [vmem:[%s347 + $0xcb4] sm:$0xf]
        %v4443 = vld [vmem:[%s347 + $0xcb8] sm:$0xf]
        %v4444 = vld [vmem:[%s347 + $0xcbc] sm:$0xf]
        %v4445 = vld [vmem:[%s347 + $0xcc0] sm:$0xf]
        %v4446 = vld [vmem:[%s347 + $0xcc4] sm:$0xf]
        %v4447 = vld [vmem:[%s347 + $0xcc8] sm:$0xf]
        %v4448 = vld [vmem:[%s347 + $0xccc] sm:$0xf]
        %v4449 = vld [vmem:[%s347 + $0xcd0] sm:$0xf]
        %v4450 = vld [vmem:[%s347 + $0xcd4] sm:$0xf]
        %v4451 = vld [vmem:[%s347 + $0xcd8] sm:$0xf]
        %v4452 = vld [vmem:[%s347 + $0xcdc] sm:$0xf]
        %v4453 = vld [vmem:[%s347 + $0xce0] sm:$0xf]
        %v4454 = vld [vmem:[%s347 + $0xce4] sm:$0xf]
        %v4455 = vld [vmem:[%s347 + $0xce8] sm:$0xf]
        %v4456 = vld [vmem:[%s347 + $0xcec] sm:$0xf]
        %v4457 = vld [vmem:[%s347 + $0xcf0] sm:$0xf]
        %v4458 = vld [vmem:[%s347 + $0xcf4] sm:$0xf]
        %v4459 = vld [vmem:[%s347 + $0xcf8] sm:$0xf]
        %v4460 = vld [vmem:[%s347 + $0xcfc] sm:$0xf]
        %v4461 = vld [vmem:[%s347 + $0xd00] sm:$0xf]
        %v4462 = vld [vmem:[%s347 + $0xd04] sm:$0xf]
        %v4463 = vld [vmem:[%s347 + $0xd08] sm:$0xf]
        %v4464 = vld [vmem:[%s347 + $0xd0c] sm:$0xf]
        %v4465 = vld [vmem:[%s347 + $0xd10] sm:$0xf]
        %v4466 = vld [vmem:[%s347 + $0xd14] sm:$0xf]
        %v4467 = vld [vmem:[%s347 + $0xd18] sm:$0xf]
        %v4468 = vld [vmem:[%s347 + $0xd1c] sm:$0xf]
        %v4469 = vld [vmem:[%s347 + $0xd20] sm:$0xf]
        %v4470 = vld [vmem:[%s347 + $0xd24] sm:$0xf]
        %v4471 = vld [vmem:[%s347 + $0xd28] sm:$0xf]
        %v4472 = vld [vmem:[%s347 + $0xd2c] sm:$0xf]
        %v4473 = vld [vmem:[%s347 + $0xd30] sm:$0xf]
        %v4474 = vld [vmem:[%s347 + $0xd34] sm:$0xf]
        %v4475 = vld [vmem:[%s347 + $0xd38] sm:$0xf]
        %v4476 = vld [vmem:[%s347 + $0xd3c] sm:$0xf]
        %v4477 = vld [vmem:[%s347 + $0xd40] sm:$0xf]
        %v4478 = vld [vmem:[%s347 + $0xd44] sm:$0xf]
        %v4479 = vld [vmem:[%s347 + $0xd48] sm:$0xf]
        %v4480 = vld [vmem:[%s347 + $0xd4c] sm:$0xf]
        %v4481 = vld [vmem:[%s347 + $0xd50] sm:$0xf]
        %v4482 = vld [vmem:[%s347 + $0xd54] sm:$0xf]
        %v4483 = vld [vmem:[%s347 + $0xd58] sm:$0xf]
        %v4484 = vld [vmem:[%s347 + $0xd5c] sm:$0xf]
        %v4485 = vld [vmem:[%s347 + $0xd60] sm:$0xf]
        %v4486 = vld [vmem:[%s347 + $0xd64] sm:$0xf]
        %v4487 = vld [vmem:[%s347 + $0xd68] sm:$0xf]
        %v4488 = vld [vmem:[%s347 + $0xd6c] sm:$0xf]
        %v4489 = vld [vmem:[%s347 + $0xd70] sm:$0xf]
        %v4490 = vld [vmem:[%s347 + $0xd74] sm:$0xf]
        %v4491 = vld [vmem:[%s347 + $0xd78] sm:$0xf]
        %v4492 = vld [vmem:[%s347 + $0xd7c] sm:$0xf]
        %v4493 = vld [vmem:[%s347 + $0xd80] sm:$0xf]
        %v4494 = vld [vmem:[%s347 + $0xd84] sm:$0xf]
        %v4495 = vld [vmem:[%s347 + $0xd88] sm:$0xf]
        %v4496 = vld [vmem:[%s347 + $0xd8c] sm:$0xf]
        %v4497 = vld [vmem:[%s347 + $0xd90] sm:$0xf]
        %v4498 = vld [vmem:[%s347 + $0xd94] sm:$0xf]
        %v4499 = vld [vmem:[%s347 + $0xd98] sm:$0xf]
        %v4500 = vld [vmem:[%s347 + $0xd9c] sm:$0xf]
        %v4501 = vld [vmem:[%s347 + $0xda0] sm:$0xf]
        %v4502 = vld [vmem:[%s347 + $0xda4] sm:$0xf]
        %v4503 = vld [vmem:[%s347 + $0xda8] sm:$0xf]
        %v4504 = vld [vmem:[%s347 + $0xdac] sm:$0xf]
        %v4505 = vld [vmem:[%s347 + $0xdb0] sm:$0xf]
        %v4506 = vld [vmem:[%s347 + $0xdb4] sm:$0xf]
        %v4507 = vld [vmem:[%s347 + $0xdb8] sm:$0xf]
        %v4508 = vld [vmem:[%s347 + $0xdbc] sm:$0xf]
        %v4509 = vld [vmem:[%s347 + $0xdc0] sm:$0xf]
        %v4510 = vld [vmem:[%s347 + $0xdc4] sm:$0xf]
        %v4511 = vld [vmem:[%s347 + $0xdc8] sm:$0xf]
        %v4512 = vld [vmem:[%s347 + $0xdcc] sm:$0xf]
        %v4513 = vld [vmem:[%s347 + $0xdd0] sm:$0xf]
        %v4514 = vld [vmem:[%s347 + $0xdd4] sm:$0xf]
        %v4515 = vld [vmem:[%s347 + $0xdd8] sm:$0xf]
        %v4516 = vld [vmem:[%s347 + $0xddc] sm:$0xf]
        %v4517 = vld [vmem:[%s347 + $0xde0] sm:$0xf]
        %v4518 = vld [vmem:[%s347 + $0xde4] sm:$0xf]
        %v4519 = vld [vmem:[%s347 + $0xde8] sm:$0xf]
        %v4520 = vld [vmem:[%s347 + $0xdec] sm:$0xf]
        %v4521 = vld [vmem:[%s347 + $0xdf0] sm:$0xf]
        %v4522 = vld [vmem:[%s347 + $0xdf4] sm:$0xf]
        %v4523 = vld [vmem:[%s347 + $0xdf8] sm:$0xf]
        %v4524 = vld [vmem:[%s347 + $0xdfc] sm:$0xf]
        %v4525 = vld [vmem:[%s347 + $0xe00] sm:$0xf]
        %v4526 = vld [vmem:[%s347 + $0xe04] sm:$0xf]
        %v4527 = vld [vmem:[%s347 + $0xe08] sm:$0xf]
        %v4528 = vld [vmem:[%s347 + $0xe0c] sm:$0xf]
        %v4529 = vld [vmem:[%s347 + $0xe10] sm:$0xf]
        %v4530 = vld [vmem:[%s347 + $0xe14] sm:$0xf]
        %v4531 = vld [vmem:[%s347 + $0xe18] sm:$0xf]
        %v4532 = vld [vmem:[%s347 + $0xe1c] sm:$0xf]
        %v4533 = vld [vmem:[%s347 + $0xe20] sm:$0xf]
        %v4534 = vld [vmem:[%s347 + $0xe24] sm:$0xf]
        %v4535 = vld [vmem:[%s347 + $0xe28] sm:$0xf]
        %v4536 = vld [vmem:[%s347 + $0xe2c] sm:$0xf]
        %v4537 = vld [vmem:[%s347 + $0xe30] sm:$0xf]
        %v4538 = vld [vmem:[%s347 + $0xe34] sm:$0xf]
        %v4539 = vld [vmem:[%s347 + $0xe38] sm:$0xf]
        %v4540 = vld [vmem:[%s347 + $0xe3c] sm:$0xf]
        %v4541 = vld [vmem:[%s347 + $0xe40] sm:$0xf]
        %v4542 = vld [vmem:[%s347 + $0xe44] sm:$0xf]
        %v4543 = vld [vmem:[%s347 + $0xe48] sm:$0xf]
        %v4544 = vld [vmem:[%s347 + $0xe4c] sm:$0xf]
        %v4545 = vld [vmem:[%s347 + $0xe50] sm:$0xf]
        %v4546 = vld [vmem:[%s347 + $0xe54] sm:$0xf]
        %v4547 = vld [vmem:[%s347 + $0xe58] sm:$0xf]
        %v4548 = vld [vmem:[%s347 + $0xe5c] sm:$0xf]
        %v4549 = vld [vmem:[%s347 + $0xe60] sm:$0xf]
        %v4550 = vld [vmem:[%s347 + $0xe64] sm:$0xf]
        %v4551 = vld [vmem:[%s347 + $0xe68] sm:$0xf]
        %v4552 = vld [vmem:[%s347 + $0xe6c] sm:$0xf]
        %v4553 = vld [vmem:[%s347 + $0xe70] sm:$0xf]
        %v4554 = vld [vmem:[%s347 + $0xe74] sm:$0xf]
        %v4555 = vld [vmem:[%s347 + $0xe78] sm:$0xf]
        %v4556 = vld [vmem:[%s347 + $0xe7c] sm:$0xf]
        %v4557 = vld [vmem:[%s347 + $0xe80] sm:$0xf]
        %v4558 = vld [vmem:[%s347 + $0xe84] sm:$0xf]
        %v4559 = vld [vmem:[%s347 + $0xe88] sm:$0xf]
        %v4560 = vld [vmem:[%s347 + $0xe8c] sm:$0xf]
        %v4561 = vld [vmem:[%s347 + $0xe90] sm:$0xf]
        %v4562 = vld [vmem:[%s347 + $0xe94] sm:$0xf]
        %v4563 = vld [vmem:[%s347 + $0xe98] sm:$0xf]
        %v4564 = vld [vmem:[%s347 + $0xe9c] sm:$0xf]
        %v4565 = vld [vmem:[%s347 + $0xea0] sm:$0xf]
        %v4566 = vld [vmem:[%s347 + $0xea4] sm:$0xf]
        %v4567 = vld [vmem:[%s347 + $0xea8] sm:$0xf]
        %v4568 = vld [vmem:[%s347 + $0xeac] sm:$0xf]
        %v4569 = vld [vmem:[%s347 + $0xeb0] sm:$0xf]
        %v4570 = vld [vmem:[%s347 + $0xeb4] sm:$0xf]
        %v4571 = vld [vmem:[%s347 + $0xeb8] sm:$0xf]
        %v4572 = vld [vmem:[%s347 + $0xebc] sm:$0xf]
        %v4573 = vld [vmem:[%s347 + $0xec0] sm:$0xf]
        %v4574 = vld [vmem:[%s347 + $0xec4] sm:$0xf]
        %v4575 = vld [vmem:[%s347 + $0xec8] sm:$0xf]
        %v4576 = vld [vmem:[%s347 + $0xecc] sm:$0xf]
        %v4577 = vld [vmem:[%s347 + $0xed0] sm:$0xf]
        %v4578 = vld [vmem:[%s347 + $0xed4] sm:$0xf]
        %v4579 = vld [vmem:[%s347 + $0xed8] sm:$0xf]
        %v4580 = vld [vmem:[%s347 + $0xedc] sm:$0xf]
        %v4581 = vld [vmem:[%s347 + $0xee0] sm:$0xf]
        %v4582 = vld [vmem:[%s347 + $0xee4] sm:$0xf]
        %v4583 = vld [vmem:[%s347 + $0xee8] sm:$0xf]
        %v4584 = vld [vmem:[%s347 + $0xeec] sm:$0xf]
        %v4585 = vld [vmem:[%s347 + $0xef0] sm:$0xf]
        %v4586 = vld [vmem:[%s347 + $0xef4] sm:$0xf]
        %v4587 = vld [vmem:[%s347 + $0xef8] sm:$0xf]
        %v4588 = vld [vmem:[%s347 + $0xefc] sm:$0xf]
        %v4589 = vld [vmem:[%s347 + $0xf00] sm:$0xf]
        %v4590 = vld [vmem:[%s347 + $0xf04] sm:$0xf]
        %v4591 = vld [vmem:[%s347 + $0xf08] sm:$0xf]
        %v4592 = vld [vmem:[%s347 + $0xf0c] sm:$0xf]
        %v4593 = vld [vmem:[%s347 + $0xf10] sm:$0xf]
        %v4594 = vld [vmem:[%s347 + $0xf14] sm:$0xf]
        %v4595 = vld [vmem:[%s347 + $0xf18] sm:$0xf]
        %v4596 = vld [vmem:[%s347 + $0xf1c] sm:$0xf]
        %v4597 = vld [vmem:[%s347 + $0xf20] sm:$0xf]
        %v4598 = vld [vmem:[%s347 + $0xf24] sm:$0xf]
        %v4599 = vld [vmem:[%s347 + $0xf28] sm:$0xf]
        %v4600 = vld [vmem:[%s347 + $0xf2c] sm:$0xf]
        %v4601 = vld [vmem:[%s347 + $0xf30] sm:$0xf]
        %v4602 = vld [vmem:[%s347 + $0xf34] sm:$0xf]
        %v4603 = vld [vmem:[%s347 + $0xf38] sm:$0xf]
        %v4604 = vld [vmem:[%s347 + $0xf3c] sm:$0xf]
        %v4605 = vld [vmem:[%s347 + $0xf40] sm:$0xf]
        %v4606 = vld [vmem:[%s347 + $0xf44] sm:$0xf]
        %v4607 = vld [vmem:[%s347 + $0xf48] sm:$0xf]
        %v4608 = vld [vmem:[%s347 + $0xf4c] sm:$0xf]
        %v4609 = vld [vmem:[%s347 + $0xf50] sm:$0xf]
        %v4610 = vld [vmem:[%s347 + $0xf54] sm:$0xf]
        %v4611 = vld [vmem:[%s347 + $0xf58] sm:$0xf]
        %v4612 = vld [vmem:[%s347 + $0xf5c] sm:$0xf]
        %v4613 = vld [vmem:[%s347 + $0xf60] sm:$0xf]
        %v4614 = vld [vmem:[%s347 + $0xf64] sm:$0xf]
        %v4615 = vld [vmem:[%s347 + $0xf68] sm:$0xf]
        %v4616 = vld [vmem:[%s347 + $0xf6c] sm:$0xf]
        %v4617 = vld [vmem:[%s347 + $0xf70] sm:$0xf]
        %v4618 = vld [vmem:[%s347 + $0xf74] sm:$0xf]
        %v4619 = vld [vmem:[%s347 + $0xf78] sm:$0xf]
        %v4620 = vld [vmem:[%s347 + $0xf7c] sm:$0xf]
        %v4621 = vld [vmem:[%s347 + $0xf80] sm:$0xf]
        %v4622 = vld [vmem:[%s347 + $0xf84] sm:$0xf]
        %v4623 = vld [vmem:[%s347 + $0xf88] sm:$0xf]
        %v4624 = vld [vmem:[%s347 + $0xf8c] sm:$0xf]
        %v4625 = vld [vmem:[%s347 + $0xf90] sm:$0xf]
        %v4626 = vld [vmem:[%s347 + $0xf94] sm:$0xf]
        %v4627 = vld [vmem:[%s347 + $0xf98] sm:$0xf]
        %v4628 = vld [vmem:[%s347 + $0xf9c] sm:$0xf]
        %v4629 = vld [vmem:[%s347 + $0xfa0] sm:$0xf]
        %v4630 = vld [vmem:[%s347 + $0xfa4] sm:$0xf]
        %v4631 = vld [vmem:[%s347 + $0xfa8] sm:$0xf]
        %v4632 = vld [vmem:[%s347 + $0xfac] sm:$0xf]
        %v4633 = vld [vmem:[%s347 + $0xfb0] sm:$0xf]
        %v4634 = vld [vmem:[%s347 + $0xfb4] sm:$0xf]
        %v4635 = vld [vmem:[%s347 + $0xfb8] sm:$0xf]
        %v4636 = vld [vmem:[%s347 + $0xfbc] sm:$0xf]
        %v4637 = vld [vmem:[%s347 + $0xfc0] sm:$0xf]
        %v4638 = vld [vmem:[%s347 + $0xfc4] sm:$0xf]
        %v4639 = vld [vmem:[%s347 + $0xfc8] sm:$0xf]
        %v4640 = vld [vmem:[%s347 + $0xfcc] sm:$0xf]
        %v4641 = vld [vmem:[%s347 + $0xfd0] sm:$0xf]
        %v4642 = vld [vmem:[%s347 + $0xfd4] sm:$0xf]
        %v4643 = vld [vmem:[%s347 + $0xfd8] sm:$0xf]
        %v4644 = vld [vmem:[%s347 + $0xfdc] sm:$0xf]
        %v4645 = vld [vmem:[%s347 + $0xfe0] sm:$0xf]
        %v4646 = vld [vmem:[%s347 + $0xfe4] sm:$0xf]
        %v4647 = vld [vmem:[%s347 + $0xfe8] sm:$0xf]
        %v4648 = vld [vmem:[%s347 + $0xfec] sm:$0xf]
        %v4649 = vld [vmem:[%s347 + $0xff0] sm:$0xf]
        %v4650 = vld [vmem:[%s347 + $0xff4] sm:$0xf]
        %v4651 = vld [vmem:[%s347 + $0xff8] sm:$0xf]
        %v4652 = vld [vmem:[%s347 + $0xffc] sm:$0xf]
        %v4653 = vld [vmem:[%s347 + $0x1000] sm:$0xf]
        %v4654 = vld [vmem:[%s347 + $0x1004] sm:$0xf]
        %v4655 = vld [vmem:[%s347 + $0x1008] sm:$0xf]
        %v4656 = vld [vmem:[%s347 + $0x100c] sm:$0xf]
        %v4657 = vld [vmem:[%s347 + $0x1010] sm:$0xf]
        %v4658 = vld [vmem:[%s347 + $0x1014] sm:$0xf]
        %v4659 = vld [vmem:[%s347 + $0x1018] sm:$0xf]
        %v4660 = vld [vmem:[%s347 + $0x101c] sm:$0xf]
        %v4661 = vld [vmem:[%s347 + $0x1020] sm:$0xf]
        %v4662 = vld [vmem:[%s347 + $0x1024] sm:$0xf]
        %v4663 = vld [vmem:[%s347 + $0x1028] sm:$0xf]
        %v4664 = vld [vmem:[%s347 + $0x102c] sm:$0xf]
        %v4665 = vld [vmem:[%s347 + $0x1030] sm:$0xf]
        %v4666 = vld [vmem:[%s347 + $0x1034] sm:$0xf]
        %v4667 = vld [vmem:[%s347 + $0x1038] sm:$0xf]
        %v4668 = vld [vmem:[%s347 + $0x103c] sm:$0xf]
        %v4669 = vld [vmem:[%s347 + $0x1040] sm:$0xf]
        %v4670 = vld [vmem:[%s347 + $0x1044] sm:$0xf]
        %v4671 = vld [vmem:[%s347 + $0x1048] sm:$0xf]
        %v4672 = vld [vmem:[%s347 + $0x104c] sm:$0xf]
        %v4673 = vld [vmem:[%s347 + $0x1050] sm:$0xf]
        %v4674 = vld [vmem:[%s347 + $0x1054] sm:$0xf]
        %v4675 = vld [vmem:[%s347 + $0x1058] sm:$0xf]
        %v4676 = vld [vmem:[%s347 + $0x105c] sm:$0xf]
        %v4677 = vld [vmem:[%s347 + $0x1060] sm:$0xf]
        %v4678 = vld [vmem:[%s347 + $0x1064] sm:$0xf]
        %v4679 = vld [vmem:[%s347 + $0x1068] sm:$0xf]
        %v4680 = vld [vmem:[%s347 + $0x106c] sm:$0xf]
        %v4681 = vld [vmem:[%s347 + $0x1070] sm:$0xf]
        %v4682 = vld [vmem:[%s347 + $0x1074] sm:$0xf]
        %v4683 = vld [vmem:[%s347 + $0x1078] sm:$0xf]
        %v4684 = vld [vmem:[%s347 + $0x107c] sm:$0xf]
        %v4685 = vld [vmem:[%s347 + $0x1080] sm:$0xf]
        %v4686 = vld [vmem:[%s347 + $0x1084] sm:$0xf]
        %v4687 = vld [vmem:[%s347 + $0x1088] sm:$0xf]
        %v4688 = vld [vmem:[%s347 + $0x108c] sm:$0xf]
        %v4689 = vld [vmem:[%s347 + $0x1090] sm:$0xf]
        %v4690 = vld [vmem:[%s347 + $0x1094] sm:$0xf]
        %v4691 = vld [vmem:[%s347 + $0x1098] sm:$0xf]
        %v4692 = vld [vmem:[%s347 + $0x109c] sm:$0xf]
        %v4693 = vld [vmem:[%s347 + $0x10a0] sm:$0xf]
        %v4694 = vld [vmem:[%s347 + $0x10a4] sm:$0xf]
        %v4695 = vld [vmem:[%s347 + $0x10a8] sm:$0xf]
        %v4696 = vld [vmem:[%s347 + $0x10ac] sm:$0xf]
        %v4697 = vld [vmem:[%s347 + $0x10b0] sm:$0xf]
        %v4698 = vld [vmem:[%s347 + $0x10b4] sm:$0xf]
        %v4699 = vld [vmem:[%s347 + $0x10b8] sm:$0xf]
        %v4700 = vld [vmem:[%s347 + $0x10bc] sm:$0xf]
        %v4701 = vld [vmem:[%s347 + $0x10c0] sm:$0xf]
        %v4702 = vld [vmem:[%s347 + $0x10c4] sm:$0xf]
        %v4703 = vld [vmem:[%s347 + $0x10c8] sm:$0xf]
        %v4704 = vld [vmem:[%s347 + $0x10cc] sm:$0xf]
        %v4705 = vld [vmem:[%s347 + $0x10d0] sm:$0xf]
        %v4706 = vld [vmem:[%s347 + $0x10d4] sm:$0xf]
        %v4707 = vld [vmem:[%s347 + $0x10d8] sm:$0xf]
        %v4708 = vld [vmem:[%s347 + $0x10dc] sm:$0xf]
        %v4709 = vld [vmem:[%s347 + $0x10e0] sm:$0xf]
        %v4710 = vld [vmem:[%s347 + $0x10e4] sm:$0xf]
        %v4711 = vld [vmem:[%s347 + $0x10e8] sm:$0xf]
        %v4712 = vld [vmem:[%s347 + $0x10ec] sm:$0xf]
        %v4713 = vld [vmem:[%s347 + $0x10f0] sm:$0xf]
        %v4714 = vld [vmem:[%s347 + $0x10f4] sm:$0xf]
        %v4715 = vld [vmem:[%s347 + $0x10f8] sm:$0xf]
        %v4716 = vld [vmem:[%s347 + $0x10fc] sm:$0xf]
        %v4717 = vld [vmem:[%s347 + $0x1100] sm:$0xf]
        %v4718 = vld [vmem:[%s347 + $0x1104] sm:$0xf]
        %v4719 = vld [vmem:[%s347 + $0x1108] sm:$0xf]
        %v4720 = vld [vmem:[%s347 + $0x110c] sm:$0xf]
        %v4721 = vld [vmem:[%s347 + $0x1110] sm:$0xf]
        %v4722 = vld [vmem:[%s347 + $0x1114] sm:$0xf]
        %v4723 = vld [vmem:[%s347 + $0x1118] sm:$0xf]
        %v4724 = vld [vmem:[%s347 + $0x111c] sm:$0xf]
        %v4725 = vld [vmem:[%s347 + $0x1120] sm:$0xf]
        %v4726 = vld [vmem:[%s347 + $0x1124] sm:$0xf]
        %v4727 = vld [vmem:[%s347 + $0x1128] sm:$0xf]
        %v4728 = vld [vmem:[%s347 + $0x112c] sm:$0xf]
        %v4729 = vld [vmem:[%s347 + $0x1130] sm:$0xf]
        %v4730 = vld [vmem:[%s347 + $0x1134] sm:$0xf]
        %v4731 = vld [vmem:[%s347 + $0x1138] sm:$0xf]
        %v4732 = vld [vmem:[%s347 + $0x113c] sm:$0xf]
        %v4733 = vld [vmem:[%s347 + $0x1140] sm:$0xf]
        %v4734 = vld [vmem:[%s347 + $0x1144] sm:$0xf]
        %v4735 = vld [vmem:[%s347 + $0x1148] sm:$0xf]
        %v4736 = vld [vmem:[%s347 + $0x114c] sm:$0xf]
        %v4737 = vld [vmem:[%s347 + $0x1150] sm:$0xf]
        %v4738 = vld [vmem:[%s347 + $0x1154] sm:$0xf]
        %v4739 = vld [vmem:[%s347 + $0x1158] sm:$0xf]
        %v4740 = vld [vmem:[%s347 + $0x115c] sm:$0xf]
        %v4741 = vld [vmem:[%s347 + $0x1160] sm:$0xf]
        %v4742 = vld [vmem:[%s347 + $0x1164] sm:$0xf]
        %v4743 = vld [vmem:[%s347 + $0x1168] sm:$0xf]
        %v4744 = vld [vmem:[%s347 + $0x116c] sm:$0xf]
        %v4745 = vld [vmem:[%s347 + $0x1170] sm:$0xf]
        %v4746 = vld [vmem:[%s347 + $0x1174] sm:$0xf]
        %v4747 = vld [vmem:[%s347 + $0x1178] sm:$0xf]
        %v4748 = vld [vmem:[%s347 + $0x117c] sm:$0xf]
        %v4749 = vld [vmem:[%s347 + $0x1180] sm:$0xf]
        %v4750 = vld [vmem:[%s347 + $0x1184] sm:$0xf]
        %v4751 = vld [vmem:[%s347 + $0x1188] sm:$0xf]
        %v4752 = vld [vmem:[%s347 + $0x118c] sm:$0xf]
        %v4753 = vld [vmem:[%s347 + $0x1190] sm:$0xf]
        %v4754 = vld [vmem:[%s347 + $0x1194] sm:$0xf]
        %v4755 = vld [vmem:[%s347 + $0x1198] sm:$0xf]
        %v4756 = vld [vmem:[%s347 + $0x119c] sm:$0xf]
        %v4757 = vld [vmem:[%s347 + $0x11a0] sm:$0xf]
        %v4758 = vld [vmem:[%s347 + $0x11a4] sm:$0xf]
        %v4759 = vld [vmem:[%s347 + $0x11a8] sm:$0xf]
        %v4760 = vld [vmem:[%s347 + $0x11ac] sm:$0xf]
        %v4761 = vld [vmem:[%s347 + $0x11b0] sm:$0xf]
        %v4762 = vld [vmem:[%s347 + $0x11b4] sm:$0xf]
        %v4763 = vld [vmem:[%s347 + $0x11b8] sm:$0xf]
        %v4764 = vld [vmem:[%s347 + $0x11bc] sm:$0xf]
        %v4765 = vld [vmem:[%s347 + $0x11c0] sm:$0xf]
        %v4766 = vld [vmem:[%s347 + $0x11c4] sm:$0xf]
        %v4767 = vld [vmem:[%s347 + $0x11c8] sm:$0xf]
        %v4768 = vld [vmem:[%s347 + $0x11cc] sm:$0xf]
        %v4769 = vld [vmem:[%s347 + $0x11d0] sm:$0xf]
        %v4770 = vld [vmem:[%s347 + $0x11d4] sm:$0xf]
        %v4771 = vld [vmem:[%s347 + $0x11d8] sm:$0xf]
        %v4772 = vld [vmem:[%s347 + $0x11dc] sm:$0xf]
        %v4773 = vld [vmem:[%s347 + $0x11e0] sm:$0xf]
        %v4774 = vld [vmem:[%s347 + $0x11e4] sm:$0xf]
        %v4775 = vld [vmem:[%s347 + $0x11e8] sm:$0xf]
        %v4776 = vld [vmem:[%s347 + $0x11ec] sm:$0xf]
        %v4777 = vld [vmem:[%s347 + $0x11f0] sm:$0xf]
        %v4778 = vld [vmem:[%s347 + $0x11f4] sm:$0xf]
        %v4779 = vld [vmem:[%s347 + $0x11f8] sm:$0xf]
        %v4780 = vld [vmem:[%s347 + $0x11fc] sm:$0xf]
        %v4781 = vld [vmem:[%s347 + $0x1200] sm:$0xf]
        %v4782 = vld [vmem:[%s347 + $0x1204] sm:$0xf]
        %v4783 = vld [vmem:[%s347 + $0x1208] sm:$0xf]
        %v4784 = vld [vmem:[%s347 + $0x120c] sm:$0xf]
        %v4785 = vld [vmem:[%s347 + $0x1210] sm:$0xf]
        %v4786 = vld [vmem:[%s347 + $0x1214] sm:$0xf]
        %v4787 = vld [vmem:[%s347 + $0x1218] sm:$0xf]
        %v4788 = vld [vmem:[%s347 + $0x121c] sm:$0xf]
        %v4789 = vld [vmem:[%s347 + $0x1220] sm:$0xf]
        %v4790 = vld [vmem:[%s347 + $0x1224] sm:$0xf]
        %v4791 = vld [vmem:[%s347 + $0x1228] sm:$0xf]
        %v4792 = vld [vmem:[%s347 + $0x122c] sm:$0xf]
        %v4793 = vld [vmem:[%s347 + $0x1230] sm:$0xf]
        %v4794 = vld [vmem:[%s347 + $0x1234] sm:$0xf]
        %v4795 = vld [vmem:[%s347 + $0x1238] sm:$0xf]
        %v4796 = vld [vmem:[%s347 + $0x123c] sm:$0xf]
        %v4797 = vld [vmem:[%s347 + $0x1240] sm:$0xf]
        %v4798 = vld [vmem:[%s347 + $0x1244] sm:$0xf]
        %v4799 = vld [vmem:[%s347 + $0x1248] sm:$0xf]
        %v4800 = vld [vmem:[%s347 + $0x124c] sm:$0xf]
        %v4801 = vld [vmem:[%s347 + $0x1250] sm:$0xf]
        %v4802 = vld [vmem:[%s347 + $0x1254] sm:$0xf]
        %v4803 = vld [vmem:[%s347 + $0x1258] sm:$0xf]
        %v4804 = vld [vmem:[%s347 + $0x125c] sm:$0xf]
        %v4805 = vld [vmem:[%s347 + $0x1260] sm:$0xf]
        %v4806 = vld [vmem:[%s347 + $0x1264] sm:$0xf]
        %v4807 = vld [vmem:[%s347 + $0x1268] sm:$0xf]
        %v4808 = vld [vmem:[%s347 + $0x126c] sm:$0xf]
        %v4809 = vld [vmem:[%s347 + $0x1270] sm:$0xf]
        %v4810 = vld [vmem:[%s347 + $0x1274] sm:$0xf]
        %v4811 = vld [vmem:[%s347 + $0x1278] sm:$0xf]
        %v4812 = vld [vmem:[%s347 + $0x127c] sm:$0xf]
        %v4813 = vld [vmem:[%s347 + $0x1280] sm:$0xf]
        %v4814 = vld [vmem:[%s347 + $0x1284] sm:$0xf]
        %v4815 = vld [vmem:[%s347 + $0x1288] sm:$0xf]
        %v4816 = vld [vmem:[%s347 + $0x128c] sm:$0xf]
        %v4817 = vld [vmem:[%s347 + $0x1290] sm:$0xf]
        %v4818 = vld [vmem:[%s347 + $0x1294] sm:$0xf]
        %v4819 = vld [vmem:[%s347 + $0x1298] sm:$0xf]
        %v4820 = vld [vmem:[%s347 + $0x129c] sm:$0xf]
        %v4821 = vld [vmem:[%s347 + $0x12a0] sm:$0xf]
        %v4822 = vld [vmem:[%s347 + $0x12a4] sm:$0xf]
        %v4823 = vld [vmem:[%s347 + $0x12a8] sm:$0xf]
        %v4824 = vld [vmem:[%s347 + $0x12ac] sm:$0xf]
        %v4825 = vld [vmem:[%s347 + $0x12b0] sm:$0xf]
        %v4826 = vld [vmem:[%s347 + $0x12b4] sm:$0xf]
        %v4827 = vld [vmem:[%s347 + $0x12b8] sm:$0xf]
        %v4828 = vld [vmem:[%s347 + $0x12bc] sm:$0xf]
        %v4829 = vld [vmem:[%s347 + $0x12c0] sm:$0xf]
        %v4830 = vld [vmem:[%s347 + $0x12c4] sm:$0xf]
        %v4831 = vld [vmem:[%s347 + $0x12c8] sm:$0xf]
        %v4832 = vld [vmem:[%s347 + $0x12cc] sm:$0xf]
        %v4833 = vld [vmem:[%s347 + $0x12d0] sm:$0xf]
        %v4834 = vld [vmem:[%s347 + $0x12d4] sm:$0xf]
        %v4835 = vld [vmem:[%s347 + $0x12d8] sm:$0xf]
        %v4836 = vld [vmem:[%s347 + $0x12dc] sm:$0xf]
        %v4837 = vld [vmem:[%s347 + $0x12e0] sm:$0xf]
        %v4838 = vld [vmem:[%s347 + $0x12e4] sm:$0xf]
        %v4839 = vld [vmem:[%s347 + $0x12e8] sm:$0xf]
        %v4840 = vld [vmem:[%s347 + $0x12ec] sm:$0xf]
        %v4841 = vld [vmem:[%s347 + $0x12f0] sm:$0xf]
        %v4842 = vld [vmem:[%s347 + $0x12f4] sm:$0xf]
        %v4843 = vld [vmem:[%s347 + $0x12f8] sm:$0xf]
        %v4844 = vld [vmem:[%s347 + $0x12fc] sm:$0xf]
        %v4845 = vld [vmem:[%s347 + $0x1300] sm:$0xf]
        %v4846 = vld [vmem:[%s347 + $0x1304] sm:$0xf]
        %v4847 = vld [vmem:[%s347 + $0x1308] sm:$0xf]
        %v4848 = vld [vmem:[%s347 + $0x130c] sm:$0xf]
        %v4849 = vld [vmem:[%s347 + $0x1310] sm:$0xf]
        %v4850 = vld [vmem:[%s347 + $0x1314] sm:$0xf]
        %v4851 = vld [vmem:[%s347 + $0x1318] sm:$0xf]
        %v4852 = vld [vmem:[%s347 + $0x131c] sm:$0xf]
        %v4853 = vld [vmem:[%s347 + $0x1320] sm:$0xf]
        %v4854 = vld [vmem:[%s347 + $0x1324] sm:$0xf]
        %v4855 = vld [vmem:[%s347 + $0x1328] sm:$0xf]
        %v4856 = vld [vmem:[%s347 + $0x132c] sm:$0xf]
        %v4857 = vld [vmem:[%s347 + $0x1330] sm:$0xf]
        %v4858 = vld [vmem:[%s347 + $0x1334] sm:$0xf]
        %v4859 = vld [vmem:[%s347 + $0x1338] sm:$0xf]
        %v4860 = vld [vmem:[%s347 + $0x133c] sm:$0xf]
        %v4861 = vld [vmem:[%s347 + $0x1340] sm:$0xf]
        %v4862 = vld [vmem:[%s347 + $0x1344] sm:$0xf]
        %v4863 = vld [vmem:[%s347 + $0x1348] sm:$0xf]
        %v4864 = vld [vmem:[%s347 + $0x134c] sm:$0xf]
        %v4865 = vld [vmem:[%s347 + $0x1350] sm:$0xf]
        %v4866 = vld [vmem:[%s347 + $0x1354] sm:$0xf]
        %v4867 = vld [vmem:[%s347 + $0x1358] sm:$0xf]
        %v4868 = vld [vmem:[%s347 + $0x135c] sm:$0xf]
        %v4869 = vld [vmem:[%s347 + $0x1360] sm:$0xf]
        %v4870 = vld [vmem:[%s347 + $0x1364] sm:$0xf]
        %v4871 = vld [vmem:[%s347 + $0x1368] sm:$0xf]
        %v4872 = vld [vmem:[%s347 + $0x136c] sm:$0xf]
        %v4873 = vld [vmem:[%s347 + $0x1370] sm:$0xf]
        %v4874 = vld [vmem:[%s347 + $0x1374] sm:$0xf]
        %v4875 = vld [vmem:[%s347 + $0x1378] sm:$0xf]
        %v4876 = vld [vmem:[%s347 + $0x137c] sm:$0xf]
        %v4877 = vld [vmem:[%s347 + $0x1380] sm:$0xf]
        %v4878 = vld [vmem:[%s347 + $0x1384] sm:$0xf]
        %v4879 = vld [vmem:[%s347 + $0x1388] sm:$0xf]
        %v4880 = vld [vmem:[%s347 + $0x138c] sm:$0xf]
        %v4881 = vld [vmem:[%s347 + $0x1390] sm:$0xf]
        %v4882 = vld [vmem:[%s347 + $0x1394] sm:$0xf]
        %v4883 = vld [vmem:[%s347 + $0x1398] sm:$0xf]
        %v4884 = vld [vmem:[%s347 + $0x139c] sm:$0xf]
        %v4885 = vld [vmem:[%s347 + $0x13a0] sm:$0xf]
        %v4886 = vld [vmem:[%s347 + $0x13a4] sm:$0xf]
        %v4887 = vld [vmem:[%s347 + $0x13a8] sm:$0xf]
        %v4888 = vld [vmem:[%s347 + $0x13ac] sm:$0xf]
        %v4889 = vld [vmem:[%s347 + $0x13b0] sm:$0xf]
        %v4890 = vld [vmem:[%s347 + $0x13b4] sm:$0xf]
        %v4891 = vld [vmem:[%s347 + $0x13b8] sm:$0xf]
        %v4892 = vld [vmem:[%s347 + $0x13bc] sm:$0xf]
        %v4893 = vld [vmem:[%s347 + $0x13c0] sm:$0xf]
        %v4894 = vld [vmem:[%s347 + $0x13c4] sm:$0xf]
        %v4895 = vld [vmem:[%s347 + $0x13c8] sm:$0xf]
        %v4896 = vld [vmem:[%s347 + $0x13cc] sm:$0xf]
        %v4897 = vld [vmem:[%s347 + $0x13d0] sm:$0xf]
        %v4898 = vld [vmem:[%s347 + $0x13d4] sm:$0xf]
        %v4899 = vld [vmem:[%s347 + $0x13d8] sm:$0xf]
        %v4900 = vld [vmem:[%s347 + $0x13dc] sm:$0xf]
        %v4901 = vld [vmem:[%s347 + $0x13e0] sm:$0xf]
        %v4902 = vld [vmem:[%s347 + $0x13e4] sm:$0xf]
        %v4903 = vld [vmem:[%s347 + $0x13e8] sm:$0xf]
        %v4904 = vld [vmem:[%s347 + $0x13ec] sm:$0xf]
        %v4905 = vld [vmem:[%s347 + $0x13f0] sm:$0xf]
        %v4906 = vld [vmem:[%s347 + $0x13f4] sm:$0xf]
        %v4907 = vld [vmem:[%s347 + $0x13f8] sm:$0xf]
        %v4908 = vld [vmem:[%s347 + $0x13fc] sm:$0xf]
        %v4909 = vld [vmem:[%s347 + $0x1400] sm:$0xf]
        %v4910 = vld [vmem:[%s347 + $0x1404] sm:$0xf]
        %v4911 = vld [vmem:[%s347 + $0x1408] sm:$0xf]
        %v4912 = vld [vmem:[%s347 + $0x140c] sm:$0xf]
        %v4913 = vld [vmem:[%s347 + $0x1410] sm:$0xf]
        %v4914 = vld [vmem:[%s347 + $0x1414] sm:$0xf]
        %v4915 = vld [vmem:[%s347 + $0x1418] sm:$0xf]
        %v4916 = vld [vmem:[%s347 + $0x141c] sm:$0xf]
        %v4917 = vld [vmem:[%s347 + $0x1420] sm:$0xf]
        %v4918 = vld [vmem:[%s347 + $0x1424] sm:$0xf]
        %v4919 = vld [vmem:[%s347 + $0x1428] sm:$0xf]
        %v4920 = vld [vmem:[%s347 + $0x142c] sm:$0xf]
        %v4921 = vld [vmem:[%s347 + $0x1430] sm:$0xf]
        %v4922 = vld [vmem:[%s347 + $0x1434] sm:$0xf]
        %v4923 = vld [vmem:[%s347 + $0x1438] sm:$0xf]
        %v4924 = vld [vmem:[%s347 + $0x143c] sm:$0xf]
        %v4925 = vld [vmem:[%s347 + $0x1440] sm:$0xf]
        %v4926 = vld [vmem:[%s347 + $0x1444] sm:$0xf]
        %v4927 = vld [vmem:[%s347 + $0x1448] sm:$0xf]
        %v4928 = vld [vmem:[%s347 + $0x144c] sm:$0xf]
        %v4929 = vld [vmem:[%s347 + $0x1450] sm:$0xf]
        %v4930 = vld [vmem:[%s347 + $0x1454] sm:$0xf]
        %v4931 = vld [vmem:[%s347 + $0x1458] sm:$0xf]
        %v4932 = vld [vmem:[%s347 + $0x145c] sm:$0xf]
        %v4933 = vld [vmem:[%s347 + $0x1460] sm:$0xf]
        %v4934 = vld [vmem:[%s347 + $0x1464] sm:$0xf]
        %v4935 = vld [vmem:[%s347 + $0x1468] sm:$0xf]
        %v4936 = vld [vmem:[%s347 + $0x146c] sm:$0xf]
        %v4937 = vld [vmem:[%s347 + $0x1470] sm:$0xf]
        %v4938 = vld [vmem:[%s347 + $0x1474] sm:$0xf]
        %v4939 = vld [vmem:[%s347 + $0x1478] sm:$0xf]
        %v4940 = vld [vmem:[%s347 + $0x147c] sm:$0xf]
        %v4941 = vld [vmem:[%s347 + $0x1480] sm:$0xf]
        %v4942 = vld [vmem:[%s347 + $0x1484] sm:$0xf]
        %v4943 = vld [vmem:[%s347 + $0x1488] sm:$0xf]
        %v4944 = vld [vmem:[%s347 + $0x148c] sm:$0xf]
        %v4945 = vld [vmem:[%s347 + $0x1490] sm:$0xf]
        %v4946 = vld [vmem:[%s347 + $0x1494] sm:$0xf]
        %v4947 = vld [vmem:[%s347 + $0x1498] sm:$0xf]
        %v4948 = vld [vmem:[%s347 + $0x149c] sm:$0xf]
        %v4949 = vld [vmem:[%s347 + $0x14a0] sm:$0xf]
        %v4950 = vld [vmem:[%s347 + $0x14a4] sm:$0xf]
        %v4951 = vld [vmem:[%s347 + $0x14a8] sm:$0xf]
        %v4952 = vld [vmem:[%s347 + $0x14ac] sm:$0xf]
        %v4953 = vld [vmem:[%s347 + $0x14b0] sm:$0xf]
        %v4954 = vld [vmem:[%s347 + $0x14b4] sm:$0xf]
        %v4955 = vld [vmem:[%s347 + $0x14b8] sm:$0xf]
        %v4956 = vld [vmem:[%s347 + $0x14bc] sm:$0xf]
        %v4957 = vld [vmem:[%s347 + $0x14c0] sm:$0xf]
        %v4958 = vld [vmem:[%s347 + $0x14c4] sm:$0xf]
        %v4959 = vld [vmem:[%s347 + $0x14c8] sm:$0xf]
        %v4960 = vld [vmem:[%s347 + $0x14cc] sm:$0xf]
        %v4961 = vld [vmem:[%s347 + $0x14d0] sm:$0xf]
        %v4962 = vld [vmem:[%s347 + $0x14d4] sm:$0xf]
        %v4963 = vld [vmem:[%s347 + $0x14d8] sm:$0xf]
        %v4964 = vld [vmem:[%s347 + $0x14dc] sm:$0xf]
        %v4965 = vld [vmem:[%s347 + $0x14e0] sm:$0xf]
        %v4966 = vld [vmem:[%s347 + $0x14e4] sm:$0xf]
        %v4967 = vld [vmem:[%s347 + $0x14e8] sm:$0xf]
        %v4968 = vld [vmem:[%s347 + $0x14ec] sm:$0xf]
        %v4969 = vld [vmem:[%s347 + $0x14f0] sm:$0xf]
        %v4970 = vld [vmem:[%s347 + $0x14f4] sm:$0xf]
        %v4971 = vld [vmem:[%s347 + $0x14f8] sm:$0xf]
        %v4972 = vld [vmem:[%s347 + $0x14fc] sm:$0xf]
        %v4973 = vld [vmem:[%s347 + $0x1500] sm:$0xf]
        %v4974 = vld [vmem:[%s347 + $0x1504] sm:$0xf]
        %v4975 = vld [vmem:[%s347 + $0x1508] sm:$0xf]
        %v4976 = vld [vmem:[%s347 + $0x150c] sm:$0xf]
        %v4977 = vld [vmem:[%s347 + $0x1510] sm:$0xf]
        %v4978 = vld [vmem:[%s347 + $0x1514] sm:$0xf]
        %v4979 = vld [vmem:[%s347 + $0x1518] sm:$0xf]
        %v4980 = vld [vmem:[%s347 + $0x151c] sm:$0xf]
        %v4981 = vld [vmem:[%s347 + $0x1520] sm:$0xf]
        %v4982 = vld [vmem:[%s347 + $0x1524] sm:$0xf]
        %v4983 = vld [vmem:[%s347 + $0x1528] sm:$0xf]
        %v4984 = vld [vmem:[%s347 + $0x152c] sm:$0xf]
        %v4985 = vld [vmem:[%s347 + $0x1530] sm:$0xf]
        %v4986 = vld [vmem:[%s347 + $0x1534] sm:$0xf]
        %v4987 = vld [vmem:[%s347 + $0x1538] sm:$0xf]
        %v4988 = vld [vmem:[%s347 + $0x153c] sm:$0xf]
        %v4989 = vld [vmem:[%s347 + $0x1540] sm:$0xf]
        %v4990 = vld [vmem:[%s347 + $0x1544] sm:$0xf]
        %v4991 = vld [vmem:[%s347 + $0x1548] sm:$0xf]
        %v4992 = vld [vmem:[%s347 + $0x154c] sm:$0xf]
        %v4993 = vld [vmem:[%s347 + $0x1550] sm:$0xf]
        %v4994 = vld [vmem:[%s347 + $0x1554] sm:$0xf]
        %v4995 = vld [vmem:[%s347 + $0x1558] sm:$0xf]
        %v4996 = vld [vmem:[%s347 + $0x155c] sm:$0xf]
        %v4997 = vld [vmem:[%s347 + $0x1560] sm:$0xf]
        %v4998 = vld [vmem:[%s347 + $0x1564] sm:$0xf]
        %v4999 = vld [vmem:[%s347 + $0x1568] sm:$0xf]
        %v5000 = vld [vmem:[%s347 + $0x156c] sm:$0xf]
        %v5001 = vld [vmem:[%s347 + $0x1570] sm:$0xf]
        %v5002 = vld [vmem:[%s347 + $0x1574] sm:$0xf]
        %v5003 = vld [vmem:[%s347 + $0x1578] sm:$0xf]
        %v5004 = vld [vmem:[%s347 + $0x157c] sm:$0xf]
        %v5005 = vld [vmem:[%s347 + $0x1580] sm:$0xf]
        %v5006 = vld [vmem:[%s347 + $0x1584] sm:$0xf]
        %v5007 = vld [vmem:[%s347 + $0x1588] sm:$0xf]
        %v5008 = vld [vmem:[%s347 + $0x158c] sm:$0xf]
        %v5009 = vld [vmem:[%s347 + $0x1590] sm:$0xf]
        %v5010 = vld [vmem:[%s347 + $0x1594] sm:$0xf]
        %v5011 = vld [vmem:[%s347 + $0x1598] sm:$0xf]
        %v5012 = vld [vmem:[%s347 + $0x159c] sm:$0xf]
        %v5013 = vld [vmem:[%s347 + $0x15a0] sm:$0xf]
        %v5014 = vld [vmem:[%s347 + $0x15a4] sm:$0xf]
        %v5015 = vld [vmem:[%s347 + $0x15a8] sm:$0xf]
        %v5016 = vld [vmem:[%s347 + $0x15ac] sm:$0xf]
        %v5017 = vld [vmem:[%s347 + $0x15b0] sm:$0xf]
        %v5018 = vld [vmem:[%s347 + $0x15b4] sm:$0xf]
        %v5019 = vld [vmem:[%s347 + $0x15b8] sm:$0xf]
        %v5020 = vld [vmem:[%s347 + $0x15bc] sm:$0xf]
        %v5021 = vld [vmem:[%s347 + $0x15c0] sm:$0xf]
        %v5022 = vld [vmem:[%s347 + $0x15c4] sm:$0xf]
        %v5023 = vld [vmem:[%s347 + $0x15c8] sm:$0xf]
        %v5024 = vld [vmem:[%s347 + $0x15cc] sm:$0xf]
        %v5025 = vld [vmem:[%s347 + $0x15d0] sm:$0xf]
        %v5026 = vld [vmem:[%s347 + $0x15d4] sm:$0xf]
        %v5027 = vld [vmem:[%s347 + $0x15d8] sm:$0xf]
        %v5028 = vld [vmem:[%s347 + $0x15dc] sm:$0xf]
        %v5029 = vld [vmem:[%s347 + $0x15e0] sm:$0xf]
        %v5030 = vld [vmem:[%s347 + $0x15e4] sm:$0xf]
        %v5031 = vld [vmem:[%s347 + $0x15e8] sm:$0xf]
        %v5032 = vld [vmem:[%s347 + $0x15ec] sm:$0xf]
        %v5033 = vld [vmem:[%s347 + $0x15f0] sm:$0xf]
        %v5034 = vld [vmem:[%s347 + $0x15f4] sm:$0xf]
        %v5035 = vld [vmem:[%s347 + $0x15f8] sm:$0xf]
        %v5036 = vld [vmem:[%s347 + $0x15fc] sm:$0xf]
        %v5037 = vld [vmem:[%s347 + $0x1600] sm:$0xf]
        %v5038 = vld [vmem:[%s347 + $0x1604] sm:$0xf]
        %v5039 = vld [vmem:[%s347 + $0x1608] sm:$0xf]
        %v5040 = vld [vmem:[%s347 + $0x160c] sm:$0xf]
        %v5041 = vld [vmem:[%s347 + $0x1610] sm:$0xf]
        %v5042 = vld [vmem:[%s347 + $0x1614] sm:$0xf]
        %v5043 = vld [vmem:[%s347 + $0x1618] sm:$0xf]
        %v5044 = vld [vmem:[%s347 + $0x161c] sm:$0xf]
        %v5045 = vld [vmem:[%s347 + $0x1620] sm:$0xf]
        %v5046 = vld [vmem:[%s347 + $0x1624] sm:$0xf]
        %v5047 = vld [vmem:[%s347 + $0x1628] sm:$0xf]
        %v5048 = vld [vmem:[%s347 + $0x162c] sm:$0xf]
        %v5049 = vld [vmem:[%s347 + $0x1630] sm:$0xf]
        %v5050 = vld [vmem:[%s347 + $0x1634] sm:$0xf]
        %v5051 = vld [vmem:[%s347 + $0x1638] sm:$0xf]
        %v5052 = vld [vmem:[%s347 + $0x163c] sm:$0xf]
        %v5053 = vld [vmem:[%s347 + $0x1640] sm:$0xf]
        %v5054 = vld [vmem:[%s347 + $0x1644] sm:$0xf]
        %v5055 = vld [vmem:[%s347 + $0x1648] sm:$0xf]
        %v5056 = vld [vmem:[%s347 + $0x164c] sm:$0xf]
        %v5057 = vld [vmem:[%s347 + $0x1650] sm:$0xf]
        %v5058 = vld [vmem:[%s347 + $0x1654] sm:$0xf]
        %v5059 = vld [vmem:[%s347 + $0x1658] sm:$0xf]
        %v5060 = vld [vmem:[%s347 + $0x165c] sm:$0xf]
        %v5061 = vld [vmem:[%s347 + $0x1660] sm:$0xf]
        %v5062 = vld [vmem:[%s347 + $0x1664] sm:$0xf]
        %v5063 = vld [vmem:[%s347 + $0x1668] sm:$0xf]
        %v5064 = vld [vmem:[%s347 + $0x166c] sm:$0xf]
        %v5065 = vld [vmem:[%s347 + $0x1670] sm:$0xf]
        %v5066 = vld [vmem:[%s347 + $0x1674] sm:$0xf]
        %v5067 = vld [vmem:[%s347 + $0x1678] sm:$0xf]
        %v5068 = vld [vmem:[%s347 + $0x167c] sm:$0xf]
        %v5069 = vld [vmem:[%s347 + $0x1680] sm:$0xf]
        %v5070 = vld [vmem:[%s347 + $0x1684] sm:$0xf]
        %v5071 = vld [vmem:[%s347 + $0x1688] sm:$0xf]
        %v5072 = vld [vmem:[%s347 + $0x168c] sm:$0xf]
        %v5073 = vld [vmem:[%s347 + $0x1690] sm:$0xf]
        %v5074 = vld [vmem:[%s347 + $0x1694] sm:$0xf]
        %v5075 = vld [vmem:[%s347 + $0x1698] sm:$0xf]
        %v5076 = vld [vmem:[%s347 + $0x169c] sm:$0xf]
        %v5077 = vld [vmem:[%s347 + $0x16a0] sm:$0xf]
        %v5078 = vld [vmem:[%s347 + $0x16a4] sm:$0xf]
        %v5079 = vld [vmem:[%s347 + $0x16a8] sm:$0xf]
        %v5080 = vld [vmem:[%s347 + $0x16ac] sm:$0xf]
        %v5081 = vld [vmem:[%s347 + $0x16b0] sm:$0xf]
        %v5082 = vld [vmem:[%s347 + $0x16b4] sm:$0xf]
        %v5083 = vld [vmem:[%s347 + $0x16b8] sm:$0xf]
        %v5084 = vld [vmem:[%s347 + $0x16bc] sm:$0xf]
        %v5085 = vld [vmem:[%s347 + $0x16c0] sm:$0xf]
        %v5086 = vld [vmem:[%s347 + $0x16c4] sm:$0xf]
        %v5087 = vld [vmem:[%s347 + $0x16c8] sm:$0xf]
        %v5088 = vld [vmem:[%s347 + $0x16cc] sm:$0xf]
        %v5089 = vld [vmem:[%s347 + $0x16d0] sm:$0xf]
        %v5090 = vld [vmem:[%s347 + $0x16d4] sm:$0xf]
        %v5091 = vld [vmem:[%s347 + $0x16d8] sm:$0xf]
        %v5092 = vld [vmem:[%s347 + $0x16dc] sm:$0xf]
        %v5093 = vld [vmem:[%s347 + $0x16e0] sm:$0xf]
        %v5094 = vld [vmem:[%s347 + $0x16e4] sm:$0xf]
        %v5095 = vld [vmem:[%s347 + $0x16e8] sm:$0xf]
        %v5096 = vld [vmem:[%s347 + $0x16ec] sm:$0xf]
        %v5097 = vld [vmem:[%s347 + $0x16f0] sm:$0xf]
        %v5098 = vld [vmem:[%s347 + $0x16f4] sm:$0xf]
        %v5099 = vld [vmem:[%s347 + $0x16f8] sm:$0xf]
        %v5100 = vld [vmem:[%s347 + $0x16fc] sm:$0xf]
        %v5101 = vld [vmem:[%s347 + $0x1700] sm:$0xf]
        %v5102 = vld [vmem:[%s347 + $0x1704] sm:$0xf]
        %v5103 = vld [vmem:[%s347 + $0x1708] sm:$0xf]
        %v5104 = vld [vmem:[%s347 + $0x170c] sm:$0xf]
        %v5105 = vld [vmem:[%s347 + $0x1710] sm:$0xf]
        %v5106 = vld [vmem:[%s347 + $0x1714] sm:$0xf]
        %v5107 = vld [vmem:[%s347 + $0x1718] sm:$0xf]
        %v5108 = vld [vmem:[%s347 + $0x171c] sm:$0xf]
        %v5109 = vld [vmem:[%s347 + $0x1720] sm:$0xf]
        %v5110 = vld [vmem:[%s347 + $0x1724] sm:$0xf]
        %v5111 = vld [vmem:[%s347 + $0x1728] sm:$0xf]
        %v5112 = vld [vmem:[%s347 + $0x172c] sm:$0xf]
        %v5113 = vld [vmem:[%s347 + $0x1730] sm:$0xf]
        %v5114 = vld [vmem:[%s347 + $0x1734] sm:$0xf]
        %v5115 = vld [vmem:[%s347 + $0x1738] sm:$0xf]
        %v5116 = vld [vmem:[%s347 + $0x173c] sm:$0xf]
        %v5117 = vld [vmem:[%s347 + $0x1740] sm:$0xf]
        %v5118 = vld [vmem:[%s347 + $0x1744] sm:$0xf]
        %v5119 = vld [vmem:[%s347 + $0x1748] sm:$0xf]
        %v5120 = vld [vmem:[%s347 + $0x174c] sm:$0xf]
        %v5121 = vld [vmem:[%s347 + $0x1750] sm:$0xf]
        %v5122 = vld [vmem:[%s347 + $0x1754] sm:$0xf]
        %v5123 = vld [vmem:[%s347 + $0x1758] sm:$0xf]
        %v5124 = vld [vmem:[%s347 + $0x175c] sm:$0xf]
        %v5125 = vld [vmem:[%s347 + $0x1760] sm:$0xf]
        %v5126 = vld [vmem:[%s347 + $0x1764] sm:$0xf]
        %v5127 = vld [vmem:[%s347 + $0x1768] sm:$0xf]
        %v5128 = vld [vmem:[%s347 + $0x176c] sm:$0xf]
        %v5129 = vld [vmem:[%s347 + $0x1770] sm:$0xf]
        %v5130 = vld [vmem:[%s347 + $0x1774] sm:$0xf]
        %v5131 = vld [vmem:[%s347 + $0x1778] sm:$0xf]
        %v5132 = vld [vmem:[%s347 + $0x177c] sm:$0xf]
        %v5133 = vld [vmem:[%s347 + $0x1780] sm:$0xf]
        %v5134 = vld [vmem:[%s347 + $0x1784] sm:$0xf]
        %v5135 = vld [vmem:[%s347 + $0x1788] sm:$0xf]
        %v5136 = vld [vmem:[%s347 + $0x178c] sm:$0xf]
        %v5137 = vld [vmem:[%s347 + $0x1790] sm:$0xf]
        %v5138 = vld [vmem:[%s347 + $0x1794] sm:$0xf]
        %v5139 = vld [vmem:[%s347 + $0x1798] sm:$0xf]
        %v5140 = vld [vmem:[%s347 + $0x179c] sm:$0xf]
        %v5141 = vld [vmem:[%s347 + $0x17a0] sm:$0xf]
        %v5142 = vld [vmem:[%s347 + $0x17a4] sm:$0xf]
        %v5143 = vld [vmem:[%s347 + $0x17a8] sm:$0xf]
        %v5144 = vld [vmem:[%s347 + $0x17ac] sm:$0xf]
        %v5145 = vld [vmem:[%s347 + $0x17b0] sm:$0xf]
        %v5146 = vld [vmem:[%s347 + $0x17b4] sm:$0xf]
        %v5147 = vld [vmem:[%s347 + $0x17b8] sm:$0xf]
        %v5148 = vld [vmem:[%s347 + $0x17bc] sm:$0xf]
        %v5149 = vld [vmem:[%s347 + $0x17c0] sm:$0xf]
        %v5150 = vld [vmem:[%s347 + $0x17c4] sm:$0xf]
        %v5151 = vld [vmem:[%s347 + $0x17c8] sm:$0xf]
        %v5152 = vld [vmem:[%s347 + $0x17cc] sm:$0xf]
        %v5153 = vld [vmem:[%s347 + $0x17d0] sm:$0xf]
        %v5154 = vld [vmem:[%s347 + $0x17d4] sm:$0xf]
        %v5155 = vld [vmem:[%s347 + $0x17d8] sm:$0xf]
        %v5156 = vld [vmem:[%s347 + $0x17dc] sm:$0xf]
        %v5157 = vld [vmem:[%s347 + $0x17e0] sm:$0xf]
        %v5158 = vld [vmem:[%s347 + $0x17e4] sm:$0xf]
        %v5159 = vld [vmem:[%s347 + $0x17e8] sm:$0xf]
        %v5160 = vld [vmem:[%s347 + $0x17ec] sm:$0xf]
        %v5161 = vld [vmem:[%s347 + $0x17f0] sm:$0xf]
        %v5162 = vld [vmem:[%s347 + $0x17f4] sm:$0xf]
        %v5163 = vld [vmem:[%s347 + $0x17f8] sm:$0xf]
        %v5164 = vld [vmem:[%s347 + $0x17fc] sm:$0xf]
        %v6701 = vunpack.c.l.b16 %v3629
        %v6702 = vunpack.c.l.b16 %v3630
        %v6703 = vunpack.c.l.b16 %v3631
        %v6704 = vunpack.c.l.b16 %v3632
        %v6705 = vunpack.c.l.b16 %v3633
        %v6706 = vunpack.c.l.b16 %v3634
        %v6707 = vunpack.c.l.b16 %v3635
        %v6708 = vunpack.c.l.b16 %v3636
        %v6709 = vunpack.c.l.b16 %v3637
        %v6710 = vunpack.c.l.b16 %v3638
        %v6711 = vunpack.c.l.b16 %v3639
        %v6712 = vunpack.c.l.b16 %v3640
        %v6713 = vunpack.c.l.b16 %v3641
        %v6714 = vunpack.c.l.b16 %v3642
        %v6715 = vunpack.c.l.b16 %v3643
        %v6716 = vunpack.c.l.b16 %v3644
        %v6717 = vunpack.c.l.b16 %v3645
        %v6718 = vunpack.c.l.b16 %v3646
        %v6719 = vunpack.c.l.b16 %v3647
        %v6720 = vunpack.c.l.b16 %v3648
        %v6721 = vunpack.c.l.b16 %v3649
        %v6722 = vunpack.c.l.b16 %v3650
        %v6723 = vunpack.c.l.b16 %v3651
        %v6724 = vunpack.c.l.b16 %v3652
        %v6725 = vunpack.c.l.b16 %v3653
        %v6726 = vunpack.c.l.b16 %v3654
        %v6727 = vunpack.c.l.b16 %v3655
        %v6728 = vunpack.c.l.b16 %v3656
        %v6729 = vunpack.c.l.b16 %v3657
        %v6730 = vunpack.c.l.b16 %v3658
        %v6731 = vunpack.c.l.b16 %v3659
        %v6732 = vunpack.c.l.b16 %v3660
        %v6733 = vunpack.c.l.b16 %v3661
        %v6734 = vunpack.c.l.b16 %v3662
        %v6735 = vunpack.c.l.b16 %v3663
        %v6736 = vunpack.c.l.b16 %v3664
        %v6737 = vunpack.c.l.b16 %v3665
        %v6738 = vunpack.c.l.b16 %v3666
        %v6739 = vunpack.c.l.b16 %v3667
        %v6740 = vunpack.c.l.b16 %v3668
        %v6741 = vunpack.c.l.b16 %v3669
        %v6742 = vunpack.c.l.b16 %v3670
        %v6743 = vunpack.c.l.b16 %v3671
        %v6744 = vunpack.c.l.b16 %v3672
        %v6745 = vunpack.c.l.b16 %v3673
        %v6746 = vunpack.c.l.b16 %v3674
        %v6747 = vunpack.c.l.b16 %v3675
        %v6748 = vunpack.c.l.b16 %v3676
        %v6749 = vunpack.c.l.b16 %v3677
        %v6750 = vunpack.c.l.b16 %v3678
        %v6751 = vunpack.c.l.b16 %v3679
        %v6752 = vunpack.c.l.b16 %v3680
        %v6753 = vunpack.c.l.b16 %v3681
        %v6754 = vunpack.c.l.b16 %v3682
        %v6755 = vunpack.c.l.b16 %v3683
        %v6756 = vunpack.c.l.b16 %v3684
        %v6757 = vunpack.c.l.b16 %v3685
        %v6758 = vunpack.c.l.b16 %v3686
        %v6759 = vunpack.c.l.b16 %v3687
        %v6760 = vunpack.c.l.b16 %v3688
        %v6761 = vunpack.c.l.b16 %v3689
        %v6762 = vunpack.c.l.b16 %v3690
        %v6763 = vunpack.c.l.b16 %v3691
        %v6764 = vunpack.c.l.b16 %v3692
        %v6765 = vunpack.c.l.b16 %v3693
        %v6766 = vunpack.c.l.b16 %v3694
        %v6767 = vunpack.c.l.b16 %v3695
        %v6768 = vunpack.c.l.b16 %v3696
        %v6769 = vunpack.c.l.b16 %v3697
        %v6770 = vunpack.c.l.b16 %v3698
        %v6771 = vunpack.c.l.b16 %v3699
        %v6772 = vunpack.c.l.b16 %v3700
        %v6773 = vunpack.c.l.b16 %v3701
        %v6774 = vunpack.c.l.b16 %v3702
        %v6775 = vunpack.c.l.b16 %v3703
        %v6776 = vunpack.c.l.b16 %v3704
        %v6777 = vunpack.c.l.b16 %v3705
        %v6778 = vunpack.c.l.b16 %v3706
        %v6779 = vunpack.c.l.b16 %v3707
        %v6780 = vunpack.c.l.b16 %v3708
        %v6781 = vunpack.c.l.b16 %v3709
        %v6782 = vunpack.c.l.b16 %v3710
        %v6783 = vunpack.c.l.b16 %v3711
        %v6784 = vunpack.c.l.b16 %v3712
        %v6785 = vunpack.c.l.b16 %v3713
        %v6786 = vunpack.c.l.b16 %v3714
        %v6787 = vunpack.c.l.b16 %v3715
        %v6788 = vunpack.c.l.b16 %v3716
        %v6789 = vunpack.c.l.b16 %v3717
        %v6790 = vunpack.c.l.b16 %v3718
        %v6791 = vunpack.c.l.b16 %v3719
        %v6792 = vunpack.c.l.b16 %v3720
        %v6793 = vunpack.c.l.b16 %v3721
        %v6794 = vunpack.c.l.b16 %v3722
        %v6795 = vunpack.c.l.b16 %v3723
        %v6796 = vunpack.c.l.b16 %v3724
        %v6797 = vunpack.c.l.b16 %v3725
        %v6798 = vunpack.c.l.b16 %v3726
        %v6799 = vunpack.c.l.b16 %v3727
        %v6800 = vunpack.c.l.b16 %v3728
        %v6801 = vunpack.c.l.b16 %v3729
        %v6802 = vunpack.c.l.b16 %v3730
        %v6803 = vunpack.c.l.b16 %v3731
        %v6804 = vunpack.c.l.b16 %v3732
        %v6805 = vunpack.c.l.b16 %v3733
        %v6806 = vunpack.c.l.b16 %v3734
        %v6807 = vunpack.c.l.b16 %v3735
        %v6808 = vunpack.c.l.b16 %v3736
        %v6809 = vunpack.c.l.b16 %v3737
        %v6810 = vunpack.c.l.b16 %v3738
        %v6811 = vunpack.c.l.b16 %v3739
        %v6812 = vunpack.c.l.b16 %v3740
        %v6813 = vunpack.c.l.b16 %v3741
        %v6814 = vunpack.c.l.b16 %v3742
        %v6815 = vunpack.c.l.b16 %v3743
        %v6816 = vunpack.c.l.b16 %v3744
        %v6817 = vunpack.c.l.b16 %v3745
        %v6818 = vunpack.c.l.b16 %v3746
        %v6819 = vunpack.c.l.b16 %v3747
        %v6820 = vunpack.c.l.b16 %v3748
        %v6821 = vunpack.c.l.b16 %v3749
        %v6822 = vunpack.c.l.b16 %v3750
        %v6823 = vunpack.c.l.b16 %v3751
        %v6824 = vunpack.c.l.b16 %v3752
        %v6825 = vunpack.c.l.b16 %v3753
        %v6826 = vunpack.c.l.b16 %v3754
        %v6827 = vunpack.c.l.b16 %v3755
        %v6828 = vunpack.c.l.b16 %v3756
        %v6829 = vunpack.c.l.b16 %v3757
        %v6830 = vunpack.c.l.b16 %v3758
        %v6831 = vunpack.c.l.b16 %v3759
        %v6832 = vunpack.c.l.b16 %v3760
        %v6833 = vunpack.c.l.b16 %v3761
        %v6834 = vunpack.c.l.b16 %v3762
        %v6835 = vunpack.c.l.b16 %v3763
        %v6836 = vunpack.c.l.b16 %v3764
        %v6837 = vunpack.c.l.b16 %v3765
        %v6838 = vunpack.c.l.b16 %v3766
        %v6839 = vunpack.c.l.b16 %v3767
        %v6840 = vunpack.c.l.b16 %v3768
        %v6841 = vunpack.c.l.b16 %v3769
        %v6842 = vunpack.c.l.b16 %v3770
        %v6843 = vunpack.c.l.b16 %v3771
        %v6844 = vunpack.c.l.b16 %v3772
        %v6845 = vunpack.c.l.b16 %v3773
        %v6846 = vunpack.c.l.b16 %v3774
        %v6847 = vunpack.c.l.b16 %v3775
        %v6848 = vunpack.c.l.b16 %v3776
        %v6849 = vunpack.c.l.b16 %v3777
        %v6850 = vunpack.c.l.b16 %v3778
        %v6851 = vunpack.c.l.b16 %v3779
        %v6852 = vunpack.c.l.b16 %v3780
        %v6853 = vunpack.c.l.b16 %v3781
        %v6854 = vunpack.c.l.b16 %v3782
        %v6855 = vunpack.c.l.b16 %v3783
        %v6856 = vunpack.c.l.b16 %v3784
        %v6857 = vunpack.c.l.b16 %v3785
        %v6858 = vunpack.c.l.b16 %v3786
        %v6859 = vunpack.c.l.b16 %v3787
        %v6860 = vunpack.c.l.b16 %v3788
        %v6861 = vunpack.c.l.b16 %v3789
        %v6862 = vunpack.c.l.b16 %v3790
        %v6863 = vunpack.c.l.b16 %v3791
        %v6864 = vunpack.c.l.b16 %v3792
        %v6865 = vunpack.c.l.b16 %v3793
        %v6866 = vunpack.c.l.b16 %v3794
        %v6867 = vunpack.c.l.b16 %v3795
        %v6868 = vunpack.c.l.b16 %v3796
        %v6869 = vunpack.c.l.b16 %v3797
        %v6870 = vunpack.c.l.b16 %v3798
        %v6871 = vunpack.c.l.b16 %v3799
        %v6872 = vunpack.c.l.b16 %v3800
        %v6873 = vunpack.c.l.b16 %v3801
        %v6874 = vunpack.c.l.b16 %v3802
        %v6875 = vunpack.c.l.b16 %v3803
        %v6876 = vunpack.c.l.b16 %v3804
        %v6877 = vunpack.c.l.b16 %v3805
        %v6878 = vunpack.c.l.b16 %v3806
        %v6879 = vunpack.c.l.b16 %v3807
        %v6880 = vunpack.c.l.b16 %v3808
        %v6881 = vunpack.c.l.b16 %v3809
        %v6882 = vunpack.c.l.b16 %v3810
        %v6883 = vunpack.c.l.b16 %v3811
        %v6884 = vunpack.c.l.b16 %v3812
        %v6885 = vunpack.c.l.b16 %v3813
        %v6886 = vunpack.c.l.b16 %v3814
        %v6887 = vunpack.c.l.b16 %v3815
        %v6888 = vunpack.c.l.b16 %v3816
        %v6889 = vunpack.c.l.b16 %v3817
        %v6890 = vunpack.c.l.b16 %v3818
        %v6891 = vunpack.c.l.b16 %v3819
        %v6892 = vunpack.c.l.b16 %v3820
        %v6893 = vunpack.c.l.b16 %v3821
        %v6894 = vunpack.c.l.b16 %v3822
        %v6895 = vunpack.c.l.b16 %v3823
        %v6896 = vunpack.c.l.b16 %v3824
        %v6897 = vunpack.c.l.b16 %v3825
        %v6898 = vunpack.c.l.b16 %v3826
        %v6899 = vunpack.c.l.b16 %v3827
        %v6900 = vunpack.c.l.b16 %v3828
        %v6901 = vunpack.c.l.b16 %v3829
        %v6902 = vunpack.c.l.b16 %v3830
        %v6903 = vunpack.c.l.b16 %v3831
        %v6904 = vunpack.c.l.b16 %v3832
        %v6905 = vunpack.c.l.b16 %v3833
        %v6906 = vunpack.c.l.b16 %v3834
        %v6907 = vunpack.c.l.b16 %v3835
        %v6908 = vunpack.c.l.b16 %v3836
        %v6909 = vunpack.c.l.b16 %v3837
        %v6910 = vunpack.c.l.b16 %v3838
        %v6911 = vunpack.c.l.b16 %v3839
        %v6912 = vunpack.c.l.b16 %v3840
        %v6913 = vunpack.c.l.b16 %v3841
        %v6914 = vunpack.c.l.b16 %v3842
        %v6915 = vunpack.c.l.b16 %v3843
        %v6916 = vunpack.c.l.b16 %v3844
        %v6917 = vunpack.c.l.b16 %v3845
        %v6918 = vunpack.c.l.b16 %v3846
        %v6919 = vunpack.c.l.b16 %v3847
        %v6920 = vunpack.c.l.b16 %v3848
        %v6921 = vunpack.c.l.b16 %v3849
        %v6922 = vunpack.c.l.b16 %v3850
        %v6923 = vunpack.c.l.b16 %v3851
        %v6924 = vunpack.c.l.b16 %v3852
        %v6925 = vunpack.c.l.b16 %v3853
        %v6926 = vunpack.c.l.b16 %v3854
        %v6927 = vunpack.c.l.b16 %v3855
        %v6928 = vunpack.c.l.b16 %v3856
        %v6929 = vunpack.c.l.b16 %v3857
        %v6930 = vunpack.c.l.b16 %v3858
        %v6931 = vunpack.c.l.b16 %v3859
        %v6932 = vunpack.c.l.b16 %v3860
        %v6933 = vunpack.c.l.b16 %v3861
        %v6934 = vunpack.c.l.b16 %v3862
        %v6935 = vunpack.c.l.b16 %v3863
        %v6936 = vunpack.c.l.b16 %v3864
        %v6937 = vunpack.c.l.b16 %v3865
        %v6938 = vunpack.c.l.b16 %v3866
        %v6939 = vunpack.c.l.b16 %v3867
        %v6940 = vunpack.c.l.b16 %v3868
        %v6941 = vunpack.c.l.b16 %v3869
        %v6942 = vunpack.c.l.b16 %v3870
        %v6943 = vunpack.c.l.b16 %v3871
        %v6944 = vunpack.c.l.b16 %v3872
        %v6945 = vunpack.c.l.b16 %v3873
        %v6946 = vunpack.c.l.b16 %v3874
        %v6947 = vunpack.c.l.b16 %v3875
        %v6948 = vunpack.c.l.b16 %v3876
        %v6949 = vunpack.c.l.b16 %v3877
        %v6950 = vunpack.c.l.b16 %v3878
        %v6951 = vunpack.c.l.b16 %v3879
        %v6952 = vunpack.c.l.b16 %v3880
        %v6953 = vunpack.c.l.b16 %v3881
        %v6954 = vunpack.c.l.b16 %v3882
        %v6955 = vunpack.c.l.b16 %v3883
        %v6956 = vunpack.c.l.b16 %v3884
        %v6957 = vunpack.c.l.b16 %v3885
        %v6958 = vunpack.c.l.b16 %v3886
        %v6959 = vunpack.c.l.b16 %v3887
        %v6960 = vunpack.c.l.b16 %v3888
        %v6961 = vunpack.c.l.b16 %v3889
        %v6962 = vunpack.c.l.b16 %v3890
        %v6963 = vunpack.c.l.b16 %v3891
        %v6964 = vunpack.c.l.b16 %v3892
        %v6965 = vunpack.c.l.b16 %v3893
        %v6966 = vunpack.c.l.b16 %v3894
        %v6967 = vunpack.c.l.b16 %v3895
        %v6968 = vunpack.c.l.b16 %v3896
        %v6969 = vunpack.c.l.b16 %v3897
        %v6970 = vunpack.c.l.b16 %v3898
        %v6971 = vunpack.c.l.b16 %v3899
        %v6972 = vunpack.c.l.b16 %v3900
        %v6973 = vunpack.c.l.b16 %v3901
        %v6974 = vunpack.c.l.b16 %v3902
        %v6975 = vunpack.c.l.b16 %v3903
        %v6976 = vunpack.c.l.b16 %v3904
        %v6977 = vunpack.c.l.b16 %v3905
        %v6978 = vunpack.c.l.b16 %v3906
        %v6979 = vunpack.c.l.b16 %v3907
        %v6980 = vunpack.c.l.b16 %v3908
        %v6981 = vunpack.c.l.b16 %v3909
        %v6982 = vunpack.c.l.b16 %v3910
        %v6983 = vunpack.c.l.b16 %v3911
        %v6984 = vunpack.c.l.b16 %v3912
        %v6985 = vunpack.c.l.b16 %v3913
        %v6986 = vunpack.c.l.b16 %v3914
        %v6987 = vunpack.c.l.b16 %v3915
        %v6988 = vunpack.c.l.b16 %v3916
        %v6989 = vunpack.c.l.b16 %v3917
        %v6990 = vunpack.c.l.b16 %v3918
        %v6991 = vunpack.c.l.b16 %v3919
        %v6992 = vunpack.c.l.b16 %v3920
        %v6993 = vunpack.c.l.b16 %v3921
        %v6994 = vunpack.c.l.b16 %v3922
        %v6995 = vunpack.c.l.b16 %v3923
        %v6996 = vunpack.c.l.b16 %v3924
        %v6997 = vunpack.c.l.b16 %v3925
        %v6998 = vunpack.c.l.b16 %v3926
        %v6999 = vunpack.c.l.b16 %v3927
        %v7000 = vunpack.c.l.b16 %v3928
        %v7001 = vunpack.c.l.b16 %v3929
        %v7002 = vunpack.c.l.b16 %v3930
        %v7003 = vunpack.c.l.b16 %v3931
        %v7004 = vunpack.c.l.b16 %v3932
        %v7005 = vunpack.c.l.b16 %v3933
        %v7006 = vunpack.c.l.b16 %v3934
        %v7007 = vunpack.c.l.b16 %v3935
        %v7008 = vunpack.c.l.b16 %v3936
        %v7009 = vunpack.c.l.b16 %v3937
        %v7010 = vunpack.c.l.b16 %v3938
        %v7011 = vunpack.c.l.b16 %v3939
        %v7012 = vunpack.c.l.b16 %v3940
        %v7013 = vunpack.c.l.b16 %v3941
        %v7014 = vunpack.c.l.b16 %v3942
        %v7015 = vunpack.c.l.b16 %v3943
        %v7016 = vunpack.c.l.b16 %v3944
        %v7017 = vunpack.c.l.b16 %v3945
        %v7018 = vunpack.c.l.b16 %v3946
        %v7019 = vunpack.c.l.b16 %v3947
        %v7020 = vunpack.c.l.b16 %v3948
        %v7021 = vunpack.c.l.b16 %v3949
        %v7022 = vunpack.c.l.b16 %v3950
        %v7023 = vunpack.c.l.b16 %v3951
        %v7024 = vunpack.c.l.b16 %v3952
        %v7025 = vunpack.c.l.b16 %v3953
        %v7026 = vunpack.c.l.b16 %v3954
        %v7027 = vunpack.c.l.b16 %v3955
        %v7028 = vunpack.c.l.b16 %v3956
        %v7029 = vunpack.c.l.b16 %v3957
        %v7030 = vunpack.c.l.b16 %v3958
        %v7031 = vunpack.c.l.b16 %v3959
        %v7032 = vunpack.c.l.b16 %v3960
        %v7033 = vunpack.c.l.b16 %v3961
        %v7034 = vunpack.c.l.b16 %v3962
        %v7035 = vunpack.c.l.b16 %v3963
        %v7036 = vunpack.c.l.b16 %v3964
        %v7037 = vunpack.c.l.b16 %v3965
        %v7038 = vunpack.c.l.b16 %v3966
        %v7039 = vunpack.c.l.b16 %v3967
        %v7040 = vunpack.c.l.b16 %v3968
        %v7041 = vunpack.c.l.b16 %v3969
        %v7042 = vunpack.c.l.b16 %v3970
        %v7043 = vunpack.c.l.b16 %v3971
        %v7044 = vunpack.c.l.b16 %v3972
        %v7045 = vunpack.c.l.b16 %v3973
        %v7046 = vunpack.c.l.b16 %v3974
        %v7047 = vunpack.c.l.b16 %v3975
        %v7048 = vunpack.c.l.b16 %v3976
        %v7049 = vunpack.c.l.b16 %v3977
        %v7050 = vunpack.c.l.b16 %v3978
        %v7051 = vunpack.c.l.b16 %v3979
        %v7052 = vunpack.c.l.b16 %v3980
        %v7053 = vunpack.c.l.b16 %v3981
        %v7054 = vunpack.c.l.b16 %v3982
        %v7055 = vunpack.c.l.b16 %v3983
        %v7056 = vunpack.c.l.b16 %v3984
        %v7057 = vunpack.c.l.b16 %v3985
        %v7058 = vunpack.c.l.b16 %v3986
        %v7059 = vunpack.c.l.b16 %v3987
        %v7060 = vunpack.c.l.b16 %v3988
        %v7061 = vunpack.c.l.b16 %v3989
        %v7062 = vunpack.c.l.b16 %v3990
        %v7063 = vunpack.c.l.b16 %v3991
        %v7064 = vunpack.c.l.b16 %v3992
        %v7065 = vunpack.c.l.b16 %v3993
        %v7066 = vunpack.c.l.b16 %v3994
        %v7067 = vunpack.c.l.b16 %v3995
        %v7068 = vunpack.c.l.b16 %v3996
        %v7069 = vunpack.c.l.b16 %v3997
        %v7070 = vunpack.c.l.b16 %v3998
        %v7071 = vunpack.c.l.b16 %v3999
        %v7072 = vunpack.c.l.b16 %v4000
        %v7073 = vunpack.c.l.b16 %v4001
        %v7074 = vunpack.c.l.b16 %v4002
        %v7075 = vunpack.c.l.b16 %v4003
        %v7076 = vunpack.c.l.b16 %v4004
        %v7077 = vunpack.c.l.b16 %v4005
        %v7078 = vunpack.c.l.b16 %v4006
        %v7079 = vunpack.c.l.b16 %v4007
        %v7080 = vunpack.c.l.b16 %v4008
        %v7081 = vunpack.c.l.b16 %v4009
        %v7082 = vunpack.c.l.b16 %v4010
        %v7083 = vunpack.c.l.b16 %v4011
        %v7084 = vunpack.c.l.b16 %v4012
        %v7085 = vunpack.c.l.b16 %v4013
        %v7086 = vunpack.c.l.b16 %v4014
        %v7087 = vunpack.c.l.b16 %v4015
        %v7088 = vunpack.c.l.b16 %v4016
        %v7089 = vunpack.c.l.b16 %v4017
        %v7090 = vunpack.c.l.b16 %v4018
        %v7091 = vunpack.c.l.b16 %v4019
        %v7092 = vunpack.c.l.b16 %v4020
        %v7093 = vunpack.c.l.b16 %v4021
        %v7094 = vunpack.c.l.b16 %v4022
        %v7095 = vunpack.c.l.b16 %v4023
        %v7096 = vunpack.c.l.b16 %v4024
        %v7097 = vunpack.c.l.b16 %v4025
        %v7098 = vunpack.c.l.b16 %v4026
        %v7099 = vunpack.c.l.b16 %v4027
        %v7100 = vunpack.c.l.b16 %v4028
        %v7101 = vunpack.c.l.b16 %v4029
        %v7102 = vunpack.c.l.b16 %v4030
        %v7103 = vunpack.c.l.b16 %v4031
        %v7104 = vunpack.c.l.b16 %v4032
        %v7105 = vunpack.c.l.b16 %v4033
        %v7106 = vunpack.c.l.b16 %v4034
        %v7107 = vunpack.c.l.b16 %v4035
        %v7108 = vunpack.c.l.b16 %v4036
        %v7109 = vunpack.c.l.b16 %v4037
        %v7110 = vunpack.c.l.b16 %v4038
        %v7111 = vunpack.c.l.b16 %v4039
        %v7112 = vunpack.c.l.b16 %v4040
        %v7113 = vunpack.c.l.b16 %v4041
        %v7114 = vunpack.c.l.b16 %v4042
        %v7115 = vunpack.c.l.b16 %v4043
        %v7116 = vunpack.c.l.b16 %v4044
        %v7117 = vunpack.c.l.b16 %v4045
        %v7118 = vunpack.c.l.b16 %v4046
        %v7119 = vunpack.c.l.b16 %v4047
        %v7120 = vunpack.c.l.b16 %v4048
        %v7121 = vunpack.c.l.b16 %v4049
        %v7122 = vunpack.c.l.b16 %v4050
        %v7123 = vunpack.c.l.b16 %v4051
        %v7124 = vunpack.c.l.b16 %v4052
        %v7125 = vunpack.c.l.b16 %v4053
        %v7126 = vunpack.c.l.b16 %v4054
        %v7127 = vunpack.c.l.b16 %v4055
        %v7128 = vunpack.c.l.b16 %v4056
        %v7129 = vunpack.c.l.b16 %v4057
        %v7130 = vunpack.c.l.b16 %v4058
        %v7131 = vunpack.c.l.b16 %v4059
        %v7132 = vunpack.c.l.b16 %v4060
        %v7133 = vunpack.c.l.b16 %v4061
        %v7134 = vunpack.c.l.b16 %v4062
        %v7135 = vunpack.c.l.b16 %v4063
        %v7136 = vunpack.c.l.b16 %v4064
        %v7137 = vunpack.c.l.b16 %v4065
        %v7138 = vunpack.c.l.b16 %v4066
        %v7139 = vunpack.c.l.b16 %v4067
        %v7140 = vunpack.c.l.b16 %v4068
        %v7141 = vunpack.c.l.b16 %v4069
        %v7142 = vunpack.c.l.b16 %v4070
        %v7143 = vunpack.c.l.b16 %v4071
        %v7144 = vunpack.c.l.b16 %v4072
        %v7145 = vunpack.c.l.b16 %v4073
        %v7146 = vunpack.c.l.b16 %v4074
        %v7147 = vunpack.c.l.b16 %v4075
        %v7148 = vunpack.c.l.b16 %v4076
        %v7149 = vunpack.c.l.b16 %v4077
        %v7150 = vunpack.c.l.b16 %v4078
        %v7151 = vunpack.c.l.b16 %v4079
        %v7152 = vunpack.c.l.b16 %v4080
        %v7153 = vunpack.c.l.b16 %v4081
        %v7154 = vunpack.c.l.b16 %v4082
        %v7155 = vunpack.c.l.b16 %v4083
        %v7156 = vunpack.c.l.b16 %v4084
        %v7157 = vunpack.c.l.b16 %v4085
        %v7158 = vunpack.c.l.b16 %v4086
        %v7159 = vunpack.c.l.b16 %v4087
        %v7160 = vunpack.c.l.b16 %v4088
        %v7161 = vunpack.c.l.b16 %v4089
        %v7162 = vunpack.c.l.b16 %v4090
        %v7163 = vunpack.c.l.b16 %v4091
        %v7164 = vunpack.c.l.b16 %v4092
        %v7165 = vunpack.c.l.b16 %v4093
        %v7166 = vunpack.c.l.b16 %v4094
        %v7167 = vunpack.c.l.b16 %v4095
        %v7168 = vunpack.c.l.b16 %v4096
        %v7169 = vunpack.c.l.b16 %v4097
        %v7170 = vunpack.c.l.b16 %v4098
        %v7171 = vunpack.c.l.b16 %v4099
        %v7172 = vunpack.c.l.b16 %v4100
        %v7173 = vunpack.c.l.b16 %v4101
        %v7174 = vunpack.c.l.b16 %v4102
        %v7175 = vunpack.c.l.b16 %v4103
        %v7176 = vunpack.c.l.b16 %v4104
        %v7177 = vunpack.c.l.b16 %v4105
        %v7178 = vunpack.c.l.b16 %v4106
        %v7179 = vunpack.c.l.b16 %v4107
        %v7180 = vunpack.c.l.b16 %v4108
        %v7181 = vunpack.c.l.b16 %v4109
        %v7182 = vunpack.c.l.b16 %v4110
        %v7183 = vunpack.c.l.b16 %v4111
        %v7184 = vunpack.c.l.b16 %v4112
        %v7185 = vunpack.c.l.b16 %v4113
        %v7186 = vunpack.c.l.b16 %v4114
        %v7187 = vunpack.c.l.b16 %v4115
        %v7188 = vunpack.c.l.b16 %v4116
        %v7189 = vunpack.c.l.b16 %v4117
        %v7190 = vunpack.c.l.b16 %v4118
        %v7191 = vunpack.c.l.b16 %v4119
        %v7192 = vunpack.c.l.b16 %v4120
        %v7193 = vunpack.c.l.b16 %v4121
        %v7194 = vunpack.c.l.b16 %v4122
        %v7195 = vunpack.c.l.b16 %v4123
        %v7196 = vunpack.c.l.b16 %v4124
        %v7197 = vunpack.c.l.b16 %v4125
        %v7198 = vunpack.c.l.b16 %v4126
        %v7199 = vunpack.c.l.b16 %v4127
        %v7200 = vunpack.c.l.b16 %v4128
        %v7201 = vunpack.c.l.b16 %v4129
        %v7202 = vunpack.c.l.b16 %v4130
        %v7203 = vunpack.c.l.b16 %v4131
        %v7204 = vunpack.c.l.b16 %v4132
        %v7205 = vunpack.c.l.b16 %v4133
        %v7206 = vunpack.c.l.b16 %v4134
        %v7207 = vunpack.c.l.b16 %v4135
        %v7208 = vunpack.c.l.b16 %v4136
        %v7209 = vunpack.c.l.b16 %v4137
        %v7210 = vunpack.c.l.b16 %v4138
        %v7211 = vunpack.c.l.b16 %v4139
        %v7212 = vunpack.c.l.b16 %v4140
        %v7213 = vunpack.c.l.b16 %v4141
        %v7214 = vunpack.c.l.b16 %v4142
        %v7215 = vunpack.c.l.b16 %v4143
        %v7216 = vunpack.c.l.b16 %v4144
        %v7217 = vunpack.c.l.b16 %v4145
        %v7218 = vunpack.c.l.b16 %v4146
        %v7219 = vunpack.c.l.b16 %v4147
        %v7220 = vunpack.c.l.b16 %v4148
        %v7221 = vunpack.c.l.b16 %v4149
        %v7222 = vunpack.c.l.b16 %v4150
        %v7223 = vunpack.c.l.b16 %v4151
        %v7224 = vunpack.c.l.b16 %v4152
        %v7225 = vunpack.c.l.b16 %v4153
        %v7226 = vunpack.c.l.b16 %v4154
        %v7227 = vunpack.c.l.b16 %v4155
        %v7228 = vunpack.c.l.b16 %v4156
        %v7229 = vunpack.c.l.b16 %v4157
        %v7230 = vunpack.c.l.b16 %v4158
        %v7231 = vunpack.c.l.b16 %v4159
        %v7232 = vunpack.c.l.b16 %v4160
        %v7233 = vunpack.c.l.b16 %v4161
        %v7234 = vunpack.c.l.b16 %v4162
        %v7235 = vunpack.c.l.b16 %v4163
        %v7236 = vunpack.c.l.b16 %v4164
        %v7237 = vunpack.c.l.b16 %v4165
        %v7238 = vunpack.c.l.b16 %v4166
        %v7239 = vunpack.c.l.b16 %v4167
        %v7240 = vunpack.c.l.b16 %v4168
        %v7241 = vunpack.c.l.b16 %v4169
        %v7242 = vunpack.c.l.b16 %v4170
        %v7243 = vunpack.c.l.b16 %v4171
        %v7244 = vunpack.c.l.b16 %v4172
        %v7245 = vunpack.c.l.b16 %v4173
        %v7246 = vunpack.c.l.b16 %v4174
        %v7247 = vunpack.c.l.b16 %v4175
        %v7248 = vunpack.c.l.b16 %v4176
        %v7249 = vunpack.c.l.b16 %v4177
        %v7250 = vunpack.c.l.b16 %v4178
        %v7251 = vunpack.c.l.b16 %v4179
        %v7252 = vunpack.c.l.b16 %v4180
        %v7253 = vunpack.c.l.b16 %v4181
        %v7254 = vunpack.c.l.b16 %v4182
        %v7255 = vunpack.c.l.b16 %v4183
        %v7256 = vunpack.c.l.b16 %v4184
        %v7257 = vunpack.c.l.b16 %v4185
        %v7258 = vunpack.c.l.b16 %v4186
        %v7259 = vunpack.c.l.b16 %v4187
        %v7260 = vunpack.c.l.b16 %v4188
        %v7261 = vunpack.c.l.b16 %v4189
        %v7262 = vunpack.c.l.b16 %v4190
        %v7263 = vunpack.c.l.b16 %v4191
        %v7264 = vunpack.c.l.b16 %v4192
        %v7265 = vunpack.c.l.b16 %v4193
        %v7266 = vunpack.c.l.b16 %v4194
        %v7267 = vunpack.c.l.b16 %v4195
        %v7268 = vunpack.c.l.b16 %v4196
        %v7269 = vunpack.c.l.b16 %v4197
        %v7270 = vunpack.c.l.b16 %v4198
        %v7271 = vunpack.c.l.b16 %v4199
        %v7272 = vunpack.c.l.b16 %v4200
        %v7273 = vunpack.c.l.b16 %v4201
        %v7274 = vunpack.c.l.b16 %v4202
        %v7275 = vunpack.c.l.b16 %v4203
        %v7276 = vunpack.c.l.b16 %v4204
        %v7277 = vunpack.c.l.b16 %v4205
        %v7278 = vunpack.c.l.b16 %v4206
        %v7279 = vunpack.c.l.b16 %v4207
        %v7280 = vunpack.c.l.b16 %v4208
        %v7281 = vunpack.c.l.b16 %v4209
        %v7282 = vunpack.c.l.b16 %v4210
        %v7283 = vunpack.c.l.b16 %v4211
        %v7284 = vunpack.c.l.b16 %v4212
        %v7285 = vunpack.c.l.b16 %v4213
        %v7286 = vunpack.c.l.b16 %v4214
        %v7287 = vunpack.c.l.b16 %v4215
        %v7288 = vunpack.c.l.b16 %v4216
        %v7289 = vunpack.c.l.b16 %v4217
        %v7290 = vunpack.c.l.b16 %v4218
        %v7291 = vunpack.c.l.b16 %v4219
        %v7292 = vunpack.c.l.b16 %v4220
        %v7293 = vunpack.c.l.b16 %v4221
        %v7294 = vunpack.c.l.b16 %v4222
        %v7295 = vunpack.c.l.b16 %v4223
        %v7296 = vunpack.c.l.b16 %v4224
        %v7297 = vunpack.c.l.b16 %v4225
        %v7298 = vunpack.c.l.b16 %v4226
        %v7299 = vunpack.c.l.b16 %v4227
        %v7300 = vunpack.c.l.b16 %v4228
        %v7301 = vunpack.c.l.b16 %v4229
        %v7302 = vunpack.c.l.b16 %v4230
        %v7303 = vunpack.c.l.b16 %v4231
        %v7304 = vunpack.c.l.b16 %v4232
        %v7305 = vunpack.c.l.b16 %v4233
        %v7306 = vunpack.c.l.b16 %v4234
        %v7307 = vunpack.c.l.b16 %v4235
        %v7308 = vunpack.c.l.b16 %v4236
        %v7309 = vunpack.c.l.b16 %v4237
        %v7310 = vunpack.c.l.b16 %v4238
        %v7311 = vunpack.c.l.b16 %v4239
        %v7312 = vunpack.c.l.b16 %v4240
        %v7313 = vunpack.c.l.b16 %v4241
        %v7314 = vunpack.c.l.b16 %v4242
        %v7315 = vunpack.c.l.b16 %v4243
        %v7316 = vunpack.c.l.b16 %v4244
        %v7317 = vunpack.c.l.b16 %v4245
        %v7318 = vunpack.c.l.b16 %v4246
        %v7319 = vunpack.c.l.b16 %v4247
        %v7320 = vunpack.c.l.b16 %v4248
        %v7321 = vunpack.c.l.b16 %v4249
        %v7322 = vunpack.c.l.b16 %v4250
        %v7323 = vunpack.c.l.b16 %v4251
        %v7324 = vunpack.c.l.b16 %v4252
        %v7325 = vunpack.c.l.b16 %v4253
        %v7326 = vunpack.c.l.b16 %v4254
        %v7327 = vunpack.c.l.b16 %v4255
        %v7328 = vunpack.c.l.b16 %v4256
        %v7329 = vunpack.c.l.b16 %v4257
        %v7330 = vunpack.c.l.b16 %v4258
        %v7331 = vunpack.c.l.b16 %v4259
        %v7332 = vunpack.c.l.b16 %v4260
        %v7333 = vunpack.c.l.b16 %v4261
        %v7334 = vunpack.c.l.b16 %v4262
        %v7335 = vunpack.c.l.b16 %v4263
        %v7336 = vunpack.c.l.b16 %v4264
        %v7337 = vunpack.c.l.b16 %v4265
        %v7338 = vunpack.c.l.b16 %v4266
        %v7339 = vunpack.c.l.b16 %v4267
        %v7340 = vunpack.c.l.b16 %v4268
        %v7341 = vunpack.c.l.b16 %v4269
        %v7342 = vunpack.c.l.b16 %v4270
        %v7343 = vunpack.c.l.b16 %v4271
        %v7344 = vunpack.c.l.b16 %v4272
        %v7345 = vunpack.c.l.b16 %v4273
        %v7346 = vunpack.c.l.b16 %v4274
        %v7347 = vunpack.c.l.b16 %v4275
        %v7348 = vunpack.c.l.b16 %v4276
        %v7349 = vunpack.c.l.b16 %v4277
        %v7350 = vunpack.c.l.b16 %v4278
        %v7351 = vunpack.c.l.b16 %v4279
        %v7352 = vunpack.c.l.b16 %v4280
        %v7353 = vunpack.c.l.b16 %v4281
        %v7354 = vunpack.c.l.b16 %v4282
        %v7355 = vunpack.c.l.b16 %v4283
        %v7356 = vunpack.c.l.b16 %v4284
        %v7357 = vunpack.c.l.b16 %v4285
        %v7358 = vunpack.c.l.b16 %v4286
        %v7359 = vunpack.c.l.b16 %v4287
        %v7360 = vunpack.c.l.b16 %v4288
        %v7361 = vunpack.c.l.b16 %v4289
        %v7362 = vunpack.c.l.b16 %v4290
        %v7363 = vunpack.c.l.b16 %v4291
        %v7364 = vunpack.c.l.b16 %v4292
        %v7365 = vunpack.c.l.b16 %v4293
        %v7366 = vunpack.c.l.b16 %v4294
        %v7367 = vunpack.c.l.b16 %v4295
        %v7368 = vunpack.c.l.b16 %v4296
        %v7369 = vunpack.c.l.b16 %v4297
        %v7370 = vunpack.c.l.b16 %v4298
        %v7371 = vunpack.c.l.b16 %v4299
        %v7372 = vunpack.c.l.b16 %v4300
        %v7373 = vunpack.c.l.b16 %v4301
        %v7374 = vunpack.c.l.b16 %v4302
        %v7375 = vunpack.c.l.b16 %v4303
        %v7376 = vunpack.c.l.b16 %v4304
        %v7377 = vunpack.c.l.b16 %v4305
        %v7378 = vunpack.c.l.b16 %v4306
        %v7379 = vunpack.c.l.b16 %v4307
        %v7380 = vunpack.c.l.b16 %v4308
        %v7381 = vunpack.c.l.b16 %v4309
        %v7382 = vunpack.c.l.b16 %v4310
        %v7383 = vunpack.c.l.b16 %v4311
        %v7384 = vunpack.c.l.b16 %v4312
        %v7385 = vunpack.c.l.b16 %v4313
        %v7386 = vunpack.c.l.b16 %v4314
        %v7387 = vunpack.c.l.b16 %v4315
        %v7388 = vunpack.c.l.b16 %v4316
        %v7389 = vunpack.c.l.b16 %v4317
        %v7390 = vunpack.c.l.b16 %v4318
        %v7391 = vunpack.c.l.b16 %v4319
        %v7392 = vunpack.c.l.b16 %v4320
        %v7393 = vunpack.c.l.b16 %v4321
        %v7394 = vunpack.c.l.b16 %v4322
        %v7395 = vunpack.c.l.b16 %v4323
        %v7396 = vunpack.c.l.b16 %v4324
        %v7397 = vunpack.c.l.b16 %v4325
        %v7398 = vunpack.c.l.b16 %v4326
        %v7399 = vunpack.c.l.b16 %v4327
        %v7400 = vunpack.c.l.b16 %v4328
        %v7401 = vunpack.c.l.b16 %v4329
        %v7402 = vunpack.c.l.b16 %v4330
        %v7403 = vunpack.c.l.b16 %v4331
        %v7404 = vunpack.c.l.b16 %v4332
        %v7405 = vunpack.c.l.b16 %v4333
        %v7406 = vunpack.c.l.b16 %v4334
        %v7407 = vunpack.c.l.b16 %v4335
        %v7408 = vunpack.c.l.b16 %v4336
        %v7409 = vunpack.c.l.b16 %v4337
        %v7410 = vunpack.c.l.b16 %v4338
        %v7411 = vunpack.c.l.b16 %v4339
        %v7412 = vunpack.c.l.b16 %v4340
        %v7413 = vunpack.c.l.b16 %v4341
        %v7414 = vunpack.c.l.b16 %v4342
        %v7415 = vunpack.c.l.b16 %v4343
        %v7416 = vunpack.c.l.b16 %v4344
        %v7417 = vunpack.c.l.b16 %v4345
        %v7418 = vunpack.c.l.b16 %v4346
        %v7419 = vunpack.c.l.b16 %v4347
        %v7420 = vunpack.c.l.b16 %v4348
        %v7421 = vunpack.c.l.b16 %v4349
        %v7422 = vunpack.c.l.b16 %v4350
        %v7423 = vunpack.c.l.b16 %v4351
        %v7424 = vunpack.c.l.b16 %v4352
        %v7425 = vunpack.c.l.b16 %v4353
        %v7426 = vunpack.c.l.b16 %v4354
        %v7427 = vunpack.c.l.b16 %v4355
        %v7428 = vunpack.c.l.b16 %v4356
        %v7429 = vunpack.c.l.b16 %v4357
        %v7430 = vunpack.c.l.b16 %v4358
        %v7431 = vunpack.c.l.b16 %v4359
        %v7432 = vunpack.c.l.b16 %v4360
        %v7433 = vunpack.c.l.b16 %v4361
        %v7434 = vunpack.c.l.b16 %v4362
        %v7435 = vunpack.c.l.b16 %v4363
        %v7436 = vunpack.c.l.b16 %v4364
        %v7437 = vunpack.c.l.b16 %v4365
        %v7438 = vunpack.c.l.b16 %v4366
        %v7439 = vunpack.c.l.b16 %v4367
        %v7440 = vunpack.c.l.b16 %v4368
        %v7441 = vunpack.c.l.b16 %v4369
        %v7442 = vunpack.c.l.b16 %v4370
        %v7443 = vunpack.c.l.b16 %v4371
        %v7444 = vunpack.c.l.b16 %v4372
        %v7445 = vunpack.c.l.b16 %v4373
        %v7446 = vunpack.c.l.b16 %v4374
        %v7447 = vunpack.c.l.b16 %v4375
        %v7448 = vunpack.c.l.b16 %v4376
        %v7449 = vunpack.c.l.b16 %v4377
        %v7450 = vunpack.c.l.b16 %v4378
        %v7451 = vunpack.c.l.b16 %v4379
        %v7452 = vunpack.c.l.b16 %v4380
        %v7453 = vunpack.c.l.b16 %v4381
        %v7454 = vunpack.c.l.b16 %v4382
        %v7455 = vunpack.c.l.b16 %v4383
        %v7456 = vunpack.c.l.b16 %v4384
        %v7457 = vunpack.c.l.b16 %v4385
        %v7458 = vunpack.c.l.b16 %v4386
        %v7459 = vunpack.c.l.b16 %v4387
        %v7460 = vunpack.c.l.b16 %v4388
        %v7461 = vunpack.c.l.b16 %v4389
        %v7462 = vunpack.c.l.b16 %v4390
        %v7463 = vunpack.c.l.b16 %v4391
        %v7464 = vunpack.c.l.b16 %v4392
        %v7465 = vunpack.c.l.b16 %v4393
        %v7466 = vunpack.c.l.b16 %v4394
        %v7467 = vunpack.c.l.b16 %v4395
        %v7468 = vunpack.c.l.b16 %v4396
        %v7469 = vunpack.c.l.b16 %v4397
        %v7470 = vunpack.c.l.b16 %v4398
        %v7471 = vunpack.c.l.b16 %v4399
        %v7472 = vunpack.c.l.b16 %v4400
        %v7473 = vunpack.c.l.b16 %v4401
        %v7474 = vunpack.c.l.b16 %v4402
        %v7475 = vunpack.c.l.b16 %v4403
        %v7476 = vunpack.c.l.b16 %v4404
        %v7477 = vunpack.c.l.b16 %v4405
        %v7478 = vunpack.c.l.b16 %v4406
        %v7479 = vunpack.c.l.b16 %v4407
        %v7480 = vunpack.c.l.b16 %v4408
        %v7481 = vunpack.c.l.b16 %v4409
        %v7482 = vunpack.c.l.b16 %v4410
        %v7483 = vunpack.c.l.b16 %v4411
        %v7484 = vunpack.c.l.b16 %v4412
        %v7485 = vunpack.c.l.b16 %v4413
        %v7486 = vunpack.c.l.b16 %v4414
        %v7487 = vunpack.c.l.b16 %v4415
        %v7488 = vunpack.c.l.b16 %v4416
        %v7489 = vunpack.c.l.b16 %v4417
        %v7490 = vunpack.c.l.b16 %v4418
        %v7491 = vunpack.c.l.b16 %v4419
        %v7492 = vunpack.c.l.b16 %v4420
        %v7493 = vunpack.c.l.b16 %v4421
        %v7494 = vunpack.c.l.b16 %v4422
        %v7495 = vunpack.c.l.b16 %v4423
        %v7496 = vunpack.c.l.b16 %v4424
        %v7497 = vunpack.c.l.b16 %v4425
        %v7498 = vunpack.c.l.b16 %v4426
        %v7499 = vunpack.c.l.b16 %v4427
        %v7500 = vunpack.c.l.b16 %v4428
        %v7501 = vunpack.c.l.b16 %v4429
        %v7502 = vunpack.c.l.b16 %v4430
        %v7503 = vunpack.c.l.b16 %v4431
        %v7504 = vunpack.c.l.b16 %v4432
        %v7505 = vunpack.c.l.b16 %v4433
        %v7506 = vunpack.c.l.b16 %v4434
        %v7507 = vunpack.c.l.b16 %v4435
        %v7508 = vunpack.c.l.b16 %v4436
        %v7509 = vunpack.c.l.b16 %v4437
        %v7510 = vunpack.c.l.b16 %v4438
        %v7511 = vunpack.c.l.b16 %v4439
        %v7512 = vunpack.c.l.b16 %v4440
        %v7513 = vunpack.c.l.b16 %v4441
        %v7514 = vunpack.c.l.b16 %v4442
        %v7515 = vunpack.c.l.b16 %v4443
        %v7516 = vunpack.c.l.b16 %v4444
        %v7517 = vunpack.c.l.b16 %v4445
        %v7518 = vunpack.c.l.b16 %v4446
        %v7519 = vunpack.c.l.b16 %v4447
        %v7520 = vunpack.c.l.b16 %v4448
        %v7521 = vunpack.c.l.b16 %v4449
        %v7522 = vunpack.c.l.b16 %v4450
        %v7523 = vunpack.c.l.b16 %v4451
        %v7524 = vunpack.c.l.b16 %v4452
        %v7525 = vunpack.c.l.b16 %v4453
        %v7526 = vunpack.c.l.b16 %v4454
        %v7527 = vunpack.c.l.b16 %v4455
        %v7528 = vunpack.c.l.b16 %v4456
        %v7529 = vunpack.c.l.b16 %v4457
        %v7530 = vunpack.c.l.b16 %v4458
        %v7531 = vunpack.c.l.b16 %v4459
        %v7532 = vunpack.c.l.b16 %v4460
        %v7533 = vunpack.c.l.b16 %v4461
        %v7534 = vunpack.c.l.b16 %v4462
        %v7535 = vunpack.c.l.b16 %v4463
        %v7536 = vunpack.c.l.b16 %v4464
        %v7537 = vunpack.c.l.b16 %v4465
        %v7538 = vunpack.c.l.b16 %v4466
        %v7539 = vunpack.c.l.b16 %v4467
        %v7540 = vunpack.c.l.b16 %v4468
        %v7541 = vunpack.c.l.b16 %v4469
        %v7542 = vunpack.c.l.b16 %v4470
        %v7543 = vunpack.c.l.b16 %v4471
        %v7544 = vunpack.c.l.b16 %v4472
        %v7545 = vunpack.c.l.b16 %v4473
        %v7546 = vunpack.c.l.b16 %v4474
        %v7547 = vunpack.c.l.b16 %v4475
        %v7548 = vunpack.c.l.b16 %v4476
        %v7549 = vunpack.c.l.b16 %v4477
        %v7550 = vunpack.c.l.b16 %v4478
        %v7551 = vunpack.c.l.b16 %v4479
        %v7552 = vunpack.c.l.b16 %v4480
        %v7553 = vunpack.c.l.b16 %v4481
        %v7554 = vunpack.c.l.b16 %v4482
        %v7555 = vunpack.c.l.b16 %v4483
        %v7556 = vunpack.c.l.b16 %v4484
        %v7557 = vunpack.c.l.b16 %v4485
        %v7558 = vunpack.c.l.b16 %v4486
        %v7559 = vunpack.c.l.b16 %v4487
        %v7560 = vunpack.c.l.b16 %v4488
        %v7561 = vunpack.c.l.b16 %v4489
        %v7562 = vunpack.c.l.b16 %v4490
        %v7563 = vunpack.c.l.b16 %v4491
        %v7564 = vunpack.c.l.b16 %v4492
        %v7565 = vunpack.c.l.b16 %v4493
        %v7566 = vunpack.c.l.b16 %v4494
        %v7567 = vunpack.c.l.b16 %v4495
        %v7568 = vunpack.c.l.b16 %v4496
        %v7569 = vunpack.c.l.b16 %v4497
        %v7570 = vunpack.c.l.b16 %v4498
        %v7571 = vunpack.c.l.b16 %v4499
        %v7572 = vunpack.c.l.b16 %v4500
        %v7573 = vunpack.c.l.b16 %v4501
        %v7574 = vunpack.c.l.b16 %v4502
        %v7575 = vunpack.c.l.b16 %v4503
        %v7576 = vunpack.c.l.b16 %v4504
        %v7577 = vunpack.c.l.b16 %v4505
        %v7578 = vunpack.c.l.b16 %v4506
        %v7579 = vunpack.c.l.b16 %v4507
        %v7580 = vunpack.c.l.b16 %v4508
        %v7581 = vunpack.c.l.b16 %v4509
        %v7582 = vunpack.c.l.b16 %v4510
        %v7583 = vunpack.c.l.b16 %v4511
        %v7584 = vunpack.c.l.b16 %v4512
        %v7585 = vunpack.c.l.b16 %v4513
        %v7586 = vunpack.c.l.b16 %v4514
        %v7587 = vunpack.c.l.b16 %v4515
        %v7588 = vunpack.c.l.b16 %v4516
        %v7589 = vunpack.c.l.b16 %v4517
        %v7590 = vunpack.c.l.b16 %v4518
        %v7591 = vunpack.c.l.b16 %v4519
        %v7592 = vunpack.c.l.b16 %v4520
        %v7593 = vunpack.c.l.b16 %v4521
        %v7594 = vunpack.c.l.b16 %v4522
        %v7595 = vunpack.c.l.b16 %v4523
        %v7596 = vunpack.c.l.b16 %v4524
        %v7597 = vunpack.c.l.b16 %v4525
        %v7598 = vunpack.c.l.b16 %v4526
        %v7599 = vunpack.c.l.b16 %v4527
        %v7600 = vunpack.c.l.b16 %v4528
        %v7601 = vunpack.c.l.b16 %v4529
        %v7602 = vunpack.c.l.b16 %v4530
        %v7603 = vunpack.c.l.b16 %v4531
        %v7604 = vunpack.c.l.b16 %v4532
        %v7605 = vunpack.c.l.b16 %v4533
        %v7606 = vunpack.c.l.b16 %v4534
        %v7607 = vunpack.c.l.b16 %v4535
        %v7608 = vunpack.c.l.b16 %v4536
        %v7609 = vunpack.c.l.b16 %v4537
        %v7610 = vunpack.c.l.b16 %v4538
        %v7611 = vunpack.c.l.b16 %v4539
        %v7612 = vunpack.c.l.b16 %v4540
        %v7613 = vunpack.c.l.b16 %v4541
        %v7614 = vunpack.c.l.b16 %v4542
        %v7615 = vunpack.c.l.b16 %v4543
        %v7616 = vunpack.c.l.b16 %v4544
        %v7617 = vunpack.c.l.b16 %v4545
        %v7618 = vunpack.c.l.b16 %v4546
        %v7619 = vunpack.c.l.b16 %v4547
        %v7620 = vunpack.c.l.b16 %v4548
        %v7621 = vunpack.c.l.b16 %v4549
        %v7622 = vunpack.c.l.b16 %v4550
        %v7623 = vunpack.c.l.b16 %v4551
        %v7624 = vunpack.c.l.b16 %v4552
        %v7625 = vunpack.c.l.b16 %v4553
        %v7626 = vunpack.c.l.b16 %v4554
        %v7627 = vunpack.c.l.b16 %v4555
        %v7628 = vunpack.c.l.b16 %v4556
        %v7629 = vunpack.c.l.b16 %v4557
        %v7630 = vunpack.c.l.b16 %v4558
        %v7631 = vunpack.c.l.b16 %v4559
        %v7632 = vunpack.c.l.b16 %v4560
        %v7633 = vunpack.c.l.b16 %v4561
        %v7634 = vunpack.c.l.b16 %v4562
        %v7635 = vunpack.c.l.b16 %v4563
        %v7636 = vunpack.c.l.b16 %v4564
        %v7637 = vunpack.c.l.b16 %v4565
        %v7638 = vunpack.c.l.b16 %v4566
        %v7639 = vunpack.c.l.b16 %v4567
        %v7640 = vunpack.c.l.b16 %v4568
        %v7641 = vunpack.c.l.b16 %v4569
        %v7642 = vunpack.c.l.b16 %v4570
        %v7643 = vunpack.c.l.b16 %v4571
        %v7644 = vunpack.c.l.b16 %v4572
        %v7645 = vunpack.c.l.b16 %v4573
        %v7646 = vunpack.c.l.b16 %v4574
        %v7647 = vunpack.c.l.b16 %v4575
        %v7648 = vunpack.c.l.b16 %v4576
        %v7649 = vunpack.c.l.b16 %v4577
        %v7650 = vunpack.c.l.b16 %v4578
        %v7651 = vunpack.c.l.b16 %v4579
        %v7652 = vunpack.c.l.b16 %v4580
        %v7653 = vunpack.c.l.b16 %v4581
        %v7654 = vunpack.c.l.b16 %v4582
        %v7655 = vunpack.c.l.b16 %v4583
        %v7656 = vunpack.c.l.b16 %v4584
        %v7657 = vunpack.c.l.b16 %v4585
        %v7658 = vunpack.c.l.b16 %v4586
        %v7659 = vunpack.c.l.b16 %v4587
        %v7660 = vunpack.c.l.b16 %v4588
        %v7661 = vunpack.c.l.b16 %v4589
        %v7662 = vunpack.c.l.b16 %v4590
        %v7663 = vunpack.c.l.b16 %v4591
        %v7664 = vunpack.c.l.b16 %v4592
        %v7665 = vunpack.c.l.b16 %v4593
        %v7666 = vunpack.c.l.b16 %v4594
        %v7667 = vunpack.c.l.b16 %v4595
        %v7668 = vunpack.c.l.b16 %v4596
        %v7669 = vunpack.c.l.b16 %v4597
        %v7670 = vunpack.c.l.b16 %v4598
        %v7671 = vunpack.c.l.b16 %v4599
        %v7672 = vunpack.c.l.b16 %v4600
        %v7673 = vunpack.c.l.b16 %v4601
        %v7674 = vunpack.c.l.b16 %v4602
        %v7675 = vunpack.c.l.b16 %v4603
        %v7676 = vunpack.c.l.b16 %v4604
        %v7677 = vunpack.c.l.b16 %v4605
        %v7678 = vunpack.c.l.b16 %v4606
        %v7679 = vunpack.c.l.b16 %v4607
        %v7680 = vunpack.c.l.b16 %v4608
        %v7681 = vunpack.c.l.b16 %v4609
        %v7682 = vunpack.c.l.b16 %v4610
        %v7683 = vunpack.c.l.b16 %v4611
        %v7684 = vunpack.c.l.b16 %v4612
        %v7685 = vunpack.c.l.b16 %v4613
        %v7686 = vunpack.c.l.b16 %v4614
        %v7687 = vunpack.c.l.b16 %v4615
        %v7688 = vunpack.c.l.b16 %v4616
        %v7689 = vunpack.c.l.b16 %v4617
        %v7690 = vunpack.c.l.b16 %v4618
        %v7691 = vunpack.c.l.b16 %v4619
        %v7692 = vunpack.c.l.b16 %v4620
        %v7693 = vunpack.c.l.b16 %v4621
        %v7694 = vunpack.c.l.b16 %v4622
        %v7695 = vunpack.c.l.b16 %v4623
        %v7696 = vunpack.c.l.b16 %v4624
        %v7697 = vunpack.c.l.b16 %v4625
        %v7698 = vunpack.c.l.b16 %v4626
        %v7699 = vunpack.c.l.b16 %v4627
        %v7700 = vunpack.c.l.b16 %v4628
        %v7701 = vunpack.c.l.b16 %v4629
        %v7702 = vunpack.c.l.b16 %v4630
        %v7703 = vunpack.c.l.b16 %v4631
        %v7704 = vunpack.c.l.b16 %v4632
        %v7705 = vunpack.c.l.b16 %v4633
        %v7706 = vunpack.c.l.b16 %v4634
        %v7707 = vunpack.c.l.b16 %v4635
        %v7708 = vunpack.c.l.b16 %v4636
        %v7709 = vunpack.c.l.b16 %v4637
        %v7710 = vunpack.c.l.b16 %v4638
        %v7711 = vunpack.c.l.b16 %v4639
        %v7712 = vunpack.c.l.b16 %v4640
        %v7713 = vunpack.c.l.b16 %v4641
        %v7714 = vunpack.c.l.b16 %v4642
        %v7715 = vunpack.c.l.b16 %v4643
        %v7716 = vunpack.c.l.b16 %v4644
        %v7717 = vunpack.c.l.b16 %v4645
        %v7718 = vunpack.c.l.b16 %v4646
        %v7719 = vunpack.c.l.b16 %v4647
        %v7720 = vunpack.c.l.b16 %v4648
        %v7721 = vunpack.c.l.b16 %v4649
        %v7722 = vunpack.c.l.b16 %v4650
        %v7723 = vunpack.c.l.b16 %v4651
        %v7724 = vunpack.c.l.b16 %v4652
        %v7725 = vunpack.c.l.b16 %v4653
        %v7726 = vunpack.c.l.b16 %v4654
        %v7727 = vunpack.c.l.b16 %v4655
        %v7728 = vunpack.c.l.b16 %v4656
        %v7729 = vunpack.c.l.b16 %v4657
        %v7730 = vunpack.c.l.b16 %v4658
        %v7731 = vunpack.c.l.b16 %v4659
        %v7732 = vunpack.c.l.b16 %v4660
        %v7733 = vunpack.c.l.b16 %v4661
        %v7734 = vunpack.c.l.b16 %v4662
        %v7735 = vunpack.c.l.b16 %v4663
        %v7736 = vunpack.c.l.b16 %v4664
        %v7737 = vunpack.c.l.b16 %v4665
        %v7738 = vunpack.c.l.b16 %v4666
        %v7739 = vunpack.c.l.b16 %v4667
        %v7740 = vunpack.c.l.b16 %v4668
        %v7741 = vunpack.c.l.b16 %v4669
        %v7742 = vunpack.c.l.b16 %v4670
        %v7743 = vunpack.c.l.b16 %v4671
        %v7744 = vunpack.c.l.b16 %v4672
        %v7745 = vunpack.c.l.b16 %v4673
        %v7746 = vunpack.c.l.b16 %v4674
        %v7747 = vunpack.c.l.b16 %v4675
        %v7748 = vunpack.c.l.b16 %v4676
        %v7749 = vunpack.c.l.b16 %v4677
        %v7750 = vunpack.c.l.b16 %v4678
        %v7751 = vunpack.c.l.b16 %v4679
        %v7752 = vunpack.c.l.b16 %v4680
        %v7753 = vunpack.c.l.b16 %v4681
        %v7754 = vunpack.c.l.b16 %v4682
        %v7755 = vunpack.c.l.b16 %v4683
        %v7756 = vunpack.c.l.b16 %v4684
        %v7757 = vunpack.c.l.b16 %v4685
        %v7758 = vunpack.c.l.b16 %v4686
        %v7759 = vunpack.c.l.b16 %v4687
        %v7760 = vunpack.c.l.b16 %v4688
        %v7761 = vunpack.c.l.b16 %v4689
        %v7762 = vunpack.c.l.b16 %v4690
        %v7763 = vunpack.c.l.b16 %v4691
        %v7764 = vunpack.c.l.b16 %v4692
        %v7765 = vunpack.c.l.b16 %v4693
        %v7766 = vunpack.c.l.b16 %v4694
        %v7767 = vunpack.c.l.b16 %v4695
        %v7768 = vunpack.c.l.b16 %v4696
        %v7769 = vunpack.c.l.b16 %v4697
        %v7770 = vunpack.c.l.b16 %v4698
        %v7771 = vunpack.c.l.b16 %v4699
        %v7772 = vunpack.c.l.b16 %v4700
        %v7773 = vunpack.c.l.b16 %v4701
        %v7774 = vunpack.c.l.b16 %v4702
        %v7775 = vunpack.c.l.b16 %v4703
        %v7776 = vunpack.c.l.b16 %v4704
        %v7777 = vunpack.c.l.b16 %v4705
        %v7778 = vunpack.c.l.b16 %v4706
        %v7779 = vunpack.c.l.b16 %v4707
        %v7780 = vunpack.c.l.b16 %v4708
        %v7781 = vunpack.c.l.b16 %v4709
        %v7782 = vunpack.c.l.b16 %v4710
        %v7783 = vunpack.c.l.b16 %v4711
        %v7784 = vunpack.c.l.b16 %v4712
        %v7785 = vunpack.c.l.b16 %v4713
        %v7786 = vunpack.c.l.b16 %v4714
        %v7787 = vunpack.c.l.b16 %v4715
        %v7788 = vunpack.c.l.b16 %v4716
        %v7789 = vunpack.c.l.b16 %v4717
        %v7790 = vunpack.c.l.b16 %v4718
        %v7791 = vunpack.c.l.b16 %v4719
        %v7792 = vunpack.c.l.b16 %v4720
        %v7793 = vunpack.c.l.b16 %v4721
        %v7794 = vunpack.c.l.b16 %v4722
        %v7795 = vunpack.c.l.b16 %v4723
        %v7796 = vunpack.c.l.b16 %v4724
        %v7797 = vunpack.c.l.b16 %v4725
        %v7798 = vunpack.c.l.b16 %v4726
        %v7799 = vunpack.c.l.b16 %v4727
        %v7800 = vunpack.c.l.b16 %v4728
        %v7801 = vunpack.c.l.b16 %v4729
        %v7802 = vunpack.c.l.b16 %v4730
        %v7803 = vunpack.c.l.b16 %v4731
        %v7804 = vunpack.c.l.b16 %v4732
        %v7805 = vunpack.c.l.b16 %v4733
        %v7806 = vunpack.c.l.b16 %v4734
        %v7807 = vunpack.c.l.b16 %v4735
        %v7808 = vunpack.c.l.b16 %v4736
        %v7809 = vunpack.c.l.b16 %v4737
        %v7810 = vunpack.c.l.b16 %v4738
        %v7811 = vunpack.c.l.b16 %v4739
        %v7812 = vunpack.c.l.b16 %v4740
        %v7813 = vunpack.c.l.b16 %v4741
        %v7814 = vunpack.c.l.b16 %v4742
        %v7815 = vunpack.c.l.b16 %v4743
        %v7816 = vunpack.c.l.b16 %v4744
        %v7817 = vunpack.c.l.b16 %v4745
        %v7818 = vunpack.c.l.b16 %v4746
        %v7819 = vunpack.c.l.b16 %v4747
        %v7820 = vunpack.c.l.b16 %v4748
        %v7821 = vunpack.c.l.b16 %v4749
        %v7822 = vunpack.c.l.b16 %v4750
        %v7823 = vunpack.c.l.b16 %v4751
        %v7824 = vunpack.c.l.b16 %v4752
        %v7825 = vunpack.c.l.b16 %v4753
        %v7826 = vunpack.c.l.b16 %v4754
        %v7827 = vunpack.c.l.b16 %v4755
        %v7828 = vunpack.c.l.b16 %v4756
        %v7829 = vunpack.c.l.b16 %v4757
        %v7830 = vunpack.c.l.b16 %v4758
        %v7831 = vunpack.c.l.b16 %v4759
        %v7832 = vunpack.c.l.b16 %v4760
        %v7833 = vunpack.c.l.b16 %v4761
        %v7834 = vunpack.c.l.b16 %v4762
        %v7835 = vunpack.c.l.b16 %v4763
        %v7836 = vunpack.c.l.b16 %v4764
        %v7837 = vunpack.c.l.b16 %v4765
        %v7838 = vunpack.c.l.b16 %v4766
        %v7839 = vunpack.c.l.b16 %v4767
        %v7840 = vunpack.c.l.b16 %v4768
        %v7841 = vunpack.c.l.b16 %v4769
        %v7842 = vunpack.c.l.b16 %v4770
        %v7843 = vunpack.c.l.b16 %v4771
        %v7844 = vunpack.c.l.b16 %v4772
        %v7845 = vunpack.c.l.b16 %v4773
        %v7846 = vunpack.c.l.b16 %v4774
        %v7847 = vunpack.c.l.b16 %v4775
        %v7848 = vunpack.c.l.b16 %v4776
        %v7849 = vunpack.c.l.b16 %v4777
        %v7850 = vunpack.c.l.b16 %v4778
        %v7851 = vunpack.c.l.b16 %v4779
        %v7852 = vunpack.c.l.b16 %v4780
        %v7853 = vunpack.c.l.b16 %v4781
        %v7854 = vunpack.c.l.b16 %v4782
        %v7855 = vunpack.c.l.b16 %v4783
        %v7856 = vunpack.c.l.b16 %v4784
        %v7857 = vunpack.c.l.b16 %v4785
        %v7858 = vunpack.c.l.b16 %v4786
        %v7859 = vunpack.c.l.b16 %v4787
        %v7860 = vunpack.c.l.b16 %v4788
        %v7861 = vunpack.c.l.b16 %v4789
        %v7862 = vunpack.c.l.b16 %v4790
        %v7863 = vunpack.c.l.b16 %v4791
        %v7864 = vunpack.c.l.b16 %v4792
        %v7865 = vunpack.c.l.b16 %v4793
        %v7866 = vunpack.c.l.b16 %v4794
        %v7867 = vunpack.c.l.b16 %v4795
        %v7868 = vunpack.c.l.b16 %v4796
        %v7869 = vunpack.c.l.b16 %v4797
        %v7870 = vunpack.c.l.b16 %v4798
        %v7871 = vunpack.c.l.b16 %v4799
        %v7872 = vunpack.c.l.b16 %v4800
        %v7873 = vunpack.c.l.b16 %v4801
        %v7874 = vunpack.c.l.b16 %v4802
        %v7875 = vunpack.c.l.b16 %v4803
        %v7876 = vunpack.c.l.b16 %v4804
        %v7877 = vunpack.c.l.b16 %v4805
        %v7878 = vunpack.c.l.b16 %v4806
        %v7879 = vunpack.c.l.b16 %v4807
        %v7880 = vunpack.c.l.b16 %v4808
        %v7881 = vunpack.c.l.b16 %v4809
        %v7882 = vunpack.c.l.b16 %v4810
        %v7883 = vunpack.c.l.b16 %v4811
        %v7884 = vunpack.c.l.b16 %v4812
        %v7885 = vunpack.c.l.b16 %v4813
        %v7886 = vunpack.c.l.b16 %v4814
        %v7887 = vunpack.c.l.b16 %v4815
        %v7888 = vunpack.c.l.b16 %v4816
        %v7889 = vunpack.c.l.b16 %v4817
        %v7890 = vunpack.c.l.b16 %v4818
        %v7891 = vunpack.c.l.b16 %v4819
        %v7892 = vunpack.c.l.b16 %v4820
        %v7893 = vunpack.c.l.b16 %v4821
        %v7894 = vunpack.c.l.b16 %v4822
        %v7895 = vunpack.c.l.b16 %v4823
        %v7896 = vunpack.c.l.b16 %v4824
        %v7897 = vunpack.c.l.b16 %v4825
        %v7898 = vunpack.c.l.b16 %v4826
        %v7899 = vunpack.c.l.b16 %v4827
        %v7900 = vunpack.c.l.b16 %v4828
        %v7901 = vunpack.c.l.b16 %v4829
        %v7902 = vunpack.c.l.b16 %v4830
        %v7903 = vunpack.c.l.b16 %v4831
        %v7904 = vunpack.c.l.b16 %v4832
        %v7905 = vunpack.c.l.b16 %v4833
        %v7906 = vunpack.c.l.b16 %v4834
        %v7907 = vunpack.c.l.b16 %v4835
        %v7908 = vunpack.c.l.b16 %v4836
        %v7909 = vunpack.c.l.b16 %v4837
        %v7910 = vunpack.c.l.b16 %v4838
        %v7911 = vunpack.c.l.b16 %v4839
        %v7912 = vunpack.c.l.b16 %v4840
        %v7913 = vunpack.c.l.b16 %v4841
        %v7914 = vunpack.c.l.b16 %v4842
        %v7915 = vunpack.c.l.b16 %v4843
        %v7916 = vunpack.c.l.b16 %v4844
        %v7917 = vunpack.c.l.b16 %v4845
        %v7918 = vunpack.c.l.b16 %v4846
        %v7919 = vunpack.c.l.b16 %v4847
        %v7920 = vunpack.c.l.b16 %v4848
        %v7921 = vunpack.c.l.b16 %v4849
        %v7922 = vunpack.c.l.b16 %v4850
        %v7923 = vunpack.c.l.b16 %v4851
        %v7924 = vunpack.c.l.b16 %v4852
        %v7925 = vunpack.c.l.b16 %v4853
        %v7926 = vunpack.c.l.b16 %v4854
        %v7927 = vunpack.c.l.b16 %v4855
        %v7928 = vunpack.c.l.b16 %v4856
        %v7929 = vunpack.c.l.b16 %v4857
        %v7930 = vunpack.c.l.b16 %v4858
        %v7931 = vunpack.c.l.b16 %v4859
        %v7932 = vunpack.c.l.b16 %v4860
        %v7933 = vunpack.c.l.b16 %v4861
        %v7934 = vunpack.c.l.b16 %v4862
        %v7935 = vunpack.c.l.b16 %v4863
        %v7936 = vunpack.c.l.b16 %v4864
        %v7937 = vunpack.c.l.b16 %v4865
        %v7938 = vunpack.c.l.b16 %v4866
        %v7939 = vunpack.c.l.b16 %v4867
        %v7940 = vunpack.c.l.b16 %v4868
        %v7941 = vunpack.c.l.b16 %v4869
        %v7942 = vunpack.c.l.b16 %v4870
        %v7943 = vunpack.c.l.b16 %v4871
        %v7944 = vunpack.c.l.b16 %v4872
        %v7945 = vunpack.c.l.b16 %v4873
        %v7946 = vunpack.c.l.b16 %v4874
        %v7947 = vunpack.c.l.b16 %v4875
        %v7948 = vunpack.c.l.b16 %v4876
        %v7949 = vunpack.c.l.b16 %v4877
        %v7950 = vunpack.c.l.b16 %v4878
        %v7951 = vunpack.c.l.b16 %v4879
        %v7952 = vunpack.c.l.b16 %v4880
        %v7953 = vunpack.c.l.b16 %v4881
        %v7954 = vunpack.c.l.b16 %v4882
        %v7955 = vunpack.c.l.b16 %v4883
        %v7956 = vunpack.c.l.b16 %v4884
        %v7957 = vunpack.c.l.b16 %v4885
        %v7958 = vunpack.c.l.b16 %v4886
        %v7959 = vunpack.c.l.b16 %v4887
        %v7960 = vunpack.c.l.b16 %v4888
        %v7961 = vunpack.c.l.b16 %v4889
        %v7962 = vunpack.c.l.b16 %v4890
        %v7963 = vunpack.c.l.b16 %v4891
        %v7964 = vunpack.c.l.b16 %v4892
        %v7965 = vunpack.c.l.b16 %v4893
        %v7966 = vunpack.c.l.b16 %v4894
        %v7967 = vunpack.c.l.b16 %v4895
        %v7968 = vunpack.c.l.b16 %v4896
        %v7969 = vunpack.c.l.b16 %v4897
        %v7970 = vunpack.c.l.b16 %v4898
        %v7971 = vunpack.c.l.b16 %v4899
        %v7972 = vunpack.c.l.b16 %v4900
        %v7973 = vunpack.c.l.b16 %v4901
        %v7974 = vunpack.c.l.b16 %v4902
        %v7975 = vunpack.c.l.b16 %v4903
        %v7976 = vunpack.c.l.b16 %v4904
        %v7977 = vunpack.c.l.b16 %v4905
        %v7978 = vunpack.c.l.b16 %v4906
        %v7979 = vunpack.c.l.b16 %v4907
        %v7980 = vunpack.c.l.b16 %v4908
        %v7981 = vunpack.c.l.b16 %v4909
        %v7982 = vunpack.c.l.b16 %v4910
        %v7983 = vunpack.c.l.b16 %v4911
        %v7984 = vunpack.c.l.b16 %v4912
        %v7985 = vunpack.c.l.b16 %v4913
        %v7986 = vunpack.c.l.b16 %v4914
        %v7987 = vunpack.c.l.b16 %v4915
        %v7988 = vunpack.c.l.b16 %v4916
        %v7989 = vunpack.c.l.b16 %v4917
        %v7990 = vunpack.c.l.b16 %v4918
        %v7991 = vunpack.c.l.b16 %v4919
        %v7992 = vunpack.c.l.b16 %v4920
        %v7993 = vunpack.c.l.b16 %v4921
        %v7994 = vunpack.c.l.b16 %v4922
        %v7995 = vunpack.c.l.b16 %v4923
        %v7996 = vunpack.c.l.b16 %v4924
        %v7997 = vunpack.c.l.b16 %v4925
        %v7998 = vunpack.c.l.b16 %v4926
        %v7999 = vunpack.c.l.b16 %v4927
        %v8000 = vunpack.c.l.b16 %v4928
        %v8001 = vunpack.c.l.b16 %v4929
        %v8002 = vunpack.c.l.b16 %v4930
        %v8003 = vunpack.c.l.b16 %v4931
        %v8004 = vunpack.c.l.b16 %v4932
        %v8005 = vunpack.c.l.b16 %v4933
        %v8006 = vunpack.c.l.b16 %v4934
        %v8007 = vunpack.c.l.b16 %v4935
        %v8008 = vunpack.c.l.b16 %v4936
        %v8009 = vunpack.c.l.b16 %v4937
        %v8010 = vunpack.c.l.b16 %v4938
        %v8011 = vunpack.c.l.b16 %v4939
        %v8012 = vunpack.c.l.b16 %v4940
        %v8013 = vunpack.c.l.b16 %v4941
        %v8014 = vunpack.c.l.b16 %v4942
        %v8015 = vunpack.c.l.b16 %v4943
        %v8016 = vunpack.c.l.b16 %v4944
        %v8017 = vunpack.c.l.b16 %v4945
        %v8018 = vunpack.c.l.b16 %v4946
        %v8019 = vunpack.c.l.b16 %v4947
        %v8020 = vunpack.c.l.b16 %v4948
        %v8021 = vunpack.c.l.b16 %v4949
        %v8022 = vunpack.c.l.b16 %v4950
        %v8023 = vunpack.c.l.b16 %v4951
        %v8024 = vunpack.c.l.b16 %v4952
        %v8025 = vunpack.c.l.b16 %v4953
        %v8026 = vunpack.c.l.b16 %v4954
        %v8027 = vunpack.c.l.b16 %v4955
        %v8028 = vunpack.c.l.b16 %v4956
        %v8029 = vunpack.c.l.b16 %v4957
        %v8030 = vunpack.c.l.b16 %v4958
        %v8031 = vunpack.c.l.b16 %v4959
        %v8032 = vunpack.c.l.b16 %v4960
        %v8033 = vunpack.c.l.b16 %v4961
        %v8034 = vunpack.c.l.b16 %v4962
        %v8035 = vunpack.c.l.b16 %v4963
        %v8036 = vunpack.c.l.b16 %v4964
        %v8037 = vunpack.c.l.b16 %v4965
        %v8038 = vunpack.c.l.b16 %v4966
        %v8039 = vunpack.c.l.b16 %v4967
        %v8040 = vunpack.c.l.b16 %v4968
        %v8041 = vunpack.c.l.b16 %v4969
        %v8042 = vunpack.c.l.b16 %v4970
        %v8043 = vunpack.c.l.b16 %v4971
        %v8044 = vunpack.c.l.b16 %v4972
        %v8045 = vunpack.c.l.b16 %v4973
        %v8046 = vunpack.c.l.b16 %v4974
        %v8047 = vunpack.c.l.b16 %v4975
        %v8048 = vunpack.c.l.b16 %v4976
        %v8049 = vunpack.c.l.b16 %v4977
        %v8050 = vunpack.c.l.b16 %v4978
        %v8051 = vunpack.c.l.b16 %v4979
        %v8052 = vunpack.c.l.b16 %v4980
        %v8053 = vunpack.c.l.b16 %v4981
        %v8054 = vunpack.c.l.b16 %v4982
        %v8055 = vunpack.c.l.b16 %v4983
        %v8056 = vunpack.c.l.b16 %v4984
        %v8057 = vunpack.c.l.b16 %v4985
        %v8058 = vunpack.c.l.b16 %v4986
        %v8059 = vunpack.c.l.b16 %v4987
        %v8060 = vunpack.c.l.b16 %v4988
        %v8061 = vunpack.c.l.b16 %v4989
        %v8062 = vunpack.c.l.b16 %v4990
        %v8063 = vunpack.c.l.b16 %v4991
        %v8064 = vunpack.c.l.b16 %v4992
        %v8065 = vunpack.c.l.b16 %v4993
        %v8066 = vunpack.c.l.b16 %v4994
        %v8067 = vunpack.c.l.b16 %v4995
        %v8068 = vunpack.c.l.b16 %v4996
        %v8069 = vunpack.c.l.b16 %v4997
        %v8070 = vunpack.c.l.b16 %v4998
        %v8071 = vunpack.c.l.b16 %v4999
        %v8072 = vunpack.c.l.b16 %v5000
        %v8073 = vunpack.c.l.b16 %v5001
        %v8074 = vunpack.c.l.b16 %v5002
        %v8075 = vunpack.c.l.b16 %v5003
        %v8076 = vunpack.c.l.b16 %v5004
        %v8077 = vunpack.c.l.b16 %v5005
        %v8078 = vunpack.c.l.b16 %v5006
        %v8079 = vunpack.c.l.b16 %v5007
        %v8080 = vunpack.c.l.b16 %v5008
        %v8081 = vunpack.c.l.b16 %v5009
        %v8082 = vunpack.c.l.b16 %v5010
        %v8083 = vunpack.c.l.b16 %v5011
        %v8084 = vunpack.c.l.b16 %v5012
        %v8085 = vunpack.c.l.b16 %v5013
        %v8086 = vunpack.c.l.b16 %v5014
        %v8087 = vunpack.c.l.b16 %v5015
        %v8088 = vunpack.c.l.b16 %v5016
        %v8089 = vunpack.c.l.b16 %v5017
        %v8090 = vunpack.c.l.b16 %v5018
        %v8091 = vunpack.c.l.b16 %v5019
        %v8092 = vunpack.c.l.b16 %v5020
        %v8093 = vunpack.c.l.b16 %v5021
        %v8094 = vunpack.c.l.b16 %v5022
        %v8095 = vunpack.c.l.b16 %v5023
        %v8096 = vunpack.c.l.b16 %v5024
        %v8097 = vunpack.c.l.b16 %v5025
        %v8098 = vunpack.c.l.b16 %v5026
        %v8099 = vunpack.c.l.b16 %v5027
        %v8100 = vunpack.c.l.b16 %v5028
        %v8101 = vunpack.c.l.b16 %v5029
        %v8102 = vunpack.c.l.b16 %v5030
        %v8103 = vunpack.c.l.b16 %v5031
        %v8104 = vunpack.c.l.b16 %v5032
        %v8105 = vunpack.c.l.b16 %v5033
        %v8106 = vunpack.c.l.b16 %v5034
        %v8107 = vunpack.c.l.b16 %v5035
        %v8108 = vunpack.c.l.b16 %v5036
        %v8109 = vunpack.c.l.b16 %v5037
        %v8110 = vunpack.c.l.b16 %v5038
        %v8111 = vunpack.c.l.b16 %v5039
        %v8112 = vunpack.c.l.b16 %v5040
        %v8113 = vunpack.c.l.b16 %v5041
        %v8114 = vunpack.c.l.b16 %v5042
        %v8115 = vunpack.c.l.b16 %v5043
        %v8116 = vunpack.c.l.b16 %v5044
        %v8117 = vunpack.c.l.b16 %v5045
        %v8118 = vunpack.c.l.b16 %v5046
        %v8119 = vunpack.c.l.b16 %v5047
        %v8120 = vunpack.c.l.b16 %v5048
        %v8121 = vunpack.c.l.b16 %v5049
        %v8122 = vunpack.c.l.b16 %v5050
        %v8123 = vunpack.c.l.b16 %v5051
        %v8124 = vunpack.c.l.b16 %v5052
        %v8125 = vunpack.c.l.b16 %v5053
        %v8126 = vunpack.c.l.b16 %v5054
        %v8127 = vunpack.c.l.b16 %v5055
        %v8128 = vunpack.c.l.b16 %v5056
        %v8129 = vunpack.c.l.b16 %v5057
        %v8130 = vunpack.c.l.b16 %v5058
        %v8131 = vunpack.c.l.b16 %v5059
        %v8132 = vunpack.c.l.b16 %v5060
        %v8133 = vunpack.c.l.b16 %v5061
        %v8134 = vunpack.c.l.b16 %v5062
        %v8135 = vunpack.c.l.b16 %v5063
        %v8136 = vunpack.c.l.b16 %v5064
        %v8137 = vunpack.c.l.b16 %v5065
        %v8138 = vunpack.c.l.b16 %v5066
        %v8139 = vunpack.c.l.b16 %v5067
        %v8140 = vunpack.c.l.b16 %v5068
        %v8141 = vunpack.c.l.b16 %v5069
        %v8142 = vunpack.c.l.b16 %v5070
        %v8143 = vunpack.c.l.b16 %v5071
        %v8144 = vunpack.c.l.b16 %v5072
        %v8145 = vunpack.c.l.b16 %v5073
        %v8146 = vunpack.c.l.b16 %v5074
        %v8147 = vunpack.c.l.b16 %v5075
        %v8148 = vunpack.c.l.b16 %v5076
        %v8149 = vunpack.c.l.b16 %v5077
        %v8150 = vunpack.c.l.b16 %v5078
        %v8151 = vunpack.c.l.b16 %v5079
        %v8152 = vunpack.c.l.b16 %v5080
        %v8153 = vunpack.c.l.b16 %v5081
        %v8154 = vunpack.c.l.b16 %v5082
        %v8155 = vunpack.c.l.b16 %v5083
        %v8156 = vunpack.c.l.b16 %v5084
        %v8157 = vunpack.c.l.b16 %v5085
        %v8158 = vunpack.c.l.b16 %v5086
        %v8159 = vunpack.c.l.b16 %v5087
        %v8160 = vunpack.c.l.b16 %v5088
        %v8161 = vunpack.c.l.b16 %v5089
        %v8162 = vunpack.c.l.b16 %v5090
        %v8163 = vunpack.c.l.b16 %v5091
        %v8164 = vunpack.c.l.b16 %v5092
        %v8165 = vunpack.c.l.b16 %v5093
        %v8166 = vunpack.c.l.b16 %v5094
        %v8167 = vunpack.c.l.b16 %v5095
        %v8168 = vunpack.c.l.b16 %v5096
        %v8169 = vunpack.c.l.b16 %v5097
        %v8170 = vunpack.c.l.b16 %v5098
        %v8171 = vunpack.c.l.b16 %v5099
        %v8172 = vunpack.c.l.b16 %v5100
        %v8173 = vunpack.c.l.b16 %v5101
        %v8174 = vunpack.c.l.b16 %v5102
        %v8175 = vunpack.c.l.b16 %v5103
        %v8176 = vunpack.c.l.b16 %v5104
        %v8177 = vunpack.c.l.b16 %v5105
        %v8178 = vunpack.c.l.b16 %v5106
        %v8179 = vunpack.c.l.b16 %v5107
        %v8180 = vunpack.c.l.b16 %v5108
        %v8181 = vunpack.c.l.b16 %v5109
        %v8182 = vunpack.c.l.b16 %v5110
        %v8183 = vunpack.c.l.b16 %v5111
        %v8184 = vunpack.c.l.b16 %v5112
        %v8185 = vunpack.c.l.b16 %v5113
        %v8186 = vunpack.c.l.b16 %v5114
        %v8187 = vunpack.c.l.b16 %v5115
        %v8188 = vunpack.c.l.b16 %v5116
        %v8189 = vunpack.c.l.b16 %v5117
        %v8190 = vunpack.c.l.b16 %v5118
        %v8191 = vunpack.c.l.b16 %v5119
        %v8192 = vunpack.c.l.b16 %v5120
        %v8193 = vunpack.c.l.b16 %v5121
        %v8194 = vunpack.c.l.b16 %v5122
        %v8195 = vunpack.c.l.b16 %v5123
        %v8196 = vunpack.c.l.b16 %v5124
        %v8197 = vunpack.c.l.b16 %v5125
        %v8198 = vunpack.c.l.b16 %v5126
        %v8199 = vunpack.c.l.b16 %v5127
        %v8200 = vunpack.c.l.b16 %v5128
        %v8201 = vunpack.c.l.b16 %v5129
        %v8202 = vunpack.c.l.b16 %v5130
        %v8203 = vunpack.c.l.b16 %v5131
        %v8204 = vunpack.c.l.b16 %v5132
        %v8205 = vunpack.c.l.b16 %v5133
        %v8206 = vunpack.c.l.b16 %v5134
        %v8207 = vunpack.c.l.b16 %v5135
        %v8208 = vunpack.c.l.b16 %v5136
        %v8209 = vunpack.c.l.b16 %v5137
        %v8210 = vunpack.c.l.b16 %v5138
        %v8211 = vunpack.c.l.b16 %v5139
        %v8212 = vunpack.c.l.b16 %v5140
        %v8213 = vunpack.c.l.b16 %v5141
        %v8214 = vunpack.c.l.b16 %v5142
        %v8215 = vunpack.c.l.b16 %v5143
        %v8216 = vunpack.c.l.b16 %v5144
        %v8217 = vunpack.c.l.b16 %v5145
        %v8218 = vunpack.c.l.b16 %v5146
        %v8219 = vunpack.c.l.b16 %v5147
        %v8220 = vunpack.c.l.b16 %v5148
        %v8221 = vunpack.c.l.b16 %v5149
        %v8222 = vunpack.c.l.b16 %v5150
        %v8223 = vunpack.c.l.b16 %v5151
        %v8224 = vunpack.c.l.b16 %v5152
        %v8225 = vunpack.c.l.b16 %v5153
        %v8226 = vunpack.c.l.b16 %v5154
        %v8227 = vunpack.c.l.b16 %v5155
        %v8228 = vunpack.c.l.b16 %v5156
        %v8229 = vunpack.c.l.b16 %v5157
        %v8230 = vunpack.c.l.b16 %v5158
        %v8231 = vunpack.c.l.b16 %v5159
        %v8232 = vunpack.c.l.b16 %v5160
        %v8233 = vunpack.c.l.b16 %v5161
        %v8234 = vunpack.c.l.b16 %v5162
        %v8235 = vunpack.c.l.b16 %v5163
        %v8236 = vunpack.c.l.b16 %v5164
        %v8237 = vpack.c.b16 %v6702, %v6701
        %v8238 = vpack.c.b16 %v6704, %v6703
        %v8239 = vpack.c.b16 %v6706, %v6705
        %v8240 = vpack.c.b16 %v6708, %v6707
        %v8241 = vpack.c.b16 %v6710, %v6709
        %v8242 = vpack.c.b16 %v6712, %v6711
        %v8243 = vpack.c.b16 %v6714, %v6713
        %v8244 = vpack.c.b16 %v6716, %v6715
        %v8245 = vpack.c.b16 %v6718, %v6717
        %v8246 = vpack.c.b16 %v6720, %v6719
        %v8247 = vpack.c.b16 %v6722, %v6721
        %v8248 = vpack.c.b16 %v6724, %v6723
        %v8249 = vpack.c.b16 %v6726, %v6725
        %v8250 = vpack.c.b16 %v6728, %v6727
        %v8251 = vpack.c.b16 %v6730, %v6729
        %v8252 = vpack.c.b16 %v6732, %v6731
        %v8253 = vpack.c.b16 %v6734, %v6733
        %v8254 = vpack.c.b16 %v6736, %v6735
        %v8255 = vpack.c.b16 %v6738, %v6737
        %v8256 = vpack.c.b16 %v6740, %v6739
        %v8257 = vpack.c.b16 %v6742, %v6741
        %v8258 = vpack.c.b16 %v6744, %v6743
        %v8259 = vpack.c.b16 %v6746, %v6745
        %v8260 = vpack.c.b16 %v6748, %v6747
        %v8261 = vpack.c.b16 %v6750, %v6749
        %v8262 = vpack.c.b16 %v6752, %v6751
        %v8263 = vpack.c.b16 %v6754, %v6753
        %v8264 = vpack.c.b16 %v6756, %v6755
        %v8265 = vpack.c.b16 %v6758, %v6757
        %v8266 = vpack.c.b16 %v6760, %v6759
        %v8267 = vpack.c.b16 %v6762, %v6761
        %v8268 = vpack.c.b16 %v6764, %v6763
        %v8269 = vpack.c.b16 %v6766, %v6765
        %v8270 = vpack.c.b16 %v6768, %v6767
        %v8271 = vpack.c.b16 %v6770, %v6769
        %v8272 = vpack.c.b16 %v6772, %v6771
        %v8273 = vpack.c.b16 %v6774, %v6773
        %v8274 = vpack.c.b16 %v6776, %v6775
        %v8275 = vpack.c.b16 %v6778, %v6777
        %v8276 = vpack.c.b16 %v6780, %v6779
        %v8277 = vpack.c.b16 %v6782, %v6781
        %v8278 = vpack.c.b16 %v6784, %v6783
        %v8279 = vpack.c.b16 %v6786, %v6785
        %v8280 = vpack.c.b16 %v6788, %v6787
        %v8281 = vpack.c.b16 %v6790, %v6789
        %v8282 = vpack.c.b16 %v6792, %v6791
        %v8283 = vpack.c.b16 %v6794, %v6793
        %v8284 = vpack.c.b16 %v6796, %v6795
        %v8285 = vpack.c.b16 %v6798, %v6797
        %v8286 = vpack.c.b16 %v6800, %v6799
        %v8287 = vpack.c.b16 %v6802, %v6801
        %v8288 = vpack.c.b16 %v6804, %v6803
        %v8289 = vpack.c.b16 %v6806, %v6805
        %v8290 = vpack.c.b16 %v6808, %v6807
        %v8291 = vpack.c.b16 %v6810, %v6809
        %v8292 = vpack.c.b16 %v6812, %v6811
        %v8293 = vpack.c.b16 %v6814, %v6813
        %v8294 = vpack.c.b16 %v6816, %v6815
        %v8295 = vpack.c.b16 %v6818, %v6817
        %v8296 = vpack.c.b16 %v6820, %v6819
        %v8297 = vpack.c.b16 %v6822, %v6821
        %v8298 = vpack.c.b16 %v6824, %v6823
        %v8299 = vpack.c.b16 %v6826, %v6825
        %v8300 = vpack.c.b16 %v6828, %v6827
        %v8301 = vpack.c.b16 %v6830, %v6829
        %v8302 = vpack.c.b16 %v6832, %v6831
        %v8303 = vpack.c.b16 %v6834, %v6833
        %v8304 = vpack.c.b16 %v6836, %v6835
        %v8305 = vpack.c.b16 %v6838, %v6837
        %v8306 = vpack.c.b16 %v6840, %v6839
        %v8307 = vpack.c.b16 %v6842, %v6841
        %v8308 = vpack.c.b16 %v6844, %v6843
        %v8309 = vpack.c.b16 %v6846, %v6845
        %v8310 = vpack.c.b16 %v6848, %v6847
        %v8311 = vpack.c.b16 %v6850, %v6849
        %v8312 = vpack.c.b16 %v6852, %v6851
        %v8313 = vpack.c.b16 %v6854, %v6853
        %v8314 = vpack.c.b16 %v6856, %v6855
        %v8315 = vpack.c.b16 %v6858, %v6857
        %v8316 = vpack.c.b16 %v6860, %v6859
        %v8317 = vpack.c.b16 %v6862, %v6861
        %v8318 = vpack.c.b16 %v6864, %v6863
        %v8319 = vpack.c.b16 %v6866, %v6865
        %v8320 = vpack.c.b16 %v6868, %v6867
        %v8321 = vpack.c.b16 %v6870, %v6869
        %v8322 = vpack.c.b16 %v6872, %v6871
        %v8323 = vpack.c.b16 %v6874, %v6873
        %v8324 = vpack.c.b16 %v6876, %v6875
        %v8325 = vpack.c.b16 %v6878, %v6877
        %v8326 = vpack.c.b16 %v6880, %v6879
        %v8327 = vpack.c.b16 %v6882, %v6881
        %v8328 = vpack.c.b16 %v6884, %v6883
        %v8329 = vpack.c.b16 %v6886, %v6885
        %v8330 = vpack.c.b16 %v6888, %v6887
        %v8331 = vpack.c.b16 %v6890, %v6889
        %v8332 = vpack.c.b16 %v6892, %v6891
        %v8333 = vpack.c.b16 %v6894, %v6893
        %v8334 = vpack.c.b16 %v6896, %v6895
        %v8335 = vpack.c.b16 %v6898, %v6897
        %v8336 = vpack.c.b16 %v6900, %v6899
        %v8337 = vpack.c.b16 %v6902, %v6901
        %v8338 = vpack.c.b16 %v6904, %v6903
        %v8339 = vpack.c.b16 %v6906, %v6905
        %v8340 = vpack.c.b16 %v6908, %v6907
        %v8341 = vpack.c.b16 %v6910, %v6909
        %v8342 = vpack.c.b16 %v6912, %v6911
        %v8343 = vpack.c.b16 %v6914, %v6913
        %v8344 = vpack.c.b16 %v6916, %v6915
        %v8345 = vpack.c.b16 %v6918, %v6917
        %v8346 = vpack.c.b16 %v6920, %v6919
        %v8347 = vpack.c.b16 %v6922, %v6921
        %v8348 = vpack.c.b16 %v6924, %v6923
        %v8349 = vpack.c.b16 %v6926, %v6925
        %v8350 = vpack.c.b16 %v6928, %v6927
        %v8351 = vpack.c.b16 %v6930, %v6929
        %v8352 = vpack.c.b16 %v6932, %v6931
        %v8353 = vpack.c.b16 %v6934, %v6933
        %v8354 = vpack.c.b16 %v6936, %v6935
        %v8355 = vpack.c.b16 %v6938, %v6937
        %v8356 = vpack.c.b16 %v6940, %v6939
        %v8357 = vpack.c.b16 %v6942, %v6941
        %v8358 = vpack.c.b16 %v6944, %v6943
        %v8359 = vpack.c.b16 %v6946, %v6945
        %v8360 = vpack.c.b16 %v6948, %v6947
        %v8361 = vpack.c.b16 %v6950, %v6949
        %v8362 = vpack.c.b16 %v6952, %v6951
        %v8363 = vpack.c.b16 %v6954, %v6953
        %v8364 = vpack.c.b16 %v6956, %v6955
        %v8365 = vpack.c.b16 %v6958, %v6957
        %v8366 = vpack.c.b16 %v6960, %v6959
        %v8367 = vpack.c.b16 %v6962, %v6961
        %v8368 = vpack.c.b16 %v6964, %v6963
        %v8369 = vpack.c.b16 %v6966, %v6965
        %v8370 = vpack.c.b16 %v6968, %v6967
        %v8371 = vpack.c.b16 %v6970, %v6969
        %v8372 = vpack.c.b16 %v6972, %v6971
        %v8373 = vpack.c.b16 %v6974, %v6973
        %v8374 = vpack.c.b16 %v6976, %v6975
        %v8375 = vpack.c.b16 %v6978, %v6977
        %v8376 = vpack.c.b16 %v6980, %v6979
        %v8377 = vpack.c.b16 %v6982, %v6981
        %v8378 = vpack.c.b16 %v6984, %v6983
        %v8379 = vpack.c.b16 %v6986, %v6985
        %v8380 = vpack.c.b16 %v6988, %v6987
        %v8381 = vpack.c.b16 %v6990, %v6989
        %v8382 = vpack.c.b16 %v6992, %v6991
        %v8383 = vpack.c.b16 %v6994, %v6993
        %v8384 = vpack.c.b16 %v6996, %v6995
        %v8385 = vpack.c.b16 %v6998, %v6997
        %v8386 = vpack.c.b16 %v7000, %v6999
        %v8387 = vpack.c.b16 %v7002, %v7001
        %v8388 = vpack.c.b16 %v7004, %v7003
        %v8389 = vpack.c.b16 %v7006, %v7005
        %v8390 = vpack.c.b16 %v7008, %v7007
        %v8391 = vpack.c.b16 %v7010, %v7009
        %v8392 = vpack.c.b16 %v7012, %v7011
        %v8393 = vpack.c.b16 %v7014, %v7013
        %v8394 = vpack.c.b16 %v7016, %v7015
        %v8395 = vpack.c.b16 %v7018, %v7017
        %v8396 = vpack.c.b16 %v7020, %v7019
        %v8397 = vpack.c.b16 %v7022, %v7021
        %v8398 = vpack.c.b16 %v7024, %v7023
        %v8399 = vpack.c.b16 %v7026, %v7025
        %v8400 = vpack.c.b16 %v7028, %v7027
        %v8401 = vpack.c.b16 %v7030, %v7029
        %v8402 = vpack.c.b16 %v7032, %v7031
        %v8403 = vpack.c.b16 %v7034, %v7033
        %v8404 = vpack.c.b16 %v7036, %v7035
        %v8405 = vpack.c.b16 %v7038, %v7037
        %v8406 = vpack.c.b16 %v7040, %v7039
        %v8407 = vpack.c.b16 %v7042, %v7041
        %v8408 = vpack.c.b16 %v7044, %v7043
        %v8409 = vpack.c.b16 %v7046, %v7045
        %v8410 = vpack.c.b16 %v7048, %v7047
        %v8411 = vpack.c.b16 %v7050, %v7049
        %v8412 = vpack.c.b16 %v7052, %v7051
        %v8413 = vpack.c.b16 %v7054, %v7053
        %v8414 = vpack.c.b16 %v7056, %v7055
        %v8415 = vpack.c.b16 %v7058, %v7057
        %v8416 = vpack.c.b16 %v7060, %v7059
        %v8417 = vpack.c.b16 %v7062, %v7061
        %v8418 = vpack.c.b16 %v7064, %v7063
        %v8419 = vpack.c.b16 %v7066, %v7065
        %v8420 = vpack.c.b16 %v7068, %v7067
        %v8421 = vpack.c.b16 %v7070, %v7069
        %v8422 = vpack.c.b16 %v7072, %v7071
        %v8423 = vpack.c.b16 %v7074, %v7073
        %v8424 = vpack.c.b16 %v7076, %v7075
        %v8425 = vpack.c.b16 %v7078, %v7077
        %v8426 = vpack.c.b16 %v7080, %v7079
        %v8427 = vpack.c.b16 %v7082, %v7081
        %v8428 = vpack.c.b16 %v7084, %v7083
        %v8429 = vpack.c.b16 %v7086, %v7085
        %v8430 = vpack.c.b16 %v7088, %v7087
        %v8431 = vpack.c.b16 %v7090, %v7089
        %v8432 = vpack.c.b16 %v7092, %v7091
        %v8433 = vpack.c.b16 %v7094, %v7093
        %v8434 = vpack.c.b16 %v7096, %v7095
        %v8435 = vpack.c.b16 %v7098, %v7097
        %v8436 = vpack.c.b16 %v7100, %v7099
        %v8437 = vpack.c.b16 %v7102, %v7101
        %v8438 = vpack.c.b16 %v7104, %v7103
        %v8439 = vpack.c.b16 %v7106, %v7105
        %v8440 = vpack.c.b16 %v7108, %v7107
        %v8441 = vpack.c.b16 %v7110, %v7109
        %v8442 = vpack.c.b16 %v7112, %v7111
        %v8443 = vpack.c.b16 %v7114, %v7113
        %v8444 = vpack.c.b16 %v7116, %v7115
        %v8445 = vpack.c.b16 %v7118, %v7117
        %v8446 = vpack.c.b16 %v7120, %v7119
        %v8447 = vpack.c.b16 %v7122, %v7121
        %v8448 = vpack.c.b16 %v7124, %v7123
        %v8449 = vpack.c.b16 %v7126, %v7125
        %v8450 = vpack.c.b16 %v7128, %v7127
        %v8451 = vpack.c.b16 %v7130, %v7129
        %v8452 = vpack.c.b16 %v7132, %v7131
        %v8453 = vpack.c.b16 %v7134, %v7133
        %v8454 = vpack.c.b16 %v7136, %v7135
        %v8455 = vpack.c.b16 %v7138, %v7137
        %v8456 = vpack.c.b16 %v7140, %v7139
        %v8457 = vpack.c.b16 %v7142, %v7141
        %v8458 = vpack.c.b16 %v7144, %v7143
        %v8459 = vpack.c.b16 %v7146, %v7145
        %v8460 = vpack.c.b16 %v7148, %v7147
        %v8461 = vpack.c.b16 %v7150, %v7149
        %v8462 = vpack.c.b16 %v7152, %v7151
        %v8463 = vpack.c.b16 %v7154, %v7153
        %v8464 = vpack.c.b16 %v7156, %v7155
        %v8465 = vpack.c.b16 %v7158, %v7157
        %v8466 = vpack.c.b16 %v7160, %v7159
        %v8467 = vpack.c.b16 %v7162, %v7161
        %v8468 = vpack.c.b16 %v7164, %v7163
        %v8469 = vpack.c.b16 %v7166, %v7165
        %v8470 = vpack.c.b16 %v7168, %v7167
        %v8471 = vpack.c.b16 %v7170, %v7169
        %v8472 = vpack.c.b16 %v7172, %v7171
        %v8473 = vpack.c.b16 %v7174, %v7173
        %v8474 = vpack.c.b16 %v7176, %v7175
        %v8475 = vpack.c.b16 %v7178, %v7177
        %v8476 = vpack.c.b16 %v7180, %v7179
        %v8477 = vpack.c.b16 %v7182, %v7181
        %v8478 = vpack.c.b16 %v7184, %v7183
        %v8479 = vpack.c.b16 %v7186, %v7185
        %v8480 = vpack.c.b16 %v7188, %v7187
        %v8481 = vpack.c.b16 %v7190, %v7189
        %v8482 = vpack.c.b16 %v7192, %v7191
        %v8483 = vpack.c.b16 %v7194, %v7193
        %v8484 = vpack.c.b16 %v7196, %v7195
        %v8485 = vpack.c.b16 %v7198, %v7197
        %v8486 = vpack.c.b16 %v7200, %v7199
        %v8487 = vpack.c.b16 %v7202, %v7201
        %v8488 = vpack.c.b16 %v7204, %v7203
        %v8489 = vpack.c.b16 %v7206, %v7205
        %v8490 = vpack.c.b16 %v7208, %v7207
        %v8491 = vpack.c.b16 %v7210, %v7209
        %v8492 = vpack.c.b16 %v7212, %v7211
        %v8493 = vpack.c.b16 %v7214, %v7213
        %v8494 = vpack.c.b16 %v7216, %v7215
        %v8495 = vpack.c.b16 %v7218, %v7217
        %v8496 = vpack.c.b16 %v7220, %v7219
        %v8497 = vpack.c.b16 %v7222, %v7221
        %v8498 = vpack.c.b16 %v7224, %v7223
        %v8499 = vpack.c.b16 %v7226, %v7225
        %v8500 = vpack.c.b16 %v7228, %v7227
        %v8501 = vpack.c.b16 %v7230, %v7229
        %v8502 = vpack.c.b16 %v7232, %v7231
        %v8503 = vpack.c.b16 %v7234, %v7233
        %v8504 = vpack.c.b16 %v7236, %v7235
        %v8505 = vpack.c.b16 %v7238, %v7237
        %v8506 = vpack.c.b16 %v7240, %v7239
        %v8507 = vpack.c.b16 %v7242, %v7241
        %v8508 = vpack.c.b16 %v7244, %v7243
        %v8509 = vpack.c.b16 %v7246, %v7245
        %v8510 = vpack.c.b16 %v7248, %v7247
        %v8511 = vpack.c.b16 %v7250, %v7249
        %v8512 = vpack.c.b16 %v7252, %v7251
        %v8513 = vpack.c.b16 %v7254, %v7253
        %v8514 = vpack.c.b16 %v7256, %v7255
        %v8515 = vpack.c.b16 %v7258, %v7257
        %v8516 = vpack.c.b16 %v7260, %v7259
        %v8517 = vpack.c.b16 %v7262, %v7261
        %v8518 = vpack.c.b16 %v7264, %v7263
        %v8519 = vpack.c.b16 %v7266, %v7265
        %v8520 = vpack.c.b16 %v7268, %v7267
        %v8521 = vpack.c.b16 %v7270, %v7269
        %v8522 = vpack.c.b16 %v7272, %v7271
        %v8523 = vpack.c.b16 %v7274, %v7273
        %v8524 = vpack.c.b16 %v7276, %v7275
        %v8525 = vpack.c.b16 %v7278, %v7277
        %v8526 = vpack.c.b16 %v7280, %v7279
        %v8527 = vpack.c.b16 %v7282, %v7281
        %v8528 = vpack.c.b16 %v7284, %v7283
        %v8529 = vpack.c.b16 %v7286, %v7285
        %v8530 = vpack.c.b16 %v7288, %v7287
        %v8531 = vpack.c.b16 %v7290, %v7289
        %v8532 = vpack.c.b16 %v7292, %v7291
        %v8533 = vpack.c.b16 %v7294, %v7293
        %v8534 = vpack.c.b16 %v7296, %v7295
        %v8535 = vpack.c.b16 %v7298, %v7297
        %v8536 = vpack.c.b16 %v7300, %v7299
        %v8537 = vpack.c.b16 %v7302, %v7301
        %v8538 = vpack.c.b16 %v7304, %v7303
        %v8539 = vpack.c.b16 %v7306, %v7305
        %v8540 = vpack.c.b16 %v7308, %v7307
        %v8541 = vpack.c.b16 %v7310, %v7309
        %v8542 = vpack.c.b16 %v7312, %v7311
        %v8543 = vpack.c.b16 %v7314, %v7313
        %v8544 = vpack.c.b16 %v7316, %v7315
        %v8545 = vpack.c.b16 %v7318, %v7317
        %v8546 = vpack.c.b16 %v7320, %v7319
        %v8547 = vpack.c.b16 %v7322, %v7321
        %v8548 = vpack.c.b16 %v7324, %v7323
        %v8549 = vpack.c.b16 %v7326, %v7325
        %v8550 = vpack.c.b16 %v7328, %v7327
        %v8551 = vpack.c.b16 %v7330, %v7329
        %v8552 = vpack.c.b16 %v7332, %v7331
        %v8553 = vpack.c.b16 %v7334, %v7333
        %v8554 = vpack.c.b16 %v7336, %v7335
        %v8555 = vpack.c.b16 %v7338, %v7337
        %v8556 = vpack.c.b16 %v7340, %v7339
        %v8557 = vpack.c.b16 %v7342, %v7341
        %v8558 = vpack.c.b16 %v7344, %v7343
        %v8559 = vpack.c.b16 %v7346, %v7345
        %v8560 = vpack.c.b16 %v7348, %v7347
        %v8561 = vpack.c.b16 %v7350, %v7349
        %v8562 = vpack.c.b16 %v7352, %v7351
        %v8563 = vpack.c.b16 %v7354, %v7353
        %v8564 = vpack.c.b16 %v7356, %v7355
        %v8565 = vpack.c.b16 %v7358, %v7357
        %v8566 = vpack.c.b16 %v7360, %v7359
        %v8567 = vpack.c.b16 %v7362, %v7361
        %v8568 = vpack.c.b16 %v7364, %v7363
        %v8569 = vpack.c.b16 %v7366, %v7365
        %v8570 = vpack.c.b16 %v7368, %v7367
        %v8571 = vpack.c.b16 %v7370, %v7369
        %v8572 = vpack.c.b16 %v7372, %v7371
        %v8573 = vpack.c.b16 %v7374, %v7373
        %v8574 = vpack.c.b16 %v7376, %v7375
        %v8575 = vpack.c.b16 %v7378, %v7377
        %v8576 = vpack.c.b16 %v7380, %v7379
        %v8577 = vpack.c.b16 %v7382, %v7381
        %v8578 = vpack.c.b16 %v7384, %v7383
        %v8579 = vpack.c.b16 %v7386, %v7385
        %v8580 = vpack.c.b16 %v7388, %v7387
        %v8581 = vpack.c.b16 %v7390, %v7389
        %v8582 = vpack.c.b16 %v7392, %v7391
        %v8583 = vpack.c.b16 %v7394, %v7393
        %v8584 = vpack.c.b16 %v7396, %v7395
        %v8585 = vpack.c.b16 %v7398, %v7397
        %v8586 = vpack.c.b16 %v7400, %v7399
        %v8587 = vpack.c.b16 %v7402, %v7401
        %v8588 = vpack.c.b16 %v7404, %v7403
        %v8589 = vpack.c.b16 %v7406, %v7405
        %v8590 = vpack.c.b16 %v7408, %v7407
        %v8591 = vpack.c.b16 %v7410, %v7409
        %v8592 = vpack.c.b16 %v7412, %v7411
        %v8593 = vpack.c.b16 %v7414, %v7413
        %v8594 = vpack.c.b16 %v7416, %v7415
        %v8595 = vpack.c.b16 %v7418, %v7417
        %v8596 = vpack.c.b16 %v7420, %v7419
        %v8597 = vpack.c.b16 %v7422, %v7421
        %v8598 = vpack.c.b16 %v7424, %v7423
        %v8599 = vpack.c.b16 %v7426, %v7425
        %v8600 = vpack.c.b16 %v7428, %v7427
        %v8601 = vpack.c.b16 %v7430, %v7429
        %v8602 = vpack.c.b16 %v7432, %v7431
        %v8603 = vpack.c.b16 %v7434, %v7433
        %v8604 = vpack.c.b16 %v7436, %v7435
        %v8605 = vpack.c.b16 %v7438, %v7437
        %v8606 = vpack.c.b16 %v7440, %v7439
        %v8607 = vpack.c.b16 %v7442, %v7441
        %v8608 = vpack.c.b16 %v7444, %v7443
        %v8609 = vpack.c.b16 %v7446, %v7445
        %v8610 = vpack.c.b16 %v7448, %v7447
        %v8611 = vpack.c.b16 %v7450, %v7449
        %v8612 = vpack.c.b16 %v7452, %v7451
        %v8613 = vpack.c.b16 %v7454, %v7453
        %v8614 = vpack.c.b16 %v7456, %v7455
        %v8615 = vpack.c.b16 %v7458, %v7457
        %v8616 = vpack.c.b16 %v7460, %v7459
        %v8617 = vpack.c.b16 %v7462, %v7461
        %v8618 = vpack.c.b16 %v7464, %v7463
        %v8619 = vpack.c.b16 %v7466, %v7465
        %v8620 = vpack.c.b16 %v7468, %v7467
        %v8621 = vpack.c.b16 %v7470, %v7469
        %v8622 = vpack.c.b16 %v7472, %v7471
        %v8623 = vpack.c.b16 %v7474, %v7473
        %v8624 = vpack.c.b16 %v7476, %v7475
        %v8625 = vpack.c.b16 %v7478, %v7477
        %v8626 = vpack.c.b16 %v7480, %v7479
        %v8627 = vpack.c.b16 %v7482, %v7481
        %v8628 = vpack.c.b16 %v7484, %v7483
        %v8629 = vpack.c.b16 %v7486, %v7485
        %v8630 = vpack.c.b16 %v7488, %v7487
        %v8631 = vpack.c.b16 %v7490, %v7489
        %v8632 = vpack.c.b16 %v7492, %v7491
        %v8633 = vpack.c.b16 %v7494, %v7493
        %v8634 = vpack.c.b16 %v7496, %v7495
        %v8635 = vpack.c.b16 %v7498, %v7497
        %v8636 = vpack.c.b16 %v7500, %v7499
        %v8637 = vpack.c.b16 %v7502, %v7501
        %v8638 = vpack.c.b16 %v7504, %v7503
        %v8639 = vpack.c.b16 %v7506, %v7505
        %v8640 = vpack.c.b16 %v7508, %v7507
        %v8641 = vpack.c.b16 %v7510, %v7509
        %v8642 = vpack.c.b16 %v7512, %v7511
        %v8643 = vpack.c.b16 %v7514, %v7513
        %v8644 = vpack.c.b16 %v7516, %v7515
        %v8645 = vpack.c.b16 %v7518, %v7517
        %v8646 = vpack.c.b16 %v7520, %v7519
        %v8647 = vpack.c.b16 %v7522, %v7521
        %v8648 = vpack.c.b16 %v7524, %v7523
        %v8649 = vpack.c.b16 %v7526, %v7525
        %v8650 = vpack.c.b16 %v7528, %v7527
        %v8651 = vpack.c.b16 %v7530, %v7529
        %v8652 = vpack.c.b16 %v7532, %v7531
        %v8653 = vpack.c.b16 %v7534, %v7533
        %v8654 = vpack.c.b16 %v7536, %v7535
        %v8655 = vpack.c.b16 %v7538, %v7537
        %v8656 = vpack.c.b16 %v7540, %v7539
        %v8657 = vpack.c.b16 %v7542, %v7541
        %v8658 = vpack.c.b16 %v7544, %v7543
        %v8659 = vpack.c.b16 %v7546, %v7545
        %v8660 = vpack.c.b16 %v7548, %v7547
        %v8661 = vpack.c.b16 %v7550, %v7549
        %v8662 = vpack.c.b16 %v7552, %v7551
        %v8663 = vpack.c.b16 %v7554, %v7553
        %v8664 = vpack.c.b16 %v7556, %v7555
        %v8665 = vpack.c.b16 %v7558, %v7557
        %v8666 = vpack.c.b16 %v7560, %v7559
        %v8667 = vpack.c.b16 %v7562, %v7561
        %v8668 = vpack.c.b16 %v7564, %v7563
        %v8669 = vpack.c.b16 %v7566, %v7565
        %v8670 = vpack.c.b16 %v7568, %v7567
        %v8671 = vpack.c.b16 %v7570, %v7569
        %v8672 = vpack.c.b16 %v7572, %v7571
        %v8673 = vpack.c.b16 %v7574, %v7573
        %v8674 = vpack.c.b16 %v7576, %v7575
        %v8675 = vpack.c.b16 %v7578, %v7577
        %v8676 = vpack.c.b16 %v7580, %v7579
        %v8677 = vpack.c.b16 %v7582, %v7581
        %v8678 = vpack.c.b16 %v7584, %v7583
        %v8679 = vpack.c.b16 %v7586, %v7585
        %v8680 = vpack.c.b16 %v7588, %v7587
        %v8681 = vpack.c.b16 %v7590, %v7589
        %v8682 = vpack.c.b16 %v7592, %v7591
        %v8683 = vpack.c.b16 %v7594, %v7593
        %v8684 = vpack.c.b16 %v7596, %v7595
        %v8685 = vpack.c.b16 %v7598, %v7597
        %v8686 = vpack.c.b16 %v7600, %v7599
        %v8687 = vpack.c.b16 %v7602, %v7601
        %v8688 = vpack.c.b16 %v7604, %v7603
        %v8689 = vpack.c.b16 %v7606, %v7605
        %v8690 = vpack.c.b16 %v7608, %v7607
        %v8691 = vpack.c.b16 %v7610, %v7609
        %v8692 = vpack.c.b16 %v7612, %v7611
        %v8693 = vpack.c.b16 %v7614, %v7613
        %v8694 = vpack.c.b16 %v7616, %v7615
        %v8695 = vpack.c.b16 %v7618, %v7617
        %v8696 = vpack.c.b16 %v7620, %v7619
        %v8697 = vpack.c.b16 %v7622, %v7621
        %v8698 = vpack.c.b16 %v7624, %v7623
        %v8699 = vpack.c.b16 %v7626, %v7625
        %v8700 = vpack.c.b16 %v7628, %v7627
        %v8701 = vpack.c.b16 %v7630, %v7629
        %v8702 = vpack.c.b16 %v7632, %v7631
        %v8703 = vpack.c.b16 %v7634, %v7633
        %v8704 = vpack.c.b16 %v7636, %v7635
        %v8705 = vpack.c.b16 %v7638, %v7637
        %v8706 = vpack.c.b16 %v7640, %v7639
        %v8707 = vpack.c.b16 %v7642, %v7641
        %v8708 = vpack.c.b16 %v7644, %v7643
        %v8709 = vpack.c.b16 %v7646, %v7645
        %v8710 = vpack.c.b16 %v7648, %v7647
        %v8711 = vpack.c.b16 %v7650, %v7649
        %v8712 = vpack.c.b16 %v7652, %v7651
        %v8713 = vpack.c.b16 %v7654, %v7653
        %v8714 = vpack.c.b16 %v7656, %v7655
        %v8715 = vpack.c.b16 %v7658, %v7657
        %v8716 = vpack.c.b16 %v7660, %v7659
        %v8717 = vpack.c.b16 %v7662, %v7661
        %v8718 = vpack.c.b16 %v7664, %v7663
        %v8719 = vpack.c.b16 %v7666, %v7665
        %v8720 = vpack.c.b16 %v7668, %v7667
        %v8721 = vpack.c.b16 %v7670, %v7669
        %v8722 = vpack.c.b16 %v7672, %v7671
        %v8723 = vpack.c.b16 %v7674, %v7673
        %v8724 = vpack.c.b16 %v7676, %v7675
        %v8725 = vpack.c.b16 %v7678, %v7677
        %v8726 = vpack.c.b16 %v7680, %v7679
        %v8727 = vpack.c.b16 %v7682, %v7681
        %v8728 = vpack.c.b16 %v7684, %v7683
        %v8729 = vpack.c.b16 %v7686, %v7685
        %v8730 = vpack.c.b16 %v7688, %v7687
        %v8731 = vpack.c.b16 %v7690, %v7689
        %v8732 = vpack.c.b16 %v7692, %v7691
        %v8733 = vpack.c.b16 %v7694, %v7693
        %v8734 = vpack.c.b16 %v7696, %v7695
        %v8735 = vpack.c.b16 %v7698, %v7697
        %v8736 = vpack.c.b16 %v7700, %v7699
        %v8737 = vpack.c.b16 %v7702, %v7701
        %v8738 = vpack.c.b16 %v7704, %v7703
        %v8739 = vpack.c.b16 %v7706, %v7705
        %v8740 = vpack.c.b16 %v7708, %v7707
        %v8741 = vpack.c.b16 %v7710, %v7709
        %v8742 = vpack.c.b16 %v7712, %v7711
        %v8743 = vpack.c.b16 %v7714, %v7713
        %v8744 = vpack.c.b16 %v7716, %v7715
        %v8745 = vpack.c.b16 %v7718, %v7717
        %v8746 = vpack.c.b16 %v7720, %v7719
        %v8747 = vpack.c.b16 %v7722, %v7721
        %v8748 = vpack.c.b16 %v7724, %v7723
        %v8749 = vpack.c.b16 %v7726, %v7725
        %v8750 = vpack.c.b16 %v7728, %v7727
        %v8751 = vpack.c.b16 %v7730, %v7729
        %v8752 = vpack.c.b16 %v7732, %v7731
        %v8753 = vpack.c.b16 %v7734, %v7733
        %v8754 = vpack.c.b16 %v7736, %v7735
        %v8755 = vpack.c.b16 %v7738, %v7737
        %v8756 = vpack.c.b16 %v7740, %v7739
        %v8757 = vpack.c.b16 %v7742, %v7741
        %v8758 = vpack.c.b16 %v7744, %v7743
        %v8759 = vpack.c.b16 %v7746, %v7745
        %v8760 = vpack.c.b16 %v7748, %v7747
        %v8761 = vpack.c.b16 %v7750, %v7749
        %v8762 = vpack.c.b16 %v7752, %v7751
        %v8763 = vpack.c.b16 %v7754, %v7753
        %v8764 = vpack.c.b16 %v7756, %v7755
        %v8765 = vpack.c.b16 %v7758, %v7757
        %v8766 = vpack.c.b16 %v7760, %v7759
        %v8767 = vpack.c.b16 %v7762, %v7761
        %v8768 = vpack.c.b16 %v7764, %v7763
        %v8769 = vpack.c.b16 %v7766, %v7765
        %v8770 = vpack.c.b16 %v7768, %v7767
        %v8771 = vpack.c.b16 %v7770, %v7769
        %v8772 = vpack.c.b16 %v7772, %v7771
        %v8773 = vpack.c.b16 %v7774, %v7773
        %v8774 = vpack.c.b16 %v7776, %v7775
        %v8775 = vpack.c.b16 %v7778, %v7777
        %v8776 = vpack.c.b16 %v7780, %v7779
        %v8777 = vpack.c.b16 %v7782, %v7781
        %v8778 = vpack.c.b16 %v7784, %v7783
        %v8779 = vpack.c.b16 %v7786, %v7785
        %v8780 = vpack.c.b16 %v7788, %v7787
        %v8781 = vpack.c.b16 %v7790, %v7789
        %v8782 = vpack.c.b16 %v7792, %v7791
        %v8783 = vpack.c.b16 %v7794, %v7793
        %v8784 = vpack.c.b16 %v7796, %v7795
        %v8785 = vpack.c.b16 %v7798, %v7797
        %v8786 = vpack.c.b16 %v7800, %v7799
        %v8787 = vpack.c.b16 %v7802, %v7801
        %v8788 = vpack.c.b16 %v7804, %v7803
        %v8789 = vpack.c.b16 %v7806, %v7805
        %v8790 = vpack.c.b16 %v7808, %v7807
        %v8791 = vpack.c.b16 %v7810, %v7809
        %v8792 = vpack.c.b16 %v7812, %v7811
        %v8793 = vpack.c.b16 %v7814, %v7813
        %v8794 = vpack.c.b16 %v7816, %v7815
        %v8795 = vpack.c.b16 %v7818, %v7817
        %v8796 = vpack.c.b16 %v7820, %v7819
        %v8797 = vpack.c.b16 %v7822, %v7821
        %v8798 = vpack.c.b16 %v7824, %v7823
        %v8799 = vpack.c.b16 %v7826, %v7825
        %v8800 = vpack.c.b16 %v7828, %v7827
        %v8801 = vpack.c.b16 %v7830, %v7829
        %v8802 = vpack.c.b16 %v7832, %v7831
        %v8803 = vpack.c.b16 %v7834, %v7833
        %v8804 = vpack.c.b16 %v7836, %v7835
        %v8805 = vpack.c.b16 %v7838, %v7837
        %v8806 = vpack.c.b16 %v7840, %v7839
        %v8807 = vpack.c.b16 %v7842, %v7841
        %v8808 = vpack.c.b16 %v7844, %v7843
        %v8809 = vpack.c.b16 %v7846, %v7845
        %v8810 = vpack.c.b16 %v7848, %v7847
        %v8811 = vpack.c.b16 %v7850, %v7849
        %v8812 = vpack.c.b16 %v7852, %v7851
        %v8813 = vpack.c.b16 %v7854, %v7853
        %v8814 = vpack.c.b16 %v7856, %v7855
        %v8815 = vpack.c.b16 %v7858, %v7857
        %v8816 = vpack.c.b16 %v7860, %v7859
        %v8817 = vpack.c.b16 %v7862, %v7861
        %v8818 = vpack.c.b16 %v7864, %v7863
        %v8819 = vpack.c.b16 %v7866, %v7865
        %v8820 = vpack.c.b16 %v7868, %v7867
        %v8821 = vpack.c.b16 %v7870, %v7869
        %v8822 = vpack.c.b16 %v7872, %v7871
        %v8823 = vpack.c.b16 %v7874, %v7873
        %v8824 = vpack.c.b16 %v7876, %v7875
        %v8825 = vpack.c.b16 %v7878, %v7877
        %v8826 = vpack.c.b16 %v7880, %v7879
        %v8827 = vpack.c.b16 %v7882, %v7881
        %v8828 = vpack.c.b16 %v7884, %v7883
        %v8829 = vpack.c.b16 %v7886, %v7885
        %v8830 = vpack.c.b16 %v7888, %v7887
        %v8831 = vpack.c.b16 %v7890, %v7889
        %v8832 = vpack.c.b16 %v7892, %v7891
        %v8833 = vpack.c.b16 %v7894, %v7893
        %v8834 = vpack.c.b16 %v7896, %v7895
        %v8835 = vpack.c.b16 %v7898, %v7897
        %v8836 = vpack.c.b16 %v7900, %v7899
        %v8837 = vpack.c.b16 %v7902, %v7901
        %v8838 = vpack.c.b16 %v7904, %v7903
        %v8839 = vpack.c.b16 %v7906, %v7905
        %v8840 = vpack.c.b16 %v7908, %v7907
        %v8841 = vpack.c.b16 %v7910, %v7909
        %v8842 = vpack.c.b16 %v7912, %v7911
        %v8843 = vpack.c.b16 %v7914, %v7913
        %v8844 = vpack.c.b16 %v7916, %v7915
        %v8845 = vpack.c.b16 %v7918, %v7917
        %v8846 = vpack.c.b16 %v7920, %v7919
        %v8847 = vpack.c.b16 %v7922, %v7921
        %v8848 = vpack.c.b16 %v7924, %v7923
        %v8849 = vpack.c.b16 %v7926, %v7925
        %v8850 = vpack.c.b16 %v7928, %v7927
        %v8851 = vpack.c.b16 %v7930, %v7929
        %v8852 = vpack.c.b16 %v7932, %v7931
        %v8853 = vpack.c.b16 %v7934, %v7933
        %v8854 = vpack.c.b16 %v7936, %v7935
        %v8855 = vpack.c.b16 %v7938, %v7937
        %v8856 = vpack.c.b16 %v7940, %v7939
        %v8857 = vpack.c.b16 %v7942, %v7941
        %v8858 = vpack.c.b16 %v7944, %v7943
        %v8859 = vpack.c.b16 %v7946, %v7945
        %v8860 = vpack.c.b16 %v7948, %v7947
        %v8861 = vpack.c.b16 %v7950, %v7949
        %v8862 = vpack.c.b16 %v7952, %v7951
        %v8863 = vpack.c.b16 %v7954, %v7953
        %v8864 = vpack.c.b16 %v7956, %v7955
        %v8865 = vpack.c.b16 %v7958, %v7957
        %v8866 = vpack.c.b16 %v7960, %v7959
        %v8867 = vpack.c.b16 %v7962, %v7961
        %v8868 = vpack.c.b16 %v7964, %v7963
        %v8869 = vpack.c.b16 %v7966, %v7965
        %v8870 = vpack.c.b16 %v7968, %v7967
        %v8871 = vpack.c.b16 %v7970, %v7969
        %v8872 = vpack.c.b16 %v7972, %v7971
        %v8873 = vpack.c.b16 %v7974, %v7973
        %v8874 = vpack.c.b16 %v7976, %v7975
        %v8875 = vpack.c.b16 %v7978, %v7977
        %v8876 = vpack.c.b16 %v7980, %v7979
        %v8877 = vpack.c.b16 %v7982, %v7981
        %v8878 = vpack.c.b16 %v7984, %v7983
        %v8879 = vpack.c.b16 %v7986, %v7985
        %v8880 = vpack.c.b16 %v7988, %v7987
        %v8881 = vpack.c.b16 %v7990, %v7989
        %v8882 = vpack.c.b16 %v7992, %v7991
        %v8883 = vpack.c.b16 %v7994, %v7993
        %v8884 = vpack.c.b16 %v7996, %v7995
        %v8885 = vpack.c.b16 %v7998, %v7997
        %v8886 = vpack.c.b16 %v8000, %v7999
        %v8887 = vpack.c.b16 %v8002, %v8001
        %v8888 = vpack.c.b16 %v8004, %v8003
        %v8889 = vpack.c.b16 %v8006, %v8005
        %v8890 = vpack.c.b16 %v8008, %v8007
        %v8891 = vpack.c.b16 %v8010, %v8009
        %v8892 = vpack.c.b16 %v8012, %v8011
        %v8893 = vpack.c.b16 %v8014, %v8013
        %v8894 = vpack.c.b16 %v8016, %v8015
        %v8895 = vpack.c.b16 %v8018, %v8017
        %v8896 = vpack.c.b16 %v8020, %v8019
        %v8897 = vpack.c.b16 %v8022, %v8021
        %v8898 = vpack.c.b16 %v8024, %v8023
        %v8899 = vpack.c.b16 %v8026, %v8025
        %v8900 = vpack.c.b16 %v8028, %v8027
        %v8901 = vpack.c.b16 %v8030, %v8029
        %v8902 = vpack.c.b16 %v8032, %v8031
        %v8903 = vpack.c.b16 %v8034, %v8033
        %v8904 = vpack.c.b16 %v8036, %v8035
        %v8905 = vpack.c.b16 %v8038, %v8037
        %v8906 = vpack.c.b16 %v8040, %v8039
        %v8907 = vpack.c.b16 %v8042, %v8041
        %v8908 = vpack.c.b16 %v8044, %v8043
        %v8909 = vpack.c.b16 %v8046, %v8045
        %v8910 = vpack.c.b16 %v8048, %v8047
        %v8911 = vpack.c.b16 %v8050, %v8049
        %v8912 = vpack.c.b16 %v8052, %v8051
        %v8913 = vpack.c.b16 %v8054, %v8053
        %v8914 = vpack.c.b16 %v8056, %v8055
        %v8915 = vpack.c.b16 %v8058, %v8057
        %v8916 = vpack.c.b16 %v8060, %v8059
        %v8917 = vpack.c.b16 %v8062, %v8061
        %v8918 = vpack.c.b16 %v8064, %v8063
        %v8919 = vpack.c.b16 %v8066, %v8065
        %v8920 = vpack.c.b16 %v8068, %v8067
        %v8921 = vpack.c.b16 %v8070, %v8069
        %v8922 = vpack.c.b16 %v8072, %v8071
        %v8923 = vpack.c.b16 %v8074, %v8073
        %v8924 = vpack.c.b16 %v8076, %v8075
        %v8925 = vpack.c.b16 %v8078, %v8077
        %v8926 = vpack.c.b16 %v8080, %v8079
        %v8927 = vpack.c.b16 %v8082, %v8081
        %v8928 = vpack.c.b16 %v8084, %v8083
        %v8929 = vpack.c.b16 %v8086, %v8085
        %v8930 = vpack.c.b16 %v8088, %v8087
        %v8931 = vpack.c.b16 %v8090, %v8089
        %v8932 = vpack.c.b16 %v8092, %v8091
        %v8933 = vpack.c.b16 %v8094, %v8093
        %v8934 = vpack.c.b16 %v8096, %v8095
        %v8935 = vpack.c.b16 %v8098, %v8097
        %v8936 = vpack.c.b16 %v8100, %v8099
        %v8937 = vpack.c.b16 %v8102, %v8101
        %v8938 = vpack.c.b16 %v8104, %v8103
        %v8939 = vpack.c.b16 %v8106, %v8105
        %v8940 = vpack.c.b16 %v8108, %v8107
        %v8941 = vpack.c.b16 %v8110, %v8109
        %v8942 = vpack.c.b16 %v8112, %v8111
        %v8943 = vpack.c.b16 %v8114, %v8113
        %v8944 = vpack.c.b16 %v8116, %v8115
        %v8945 = vpack.c.b16 %v8118, %v8117
        %v8946 = vpack.c.b16 %v8120, %v8119
        %v8947 = vpack.c.b16 %v8122, %v8121
        %v8948 = vpack.c.b16 %v8124, %v8123
        %v8949 = vpack.c.b16 %v8126, %v8125
        %v8950 = vpack.c.b16 %v8128, %v8127
        %v8951 = vpack.c.b16 %v8130, %v8129
        %v8952 = vpack.c.b16 %v8132, %v8131
        %v8953 = vpack.c.b16 %v8134, %v8133
        %v8954 = vpack.c.b16 %v8136, %v8135
        %v8955 = vpack.c.b16 %v8138, %v8137
        %v8956 = vpack.c.b16 %v8140, %v8139
        %v8957 = vpack.c.b16 %v8142, %v8141
        %v8958 = vpack.c.b16 %v8144, %v8143
        %v8959 = vpack.c.b16 %v8146, %v8145
        %v8960 = vpack.c.b16 %v8148, %v8147
        %v8961 = vpack.c.b16 %v8150, %v8149
        %v8962 = vpack.c.b16 %v8152, %v8151
        %v8963 = vpack.c.b16 %v8154, %v8153
        %v8964 = vpack.c.b16 %v8156, %v8155
        %v8965 = vpack.c.b16 %v8158, %v8157
        %v8966 = vpack.c.b16 %v8160, %v8159
        %v8967 = vpack.c.b16 %v8162, %v8161
        %v8968 = vpack.c.b16 %v8164, %v8163
        %v8969 = vpack.c.b16 %v8166, %v8165
        %v8970 = vpack.c.b16 %v8168, %v8167
        %v8971 = vpack.c.b16 %v8170, %v8169
        %v8972 = vpack.c.b16 %v8172, %v8171
        %v8973 = vpack.c.b16 %v8174, %v8173
        %v8974 = vpack.c.b16 %v8176, %v8175
        %v8975 = vpack.c.b16 %v8178, %v8177
        %v8976 = vpack.c.b16 %v8180, %v8179
        %v8977 = vpack.c.b16 %v8182, %v8181
        %v8978 = vpack.c.b16 %v8184, %v8183
        %v8979 = vpack.c.b16 %v8186, %v8185
        %v8980 = vpack.c.b16 %v8188, %v8187
        %v8981 = vpack.c.b16 %v8190, %v8189
        %v8982 = vpack.c.b16 %v8192, %v8191
        %v8983 = vpack.c.b16 %v8194, %v8193
        %v8984 = vpack.c.b16 %v8196, %v8195
        %v8985 = vpack.c.b16 %v8198, %v8197
        %v8986 = vpack.c.b16 %v8200, %v8199
        %v8987 = vpack.c.b16 %v8202, %v8201
        %v8988 = vpack.c.b16 %v8204, %v8203
        %v8989 = vpack.c.b16 %v8206, %v8205
        %v8990 = vpack.c.b16 %v8208, %v8207
        %v8991 = vpack.c.b16 %v8210, %v8209
        %v8992 = vpack.c.b16 %v8212, %v8211
        %v8993 = vpack.c.b16 %v8214, %v8213
        %v8994 = vpack.c.b16 %v8216, %v8215
        %v8995 = vpack.c.b16 %v8218, %v8217
        %v8996 = vpack.c.b16 %v8220, %v8219
        %v8997 = vpack.c.b16 %v8222, %v8221
        %v8998 = vpack.c.b16 %v8224, %v8223
        %v8999 = vpack.c.b16 %v8226, %v8225
        %v9000 = vpack.c.b16 %v8228, %v8227
        %v9001 = vpack.c.b16 %v8230, %v8229
        %v9002 = vpack.c.b16 %v8232, %v8231
        %v9003 = vpack.c.b16 %v8234, %v8233
        %v9004 = vpack.c.b16 %v8236, %v8235
        %9773 = vmatprep.subr.bf16.mxu0 0
        %9774 = vmatpush1.bf16.msra.mxu0 %v8244
        %9775 = vmatprep.subr.bf16.mxu0 0
        %9776 = vmatpush1.bf16.msra.mxu0 %v8243
        %9777 = vmatprep.subr.bf16.mxu0 0
        %9778 = vmatpush1.bf16.msra.mxu0 %v8242
        %9779 = vmatprep.subr.bf16.mxu0 0
        %9780 = vmatpush1.bf16.msra.mxu0 %v8241
        %9781 = vmatprep.subr.bf16.mxu0 0
        %9782 = vmatpush1.bf16.msra.mxu0 %v8240
        %9783 = vmatprep.subr.bf16.mxu0 0
        %9784 = vmatpush1.bf16.msra.mxu0 %v8239
        %9785 = vmatprep.subr.bf16.mxu0 0
        %9786 = vmatpush1.bf16.msra.mxu0 %v8238
        %9787 = vmatprep.subr.bf16.mxu0 0
        %9788 = vmatpush1.bf16.msra.mxu0 %v8237
        %9789 = vmatprep.subr.bf16.mxu0 0
        %9790 = vmatpush2.bf16.msra.mxu0 %v8252
        %9791 = vmatprep.subr.bf16.mxu0 0
        %9792 = vmatpush2.bf16.msra.mxu0 %v8251
        %9793 = vmatprep.subr.bf16.mxu0 0
        %9794 = vmatpush2.bf16.msra.mxu0 %v8250
        %9795 = vmatprep.subr.bf16.mxu0 0
        %9796 = vmatpush2.bf16.msra.mxu0 %v8249
        %9797 = vmatprep.subr.bf16.mxu0 0
        %9798 = vmatpush2.bf16.msra.mxu0 %v8248
        %9799 = vmatprep.subr.bf16.mxu0 0
        %9800 = vmatpush2.bf16.msra.mxu0 %v8247
        %9801 = vmatprep.subr.bf16.mxu0 0
        %9802 = vmatpush2.bf16.msra.mxu0 %v8246
        %9803 = vmatprep.subr.bf16.mxu0 0
        %9804 = vmatpush2.bf16.msra.mxu0 %v8245
        %9805 = vmatprep.mubr.bf16.mxu0 %v3534
        %9806 = vmatmul.mubr.bf16.gmra.mxu0 %v3533
        %v9807 = vpop.f32.mrf.mxu0
        %v9808 = vadd.f32 0.0, %v9807
        %v9809 = vpop.f32.mrf.mxu0
        %v9810 = vpop.f32.mrf.mxu0
        %v9811 = vpop.f32.mrf.mxu0
        %9812 = vdwg.mxu0
        %9813 = vmatprep.subr.bf16.mxu0 0
        %9814 = vmatpush1.bf16.msra.mxu0 %v8260
        %9815 = vmatprep.subr.bf16.mxu0 0
        %9816 = vmatpush1.bf16.msra.mxu0 %v8259
        %9817 = vmatprep.subr.bf16.mxu0 0
        %9818 = vmatpush1.bf16.msra.mxu0 %v8258
        %9819 = vmatprep.subr.bf16.mxu0 0
        %9820 = vmatpush1.bf16.msra.mxu0 %v8257
        %9821 = vmatprep.subr.bf16.mxu0 0
        %9822 = vmatpush1.bf16.msra.mxu0 %v8256
        %9823 = vmatprep.subr.bf16.mxu0 0
        %9824 = vmatpush1.bf16.msra.mxu0 %v8255
        %9825 = vmatprep.subr.bf16.mxu0 0
        %9826 = vmatpush1.bf16.msra.mxu0 %v8254
        %9827 = vmatprep.subr.bf16.mxu0 0
        %9828 = vmatpush1.bf16.msra.mxu0 %v8253
        %9829 = vmatprep.subr.bf16.mxu0 0
        %9830 = vmatpush2.bf16.msra.mxu0 %v8268
        %9831 = vmatprep.subr.bf16.mxu0 0
        %9832 = vmatpush2.bf16.msra.mxu0 %v8267
        %9833 = vmatprep.subr.bf16.mxu0 0
        %9834 = vmatpush2.bf16.msra.mxu0 %v8266
        %9835 = vmatprep.subr.bf16.mxu0 0
        %9836 = vmatpush2.bf16.msra.mxu0 %v8265
        %9837 = vmatprep.subr.bf16.mxu0 0
        %9838 = vmatpush2.bf16.msra.mxu0 %v8264
        %9839 = vmatprep.subr.bf16.mxu0 0
        %9840 = vmatpush2.bf16.msra.mxu0 %v8263
        %9841 = vmatprep.subr.bf16.mxu0 0
        %9842 = vmatpush2.bf16.msra.mxu0 %v8262
        %9843 = vmatprep.subr.bf16.mxu0 0
        %9844 = vmatpush2.bf16.msra.mxu0 %v8261
        %9845 = vmatprep.mubr.bf16.mxu0 %v3536
        %9846 = vmatmul.mubr.bf16.gmra.mxu0 %v3535
        %v9847 = vpop.f32.mrf.mxu0
        %v9848 = vadd.f32 %v9808, %v9847
        %v9849 = vpop.f32.mrf.mxu0
        %v9850 = vpop.f32.mrf.mxu0
        %v9851 = vpop.f32.mrf.mxu0
        %9852 = vdwg.mxu0
        %9853 = vmatprep.subr.bf16.mxu0 0
        %9854 = vmatpush1.bf16.msra.mxu0 %v8276
        %9855 = vmatprep.subr.bf16.mxu0 0
        %9856 = vmatpush1.bf16.msra.mxu0 %v8275
        %9857 = vmatprep.subr.bf16.mxu0 0
        %9858 = vmatpush1.bf16.msra.mxu0 %v8274
        %9859 = vmatprep.subr.bf16.mxu0 0
        %9860 = vmatpush1.bf16.msra.mxu0 %v8273
        %9861 = vmatprep.subr.bf16.mxu0 0
        %9862 = vmatpush1.bf16.msra.mxu0 %v8272
        %9863 = vmatprep.subr.bf16.mxu0 0
        %9864 = vmatpush1.bf16.msra.mxu0 %v8271
        %9865 = vmatprep.subr.bf16.mxu0 0
        %9866 = vmatpush1.bf16.msra.mxu0 %v8270
        %9867 = vmatprep.subr.bf16.mxu0 0
        %9868 = vmatpush1.bf16.msra.mxu0 %v8269
        %9869 = vmatprep.subr.bf16.mxu0 0
        %9870 = vmatpush2.bf16.msra.mxu0 %v8284
        %9871 = vmatprep.subr.bf16.mxu0 0
        %9872 = vmatpush2.bf16.msra.mxu0 %v8283
        %9873 = vmatprep.subr.bf16.mxu0 0
        %9874 = vmatpush2.bf16.msra.mxu0 %v8282
        %9875 = vmatprep.subr.bf16.mxu0 0
        %9876 = vmatpush2.bf16.msra.mxu0 %v8281
        %9877 = vmatprep.subr.bf16.mxu0 0
        %9878 = vmatpush2.bf16.msra.mxu0 %v8280
        %9879 = vmatprep.subr.bf16.mxu0 0
        %9880 = vmatpush2.bf16.msra.mxu0 %v8279
        %9881 = vmatprep.subr.bf16.mxu0 0
        %9882 = vmatpush2.bf16.msra.mxu0 %v8278
        %9883 = vmatprep.subr.bf16.mxu0 0
        %9884 = vmatpush2.bf16.msra.mxu0 %v8277
        %9885 = vmatprep.mubr.bf16.mxu0 %v3538
        %9886 = vmatmul.mubr.bf16.gmra.mxu0 %v3537
        %v9887 = vpop.f32.mrf.mxu0
        %v9888 = vadd.f32 %v9848, %v9887
        %v9889 = vpop.f32.mrf.mxu0
        %v9890 = vpop.f32.mrf.mxu0
        %v9891 = vpop.f32.mrf.mxu0
        %9892 = vdwg.mxu0
        %9893 = vmatprep.subr.bf16.mxu0 0
        %9894 = vmatpush1.bf16.msra.mxu0 %v8292
        %9895 = vmatprep.subr.bf16.mxu0 0
        %9896 = vmatpush1.bf16.msra.mxu0 %v8291
        %9897 = vmatprep.subr.bf16.mxu0 0
        %9898 = vmatpush1.bf16.msra.mxu0 %v8290
        %9899 = vmatprep.subr.bf16.mxu0 0
        %9900 = vmatpush1.bf16.msra.mxu0 %v8289
        %9901 = vmatprep.subr.bf16.mxu0 0
        %9902 = vmatpush1.bf16.msra.mxu0 %v8288
        %9903 = vmatprep.subr.bf16.mxu0 0
        %9904 = vmatpush1.bf16.msra.mxu0 %v8287
        %9905 = vmatprep.subr.bf16.mxu0 0
        %9906 = vmatpush1.bf16.msra.mxu0 %v8286
        %9907 = vmatprep.subr.bf16.mxu0 0
        %9908 = vmatpush1.bf16.msra.mxu0 %v8285
        %9909 = vmatprep.subr.bf16.mxu0 0
        %9910 = vmatpush2.bf16.msra.mxu0 %v8300
        %9911 = vmatprep.subr.bf16.mxu0 0
        %9912 = vmatpush2.bf16.msra.mxu0 %v8299
        %9913 = vmatprep.subr.bf16.mxu0 0
        %9914 = vmatpush2.bf16.msra.mxu0 %v8298
        %9915 = vmatprep.subr.bf16.mxu0 0
        %9916 = vmatpush2.bf16.msra.mxu0 %v8297
        %9917 = vmatprep.subr.bf16.mxu0 0
        %9918 = vmatpush2.bf16.msra.mxu0 %v8296
        %9919 = vmatprep.subr.bf16.mxu0 0
        %9920 = vmatpush2.bf16.msra.mxu0 %v8295
        %9921 = vmatprep.subr.bf16.mxu0 0
        %9922 = vmatpush2.bf16.msra.mxu0 %v8294
        %9923 = vmatprep.subr.bf16.mxu0 0
        %9924 = vmatpush2.bf16.msra.mxu0 %v8293
        %9925 = vmatprep.mubr.bf16.mxu0 %v3540
        %9926 = vmatmul.mubr.bf16.gmra.mxu0 %v3539
        %v9927 = vpop.f32.mrf.mxu0
        %v9928 = vadd.f32 %v9888, %v9927
        %v9929 = vpop.f32.mrf.mxu0
        %v9930 = vpop.f32.mrf.mxu0
        %v9931 = vpop.f32.mrf.mxu0
        %9932 = vdwg.mxu0
        %9933 = vmatprep.subr.bf16.mxu0 0
        %9934 = vmatpush1.bf16.msra.mxu0 %v8308
        %9935 = vmatprep.subr.bf16.mxu0 0
        %9936 = vmatpush1.bf16.msra.mxu0 %v8307
        %9937 = vmatprep.subr.bf16.mxu0 0
        %9938 = vmatpush1.bf16.msra.mxu0 %v8306
        %9939 = vmatprep.subr.bf16.mxu0 0
        %9940 = vmatpush1.bf16.msra.mxu0 %v8305
        %9941 = vmatprep.subr.bf16.mxu0 0
        %9942 = vmatpush1.bf16.msra.mxu0 %v8304
        %9943 = vmatprep.subr.bf16.mxu0 0
        %9944 = vmatpush1.bf16.msra.mxu0 %v8303
        %9945 = vmatprep.subr.bf16.mxu0 0
        %9946 = vmatpush1.bf16.msra.mxu0 %v8302
        %9947 = vmatprep.subr.bf16.mxu0 0
        %9948 = vmatpush1.bf16.msra.mxu0 %v8301
        %9949 = vmatprep.subr.bf16.mxu0 0
        %9950 = vmatpush2.bf16.msra.mxu0 %v8316
        %9951 = vmatprep.subr.bf16.mxu0 0
        %9952 = vmatpush2.bf16.msra.mxu0 %v8315
        %9953 = vmatprep.subr.bf16.mxu0 0
        %9954 = vmatpush2.bf16.msra.mxu0 %v8314
        %9955 = vmatprep.subr.bf16.mxu0 0
        %9956 = vmatpush2.bf16.msra.mxu0 %v8313
        %9957 = vmatprep.subr.bf16.mxu0 0
        %9958 = vmatpush2.bf16.msra.mxu0 %v8312
        %9959 = vmatprep.subr.bf16.mxu0 0
        %9960 = vmatpush2.bf16.msra.mxu0 %v8311
        %9961 = vmatprep.subr.bf16.mxu0 0
        %9962 = vmatpush2.bf16.msra.mxu0 %v8310
        %9963 = vmatprep.subr.bf16.mxu0 0
        %9964 = vmatpush2.bf16.msra.mxu0 %v8309
        %9965 = vmatprep.mubr.bf16.mxu0 %v3542
        %9966 = vmatmul.mubr.bf16.gmra.mxu0 %v3541
        %v9967 = vpop.f32.mrf.mxu0
        %v9968 = vadd.f32 %v9928, %v9967
        %v9969 = vpop.f32.mrf.mxu0
        %v9970 = vpop.f32.mrf.mxu0
        %v9971 = vpop.f32.mrf.mxu0
        %9972 = vdwg.mxu0
        %9973 = vmatprep.subr.bf16.mxu0 0
        %9974 = vmatpush1.bf16.msra.mxu0 %v8324
        %9975 = vmatprep.subr.bf16.mxu0 0
        %9976 = vmatpush1.bf16.msra.mxu0 %v8323
        %9977 = vmatprep.subr.bf16.mxu0 0
        %9978 = vmatpush1.bf16.msra.mxu0 %v8322
        %9979 = vmatprep.subr.bf16.mxu0 0
        %9980 = vmatpush1.bf16.msra.mxu0 %v8321
        %9981 = vmatprep.subr.bf16.mxu0 0
        %9982 = vmatpush1.bf16.msra.mxu0 %v8320
        %9983 = vmatprep.subr.bf16.mxu0 0
        %9984 = vmatpush1.bf16.msra.mxu0 %v8319
        %9985 = vmatprep.subr.bf16.mxu0 0
        %9986 = vmatpush1.bf16.msra.mxu0 %v8318
        %9987 = vmatprep.subr.bf16.mxu0 0
        %9988 = vmatpush1.bf16.msra.mxu0 %v8317
        %9989 = vmatprep.subr.bf16.mxu0 0
        %9990 = vmatpush2.bf16.msra.mxu0 %v8332
        %9991 = vmatprep.subr.bf16.mxu0 0
        %9992 = vmatpush2.bf16.msra.mxu0 %v8331
        %9993 = vmatprep.subr.bf16.mxu0 0
        %9994 = vmatpush2.bf16.msra.mxu0 %v8330
        %9995 = vmatprep.subr.bf16.mxu0 0
        %9996 = vmatpush2.bf16.msra.mxu0 %v8329
        %9997 = vmatprep.subr.bf16.mxu0 0
        %9998 = vmatpush2.bf16.msra.mxu0 %v8328
        %9999 = vmatprep.subr.bf16.mxu0 0
        %10000 = vmatpush2.bf16.msra.mxu0 %v8327
        %10001 = vmatprep.subr.bf16.mxu0 0
        %10002 = vmatpush2.bf16.msra.mxu0 %v8326
        %10003 = vmatprep.subr.bf16.mxu0 0
        %10004 = vmatpush2.bf16.msra.mxu0 %v8325
        %10005 = vmatprep.mubr.bf16.mxu0 %v3544
        %10006 = vmatmul.mubr.bf16.gmra.mxu0 %v3543
        %v10007 = vpop.f32.mrf.mxu0
        %v10008 = vadd.f32 %v9968, %v10007
        %v10009 = vpop.f32.mrf.mxu0
        %v10010 = vpop.f32.mrf.mxu0
        %v10011 = vpop.f32.mrf.mxu0
        %10012 = vdwg.mxu0
        %10013 = vmatprep.subr.bf16.mxu0 0
        %10014 = vmatpush1.bf16.msra.mxu0 %v8340
        %10015 = vmatprep.subr.bf16.mxu0 0
        %10016 = vmatpush1.bf16.msra.mxu0 %v8339
        %10017 = vmatprep.subr.bf16.mxu0 0
        %10018 = vmatpush1.bf16.msra.mxu0 %v8338
        %10019 = vmatprep.subr.bf16.mxu0 0
        %10020 = vmatpush1.bf16.msra.mxu0 %v8337
        %10021 = vmatprep.subr.bf16.mxu0 0
        %10022 = vmatpush1.bf16.msra.mxu0 %v8336
        %10023 = vmatprep.subr.bf16.mxu0 0
        %10024 = vmatpush1.bf16.msra.mxu0 %v8335
        %10025 = vmatprep.subr.bf16.mxu0 0
        %10026 = vmatpush1.bf16.msra.mxu0 %v8334
        %10027 = vmatprep.subr.bf16.mxu0 0
        %10028 = vmatpush1.bf16.msra.mxu0 %v8333
        %10029 = vmatprep.subr.bf16.mxu0 0
        %10030 = vmatpush2.bf16.msra.mxu0 %v8348
        %10031 = vmatprep.subr.bf16.mxu0 0
        %10032 = vmatpush2.bf16.msra.mxu0 %v8347
        %10033 = vmatprep.subr.bf16.mxu0 0
        %10034 = vmatpush2.bf16.msra.mxu0 %v8346
        %10035 = vmatprep.subr.bf16.mxu0 0
        %10036 = vmatpush2.bf16.msra.mxu0 %v8345
        %10037 = vmatprep.subr.bf16.mxu0 0
        %10038 = vmatpush2.bf16.msra.mxu0 %v8344
        %10039 = vmatprep.subr.bf16.mxu0 0
        %10040 = vmatpush2.bf16.msra.mxu0 %v8343
        %10041 = vmatprep.subr.bf16.mxu0 0
        %10042 = vmatpush2.bf16.msra.mxu0 %v8342
        %10043 = vmatprep.subr.bf16.mxu0 0
        %10044 = vmatpush2.bf16.msra.mxu0 %v8341
        %10045 = vmatprep.mubr.bf16.mxu0 %v3546
        %10046 = vmatmul.mubr.bf16.gmra.mxu0 %v3545
        %v10047 = vpop.f32.mrf.mxu0
        %v10048 = vadd.f32 %v10008, %v10047
        %v10049 = vpop.f32.mrf.mxu0
        %v10050 = vpop.f32.mrf.mxu0
        %v10051 = vpop.f32.mrf.mxu0
        %10052 = vdwg.mxu0
        %10053 = vmatprep.subr.bf16.mxu0 0
        %10054 = vmatpush1.bf16.msra.mxu0 %v8356
        %10055 = vmatprep.subr.bf16.mxu0 0
        %10056 = vmatpush1.bf16.msra.mxu0 %v8355
        %10057 = vmatprep.subr.bf16.mxu0 0
        %10058 = vmatpush1.bf16.msra.mxu0 %v8354
        %10059 = vmatprep.subr.bf16.mxu0 0
        %10060 = vmatpush1.bf16.msra.mxu0 %v8353
        %10061 = vmatprep.subr.bf16.mxu0 0
        %10062 = vmatpush1.bf16.msra.mxu0 %v8352
        %10063 = vmatprep.subr.bf16.mxu0 0
        %10064 = vmatpush1.bf16.msra.mxu0 %v8351
        %10065 = vmatprep.subr.bf16.mxu0 0
        %10066 = vmatpush1.bf16.msra.mxu0 %v8350
        %10067 = vmatprep.subr.bf16.mxu0 0
        %10068 = vmatpush1.bf16.msra.mxu0 %v8349
        %10069 = vmatprep.subr.bf16.mxu0 0
        %10070 = vmatpush2.bf16.msra.mxu0 %v8364
        %10071 = vmatprep.subr.bf16.mxu0 0
        %10072 = vmatpush2.bf16.msra.mxu0 %v8363
        %10073 = vmatprep.subr.bf16.mxu0 0
        %10074 = vmatpush2.bf16.msra.mxu0 %v8362
        %10075 = vmatprep.subr.bf16.mxu0 0
        %10076 = vmatpush2.bf16.msra.mxu0 %v8361
        %10077 = vmatprep.subr.bf16.mxu0 0
        %10078 = vmatpush2.bf16.msra.mxu0 %v8360
        %10079 = vmatprep.subr.bf16.mxu0 0
        %10080 = vmatpush2.bf16.msra.mxu0 %v8359
        %10081 = vmatprep.subr.bf16.mxu0 0
        %10082 = vmatpush2.bf16.msra.mxu0 %v8358
        %10083 = vmatprep.subr.bf16.mxu0 0
        %10084 = vmatpush2.bf16.msra.mxu0 %v8357
        %10085 = vmatprep.mubr.bf16.mxu0 %v3548
        %10086 = vmatmul.mubr.bf16.gmra.mxu0 %v3547
        %v10087 = vpop.f32.mrf.mxu0
        %v10088 = vadd.f32 %v10048, %v10087
        %v10089 = vpop.f32.mrf.mxu0
        %v10090 = vpop.f32.mrf.mxu0
        %v10091 = vpop.f32.mrf.mxu0
        %10092 = vdwg.mxu0
        %10093 = vmatprep.subr.bf16.mxu0 0
        %10094 = vmatpush1.bf16.msra.mxu0 %v8372
        %10095 = vmatprep.subr.bf16.mxu0 0
        %10096 = vmatpush1.bf16.msra.mxu0 %v8371
        %10097 = vmatprep.subr.bf16.mxu0 0
        %10098 = vmatpush1.bf16.msra.mxu0 %v8370
        %10099 = vmatprep.subr.bf16.mxu0 0
        %10100 = vmatpush1.bf16.msra.mxu0 %v8369
        %10101 = vmatprep.subr.bf16.mxu0 0
        %10102 = vmatpush1.bf16.msra.mxu0 %v8368
        %10103 = vmatprep.subr.bf16.mxu0 0
        %10104 = vmatpush1.bf16.msra.mxu0 %v8367
        %10105 = vmatprep.subr.bf16.mxu0 0
        %10106 = vmatpush1.bf16.msra.mxu0 %v8366
        %10107 = vmatprep.subr.bf16.mxu0 0
        %10108 = vmatpush1.bf16.msra.mxu0 %v8365
        %10109 = vmatprep.subr.bf16.mxu0 0
        %10110 = vmatpush2.bf16.msra.mxu0 %v8380
        %10111 = vmatprep.subr.bf16.mxu0 0
        %10112 = vmatpush2.bf16.msra.mxu0 %v8379
        %10113 = vmatprep.subr.bf16.mxu0 0
        %10114 = vmatpush2.bf16.msra.mxu0 %v8378
        %10115 = vmatprep.subr.bf16.mxu0 0
        %10116 = vmatpush2.bf16.msra.mxu0 %v8377
        %10117 = vmatprep.subr.bf16.mxu0 0
        %10118 = vmatpush2.bf16.msra.mxu0 %v8376
        %10119 = vmatprep.subr.bf16.mxu0 0
        %10120 = vmatpush2.bf16.msra.mxu0 %v8375
        %10121 = vmatprep.subr.bf16.mxu0 0
        %10122 = vmatpush2.bf16.msra.mxu0 %v8374
        %10123 = vmatprep.subr.bf16.mxu0 0
        %10124 = vmatpush2.bf16.msra.mxu0 %v8373
        %10125 = vmatprep.mubr.bf16.mxu0 %v3550
        %10126 = vmatmul.mubr.bf16.gmra.mxu0 %v3549
        %v10127 = vpop.f32.mrf.mxu0
        %v10128 = vadd.f32 %v10088, %v10127
        %v10129 = vpop.f32.mrf.mxu0
        %v10130 = vpop.f32.mrf.mxu0
        %v10131 = vpop.f32.mrf.mxu0
        %10132 = vdwg.mxu0
        %10133 = vmatprep.subr.bf16.mxu0 0
        %10134 = vmatpush1.bf16.msra.mxu0 %v8388
        %10135 = vmatprep.subr.bf16.mxu0 0
        %10136 = vmatpush1.bf16.msra.mxu0 %v8387
        %10137 = vmatprep.subr.bf16.mxu0 0
        %10138 = vmatpush1.bf16.msra.mxu0 %v8386
        %10139 = vmatprep.subr.bf16.mxu0 0
        %10140 = vmatpush1.bf16.msra.mxu0 %v8385
        %10141 = vmatprep.subr.bf16.mxu0 0
        %10142 = vmatpush1.bf16.msra.mxu0 %v8384
        %10143 = vmatprep.subr.bf16.mxu0 0
        %10144 = vmatpush1.bf16.msra.mxu0 %v8383
        %10145 = vmatprep.subr.bf16.mxu0 0
        %10146 = vmatpush1.bf16.msra.mxu0 %v8382
        %10147 = vmatprep.subr.bf16.mxu0 0
        %10148 = vmatpush1.bf16.msra.mxu0 %v8381
        %10149 = vmatprep.subr.bf16.mxu0 0
        %10150 = vmatpush2.bf16.msra.mxu0 %v8396
        %10151 = vmatprep.subr.bf16.mxu0 0
        %10152 = vmatpush2.bf16.msra.mxu0 %v8395
        %10153 = vmatprep.subr.bf16.mxu0 0
        %10154 = vmatpush2.bf16.msra.mxu0 %v8394
        %10155 = vmatprep.subr.bf16.mxu0 0
        %10156 = vmatpush2.bf16.msra.mxu0 %v8393
        %10157 = vmatprep.subr.bf16.mxu0 0
        %10158 = vmatpush2.bf16.msra.mxu0 %v8392
        %10159 = vmatprep.subr.bf16.mxu0 0
        %10160 = vmatpush2.bf16.msra.mxu0 %v8391
        %10161 = vmatprep.subr.bf16.mxu0 0
        %10162 = vmatpush2.bf16.msra.mxu0 %v8390
        %10163 = vmatprep.subr.bf16.mxu0 0
        %10164 = vmatpush2.bf16.msra.mxu0 %v8389
        %10165 = vmatprep.mubr.bf16.mxu0 %v3552
        %10166 = vmatmul.mubr.bf16.gmra.mxu0 %v3551
        %v10167 = vpop.f32.mrf.mxu0
        %v10168 = vadd.f32 %v10128, %v10167
        %v10169 = vpop.f32.mrf.mxu0
        %v10170 = vpop.f32.mrf.mxu0
        %v10171 = vpop.f32.mrf.mxu0
        %10172 = vdwg.mxu0
        %10173 = vmatprep.subr.bf16.mxu0 0
        %10174 = vmatpush1.bf16.msra.mxu0 %v8404
        %10175 = vmatprep.subr.bf16.mxu0 0
        %10176 = vmatpush1.bf16.msra.mxu0 %v8403
        %10177 = vmatprep.subr.bf16.mxu0 0
        %10178 = vmatpush1.bf16.msra.mxu0 %v8402
        %10179 = vmatprep.subr.bf16.mxu0 0
        %10180 = vmatpush1.bf16.msra.mxu0 %v8401
        %10181 = vmatprep.subr.bf16.mxu0 0
        %10182 = vmatpush1.bf16.msra.mxu0 %v8400
        %10183 = vmatprep.subr.bf16.mxu0 0
        %10184 = vmatpush1.bf16.msra.mxu0 %v8399
        %10185 = vmatprep.subr.bf16.mxu0 0
        %10186 = vmatpush1.bf16.msra.mxu0 %v8398
        %10187 = vmatprep.subr.bf16.mxu0 0
        %10188 = vmatpush1.bf16.msra.mxu0 %v8397
        %10189 = vmatprep.subr.bf16.mxu0 0
        %10190 = vmatpush2.bf16.msra.mxu0 %v8412
        %10191 = vmatprep.subr.bf16.mxu0 0
        %10192 = vmatpush2.bf16.msra.mxu0 %v8411
        %10193 = vmatprep.subr.bf16.mxu0 0
        %10194 = vmatpush2.bf16.msra.mxu0 %v8410
        %10195 = vmatprep.subr.bf16.mxu0 0
        %10196 = vmatpush2.bf16.msra.mxu0 %v8409
        %10197 = vmatprep.subr.bf16.mxu0 0
        %10198 = vmatpush2.bf16.msra.mxu0 %v8408
        %10199 = vmatprep.subr.bf16.mxu0 0
        %10200 = vmatpush2.bf16.msra.mxu0 %v8407
        %10201 = vmatprep.subr.bf16.mxu0 0
        %10202 = vmatpush2.bf16.msra.mxu0 %v8406
        %10203 = vmatprep.subr.bf16.mxu0 0
        %10204 = vmatpush2.bf16.msra.mxu0 %v8405
        %10205 = vmatprep.mubr.bf16.mxu0 %v3554
        %10206 = vmatmul.mubr.bf16.gmra.mxu0 %v3553
        %v10207 = vpop.f32.mrf.mxu0
        %v10208 = vadd.f32 %v10168, %v10207
        %v10209 = vpop.f32.mrf.mxu0
        %v10210 = vpop.f32.mrf.mxu0
        %v10211 = vpop.f32.mrf.mxu0
        %10212 = vdwg.mxu0
        %10213 = vmatprep.subr.bf16.mxu0 0
        %10214 = vmatpush1.bf16.msra.mxu0 %v8420
        %10215 = vmatprep.subr.bf16.mxu0 0
        %10216 = vmatpush1.bf16.msra.mxu0 %v8419
        %10217 = vmatprep.subr.bf16.mxu0 0
        %10218 = vmatpush1.bf16.msra.mxu0 %v8418
        %10219 = vmatprep.subr.bf16.mxu0 0
        %10220 = vmatpush1.bf16.msra.mxu0 %v8417
        %10221 = vmatprep.subr.bf16.mxu0 0
        %10222 = vmatpush1.bf16.msra.mxu0 %v8416
        %10223 = vmatprep.subr.bf16.mxu0 0
        %10224 = vmatpush1.bf16.msra.mxu0 %v8415
        %10225 = vmatprep.subr.bf16.mxu0 0
        %10226 = vmatpush1.bf16.msra.mxu0 %v8414
        %10227 = vmatprep.subr.bf16.mxu0 0
        %10228 = vmatpush1.bf16.msra.mxu0 %v8413
        %10229 = vmatprep.subr.bf16.mxu0 0
        %10230 = vmatpush2.bf16.msra.mxu0 %v8428
        %10231 = vmatprep.subr.bf16.mxu0 0
        %10232 = vmatpush2.bf16.msra.mxu0 %v8427
        %10233 = vmatprep.subr.bf16.mxu0 0
        %10234 = vmatpush2.bf16.msra.mxu0 %v8426
        %10235 = vmatprep.subr.bf16.mxu0 0
        %10236 = vmatpush2.bf16.msra.mxu0 %v8425
        %10237 = vmatprep.subr.bf16.mxu0 0
        %10238 = vmatpush2.bf16.msra.mxu0 %v8424
        %10239 = vmatprep.subr.bf16.mxu0 0
        %10240 = vmatpush2.bf16.msra.mxu0 %v8423
        %10241 = vmatprep.subr.bf16.mxu0 0
        %10242 = vmatpush2.bf16.msra.mxu0 %v8422
        %10243 = vmatprep.subr.bf16.mxu0 0
        %10244 = vmatpush2.bf16.msra.mxu0 %v8421
        %10245 = vmatprep.mubr.bf16.mxu0 %v3556
        %10246 = vmatmul.mubr.bf16.gmra.mxu0 %v3555
        %v10247 = vpop.f32.mrf.mxu0
        %v10248 = vadd.f32 %v10208, %v10247
        %v10249 = vpop.f32.mrf.mxu0
        %v10250 = vpop.f32.mrf.mxu0
        %v10251 = vpop.f32.mrf.mxu0
        %10252 = vdwg.mxu0
        %10253 = vmatprep.subr.bf16.mxu0 0
        %10254 = vmatpush1.bf16.msra.mxu0 %v8436
        %10255 = vmatprep.subr.bf16.mxu0 0
        %10256 = vmatpush1.bf16.msra.mxu0 %v8435
        %10257 = vmatprep.subr.bf16.mxu0 0
        %10258 = vmatpush1.bf16.msra.mxu0 %v8434
        %10259 = vmatprep.subr.bf16.mxu0 0
        %10260 = vmatpush1.bf16.msra.mxu0 %v8433
        %10261 = vmatprep.subr.bf16.mxu0 0
        %10262 = vmatpush1.bf16.msra.mxu0 %v8432
        %10263 = vmatprep.subr.bf16.mxu0 0
        %10264 = vmatpush1.bf16.msra.mxu0 %v8431
        %10265 = vmatprep.subr.bf16.mxu0 0
        %10266 = vmatpush1.bf16.msra.mxu0 %v8430
        %10267 = vmatprep.subr.bf16.mxu0 0
        %10268 = vmatpush1.bf16.msra.mxu0 %v8429
        %10269 = vmatprep.subr.bf16.mxu0 0
        %10270 = vmatpush2.bf16.msra.mxu0 %v8444
        %10271 = vmatprep.subr.bf16.mxu0 0
        %10272 = vmatpush2.bf16.msra.mxu0 %v8443
        %10273 = vmatprep.subr.bf16.mxu0 0
        %10274 = vmatpush2.bf16.msra.mxu0 %v8442
        %10275 = vmatprep.subr.bf16.mxu0 0
        %10276 = vmatpush2.bf16.msra.mxu0 %v8441
        %10277 = vmatprep.subr.bf16.mxu0 0
        %10278 = vmatpush2.bf16.msra.mxu0 %v8440
        %10279 = vmatprep.subr.bf16.mxu0 0
        %10280 = vmatpush2.bf16.msra.mxu0 %v8439
        %10281 = vmatprep.subr.bf16.mxu0 0
        %10282 = vmatpush2.bf16.msra.mxu0 %v8438
        %10283 = vmatprep.subr.bf16.mxu0 0
        %10284 = vmatpush2.bf16.msra.mxu0 %v8437
        %10285 = vmatprep.mubr.bf16.mxu0 %v3558
        %10286 = vmatmul.mubr.bf16.gmra.mxu0 %v3557
        %v10287 = vpop.f32.mrf.mxu0
        %v10288 = vadd.f32 %v10248, %v10287
        %v10289 = vpop.f32.mrf.mxu0
        %v10290 = vpop.f32.mrf.mxu0
        %v10291 = vpop.f32.mrf.mxu0
        %10292 = vdwg.mxu0
        %10293 = vmatprep.subr.bf16.mxu0 0
        %10294 = vmatpush1.bf16.msra.mxu0 %v8452
        %10295 = vmatprep.subr.bf16.mxu0 0
        %10296 = vmatpush1.bf16.msra.mxu0 %v8451
        %10297 = vmatprep.subr.bf16.mxu0 0
        %10298 = vmatpush1.bf16.msra.mxu0 %v8450
        %10299 = vmatprep.subr.bf16.mxu0 0
        %10300 = vmatpush1.bf16.msra.mxu0 %v8449
        %10301 = vmatprep.subr.bf16.mxu0 0
        %10302 = vmatpush1.bf16.msra.mxu0 %v8448
        %10303 = vmatprep.subr.bf16.mxu0 0
        %10304 = vmatpush1.bf16.msra.mxu0 %v8447
        %10305 = vmatprep.subr.bf16.mxu0 0
        %10306 = vmatpush1.bf16.msra.mxu0 %v8446
        %10307 = vmatprep.subr.bf16.mxu0 0
        %10308 = vmatpush1.bf16.msra.mxu0 %v8445
        %10309 = vmatprep.subr.bf16.mxu0 0
        %10310 = vmatpush2.bf16.msra.mxu0 %v8460
        %10311 = vmatprep.subr.bf16.mxu0 0
        %10312 = vmatpush2.bf16.msra.mxu0 %v8459
        %10313 = vmatprep.subr.bf16.mxu0 0
        %10314 = vmatpush2.bf16.msra.mxu0 %v8458
        %10315 = vmatprep.subr.bf16.mxu0 0
        %10316 = vmatpush2.bf16.msra.mxu0 %v8457
        %10317 = vmatprep.subr.bf16.mxu0 0
        %10318 = vmatpush2.bf16.msra.mxu0 %v8456
        %10319 = vmatprep.subr.bf16.mxu0 0
        %10320 = vmatpush2.bf16.msra.mxu0 %v8455
        %10321 = vmatprep.subr.bf16.mxu0 0
        %10322 = vmatpush2.bf16.msra.mxu0 %v8454
        %10323 = vmatprep.subr.bf16.mxu0 0
        %10324 = vmatpush2.bf16.msra.mxu0 %v8453
        %10325 = vmatprep.mubr.bf16.mxu0 %v3560
        %10326 = vmatmul.mubr.bf16.gmra.mxu0 %v3559
        %v10327 = vpop.f32.mrf.mxu0
        %v10328 = vadd.f32 %v10288, %v10327
        %v10329 = vpop.f32.mrf.mxu0
        %v10330 = vpop.f32.mrf.mxu0
        %v10331 = vpop.f32.mrf.mxu0
        %10332 = vdwg.mxu0
        %10333 = vmatprep.subr.bf16.mxu0 0
        %10334 = vmatpush1.bf16.msra.mxu0 %v8468
        %10335 = vmatprep.subr.bf16.mxu0 0
        %10336 = vmatpush1.bf16.msra.mxu0 %v8467
        %10337 = vmatprep.subr.bf16.mxu0 0
        %10338 = vmatpush1.bf16.msra.mxu0 %v8466
        %10339 = vmatprep.subr.bf16.mxu0 0
        %10340 = vmatpush1.bf16.msra.mxu0 %v8465
        %10341 = vmatprep.subr.bf16.mxu0 0
        %10342 = vmatpush1.bf16.msra.mxu0 %v8464
        %10343 = vmatprep.subr.bf16.mxu0 0
        %10344 = vmatpush1.bf16.msra.mxu0 %v8463
        %10345 = vmatprep.subr.bf16.mxu0 0
        %10346 = vmatpush1.bf16.msra.mxu0 %v8462
        %10347 = vmatprep.subr.bf16.mxu0 0
        %10348 = vmatpush1.bf16.msra.mxu0 %v8461
        %10349 = vmatprep.subr.bf16.mxu0 0
        %10350 = vmatpush2.bf16.msra.mxu0 %v8476
        %10351 = vmatprep.subr.bf16.mxu0 0
        %10352 = vmatpush2.bf16.msra.mxu0 %v8475
        %10353 = vmatprep.subr.bf16.mxu0 0
        %10354 = vmatpush2.bf16.msra.mxu0 %v8474
        %10355 = vmatprep.subr.bf16.mxu0 0
        %10356 = vmatpush2.bf16.msra.mxu0 %v8473
        %10357 = vmatprep.subr.bf16.mxu0 0
        %10358 = vmatpush2.bf16.msra.mxu0 %v8472
        %10359 = vmatprep.subr.bf16.mxu0 0
        %10360 = vmatpush2.bf16.msra.mxu0 %v8471
        %10361 = vmatprep.subr.bf16.mxu0 0
        %10362 = vmatpush2.bf16.msra.mxu0 %v8470
        %10363 = vmatprep.subr.bf16.mxu0 0
        %10364 = vmatpush2.bf16.msra.mxu0 %v8469
        %10365 = vmatprep.mubr.bf16.mxu0 %v3562
        %10366 = vmatmul.mubr.bf16.gmra.mxu0 %v3561
        %v10367 = vpop.f32.mrf.mxu0
        %v10368 = vadd.f32 %v10328, %v10367
        %v10369 = vpop.f32.mrf.mxu0
        %v10370 = vpop.f32.mrf.mxu0
        %v10371 = vpop.f32.mrf.mxu0
        %10372 = vdwg.mxu0
        %10373 = vmatprep.subr.bf16.mxu0 0
        %10374 = vmatpush1.bf16.msra.mxu0 %v8484
        %10375 = vmatprep.subr.bf16.mxu0 0
        %10376 = vmatpush1.bf16.msra.mxu0 %v8483
        %10377 = vmatprep.subr.bf16.mxu0 0
        %10378 = vmatpush1.bf16.msra.mxu0 %v8482
        %10379 = vmatprep.subr.bf16.mxu0 0
        %10380 = vmatpush1.bf16.msra.mxu0 %v8481
        %10381 = vmatprep.subr.bf16.mxu0 0
        %10382 = vmatpush1.bf16.msra.mxu0 %v8480
        %10383 = vmatprep.subr.bf16.mxu0 0
        %10384 = vmatpush1.bf16.msra.mxu0 %v8479
        %10385 = vmatprep.subr.bf16.mxu0 0
        %10386 = vmatpush1.bf16.msra.mxu0 %v8478
        %10387 = vmatprep.subr.bf16.mxu0 0
        %10388 = vmatpush1.bf16.msra.mxu0 %v8477
        %10389 = vmatprep.subr.bf16.mxu0 0
        %10390 = vmatpush2.bf16.msra.mxu0 %v8492
        %10391 = vmatprep.subr.bf16.mxu0 0
        %10392 = vmatpush2.bf16.msra.mxu0 %v8491
        %10393 = vmatprep.subr.bf16.mxu0 0
        %10394 = vmatpush2.bf16.msra.mxu0 %v8490
        %10395 = vmatprep.subr.bf16.mxu0 0
        %10396 = vmatpush2.bf16.msra.mxu0 %v8489
        %10397 = vmatprep.subr.bf16.mxu0 0
        %10398 = vmatpush2.bf16.msra.mxu0 %v8488
        %10399 = vmatprep.subr.bf16.mxu0 0
        %10400 = vmatpush2.bf16.msra.mxu0 %v8487
        %10401 = vmatprep.subr.bf16.mxu0 0
        %10402 = vmatpush2.bf16.msra.mxu0 %v8486
        %10403 = vmatprep.subr.bf16.mxu0 0
        %10404 = vmatpush2.bf16.msra.mxu0 %v8485
        %10405 = vmatprep.mubr.bf16.mxu0 %v3564
        %10406 = vmatmul.mubr.bf16.gmra.mxu0 %v3563
        %v10407 = vpop.f32.mrf.mxu0
        %v10408 = vadd.f32 %v10368, %v10407
        %v10409 = vpop.f32.mrf.mxu0
        %v10410 = vpop.f32.mrf.mxu0
        %v10411 = vpop.f32.mrf.mxu0
        %10412 = vdwg.mxu0
        %10413 = vmatprep.subr.bf16.mxu0 0
        %10414 = vmatpush1.bf16.msra.mxu0 %v8500
        %10415 = vmatprep.subr.bf16.mxu0 0
        %10416 = vmatpush1.bf16.msra.mxu0 %v8499
        %10417 = vmatprep.subr.bf16.mxu0 0
        %10418 = vmatpush1.bf16.msra.mxu0 %v8498
        %10419 = vmatprep.subr.bf16.mxu0 0
        %10420 = vmatpush1.bf16.msra.mxu0 %v8497
        %10421 = vmatprep.subr.bf16.mxu0 0
        %10422 = vmatpush1.bf16.msra.mxu0 %v8496
        %10423 = vmatprep.subr.bf16.mxu0 0
        %10424 = vmatpush1.bf16.msra.mxu0 %v8495
        %10425 = vmatprep.subr.bf16.mxu0 0
        %10426 = vmatpush1.bf16.msra.mxu0 %v8494
        %10427 = vmatprep.subr.bf16.mxu0 0
        %10428 = vmatpush1.bf16.msra.mxu0 %v8493
        %10429 = vmatprep.subr.bf16.mxu0 0
        %10430 = vmatpush2.bf16.msra.mxu0 %v8508
        %10431 = vmatprep.subr.bf16.mxu0 0
        %10432 = vmatpush2.bf16.msra.mxu0 %v8507
        %10433 = vmatprep.subr.bf16.mxu0 0
        %10434 = vmatpush2.bf16.msra.mxu0 %v8506
        %10435 = vmatprep.subr.bf16.mxu0 0
        %10436 = vmatpush2.bf16.msra.mxu0 %v8505
        %10437 = vmatprep.subr.bf16.mxu0 0
        %10438 = vmatpush2.bf16.msra.mxu0 %v8504
        %10439 = vmatprep.subr.bf16.mxu0 0
        %10440 = vmatpush2.bf16.msra.mxu0 %v8503
        %10441 = vmatprep.subr.bf16.mxu0 0
        %10442 = vmatpush2.bf16.msra.mxu0 %v8502
        %10443 = vmatprep.subr.bf16.mxu0 0
        %10444 = vmatpush2.bf16.msra.mxu0 %v8501
        %10445 = vmatprep.mubr.bf16.mxu0 %v3566
        %10446 = vmatmul.mubr.bf16.gmra.mxu0 %v3565
        %v10447 = vpop.f32.mrf.mxu0
        %v10448 = vadd.f32 %v10408, %v10447
        %v10449 = vpop.f32.mrf.mxu0
        %v10450 = vpop.f32.mrf.mxu0
        %v10451 = vpop.f32.mrf.mxu0
        %10452 = vdwg.mxu0
        %10453 = vmatprep.subr.bf16.mxu0 0
        %10454 = vmatpush1.bf16.msra.mxu0 %v8516
        %10455 = vmatprep.subr.bf16.mxu0 0
        %10456 = vmatpush1.bf16.msra.mxu0 %v8515
        %10457 = vmatprep.subr.bf16.mxu0 0
        %10458 = vmatpush1.bf16.msra.mxu0 %v8514
        %10459 = vmatprep.subr.bf16.mxu0 0
        %10460 = vmatpush1.bf16.msra.mxu0 %v8513
        %10461 = vmatprep.subr.bf16.mxu0 0
        %10462 = vmatpush1.bf16.msra.mxu0 %v8512
        %10463 = vmatprep.subr.bf16.mxu0 0
        %10464 = vmatpush1.bf16.msra.mxu0 %v8511
        %10465 = vmatprep.subr.bf16.mxu0 0
        %10466 = vmatpush1.bf16.msra.mxu0 %v8510
        %10467 = vmatprep.subr.bf16.mxu0 0
        %10468 = vmatpush1.bf16.msra.mxu0 %v8509
        %10469 = vmatprep.subr.bf16.mxu0 0
        %10470 = vmatpush2.bf16.msra.mxu0 %v8524
        %10471 = vmatprep.subr.bf16.mxu0 0
        %10472 = vmatpush2.bf16.msra.mxu0 %v8523
        %10473 = vmatprep.subr.bf16.mxu0 0
        %10474 = vmatpush2.bf16.msra.mxu0 %v8522
        %10475 = vmatprep.subr.bf16.mxu0 0
        %10476 = vmatpush2.bf16.msra.mxu0 %v8521
        %10477 = vmatprep.subr.bf16.mxu0 0
        %10478 = vmatpush2.bf16.msra.mxu0 %v8520
        %10479 = vmatprep.subr.bf16.mxu0 0
        %10480 = vmatpush2.bf16.msra.mxu0 %v8519
        %10481 = vmatprep.subr.bf16.mxu0 0
        %10482 = vmatpush2.bf16.msra.mxu0 %v8518
        %10483 = vmatprep.subr.bf16.mxu0 0
        %10484 = vmatpush2.bf16.msra.mxu0 %v8517
        %10485 = vmatprep.mubr.bf16.mxu0 %v3568
        %10486 = vmatmul.mubr.bf16.gmra.mxu0 %v3567
        %v10487 = vpop.f32.mrf.mxu0
        %v10488 = vadd.f32 %v10448, %v10487
        %v10489 = vpop.f32.mrf.mxu0
        %v10490 = vpop.f32.mrf.mxu0
        %v10491 = vpop.f32.mrf.mxu0
        %10492 = vdwg.mxu0
        %10493 = vmatprep.subr.bf16.mxu0 0
        %10494 = vmatpush1.bf16.msra.mxu0 %v8532
        %10495 = vmatprep.subr.bf16.mxu0 0
        %10496 = vmatpush1.bf16.msra.mxu0 %v8531
        %10497 = vmatprep.subr.bf16.mxu0 0
        %10498 = vmatpush1.bf16.msra.mxu0 %v8530
        %10499 = vmatprep.subr.bf16.mxu0 0
        %10500 = vmatpush1.bf16.msra.mxu0 %v8529
        %10501 = vmatprep.subr.bf16.mxu0 0
        %10502 = vmatpush1.bf16.msra.mxu0 %v8528
        %10503 = vmatprep.subr.bf16.mxu0 0
        %10504 = vmatpush1.bf16.msra.mxu0 %v8527
        %10505 = vmatprep.subr.bf16.mxu0 0
        %10506 = vmatpush1.bf16.msra.mxu0 %v8526
        %10507 = vmatprep.subr.bf16.mxu0 0
        %10508 = vmatpush1.bf16.msra.mxu0 %v8525
        %10509 = vmatprep.subr.bf16.mxu0 0
        %10510 = vmatpush2.bf16.msra.mxu0 %v8540
        %10511 = vmatprep.subr.bf16.mxu0 0
        %10512 = vmatpush2.bf16.msra.mxu0 %v8539
        %10513 = vmatprep.subr.bf16.mxu0 0
        %10514 = vmatpush2.bf16.msra.mxu0 %v8538
        %10515 = vmatprep.subr.bf16.mxu0 0
        %10516 = vmatpush2.bf16.msra.mxu0 %v8537
        %10517 = vmatprep.subr.bf16.mxu0 0
        %10518 = vmatpush2.bf16.msra.mxu0 %v8536
        %10519 = vmatprep.subr.bf16.mxu0 0
        %10520 = vmatpush2.bf16.msra.mxu0 %v8535
        %10521 = vmatprep.subr.bf16.mxu0 0
        %10522 = vmatpush2.bf16.msra.mxu0 %v8534
        %10523 = vmatprep.subr.bf16.mxu0 0
        %10524 = vmatpush2.bf16.msra.mxu0 %v8533
        %10525 = vmatprep.mubr.bf16.mxu0 %v3570
        %10526 = vmatmul.mubr.bf16.gmra.mxu0 %v3569
        %v10527 = vpop.f32.mrf.mxu0
        %v10528 = vadd.f32 %v10488, %v10527
        %v10529 = vpop.f32.mrf.mxu0
        %v10530 = vpop.f32.mrf.mxu0
        %v10531 = vpop.f32.mrf.mxu0
        %10532 = vdwg.mxu0
        %10533 = vmatprep.subr.bf16.mxu0 0
        %10534 = vmatpush1.bf16.msra.mxu0 %v8548
        %10535 = vmatprep.subr.bf16.mxu0 0
        %10536 = vmatpush1.bf16.msra.mxu0 %v8547
        %10537 = vmatprep.subr.bf16.mxu0 0
        %10538 = vmatpush1.bf16.msra.mxu0 %v8546
        %10539 = vmatprep.subr.bf16.mxu0 0
        %10540 = vmatpush1.bf16.msra.mxu0 %v8545
        %10541 = vmatprep.subr.bf16.mxu0 0
        %10542 = vmatpush1.bf16.msra.mxu0 %v8544
        %10543 = vmatprep.subr.bf16.mxu0 0
        %10544 = vmatpush1.bf16.msra.mxu0 %v8543
        %10545 = vmatprep.subr.bf16.mxu0 0
        %10546 = vmatpush1.bf16.msra.mxu0 %v8542
        %10547 = vmatprep.subr.bf16.mxu0 0
        %10548 = vmatpush1.bf16.msra.mxu0 %v8541
        %10549 = vmatprep.subr.bf16.mxu0 0
        %10550 = vmatpush2.bf16.msra.mxu0 %v8556
        %10551 = vmatprep.subr.bf16.mxu0 0
        %10552 = vmatpush2.bf16.msra.mxu0 %v8555
        %10553 = vmatprep.subr.bf16.mxu0 0
        %10554 = vmatpush2.bf16.msra.mxu0 %v8554
        %10555 = vmatprep.subr.bf16.mxu0 0
        %10556 = vmatpush2.bf16.msra.mxu0 %v8553
        %10557 = vmatprep.subr.bf16.mxu0 0
        %10558 = vmatpush2.bf16.msra.mxu0 %v8552
        %10559 = vmatprep.subr.bf16.mxu0 0
        %10560 = vmatpush2.bf16.msra.mxu0 %v8551
        %10561 = vmatprep.subr.bf16.mxu0 0
        %10562 = vmatpush2.bf16.msra.mxu0 %v8550
        %10563 = vmatprep.subr.bf16.mxu0 0
        %10564 = vmatpush2.bf16.msra.mxu0 %v8549
        %10565 = vmatprep.mubr.bf16.mxu0 %v3572
        %10566 = vmatmul.mubr.bf16.gmra.mxu0 %v3571
        %v10567 = vpop.f32.mrf.mxu0
        %v10568 = vadd.f32 %v10528, %v10567
        %v10569 = vpop.f32.mrf.mxu0
        %v10570 = vpop.f32.mrf.mxu0
        %v10571 = vpop.f32.mrf.mxu0
        %10572 = vdwg.mxu0
        %10573 = vmatprep.subr.bf16.mxu0 0
        %10574 = vmatpush1.bf16.msra.mxu0 %v8564
        %10575 = vmatprep.subr.bf16.mxu0 0
        %10576 = vmatpush1.bf16.msra.mxu0 %v8563
        %10577 = vmatprep.subr.bf16.mxu0 0
        %10578 = vmatpush1.bf16.msra.mxu0 %v8562
        %10579 = vmatprep.subr.bf16.mxu0 0
        %10580 = vmatpush1.bf16.msra.mxu0 %v8561
        %10581 = vmatprep.subr.bf16.mxu0 0
        %10582 = vmatpush1.bf16.msra.mxu0 %v8560
        %10583 = vmatprep.subr.bf16.mxu0 0
        %10584 = vmatpush1.bf16.msra.mxu0 %v8559
        %10585 = vmatprep.subr.bf16.mxu0 0
        %10586 = vmatpush1.bf16.msra.mxu0 %v8558
        %10587 = vmatprep.subr.bf16.mxu0 0
        %10588 = vmatpush1.bf16.msra.mxu0 %v8557
        %10589 = vmatprep.subr.bf16.mxu0 0
        %10590 = vmatpush2.bf16.msra.mxu0 %v8572
        %10591 = vmatprep.subr.bf16.mxu0 0
        %10592 = vmatpush2.bf16.msra.mxu0 %v8571
        %10593 = vmatprep.subr.bf16.mxu0 0
        %10594 = vmatpush2.bf16.msra.mxu0 %v8570
        %10595 = vmatprep.subr.bf16.mxu0 0
        %10596 = vmatpush2.bf16.msra.mxu0 %v8569
        %10597 = vmatprep.subr.bf16.mxu0 0
        %10598 = vmatpush2.bf16.msra.mxu0 %v8568
        %10599 = vmatprep.subr.bf16.mxu0 0
        %10600 = vmatpush2.bf16.msra.mxu0 %v8567
        %10601 = vmatprep.subr.bf16.mxu0 0
        %10602 = vmatpush2.bf16.msra.mxu0 %v8566
        %10603 = vmatprep.subr.bf16.mxu0 0
        %10604 = vmatpush2.bf16.msra.mxu0 %v8565
        %10605 = vmatprep.mubr.bf16.mxu0 %v3574
        %10606 = vmatmul.mubr.bf16.gmra.mxu0 %v3573
        %v10607 = vpop.f32.mrf.mxu0
        %v10608 = vadd.f32 %v10568, %v10607
        %v10609 = vpop.f32.mrf.mxu0
        %v10610 = vpop.f32.mrf.mxu0
        %v10611 = vpop.f32.mrf.mxu0
        %10612 = vdwg.mxu0
        %10613 = vmatprep.subr.bf16.mxu0 0
        %10614 = vmatpush1.bf16.msra.mxu0 %v8580
        %10615 = vmatprep.subr.bf16.mxu0 0
        %10616 = vmatpush1.bf16.msra.mxu0 %v8579
        %10617 = vmatprep.subr.bf16.mxu0 0
        %10618 = vmatpush1.bf16.msra.mxu0 %v8578
        %10619 = vmatprep.subr.bf16.mxu0 0
        %10620 = vmatpush1.bf16.msra.mxu0 %v8577
        %10621 = vmatprep.subr.bf16.mxu0 0
        %10622 = vmatpush1.bf16.msra.mxu0 %v8576
        %10623 = vmatprep.subr.bf16.mxu0 0
        %10624 = vmatpush1.bf16.msra.mxu0 %v8575
        %10625 = vmatprep.subr.bf16.mxu0 0
        %10626 = vmatpush1.bf16.msra.mxu0 %v8574
        %10627 = vmatprep.subr.bf16.mxu0 0
        %10628 = vmatpush1.bf16.msra.mxu0 %v8573
        %10629 = vmatprep.subr.bf16.mxu0 0
        %10630 = vmatpush2.bf16.msra.mxu0 %v8588
        %10631 = vmatprep.subr.bf16.mxu0 0
        %10632 = vmatpush2.bf16.msra.mxu0 %v8587
        %10633 = vmatprep.subr.bf16.mxu0 0
        %10634 = vmatpush2.bf16.msra.mxu0 %v8586
        %10635 = vmatprep.subr.bf16.mxu0 0
        %10636 = vmatpush2.bf16.msra.mxu0 %v8585
        %10637 = vmatprep.subr.bf16.mxu0 0
        %10638 = vmatpush2.bf16.msra.mxu0 %v8584
        %10639 = vmatprep.subr.bf16.mxu0 0
        %10640 = vmatpush2.bf16.msra.mxu0 %v8583
        %10641 = vmatprep.subr.bf16.mxu0 0
        %10642 = vmatpush2.bf16.msra.mxu0 %v8582
        %10643 = vmatprep.subr.bf16.mxu0 0
        %10644 = vmatpush2.bf16.msra.mxu0 %v8581
        %10645 = vmatprep.mubr.bf16.mxu0 %v3576
        %10646 = vmatmul.mubr.bf16.gmra.mxu0 %v3575
        %v10647 = vpop.f32.mrf.mxu0
        %v10648 = vadd.f32 %v10608, %v10647
        %v10649 = vpop.f32.mrf.mxu0
        %v10650 = vpop.f32.mrf.mxu0
        %v10651 = vpop.f32.mrf.mxu0
        %10652 = vdwg.mxu0
        %10653 = vmatprep.subr.bf16.mxu0 0
        %10654 = vmatpush1.bf16.msra.mxu0 %v8596
        %10655 = vmatprep.subr.bf16.mxu0 0
        %10656 = vmatpush1.bf16.msra.mxu0 %v8595
        %10657 = vmatprep.subr.bf16.mxu0 0
        %10658 = vmatpush1.bf16.msra.mxu0 %v8594
        %10659 = vmatprep.subr.bf16.mxu0 0
        %10660 = vmatpush1.bf16.msra.mxu0 %v8593
        %10661 = vmatprep.subr.bf16.mxu0 0
        %10662 = vmatpush1.bf16.msra.mxu0 %v8592
        %10663 = vmatprep.subr.bf16.mxu0 0
        %10664 = vmatpush1.bf16.msra.mxu0 %v8591
        %10665 = vmatprep.subr.bf16.mxu0 0
        %10666 = vmatpush1.bf16.msra.mxu0 %v8590
        %10667 = vmatprep.subr.bf16.mxu0 0
        %10668 = vmatpush1.bf16.msra.mxu0 %v8589
        %10669 = vmatprep.subr.bf16.mxu0 0
        %10670 = vmatpush2.bf16.msra.mxu0 %v8604
        %10671 = vmatprep.subr.bf16.mxu0 0
        %10672 = vmatpush2.bf16.msra.mxu0 %v8603
        %10673 = vmatprep.subr.bf16.mxu0 0
        %10674 = vmatpush2.bf16.msra.mxu0 %v8602
        %10675 = vmatprep.subr.bf16.mxu0 0
        %10676 = vmatpush2.bf16.msra.mxu0 %v8601
        %10677 = vmatprep.subr.bf16.mxu0 0
        %10678 = vmatpush2.bf16.msra.mxu0 %v8600
        %10679 = vmatprep.subr.bf16.mxu0 0
        %10680 = vmatpush2.bf16.msra.mxu0 %v8599
        %10681 = vmatprep.subr.bf16.mxu0 0
        %10682 = vmatpush2.bf16.msra.mxu0 %v8598
        %10683 = vmatprep.subr.bf16.mxu0 0
        %10684 = vmatpush2.bf16.msra.mxu0 %v8597
        %10685 = vmatprep.mubr.bf16.mxu0 %v3578
        %10686 = vmatmul.mubr.bf16.gmra.mxu0 %v3577
        %v10687 = vpop.f32.mrf.mxu0
        %v10688 = vadd.f32 %v10648, %v10687
        %v10689 = vpop.f32.mrf.mxu0
        %v10690 = vpop.f32.mrf.mxu0
        %v10691 = vpop.f32.mrf.mxu0
        %10692 = vdwg.mxu0
        %10693 = vmatprep.subr.bf16.mxu0 0
        %10694 = vmatpush1.bf16.msra.mxu0 %v8612
        %10695 = vmatprep.subr.bf16.mxu0 0
        %10696 = vmatpush1.bf16.msra.mxu0 %v8611
        %10697 = vmatprep.subr.bf16.mxu0 0
        %10698 = vmatpush1.bf16.msra.mxu0 %v8610
        %10699 = vmatprep.subr.bf16.mxu0 0
        %10700 = vmatpush1.bf16.msra.mxu0 %v8609
        %10701 = vmatprep.subr.bf16.mxu0 0
        %10702 = vmatpush1.bf16.msra.mxu0 %v8608
        %10703 = vmatprep.subr.bf16.mxu0 0
        %10704 = vmatpush1.bf16.msra.mxu0 %v8607
        %10705 = vmatprep.subr.bf16.mxu0 0
        %10706 = vmatpush1.bf16.msra.mxu0 %v8606
        %10707 = vmatprep.subr.bf16.mxu0 0
        %10708 = vmatpush1.bf16.msra.mxu0 %v8605
        %10709 = vmatprep.subr.bf16.mxu0 0
        %10710 = vmatpush2.bf16.msra.mxu0 %v8620
        %10711 = vmatprep.subr.bf16.mxu0 0
        %10712 = vmatpush2.bf16.msra.mxu0 %v8619
        %10713 = vmatprep.subr.bf16.mxu0 0
        %10714 = vmatpush2.bf16.msra.mxu0 %v8618
        %10715 = vmatprep.subr.bf16.mxu0 0
        %10716 = vmatpush2.bf16.msra.mxu0 %v8617
        %10717 = vmatprep.subr.bf16.mxu0 0
        %10718 = vmatpush2.bf16.msra.mxu0 %v8616
        %10719 = vmatprep.subr.bf16.mxu0 0
        %10720 = vmatpush2.bf16.msra.mxu0 %v8615
        %10721 = vmatprep.subr.bf16.mxu0 0
        %10722 = vmatpush2.bf16.msra.mxu0 %v8614
        %10723 = vmatprep.subr.bf16.mxu0 0
        %10724 = vmatpush2.bf16.msra.mxu0 %v8613
        %10725 = vmatprep.mubr.bf16.mxu0 %v3580
        %10726 = vmatmul.mubr.bf16.gmra.mxu0 %v3579
        %v10727 = vpop.f32.mrf.mxu0
        %v10728 = vadd.f32 %v10688, %v10727
        %v10729 = vpop.f32.mrf.mxu0
        %v10730 = vpop.f32.mrf.mxu0
        %v10731 = vpop.f32.mrf.mxu0
        %10732 = vdwg.mxu0
        %10733 = vmatprep.subr.bf16.mxu0 0
        %10734 = vmatpush1.bf16.msra.mxu0 %v8628
        %10735 = vmatprep.subr.bf16.mxu0 0
        %10736 = vmatpush1.bf16.msra.mxu0 %v8627
        %10737 = vmatprep.subr.bf16.mxu0 0
        %10738 = vmatpush1.bf16.msra.mxu0 %v8626
        %10739 = vmatprep.subr.bf16.mxu0 0
        %10740 = vmatpush1.bf16.msra.mxu0 %v8625
        %10741 = vmatprep.subr.bf16.mxu0 0
        %10742 = vmatpush1.bf16.msra.mxu0 %v8624
        %10743 = vmatprep.subr.bf16.mxu0 0
        %10744 = vmatpush1.bf16.msra.mxu0 %v8623
        %10745 = vmatprep.subr.bf16.mxu0 0
        %10746 = vmatpush1.bf16.msra.mxu0 %v8622
        %10747 = vmatprep.subr.bf16.mxu0 0
        %10748 = vmatpush1.bf16.msra.mxu0 %v8621
        %10749 = vmatprep.subr.bf16.mxu0 0
        %10750 = vmatpush2.bf16.msra.mxu0 %v8636
        %10751 = vmatprep.subr.bf16.mxu0 0
        %10752 = vmatpush2.bf16.msra.mxu0 %v8635
        %10753 = vmatprep.subr.bf16.mxu0 0
        %10754 = vmatpush2.bf16.msra.mxu0 %v8634
        %10755 = vmatprep.subr.bf16.mxu0 0
        %10756 = vmatpush2.bf16.msra.mxu0 %v8633
        %10757 = vmatprep.subr.bf16.mxu0 0
        %10758 = vmatpush2.bf16.msra.mxu0 %v8632
        %10759 = vmatprep.subr.bf16.mxu0 0
        %10760 = vmatpush2.bf16.msra.mxu0 %v8631
        %10761 = vmatprep.subr.bf16.mxu0 0
        %10762 = vmatpush2.bf16.msra.mxu0 %v8630
        %10763 = vmatprep.subr.bf16.mxu0 0
        %10764 = vmatpush2.bf16.msra.mxu0 %v8629
        %10765 = vmatprep.mubr.bf16.mxu0 %v3582
        %10766 = vmatmul.mubr.bf16.gmra.mxu0 %v3581
        %v10767 = vpop.f32.mrf.mxu0
        %v10768 = vadd.f32 %v10728, %v10767
        %v10769 = vpop.f32.mrf.mxu0
        %v10770 = vpop.f32.mrf.mxu0
        %v10771 = vpop.f32.mrf.mxu0
        %10772 = vdwg.mxu0
        %10773 = vmatprep.subr.bf16.mxu0 0
        %10774 = vmatpush1.bf16.msra.mxu0 %v8644
        %10775 = vmatprep.subr.bf16.mxu0 0
        %10776 = vmatpush1.bf16.msra.mxu0 %v8643
        %10777 = vmatprep.subr.bf16.mxu0 0
        %10778 = vmatpush1.bf16.msra.mxu0 %v8642
        %10779 = vmatprep.subr.bf16.mxu0 0
        %10780 = vmatpush1.bf16.msra.mxu0 %v8641
        %10781 = vmatprep.subr.bf16.mxu0 0
        %10782 = vmatpush1.bf16.msra.mxu0 %v8640
        %10783 = vmatprep.subr.bf16.mxu0 0
        %10784 = vmatpush1.bf16.msra.mxu0 %v8639
        %10785 = vmatprep.subr.bf16.mxu0 0
        %10786 = vmatpush1.bf16.msra.mxu0 %v8638
        %10787 = vmatprep.subr.bf16.mxu0 0
        %10788 = vmatpush1.bf16.msra.mxu0 %v8637
        %10789 = vmatprep.subr.bf16.mxu0 0
        %10790 = vmatpush2.bf16.msra.mxu0 %v8652
        %10791 = vmatprep.subr.bf16.mxu0 0
        %10792 = vmatpush2.bf16.msra.mxu0 %v8651
        %10793 = vmatprep.subr.bf16.mxu0 0
        %10794 = vmatpush2.bf16.msra.mxu0 %v8650
        %10795 = vmatprep.subr.bf16.mxu0 0
        %10796 = vmatpush2.bf16.msra.mxu0 %v8649
        %10797 = vmatprep.subr.bf16.mxu0 0
        %10798 = vmatpush2.bf16.msra.mxu0 %v8648
        %10799 = vmatprep.subr.bf16.mxu0 0
        %10800 = vmatpush2.bf16.msra.mxu0 %v8647
        %10801 = vmatprep.subr.bf16.mxu0 0
        %10802 = vmatpush2.bf16.msra.mxu0 %v8646
        %10803 = vmatprep.subr.bf16.mxu0 0
        %10804 = vmatpush2.bf16.msra.mxu0 %v8645
        %10805 = vmatprep.mubr.bf16.mxu0 %v3584
        %10806 = vmatmul.mubr.bf16.gmra.mxu0 %v3583
        %v10807 = vpop.f32.mrf.mxu0
        %v10808 = vadd.f32 %v10768, %v10807
        %v10809 = vpop.f32.mrf.mxu0
        %v10810 = vpop.f32.mrf.mxu0
        %v10811 = vpop.f32.mrf.mxu0
        %10812 = vdwg.mxu0
        %10813 = vmatprep.subr.bf16.mxu0 0
        %10814 = vmatpush1.bf16.msra.mxu0 %v8660
        %10815 = vmatprep.subr.bf16.mxu0 0
        %10816 = vmatpush1.bf16.msra.mxu0 %v8659
        %10817 = vmatprep.subr.bf16.mxu0 0
        %10818 = vmatpush1.bf16.msra.mxu0 %v8658
        %10819 = vmatprep.subr.bf16.mxu0 0
        %10820 = vmatpush1.bf16.msra.mxu0 %v8657
        %10821 = vmatprep.subr.bf16.mxu0 0
        %10822 = vmatpush1.bf16.msra.mxu0 %v8656
        %10823 = vmatprep.subr.bf16.mxu0 0
        %10824 = vmatpush1.bf16.msra.mxu0 %v8655
        %10825 = vmatprep.subr.bf16.mxu0 0
        %10826 = vmatpush1.bf16.msra.mxu0 %v8654
        %10827 = vmatprep.subr.bf16.mxu0 0
        %10828 = vmatpush1.bf16.msra.mxu0 %v8653
        %10829 = vmatprep.subr.bf16.mxu0 0
        %10830 = vmatpush2.bf16.msra.mxu0 %v8668
        %10831 = vmatprep.subr.bf16.mxu0 0
        %10832 = vmatpush2.bf16.msra.mxu0 %v8667
        %10833 = vmatprep.subr.bf16.mxu0 0
        %10834 = vmatpush2.bf16.msra.mxu0 %v8666
        %10835 = vmatprep.subr.bf16.mxu0 0
        %10836 = vmatpush2.bf16.msra.mxu0 %v8665
        %10837 = vmatprep.subr.bf16.mxu0 0
        %10838 = vmatpush2.bf16.msra.mxu0 %v8664
        %10839 = vmatprep.subr.bf16.mxu0 0
        %10840 = vmatpush2.bf16.msra.mxu0 %v8663
        %10841 = vmatprep.subr.bf16.mxu0 0
        %10842 = vmatpush2.bf16.msra.mxu0 %v8662
        %10843 = vmatprep.subr.bf16.mxu0 0
        %10844 = vmatpush2.bf16.msra.mxu0 %v8661
        %10845 = vmatprep.mubr.bf16.mxu0 %v3586
        %10846 = vmatmul.mubr.bf16.gmra.mxu0 %v3585
        %v10847 = vpop.f32.mrf.mxu0
        %v10848 = vadd.f32 %v10808, %v10847
        %v10849 = vpop.f32.mrf.mxu0
        %v10850 = vpop.f32.mrf.mxu0
        %v10851 = vpop.f32.mrf.mxu0
        %10852 = vdwg.mxu0
        %10853 = vmatprep.subr.bf16.mxu0 0
        %10854 = vmatpush1.bf16.msra.mxu0 %v8676
        %10855 = vmatprep.subr.bf16.mxu0 0
        %10856 = vmatpush1.bf16.msra.mxu0 %v8675
        %10857 = vmatprep.subr.bf16.mxu0 0
        %10858 = vmatpush1.bf16.msra.mxu0 %v8674
        %10859 = vmatprep.subr.bf16.mxu0 0
        %10860 = vmatpush1.bf16.msra.mxu0 %v8673
        %10861 = vmatprep.subr.bf16.mxu0 0
        %10862 = vmatpush1.bf16.msra.mxu0 %v8672
        %10863 = vmatprep.subr.bf16.mxu0 0
        %10864 = vmatpush1.bf16.msra.mxu0 %v8671
        %10865 = vmatprep.subr.bf16.mxu0 0
        %10866 = vmatpush1.bf16.msra.mxu0 %v8670
        %10867 = vmatprep.subr.bf16.mxu0 0
        %10868 = vmatpush1.bf16.msra.mxu0 %v8669
        %10869 = vmatprep.subr.bf16.mxu0 0
        %10870 = vmatpush2.bf16.msra.mxu0 %v8684
        %10871 = vmatprep.subr.bf16.mxu0 0
        %10872 = vmatpush2.bf16.msra.mxu0 %v8683
        %10873 = vmatprep.subr.bf16.mxu0 0
        %10874 = vmatpush2.bf16.msra.mxu0 %v8682
        %10875 = vmatprep.subr.bf16.mxu0 0
        %10876 = vmatpush2.bf16.msra.mxu0 %v8681
        %10877 = vmatprep.subr.bf16.mxu0 0
        %10878 = vmatpush2.bf16.msra.mxu0 %v8680
        %10879 = vmatprep.subr.bf16.mxu0 0
        %10880 = vmatpush2.bf16.msra.mxu0 %v8679
        %10881 = vmatprep.subr.bf16.mxu0 0
        %10882 = vmatpush2.bf16.msra.mxu0 %v8678
        %10883 = vmatprep.subr.bf16.mxu0 0
        %10884 = vmatpush2.bf16.msra.mxu0 %v8677
        %10885 = vmatprep.mubr.bf16.mxu0 %v3588
        %10886 = vmatmul.mubr.bf16.gmra.mxu0 %v3587
        %v10887 = vpop.f32.mrf.mxu0
        %v10888 = vadd.f32 %v10848, %v10887
        %v10889 = vpop.f32.mrf.mxu0
        %v10890 = vpop.f32.mrf.mxu0
        %v10891 = vpop.f32.mrf.mxu0
        %10892 = vdwg.mxu0
        %10893 = vmatprep.subr.bf16.mxu0 0
        %10894 = vmatpush1.bf16.msra.mxu0 %v8692
        %10895 = vmatprep.subr.bf16.mxu0 0
        %10896 = vmatpush1.bf16.msra.mxu0 %v8691
        %10897 = vmatprep.subr.bf16.mxu0 0
        %10898 = vmatpush1.bf16.msra.mxu0 %v8690
        %10899 = vmatprep.subr.bf16.mxu0 0
        %10900 = vmatpush1.bf16.msra.mxu0 %v8689
        %10901 = vmatprep.subr.bf16.mxu0 0
        %10902 = vmatpush1.bf16.msra.mxu0 %v8688
        %10903 = vmatprep.subr.bf16.mxu0 0
        %10904 = vmatpush1.bf16.msra.mxu0 %v8687
        %10905 = vmatprep.subr.bf16.mxu0 0
        %10906 = vmatpush1.bf16.msra.mxu0 %v8686
        %10907 = vmatprep.subr.bf16.mxu0 0
        %10908 = vmatpush1.bf16.msra.mxu0 %v8685
        %10909 = vmatprep.subr.bf16.mxu0 0
        %10910 = vmatpush2.bf16.msra.mxu0 %v8700
        %10911 = vmatprep.subr.bf16.mxu0 0
        %10912 = vmatpush2.bf16.msra.mxu0 %v8699
        %10913 = vmatprep.subr.bf16.mxu0 0
        %10914 = vmatpush2.bf16.msra.mxu0 %v8698
        %10915 = vmatprep.subr.bf16.mxu0 0
        %10916 = vmatpush2.bf16.msra.mxu0 %v8697
        %10917 = vmatprep.subr.bf16.mxu0 0
        %10918 = vmatpush2.bf16.msra.mxu0 %v8696
        %10919 = vmatprep.subr.bf16.mxu0 0
        %10920 = vmatpush2.bf16.msra.mxu0 %v8695
        %10921 = vmatprep.subr.bf16.mxu0 0
        %10922 = vmatpush2.bf16.msra.mxu0 %v8694
        %10923 = vmatprep.subr.bf16.mxu0 0
        %10924 = vmatpush2.bf16.msra.mxu0 %v8693
        %10925 = vmatprep.mubr.bf16.mxu0 %v3590
        %10926 = vmatmul.mubr.bf16.gmra.mxu0 %v3589
        %v10927 = vpop.f32.mrf.mxu0
        %v10928 = vadd.f32 %v10888, %v10927
        %v10929 = vpop.f32.mrf.mxu0
        %v10930 = vpop.f32.mrf.mxu0
        %v10931 = vpop.f32.mrf.mxu0
        %10932 = vdwg.mxu0
        %10933 = vmatprep.subr.bf16.mxu0 0
        %10934 = vmatpush1.bf16.msra.mxu0 %v8708
        %10935 = vmatprep.subr.bf16.mxu0 0
        %10936 = vmatpush1.bf16.msra.mxu0 %v8707
        %10937 = vmatprep.subr.bf16.mxu0 0
        %10938 = vmatpush1.bf16.msra.mxu0 %v8706
        %10939 = vmatprep.subr.bf16.mxu0 0
        %10940 = vmatpush1.bf16.msra.mxu0 %v8705
        %10941 = vmatprep.subr.bf16.mxu0 0
        %10942 = vmatpush1.bf16.msra.mxu0 %v8704
        %10943 = vmatprep.subr.bf16.mxu0 0
        %10944 = vmatpush1.bf16.msra.mxu0 %v8703
        %10945 = vmatprep.subr.bf16.mxu0 0
        %10946 = vmatpush1.bf16.msra.mxu0 %v8702
        %10947 = vmatprep.subr.bf16.mxu0 0
        %10948 = vmatpush1.bf16.msra.mxu0 %v8701
        %10949 = vmatprep.subr.bf16.mxu0 0
        %10950 = vmatpush2.bf16.msra.mxu0 %v8716
        %10951 = vmatprep.subr.bf16.mxu0 0
        %10952 = vmatpush2.bf16.msra.mxu0 %v8715
        %10953 = vmatprep.subr.bf16.mxu0 0
        %10954 = vmatpush2.bf16.msra.mxu0 %v8714
        %10955 = vmatprep.subr.bf16.mxu0 0
        %10956 = vmatpush2.bf16.msra.mxu0 %v8713
        %10957 = vmatprep.subr.bf16.mxu0 0
        %10958 = vmatpush2.bf16.msra.mxu0 %v8712
        %10959 = vmatprep.subr.bf16.mxu0 0
        %10960 = vmatpush2.bf16.msra.mxu0 %v8711
        %10961 = vmatprep.subr.bf16.mxu0 0
        %10962 = vmatpush2.bf16.msra.mxu0 %v8710
        %10963 = vmatprep.subr.bf16.mxu0 0
        %10964 = vmatpush2.bf16.msra.mxu0 %v8709
        %10965 = vmatprep.mubr.bf16.mxu0 %v3592
        %10966 = vmatmul.mubr.bf16.gmra.mxu0 %v3591
        %v10967 = vpop.f32.mrf.mxu0
        %v10968 = vadd.f32 %v10928, %v10967
        %v10969 = vpop.f32.mrf.mxu0
        %v10970 = vpop.f32.mrf.mxu0
        %v10971 = vpop.f32.mrf.mxu0
        %10972 = vdwg.mxu0
        %10973 = vmatprep.subr.bf16.mxu0 0
        %10974 = vmatpush1.bf16.msra.mxu0 %v8724
        %10975 = vmatprep.subr.bf16.mxu0 0
        %10976 = vmatpush1.bf16.msra.mxu0 %v8723
        %10977 = vmatprep.subr.bf16.mxu0 0
        %10978 = vmatpush1.bf16.msra.mxu0 %v8722
        %10979 = vmatprep.subr.bf16.mxu0 0
        %10980 = vmatpush1.bf16.msra.mxu0 %v8721
        %10981 = vmatprep.subr.bf16.mxu0 0
        %10982 = vmatpush1.bf16.msra.mxu0 %v8720
        %10983 = vmatprep.subr.bf16.mxu0 0
        %10984 = vmatpush1.bf16.msra.mxu0 %v8719
        %10985 = vmatprep.subr.bf16.mxu0 0
        %10986 = vmatpush1.bf16.msra.mxu0 %v8718
        %10987 = vmatprep.subr.bf16.mxu0 0
        %10988 = vmatpush1.bf16.msra.mxu0 %v8717
        %10989 = vmatprep.subr.bf16.mxu0 0
        %10990 = vmatpush2.bf16.msra.mxu0 %v8732
        %10991 = vmatprep.subr.bf16.mxu0 0
        %10992 = vmatpush2.bf16.msra.mxu0 %v8731
        %10993 = vmatprep.subr.bf16.mxu0 0
        %10994 = vmatpush2.bf16.msra.mxu0 %v8730
        %10995 = vmatprep.subr.bf16.mxu0 0
        %10996 = vmatpush2.bf16.msra.mxu0 %v8729
        %10997 = vmatprep.subr.bf16.mxu0 0
        %10998 = vmatpush2.bf16.msra.mxu0 %v8728
        %10999 = vmatprep.subr.bf16.mxu0 0
        %11000 = vmatpush2.bf16.msra.mxu0 %v8727
        %11001 = vmatprep.subr.bf16.mxu0 0
        %11002 = vmatpush2.bf16.msra.mxu0 %v8726
        %11003 = vmatprep.subr.bf16.mxu0 0
        %11004 = vmatpush2.bf16.msra.mxu0 %v8725
        %11005 = vmatprep.mubr.bf16.mxu0 %v3594
        %11006 = vmatmul.mubr.bf16.gmra.mxu0 %v3593
        %v11007 = vpop.f32.mrf.mxu0
        %v11008 = vadd.f32 %v10968, %v11007
        %v11009 = vpop.f32.mrf.mxu0
        %v11010 = vpop.f32.mrf.mxu0
        %v11011 = vpop.f32.mrf.mxu0
        %11012 = vdwg.mxu0
        %11013 = vmatprep.subr.bf16.mxu0 0
        %11014 = vmatpush1.bf16.msra.mxu0 %v8740
        %11015 = vmatprep.subr.bf16.mxu0 0
        %11016 = vmatpush1.bf16.msra.mxu0 %v8739
        %11017 = vmatprep.subr.bf16.mxu0 0
        %11018 = vmatpush1.bf16.msra.mxu0 %v8738
        %11019 = vmatprep.subr.bf16.mxu0 0
        %11020 = vmatpush1.bf16.msra.mxu0 %v8737
        %11021 = vmatprep.subr.bf16.mxu0 0
        %11022 = vmatpush1.bf16.msra.mxu0 %v8736
        %11023 = vmatprep.subr.bf16.mxu0 0
        %11024 = vmatpush1.bf16.msra.mxu0 %v8735
        %11025 = vmatprep.subr.bf16.mxu0 0
        %11026 = vmatpush1.bf16.msra.mxu0 %v8734
        %11027 = vmatprep.subr.bf16.mxu0 0
        %11028 = vmatpush1.bf16.msra.mxu0 %v8733
        %11029 = vmatprep.subr.bf16.mxu0 0
        %11030 = vmatpush2.bf16.msra.mxu0 %v8748
        %11031 = vmatprep.subr.bf16.mxu0 0
        %11032 = vmatpush2.bf16.msra.mxu0 %v8747
        %11033 = vmatprep.subr.bf16.mxu0 0
        %11034 = vmatpush2.bf16.msra.mxu0 %v8746
        %11035 = vmatprep.subr.bf16.mxu0 0
        %11036 = vmatpush2.bf16.msra.mxu0 %v8745
        %11037 = vmatprep.subr.bf16.mxu0 0
        %11038 = vmatpush2.bf16.msra.mxu0 %v8744
        %11039 = vmatprep.subr.bf16.mxu0 0
        %11040 = vmatpush2.bf16.msra.mxu0 %v8743
        %11041 = vmatprep.subr.bf16.mxu0 0
        %11042 = vmatpush2.bf16.msra.mxu0 %v8742
        %11043 = vmatprep.subr.bf16.mxu0 0
        %11044 = vmatpush2.bf16.msra.mxu0 %v8741
        %11045 = vmatprep.mubr.bf16.mxu0 %v3596
        %11046 = vmatmul.mubr.bf16.gmra.mxu0 %v3595
        %v11047 = vpop.f32.mrf.mxu0
        %v11048 = vadd.f32 %v11008, %v11047
        %v11049 = vpop.f32.mrf.mxu0
        %v11050 = vpop.f32.mrf.mxu0
        %v11051 = vpop.f32.mrf.mxu0
        %11052 = vdwg.mxu0
        %11053 = vmatprep.subr.bf16.mxu0 0
        %11054 = vmatpush1.bf16.msra.mxu0 %v8756
        %11055 = vmatprep.subr.bf16.mxu0 0
        %11056 = vmatpush1.bf16.msra.mxu0 %v8755
        %11057 = vmatprep.subr.bf16.mxu0 0
        %11058 = vmatpush1.bf16.msra.mxu0 %v8754
        %11059 = vmatprep.subr.bf16.mxu0 0
        %11060 = vmatpush1.bf16.msra.mxu0 %v8753
        %11061 = vmatprep.subr.bf16.mxu0 0
        %11062 = vmatpush1.bf16.msra.mxu0 %v8752
        %11063 = vmatprep.subr.bf16.mxu0 0
        %11064 = vmatpush1.bf16.msra.mxu0 %v8751
        %11065 = vmatprep.subr.bf16.mxu0 0
        %11066 = vmatpush1.bf16.msra.mxu0 %v8750
        %11067 = vmatprep.subr.bf16.mxu0 0
        %11068 = vmatpush1.bf16.msra.mxu0 %v8749
        %11069 = vmatprep.subr.bf16.mxu0 0
        %11070 = vmatpush2.bf16.msra.mxu0 %v8764
        %11071 = vmatprep.subr.bf16.mxu0 0
        %11072 = vmatpush2.bf16.msra.mxu0 %v8763
        %11073 = vmatprep.subr.bf16.mxu0 0
        %11074 = vmatpush2.bf16.msra.mxu0 %v8762
        %11075 = vmatprep.subr.bf16.mxu0 0
        %11076 = vmatpush2.bf16.msra.mxu0 %v8761
        %11077 = vmatprep.subr.bf16.mxu0 0
        %11078 = vmatpush2.bf16.msra.mxu0 %v8760
        %11079 = vmatprep.subr.bf16.mxu0 0
        %11080 = vmatpush2.bf16.msra.mxu0 %v8759
        %11081 = vmatprep.subr.bf16.mxu0 0
        %11082 = vmatpush2.bf16.msra.mxu0 %v8758
        %11083 = vmatprep.subr.bf16.mxu0 0
        %11084 = vmatpush2.bf16.msra.mxu0 %v8757
        %11085 = vmatprep.mubr.bf16.mxu0 %v3598
        %11086 = vmatmul.mubr.bf16.gmra.mxu0 %v3597
        %v11087 = vpop.f32.mrf.mxu0
        %v11088 = vadd.f32 %v11048, %v11087
        %v11089 = vpop.f32.mrf.mxu0
        %v11090 = vpop.f32.mrf.mxu0
        %v11091 = vpop.f32.mrf.mxu0
        %11092 = vdwg.mxu0
        %11093 = vmatprep.subr.bf16.mxu0 0
        %11094 = vmatpush1.bf16.msra.mxu0 %v8772
        %11095 = vmatprep.subr.bf16.mxu0 0
        %11096 = vmatpush1.bf16.msra.mxu0 %v8771
        %11097 = vmatprep.subr.bf16.mxu0 0
        %11098 = vmatpush1.bf16.msra.mxu0 %v8770
        %11099 = vmatprep.subr.bf16.mxu0 0
        %11100 = vmatpush1.bf16.msra.mxu0 %v8769
        %11101 = vmatprep.subr.bf16.mxu0 0
        %11102 = vmatpush1.bf16.msra.mxu0 %v8768
        %11103 = vmatprep.subr.bf16.mxu0 0
        %11104 = vmatpush1.bf16.msra.mxu0 %v8767
        %11105 = vmatprep.subr.bf16.mxu0 0
        %11106 = vmatpush1.bf16.msra.mxu0 %v8766
        %11107 = vmatprep.subr.bf16.mxu0 0
        %11108 = vmatpush1.bf16.msra.mxu0 %v8765
        %11109 = vmatprep.subr.bf16.mxu0 0
        %11110 = vmatpush2.bf16.msra.mxu0 %v8780
        %11111 = vmatprep.subr.bf16.mxu0 0
        %11112 = vmatpush2.bf16.msra.mxu0 %v8779
        %11113 = vmatprep.subr.bf16.mxu0 0
        %11114 = vmatpush2.bf16.msra.mxu0 %v8778
        %11115 = vmatprep.subr.bf16.mxu0 0
        %11116 = vmatpush2.bf16.msra.mxu0 %v8777
        %11117 = vmatprep.subr.bf16.mxu0 0
        %11118 = vmatpush2.bf16.msra.mxu0 %v8776
        %11119 = vmatprep.subr.bf16.mxu0 0
        %11120 = vmatpush2.bf16.msra.mxu0 %v8775
        %11121 = vmatprep.subr.bf16.mxu0 0
        %11122 = vmatpush2.bf16.msra.mxu0 %v8774
        %11123 = vmatprep.subr.bf16.mxu0 0
        %11124 = vmatpush2.bf16.msra.mxu0 %v8773
        %11125 = vmatprep.mubr.bf16.mxu0 %v3600
        %11126 = vmatmul.mubr.bf16.gmra.mxu0 %v3599
        %v11127 = vpop.f32.mrf.mxu0
        %v11128 = vadd.f32 %v11088, %v11127
        %v11129 = vpop.f32.mrf.mxu0
        %v11130 = vpop.f32.mrf.mxu0
        %v11131 = vpop.f32.mrf.mxu0
        %11132 = vdwg.mxu0
        %11133 = vmatprep.subr.bf16.mxu0 0
        %11134 = vmatpush1.bf16.msra.mxu0 %v8788
        %11135 = vmatprep.subr.bf16.mxu0 0
        %11136 = vmatpush1.bf16.msra.mxu0 %v8787
        %11137 = vmatprep.subr.bf16.mxu0 0
        %11138 = vmatpush1.bf16.msra.mxu0 %v8786
        %11139 = vmatprep.subr.bf16.mxu0 0
        %11140 = vmatpush1.bf16.msra.mxu0 %v8785
        %11141 = vmatprep.subr.bf16.mxu0 0
        %11142 = vmatpush1.bf16.msra.mxu0 %v8784
        %11143 = vmatprep.subr.bf16.mxu0 0
        %11144 = vmatpush1.bf16.msra.mxu0 %v8783
        %11145 = vmatprep.subr.bf16.mxu0 0
        %11146 = vmatpush1.bf16.msra.mxu0 %v8782
        %11147 = vmatprep.subr.bf16.mxu0 0
        %11148 = vmatpush1.bf16.msra.mxu0 %v8781
        %11149 = vmatprep.subr.bf16.mxu0 0
        %11150 = vmatpush2.bf16.msra.mxu0 %v8796
        %11151 = vmatprep.subr.bf16.mxu0 0
        %11152 = vmatpush2.bf16.msra.mxu0 %v8795
        %11153 = vmatprep.subr.bf16.mxu0 0
        %11154 = vmatpush2.bf16.msra.mxu0 %v8794
        %11155 = vmatprep.subr.bf16.mxu0 0
        %11156 = vmatpush2.bf16.msra.mxu0 %v8793
        %11157 = vmatprep.subr.bf16.mxu0 0
        %11158 = vmatpush2.bf16.msra.mxu0 %v8792
        %11159 = vmatprep.subr.bf16.mxu0 0
        %11160 = vmatpush2.bf16.msra.mxu0 %v8791
        %11161 = vmatprep.subr.bf16.mxu0 0
        %11162 = vmatpush2.bf16.msra.mxu0 %v8790
        %11163 = vmatprep.subr.bf16.mxu0 0
        %11164 = vmatpush2.bf16.msra.mxu0 %v8789
        %11165 = vmatprep.mubr.bf16.mxu0 %v3602
        %11166 = vmatmul.mubr.bf16.gmra.mxu0 %v3601
        %v11167 = vpop.f32.mrf.mxu0
        %v11168 = vadd.f32 %v11128, %v11167
        %v11169 = vpop.f32.mrf.mxu0
        %v11170 = vpop.f32.mrf.mxu0
        %v11171 = vpop.f32.mrf.mxu0
        %11172 = vdwg.mxu0
        %11173 = vmatprep.subr.bf16.mxu0 0
        %11174 = vmatpush1.bf16.msra.mxu0 %v8804
        %11175 = vmatprep.subr.bf16.mxu0 0
        %11176 = vmatpush1.bf16.msra.mxu0 %v8803
        %11177 = vmatprep.subr.bf16.mxu0 0
        %11178 = vmatpush1.bf16.msra.mxu0 %v8802
        %11179 = vmatprep.subr.bf16.mxu0 0
        %11180 = vmatpush1.bf16.msra.mxu0 %v8801
        %11181 = vmatprep.subr.bf16.mxu0 0
        %11182 = vmatpush1.bf16.msra.mxu0 %v8800
        %11183 = vmatprep.subr.bf16.mxu0 0
        %11184 = vmatpush1.bf16.msra.mxu0 %v8799
        %11185 = vmatprep.subr.bf16.mxu0 0
        %11186 = vmatpush1.bf16.msra.mxu0 %v8798
        %11187 = vmatprep.subr.bf16.mxu0 0
        %11188 = vmatpush1.bf16.msra.mxu0 %v8797
        %11189 = vmatprep.subr.bf16.mxu0 0
        %11190 = vmatpush2.bf16.msra.mxu0 %v8812
        %11191 = vmatprep.subr.bf16.mxu0 0
        %11192 = vmatpush2.bf16.msra.mxu0 %v8811
        %11193 = vmatprep.subr.bf16.mxu0 0
        %11194 = vmatpush2.bf16.msra.mxu0 %v8810
        %11195 = vmatprep.subr.bf16.mxu0 0
        %11196 = vmatpush2.bf16.msra.mxu0 %v8809
        %11197 = vmatprep.subr.bf16.mxu0 0
        %11198 = vmatpush2.bf16.msra.mxu0 %v8808
        %11199 = vmatprep.subr.bf16.mxu0 0
        %11200 = vmatpush2.bf16.msra.mxu0 %v8807
        %11201 = vmatprep.subr.bf16.mxu0 0
        %11202 = vmatpush2.bf16.msra.mxu0 %v8806
        %11203 = vmatprep.subr.bf16.mxu0 0
        %11204 = vmatpush2.bf16.msra.mxu0 %v8805
        %11205 = vmatprep.mubr.bf16.mxu0 %v3604
        %11206 = vmatmul.mubr.bf16.gmra.mxu0 %v3603
        %v11207 = vpop.f32.mrf.mxu0
        %v11208 = vadd.f32 %v11168, %v11207
        %v11209 = vpop.f32.mrf.mxu0
        %v11210 = vpop.f32.mrf.mxu0
        %v11211 = vpop.f32.mrf.mxu0
        %11212 = vdwg.mxu0
        %11213 = vmatprep.subr.bf16.mxu0 0
        %11214 = vmatpush1.bf16.msra.mxu0 %v8820
        %11215 = vmatprep.subr.bf16.mxu0 0
        %11216 = vmatpush1.bf16.msra.mxu0 %v8819
        %11217 = vmatprep.subr.bf16.mxu0 0
        %11218 = vmatpush1.bf16.msra.mxu0 %v8818
        %11219 = vmatprep.subr.bf16.mxu0 0
        %11220 = vmatpush1.bf16.msra.mxu0 %v8817
        %11221 = vmatprep.subr.bf16.mxu0 0
        %11222 = vmatpush1.bf16.msra.mxu0 %v8816
        %11223 = vmatprep.subr.bf16.mxu0 0
        %11224 = vmatpush1.bf16.msra.mxu0 %v8815
        %11225 = vmatprep.subr.bf16.mxu0 0
        %11226 = vmatpush1.bf16.msra.mxu0 %v8814
        %11227 = vmatprep.subr.bf16.mxu0 0
        %11228 = vmatpush1.bf16.msra.mxu0 %v8813
        %11229 = vmatprep.subr.bf16.mxu0 0
        %11230 = vmatpush2.bf16.msra.mxu0 %v8828
        %11231 = vmatprep.subr.bf16.mxu0 0
        %11232 = vmatpush2.bf16.msra.mxu0 %v8827
        %11233 = vmatprep.subr.bf16.mxu0 0
        %11234 = vmatpush2.bf16.msra.mxu0 %v8826
        %11235 = vmatprep.subr.bf16.mxu0 0
        %11236 = vmatpush2.bf16.msra.mxu0 %v8825
        %11237 = vmatprep.subr.bf16.mxu0 0
        %11238 = vmatpush2.bf16.msra.mxu0 %v8824
        %11239 = vmatprep.subr.bf16.mxu0 0
        %11240 = vmatpush2.bf16.msra.mxu0 %v8823
        %11241 = vmatprep.subr.bf16.mxu0 0
        %11242 = vmatpush2.bf16.msra.mxu0 %v8822
        %11243 = vmatprep.subr.bf16.mxu0 0
        %11244 = vmatpush2.bf16.msra.mxu0 %v8821
        %11245 = vmatprep.mubr.bf16.mxu0 %v3606
        %11246 = vmatmul.mubr.bf16.gmra.mxu0 %v3605
        %v11247 = vpop.f32.mrf.mxu0
        %v11248 = vadd.f32 %v11208, %v11247
        %v11249 = vpop.f32.mrf.mxu0
        %v11250 = vpop.f32.mrf.mxu0
        %v11251 = vpop.f32.mrf.mxu0
        %11252 = vdwg.mxu0
        %11253 = vmatprep.subr.bf16.mxu0 0
        %11254 = vmatpush1.bf16.msra.mxu0 %v8836
        %11255 = vmatprep.subr.bf16.mxu0 0
        %11256 = vmatpush1.bf16.msra.mxu0 %v8835
        %11257 = vmatprep.subr.bf16.mxu0 0
        %11258 = vmatpush1.bf16.msra.mxu0 %v8834
        %11259 = vmatprep.subr.bf16.mxu0 0
        %11260 = vmatpush1.bf16.msra.mxu0 %v8833
        %11261 = vmatprep.subr.bf16.mxu0 0
        %11262 = vmatpush1.bf16.msra.mxu0 %v8832
        %11263 = vmatprep.subr.bf16.mxu0 0
        %11264 = vmatpush1.bf16.msra.mxu0 %v8831
        %11265 = vmatprep.subr.bf16.mxu0 0
        %11266 = vmatpush1.bf16.msra.mxu0 %v8830
        %11267 = vmatprep.subr.bf16.mxu0 0
        %11268 = vmatpush1.bf16.msra.mxu0 %v8829
        %11269 = vmatprep.subr.bf16.mxu0 0
        %11270 = vmatpush2.bf16.msra.mxu0 %v8844
        %11271 = vmatprep.subr.bf16.mxu0 0
        %11272 = vmatpush2.bf16.msra.mxu0 %v8843
        %11273 = vmatprep.subr.bf16.mxu0 0
        %11274 = vmatpush2.bf16.msra.mxu0 %v8842
        %11275 = vmatprep.subr.bf16.mxu0 0
        %11276 = vmatpush2.bf16.msra.mxu0 %v8841
        %11277 = vmatprep.subr.bf16.mxu0 0
        %11278 = vmatpush2.bf16.msra.mxu0 %v8840
        %11279 = vmatprep.subr.bf16.mxu0 0
        %11280 = vmatpush2.bf16.msra.mxu0 %v8839
        %11281 = vmatprep.subr.bf16.mxu0 0
        %11282 = vmatpush2.bf16.msra.mxu0 %v8838
        %11283 = vmatprep.subr.bf16.mxu0 0
        %11284 = vmatpush2.bf16.msra.mxu0 %v8837
        %11285 = vmatprep.mubr.bf16.mxu0 %v3608
        %11286 = vmatmul.mubr.bf16.gmra.mxu0 %v3607
        %v11287 = vpop.f32.mrf.mxu0
        %v11288 = vadd.f32 %v11248, %v11287
        %v11289 = vpop.f32.mrf.mxu0
        %v11290 = vpop.f32.mrf.mxu0
        %v11291 = vpop.f32.mrf.mxu0
        %11292 = vdwg.mxu0
        %11293 = vmatprep.subr.bf16.mxu0 0
        %11294 = vmatpush1.bf16.msra.mxu0 %v8852
        %11295 = vmatprep.subr.bf16.mxu0 0
        %11296 = vmatpush1.bf16.msra.mxu0 %v8851
        %11297 = vmatprep.subr.bf16.mxu0 0
        %11298 = vmatpush1.bf16.msra.mxu0 %v8850
        %11299 = vmatprep.subr.bf16.mxu0 0
        %11300 = vmatpush1.bf16.msra.mxu0 %v8849
        %11301 = vmatprep.subr.bf16.mxu0 0
        %11302 = vmatpush1.bf16.msra.mxu0 %v8848
        %11303 = vmatprep.subr.bf16.mxu0 0
        %11304 = vmatpush1.bf16.msra.mxu0 %v8847
        %11305 = vmatprep.subr.bf16.mxu0 0
        %11306 = vmatpush1.bf16.msra.mxu0 %v8846
        %11307 = vmatprep.subr.bf16.mxu0 0
        %11308 = vmatpush1.bf16.msra.mxu0 %v8845
        %11309 = vmatprep.subr.bf16.mxu0 0
        %11310 = vmatpush2.bf16.msra.mxu0 %v8860
        %11311 = vmatprep.subr.bf16.mxu0 0
        %11312 = vmatpush2.bf16.msra.mxu0 %v8859
        %11313 = vmatprep.subr.bf16.mxu0 0
        %11314 = vmatpush2.bf16.msra.mxu0 %v8858
        %11315 = vmatprep.subr.bf16.mxu0 0
        %11316 = vmatpush2.bf16.msra.mxu0 %v8857
        %11317 = vmatprep.subr.bf16.mxu0 0
        %11318 = vmatpush2.bf16.msra.mxu0 %v8856
        %11319 = vmatprep.subr.bf16.mxu0 0
        %11320 = vmatpush2.bf16.msra.mxu0 %v8855
        %11321 = vmatprep.subr.bf16.mxu0 0
        %11322 = vmatpush2.bf16.msra.mxu0 %v8854
        %11323 = vmatprep.subr.bf16.mxu0 0
        %11324 = vmatpush2.bf16.msra.mxu0 %v8853
        %11325 = vmatprep.mubr.bf16.mxu0 %v3610
        %11326 = vmatmul.mubr.bf16.gmra.mxu0 %v3609
        %v11327 = vpop.f32.mrf.mxu0
        %v11328 = vadd.f32 %v11288, %v11327
        %v11329 = vpop.f32.mrf.mxu0
        %v11330 = vpop.f32.mrf.mxu0
        %v11331 = vpop.f32.mrf.mxu0
        %11332 = vdwg.mxu0
        %11333 = vmatprep.subr.bf16.mxu0 0
        %11334 = vmatpush1.bf16.msra.mxu0 %v8868
        %11335 = vmatprep.subr.bf16.mxu0 0
        %11336 = vmatpush1.bf16.msra.mxu0 %v8867
        %11337 = vmatprep.subr.bf16.mxu0 0
        %11338 = vmatpush1.bf16.msra.mxu0 %v8866
        %11339 = vmatprep.subr.bf16.mxu0 0
        %11340 = vmatpush1.bf16.msra.mxu0 %v8865
        %11341 = vmatprep.subr.bf16.mxu0 0
        %11342 = vmatpush1.bf16.msra.mxu0 %v8864
        %11343 = vmatprep.subr.bf16.mxu0 0
        %11344 = vmatpush1.bf16.msra.mxu0 %v8863
        %11345 = vmatprep.subr.bf16.mxu0 0
        %11346 = vmatpush1.bf16.msra.mxu0 %v8862
        %11347 = vmatprep.subr.bf16.mxu0 0
        %11348 = vmatpush1.bf16.msra.mxu0 %v8861
        %11349 = vmatprep.subr.bf16.mxu0 0
        %11350 = vmatpush2.bf16.msra.mxu0 %v8876
        %11351 = vmatprep.subr.bf16.mxu0 0
        %11352 = vmatpush2.bf16.msra.mxu0 %v8875
        %11353 = vmatprep.subr.bf16.mxu0 0
        %11354 = vmatpush2.bf16.msra.mxu0 %v8874
        %11355 = vmatprep.subr.bf16.mxu0 0
        %11356 = vmatpush2.bf16.msra.mxu0 %v8873
        %11357 = vmatprep.subr.bf16.mxu0 0
        %11358 = vmatpush2.bf16.msra.mxu0 %v8872
        %11359 = vmatprep.subr.bf16.mxu0 0
        %11360 = vmatpush2.bf16.msra.mxu0 %v8871
        %11361 = vmatprep.subr.bf16.mxu0 0
        %11362 = vmatpush2.bf16.msra.mxu0 %v8870
        %11363 = vmatprep.subr.bf16.mxu0 0
        %11364 = vmatpush2.bf16.msra.mxu0 %v8869
        %11365 = vmatprep.mubr.bf16.mxu0 %v3612
        %11366 = vmatmul.mubr.bf16.gmra.mxu0 %v3611
        %v11367 = vpop.f32.mrf.mxu0
        %v11368 = vadd.f32 %v11328, %v11367
        %v11369 = vpop.f32.mrf.mxu0
        %v11370 = vpop.f32.mrf.mxu0
        %v11371 = vpop.f32.mrf.mxu0
        %11372 = vdwg.mxu0
        %11373 = vmatprep.subr.bf16.mxu0 0
        %11374 = vmatpush1.bf16.msra.mxu0 %v8884
        %11375 = vmatprep.subr.bf16.mxu0 0
        %11376 = vmatpush1.bf16.msra.mxu0 %v8883
        %11377 = vmatprep.subr.bf16.mxu0 0
        %11378 = vmatpush1.bf16.msra.mxu0 %v8882
        %11379 = vmatprep.subr.bf16.mxu0 0
        %11380 = vmatpush1.bf16.msra.mxu0 %v8881
        %11381 = vmatprep.subr.bf16.mxu0 0
        %11382 = vmatpush1.bf16.msra.mxu0 %v8880
        %11383 = vmatprep.subr.bf16.mxu0 0
        %11384 = vmatpush1.bf16.msra.mxu0 %v8879
        %11385 = vmatprep.subr.bf16.mxu0 0
        %11386 = vmatpush1.bf16.msra.mxu0 %v8878
        %11387 = vmatprep.subr.bf16.mxu0 0
        %11388 = vmatpush1.bf16.msra.mxu0 %v8877
        %11389 = vmatprep.subr.bf16.mxu0 0
        %11390 = vmatpush2.bf16.msra.mxu0 %v8892
        %11391 = vmatprep.subr.bf16.mxu0 0
        %11392 = vmatpush2.bf16.msra.mxu0 %v8891
        %11393 = vmatprep.subr.bf16.mxu0 0
        %11394 = vmatpush2.bf16.msra.mxu0 %v8890
        %11395 = vmatprep.subr.bf16.mxu0 0
        %11396 = vmatpush2.bf16.msra.mxu0 %v8889
        %11397 = vmatprep.subr.bf16.mxu0 0
        %11398 = vmatpush2.bf16.msra.mxu0 %v8888
        %11399 = vmatprep.subr.bf16.mxu0 0
        %11400 = vmatpush2.bf16.msra.mxu0 %v8887
        %11401 = vmatprep.subr.bf16.mxu0 0
        %11402 = vmatpush2.bf16.msra.mxu0 %v8886
        %11403 = vmatprep.subr.bf16.mxu0 0
        %11404 = vmatpush2.bf16.msra.mxu0 %v8885
        %11405 = vmatprep.mubr.bf16.mxu0 %v3614
        %11406 = vmatmul.mubr.bf16.gmra.mxu0 %v3613
        %v11407 = vpop.f32.mrf.mxu0
        %v11408 = vadd.f32 %v11368, %v11407
        %v11409 = vpop.f32.mrf.mxu0
        %v11410 = vpop.f32.mrf.mxu0
        %v11411 = vpop.f32.mrf.mxu0
        %11412 = vdwg.mxu0
        %11413 = vmatprep.subr.bf16.mxu0 0
        %11414 = vmatpush1.bf16.msra.mxu0 %v8900
        %11415 = vmatprep.subr.bf16.mxu0 0
        %11416 = vmatpush1.bf16.msra.mxu0 %v8899
        %11417 = vmatprep.subr.bf16.mxu0 0
        %11418 = vmatpush1.bf16.msra.mxu0 %v8898
        %11419 = vmatprep.subr.bf16.mxu0 0
        %11420 = vmatpush1.bf16.msra.mxu0 %v8897
        %11421 = vmatprep.subr.bf16.mxu0 0
        %11422 = vmatpush1.bf16.msra.mxu0 %v8896
        %11423 = vmatprep.subr.bf16.mxu0 0
        %11424 = vmatpush1.bf16.msra.mxu0 %v8895
        %11425 = vmatprep.subr.bf16.mxu0 0
        %11426 = vmatpush1.bf16.msra.mxu0 %v8894
        %11427 = vmatprep.subr.bf16.mxu0 0
        %11428 = vmatpush1.bf16.msra.mxu0 %v8893
        %11429 = vmatprep.subr.bf16.mxu0 0
        %11430 = vmatpush2.bf16.msra.mxu0 %v8908
        %11431 = vmatprep.subr.bf16.mxu0 0
        %11432 = vmatpush2.bf16.msra.mxu0 %v8907
        %11433 = vmatprep.subr.bf16.mxu0 0
        %11434 = vmatpush2.bf16.msra.mxu0 %v8906
        %11435 = vmatprep.subr.bf16.mxu0 0
        %11436 = vmatpush2.bf16.msra.mxu0 %v8905
        %11437 = vmatprep.subr.bf16.mxu0 0
        %11438 = vmatpush2.bf16.msra.mxu0 %v8904
        %11439 = vmatprep.subr.bf16.mxu0 0
        %11440 = vmatpush2.bf16.msra.mxu0 %v8903
        %11441 = vmatprep.subr.bf16.mxu0 0
        %11442 = vmatpush2.bf16.msra.mxu0 %v8902
        %11443 = vmatprep.subr.bf16.mxu0 0
        %11444 = vmatpush2.bf16.msra.mxu0 %v8901
        %11445 = vmatprep.mubr.bf16.mxu0 %v3616
        %11446 = vmatmul.mubr.bf16.gmra.mxu0 %v3615
        %v11447 = vpop.f32.mrf.mxu0
        %v11448 = vadd.f32 %v11408, %v11447
        %v11449 = vpop.f32.mrf.mxu0
        %v11450 = vpop.f32.mrf.mxu0
        %v11451 = vpop.f32.mrf.mxu0
        %11452 = vdwg.mxu0
        %11453 = vmatprep.subr.bf16.mxu0 0
        %11454 = vmatpush1.bf16.msra.mxu0 %v8916
        %11455 = vmatprep.subr.bf16.mxu0 0
        %11456 = vmatpush1.bf16.msra.mxu0 %v8915
        %11457 = vmatprep.subr.bf16.mxu0 0
        %11458 = vmatpush1.bf16.msra.mxu0 %v8914
        %11459 = vmatprep.subr.bf16.mxu0 0
        %11460 = vmatpush1.bf16.msra.mxu0 %v8913
        %11461 = vmatprep.subr.bf16.mxu0 0
        %11462 = vmatpush1.bf16.msra.mxu0 %v8912
        %11463 = vmatprep.subr.bf16.mxu0 0
        %11464 = vmatpush1.bf16.msra.mxu0 %v8911
        %11465 = vmatprep.subr.bf16.mxu0 0
        %11466 = vmatpush1.bf16.msra.mxu0 %v8910
        %11467 = vmatprep.subr.bf16.mxu0 0
        %11468 = vmatpush1.bf16.msra.mxu0 %v8909
        %11469 = vmatprep.subr.bf16.mxu0 0
        %11470 = vmatpush2.bf16.msra.mxu0 %v8924
        %11471 = vmatprep.subr.bf16.mxu0 0
        %11472 = vmatpush2.bf16.msra.mxu0 %v8923
        %11473 = vmatprep.subr.bf16.mxu0 0
        %11474 = vmatpush2.bf16.msra.mxu0 %v8922
        %11475 = vmatprep.subr.bf16.mxu0 0
        %11476 = vmatpush2.bf16.msra.mxu0 %v8921
        %11477 = vmatprep.subr.bf16.mxu0 0
        %11478 = vmatpush2.bf16.msra.mxu0 %v8920
        %11479 = vmatprep.subr.bf16.mxu0 0
        %11480 = vmatpush2.bf16.msra.mxu0 %v8919
        %11481 = vmatprep.subr.bf16.mxu0 0
        %11482 = vmatpush2.bf16.msra.mxu0 %v8918
        %11483 = vmatprep.subr.bf16.mxu0 0
        %11484 = vmatpush2.bf16.msra.mxu0 %v8917
        %11485 = vmatprep.mubr.bf16.mxu0 %v3618
        %11486 = vmatmul.mubr.bf16.gmra.mxu0 %v3617
        %v11487 = vpop.f32.mrf.mxu0
        %v11488 = vadd.f32 %v11448, %v11487
        %v11489 = vpop.f32.mrf.mxu0
        %v11490 = vpop.f32.mrf.mxu0
        %v11491 = vpop.f32.mrf.mxu0
        %11492 = vdwg.mxu0
        %11493 = vmatprep.subr.bf16.mxu0 0
        %11494 = vmatpush1.bf16.msra.mxu0 %v8932
        %11495 = vmatprep.subr.bf16.mxu0 0
        %11496 = vmatpush1.bf16.msra.mxu0 %v8931
        %11497 = vmatprep.subr.bf16.mxu0 0
        %11498 = vmatpush1.bf16.msra.mxu0 %v8930
        %11499 = vmatprep.subr.bf16.mxu0 0
        %11500 = vmatpush1.bf16.msra.mxu0 %v8929
        %11501 = vmatprep.subr.bf16.mxu0 0
        %11502 = vmatpush1.bf16.msra.mxu0 %v8928
        %11503 = vmatprep.subr.bf16.mxu0 0
        %11504 = vmatpush1.bf16.msra.mxu0 %v8927
        %11505 = vmatprep.subr.bf16.mxu0 0
        %11506 = vmatpush1.bf16.msra.mxu0 %v8926
        %11507 = vmatprep.subr.bf16.mxu0 0
        %11508 = vmatpush1.bf16.msra.mxu0 %v8925
        %11509 = vmatprep.subr.bf16.mxu0 0
        %11510 = vmatpush2.bf16.msra.mxu0 %v8940
        %11511 = vmatprep.subr.bf16.mxu0 0
        %11512 = vmatpush2.bf16.msra.mxu0 %v8939
        %11513 = vmatprep.subr.bf16.mxu0 0
        %11514 = vmatpush2.bf16.msra.mxu0 %v8938
        %11515 = vmatprep.subr.bf16.mxu0 0
        %11516 = vmatpush2.bf16.msra.mxu0 %v8937
        %11517 = vmatprep.subr.bf16.mxu0 0
        %11518 = vmatpush2.bf16.msra.mxu0 %v8936
        %11519 = vmatprep.subr.bf16.mxu0 0
        %11520 = vmatpush2.bf16.msra.mxu0 %v8935
        %11521 = vmatprep.subr.bf16.mxu0 0
        %11522 = vmatpush2.bf16.msra.mxu0 %v8934
        %11523 = vmatprep.subr.bf16.mxu0 0
        %11524 = vmatpush2.bf16.msra.mxu0 %v8933
        %11525 = vmatprep.mubr.bf16.mxu0 %v3620
        %11526 = vmatmul.mubr.bf16.gmra.mxu0 %v3619
        %v11527 = vpop.f32.mrf.mxu0
        %v11528 = vadd.f32 %v11488, %v11527
        %v11529 = vpop.f32.mrf.mxu0
        %v11530 = vpop.f32.mrf.mxu0
        %v11531 = vpop.f32.mrf.mxu0
        %11532 = vdwg.mxu0
        %11533 = vmatprep.subr.bf16.mxu0 0
        %11534 = vmatpush1.bf16.msra.mxu0 %v8948
        %11535 = vmatprep.subr.bf16.mxu0 0
        %11536 = vmatpush1.bf16.msra.mxu0 %v8947
        %11537 = vmatprep.subr.bf16.mxu0 0
        %11538 = vmatpush1.bf16.msra.mxu0 %v8946
        %11539 = vmatprep.subr.bf16.mxu0 0
        %11540 = vmatpush1.bf16.msra.mxu0 %v8945
        %11541 = vmatprep.subr.bf16.mxu0 0
        %11542 = vmatpush1.bf16.msra.mxu0 %v8944
        %11543 = vmatprep.subr.bf16.mxu0 0
        %11544 = vmatpush1.bf16.msra.mxu0 %v8943
        %11545 = vmatprep.subr.bf16.mxu0 0
        %11546 = vmatpush1.bf16.msra.mxu0 %v8942
        %11547 = vmatprep.subr.bf16.mxu0 0
        %11548 = vmatpush1.bf16.msra.mxu0 %v8941
        %11549 = vmatprep.subr.bf16.mxu0 0
        %11550 = vmatpush2.bf16.msra.mxu0 %v8956
        %11551 = vmatprep.subr.bf16.mxu0 0
        %11552 = vmatpush2.bf16.msra.mxu0 %v8955
        %11553 = vmatprep.subr.bf16.mxu0 0
        %11554 = vmatpush2.bf16.msra.mxu0 %v8954
        %11555 = vmatprep.subr.bf16.mxu0 0
        %11556 = vmatpush2.bf16.msra.mxu0 %v8953
        %11557 = vmatprep.subr.bf16.mxu0 0
        %11558 = vmatpush2.bf16.msra.mxu0 %v8952
        %11559 = vmatprep.subr.bf16.mxu0 0
        %11560 = vmatpush2.bf16.msra.mxu0 %v8951
        %11561 = vmatprep.subr.bf16.mxu0 0
        %11562 = vmatpush2.bf16.msra.mxu0 %v8950
        %11563 = vmatprep.subr.bf16.mxu0 0
        %11564 = vmatpush2.bf16.msra.mxu0 %v8949
        %11565 = vmatprep.mubr.bf16.mxu0 %v3622
        %11566 = vmatmul.mubr.bf16.gmra.mxu0 %v3621
        %v11567 = vpop.f32.mrf.mxu0
        %v11568 = vadd.f32 %v11528, %v11567
        %v11569 = vpop.f32.mrf.mxu0
        %v11570 = vpop.f32.mrf.mxu0
        %v11571 = vpop.f32.mrf.mxu0
        %11572 = vdwg.mxu0
        %11573 = vmatprep.subr.bf16.mxu0 0
        %11574 = vmatpush1.bf16.msra.mxu0 %v8964
        %11575 = vmatprep.subr.bf16.mxu0 0
        %11576 = vmatpush1.bf16.msra.mxu0 %v8963
        %11577 = vmatprep.subr.bf16.mxu0 0
        %11578 = vmatpush1.bf16.msra.mxu0 %v8962
        %11579 = vmatprep.subr.bf16.mxu0 0
        %11580 = vmatpush1.bf16.msra.mxu0 %v8961
        %11581 = vmatprep.subr.bf16.mxu0 0
        %11582 = vmatpush1.bf16.msra.mxu0 %v8960
        %11583 = vmatprep.subr.bf16.mxu0 0
        %11584 = vmatpush1.bf16.msra.mxu0 %v8959
        %11585 = vmatprep.subr.bf16.mxu0 0
        %11586 = vmatpush1.bf16.msra.mxu0 %v8958
        %11587 = vmatprep.subr.bf16.mxu0 0
        %11588 = vmatpush1.bf16.msra.mxu0 %v8957
        %11589 = vmatprep.subr.bf16.mxu0 0
        %11590 = vmatpush2.bf16.msra.mxu0 %v8972
        %11591 = vmatprep.subr.bf16.mxu0 0
        %11592 = vmatpush2.bf16.msra.mxu0 %v8971
        %11593 = vmatprep.subr.bf16.mxu0 0
        %11594 = vmatpush2.bf16.msra.mxu0 %v8970
        %11595 = vmatprep.subr.bf16.mxu0 0
        %11596 = vmatpush2.bf16.msra.mxu0 %v8969
        %11597 = vmatprep.subr.bf16.mxu0 0
        %11598 = vmatpush2.bf16.msra.mxu0 %v8968
        %11599 = vmatprep.subr.bf16.mxu0 0
        %11600 = vmatpush2.bf16.msra.mxu0 %v8967
        %11601 = vmatprep.subr.bf16.mxu0 0
        %11602 = vmatpush2.bf16.msra.mxu0 %v8966
        %11603 = vmatprep.subr.bf16.mxu0 0
        %11604 = vmatpush2.bf16.msra.mxu0 %v8965
        %11605 = vmatprep.mubr.bf16.mxu0 %v3624
        %11606 = vmatmul.mubr.bf16.gmra.mxu0 %v3623
        %v11607 = vpop.f32.mrf.mxu0
        %v11608 = vadd.f32 %v11568, %v11607
        %v11609 = vpop.f32.mrf.mxu0
        %v11610 = vpop.f32.mrf.mxu0
        %v11611 = vpop.f32.mrf.mxu0
        %11612 = vdwg.mxu0
        %11613 = vmatprep.subr.bf16.mxu0 0
        %11614 = vmatpush1.bf16.msra.mxu0 %v8980
        %11615 = vmatprep.subr.bf16.mxu0 0
        %11616 = vmatpush1.bf16.msra.mxu0 %v8979
        %11617 = vmatprep.subr.bf16.mxu0 0
        %11618 = vmatpush1.bf16.msra.mxu0 %v8978
        %11619 = vmatprep.subr.bf16.mxu0 0
        %11620 = vmatpush1.bf16.msra.mxu0 %v8977
        %11621 = vmatprep.subr.bf16.mxu0 0
        %11622 = vmatpush1.bf16.msra.mxu0 %v8976
        %11623 = vmatprep.subr.bf16.mxu0 0
        %11624 = vmatpush1.bf16.msra.mxu0 %v8975
        %11625 = vmatprep.subr.bf16.mxu0 0
        %11626 = vmatpush1.bf16.msra.mxu0 %v8974
        %11627 = vmatprep.subr.bf16.mxu0 0
        %11628 = vmatpush1.bf16.msra.mxu0 %v8973
        %11629 = vmatprep.subr.bf16.mxu0 0
        %11630 = vmatpush2.bf16.msra.mxu0 %v8988
        %11631 = vmatprep.subr.bf16.mxu0 0
        %11632 = vmatpush2.bf16.msra.mxu0 %v8987
        %11633 = vmatprep.subr.bf16.mxu0 0
        %11634 = vmatpush2.bf16.msra.mxu0 %v8986
        %11635 = vmatprep.subr.bf16.mxu0 0
        %11636 = vmatpush2.bf16.msra.mxu0 %v8985
        %11637 = vmatprep.subr.bf16.mxu0 0
        %11638 = vmatpush2.bf16.msra.mxu0 %v8984
        %11639 = vmatprep.subr.bf16.mxu0 0
        %11640 = vmatpush2.bf16.msra.mxu0 %v8983
        %11641 = vmatprep.subr.bf16.mxu0 0
        %11642 = vmatpush2.bf16.msra.mxu0 %v8982
        %11643 = vmatprep.subr.bf16.mxu0 0
        %11644 = vmatpush2.bf16.msra.mxu0 %v8981
        %11645 = vmatprep.mubr.bf16.mxu0 %v3626
        %11646 = vmatmul.mubr.bf16.gmra.mxu0 %v3625
        %v11647 = vpop.f32.mrf.mxu0
        %v11648 = vadd.f32 %v11608, %v11647
        %v11649 = vpop.f32.mrf.mxu0
        %v11650 = vpop.f32.mrf.mxu0
        %v11651 = vpop.f32.mrf.mxu0
        %11652 = vdwg.mxu0
        %11653 = vmatprep.subr.bf16.mxu0 0
        %11654 = vmatpush1.bf16.msra.mxu0 %v8996
        %11655 = vmatprep.subr.bf16.mxu0 0
        %11656 = vmatpush1.bf16.msra.mxu0 %v8995
        %11657 = vmatprep.subr.bf16.mxu0 0
        %11658 = vmatpush1.bf16.msra.mxu0 %v8994
        %11659 = vmatprep.subr.bf16.mxu0 0
        %11660 = vmatpush1.bf16.msra.mxu0 %v8993
        %11661 = vmatprep.subr.bf16.mxu0 0
        %11662 = vmatpush1.bf16.msra.mxu0 %v8992
        %11663 = vmatprep.subr.bf16.mxu0 0
        %11664 = vmatpush1.bf16.msra.mxu0 %v8991
        %11665 = vmatprep.subr.bf16.mxu0 0
        %11666 = vmatpush1.bf16.msra.mxu0 %v8990
        %11667 = vmatprep.subr.bf16.mxu0 0
        %11668 = vmatpush1.bf16.msra.mxu0 %v8989
        %11669 = vmatprep.subr.bf16.mxu0 0
        %11670 = vmatpush2.bf16.msra.mxu0 %v9004
        %11671 = vmatprep.subr.bf16.mxu0 0
        %11672 = vmatpush2.bf16.msra.mxu0 %v9003
        %11673 = vmatprep.subr.bf16.mxu0 0
        %11674 = vmatpush2.bf16.msra.mxu0 %v9002
        %11675 = vmatprep.subr.bf16.mxu0 0
        %11676 = vmatpush2.bf16.msra.mxu0 %v9001
        %11677 = vmatprep.subr.bf16.mxu0 0
        %11678 = vmatpush2.bf16.msra.mxu0 %v9000
        %11679 = vmatprep.subr.bf16.mxu0 0
        %11680 = vmatpush2.bf16.msra.mxu0 %v8999
        %11681 = vmatprep.subr.bf16.mxu0 0
        %11682 = vmatpush2.bf16.msra.mxu0 %v8998
        %11683 = vmatprep.subr.bf16.mxu0 0
        %11684 = vmatpush2.bf16.msra.mxu0 %v8997
        %11685 = vmatprep.mubr.bf16.mxu0 %v3628
        %11686 = vmatmul.mubr.bf16.gmra.mxu0 %v3627
        %v11687 = vpop.f32.mrf.mxu0
        %v11688 = vadd.f32 %v11648, %v11687
        %v11689 = vpop.f32.mrf.mxu0
        %v11690 = vpop.f32.mrf.mxu0
        %v11691 = vpop.f32.mrf.mxu0
        %11692 = vdwg.mxu0
        %v11693 = vadd.f32 %v3532, %v11688
        %11694 = vst [vmem:[#allocation2] sm:$0xff] %v11693
        %p11695 = scmp.eq.s32.totalorder %s33, 3
        // Predicated region
        $region65: #{tpu_custom_call.1} parent=39 // pred_check
          %p11696 = pneg %p11695
        $region66: #{tpu_custom_call.1} parent=39 // pred_check_branch
          %11698 = sbr.rel (%p11696) target = $region68
        $region67: #{tpu_custom_call.1} parent=39 // pred_region
          %v11699 = vld [vmem:[#allocation2] sm:$0xff]
          %v11700 = vld [vmem:[%s355] sm:$0x1]
          %v11702 = vlaneseq
          %v11703 = vshrl.u32 %v11702, 7
          %v11704 = vsub.s32 0, %v11703
          %v11705 = vrot.slane %v11700, %v11704
          %v11707 = vadd.f32 %v11699, %v11705
          %v11708 = vmax.f32 %v11707, 0.0
          %11709 = vst [vmem:[%s400] sm:$0xff] %v11708
        $region68: #{tpu_custom_call.1} parent=39 // pred_fallthru
          _
        %s11710 = sand.u32 %s180, 1
        %s11711 = scalar_lea.sflag [#allocation5], %s11710
        %s11712 = sand.u32 %s180, 1
        %s11713 = smul.addr %s11712, 8
        %s11714 = scalar_lea.vmem [#allocation12], %s11713
        // Predicated region
        $region69: #{tpu_custom_call.1} parent=39 // pred_check
          %p11715 = pneg %p190
        $region70: #{tpu_custom_call.1} parent=39 // pred_check_branch
          %11717 = sbr.rel (%p11715) target = $region72
        $region71: #{tpu_custom_call.1} parent=39 // pred_region
          %s11719 = ssub.s32 128, 128
          %11720 = vsyncadd %s11711, %s11719
          %s11721 = smul.addr %s32, 128
          %s11722 = scalar_lea.hbm %s5, %s11721
          %s11724 = sshll.u32 %s11714, 4
          %s11725 = int_to_ptr.vmem [resolvable:$true] %s11724
          %11727 = dma.vmem_to_hbm [thread:$0]  %s11725, 128, %s11722, %s11711
        $region72: #{tpu_custom_call.1} parent=39 // pred_fallthru
          _
      $region40: #{tpu_custom_call.1} parent=5 // pred_fallthru
        _
      %p11728 = scmp.le.s32.totalorder 2, %s23
      // Predicated region
      $region73: #{tpu_custom_call.1} parent=5 // pred_check
        %p11729 = pneg %p11728
      $region74: #{tpu_custom_call.1} parent=5 // pred_check_branch
        %11731 = sbr.rel (%p11729) target = $region76
      $region75: #{tpu_custom_call.1} parent=5 // pred_region
        %s11732 = ssub.s32 %s23, 2
        // Predicated region
        $region77: #{tpu_custom_call.1} parent=75 // pred_check
          %p11733 = pneg %p196
        $region78: #{tpu_custom_call.1} parent=75 // pred_check_branch
          %11735 = sbr.rel (%p11733) target = $region80
        $region79: #{tpu_custom_call.1} parent=75 // pred_region
          %s11736 = sand.u32 %s181, 1
          %s11737 = scalar_lea.sflag [#allocation5], %s11736
          %s11738 = sand.u32 %s181, 1
          %s11739 = smul.addr %s11738, 8
          %s11740 = scalar_lea.vmem [#allocation12], %s11739
          %11741 = dma.done %s11737, 128
        $region80: #{tpu_custom_call.1} parent=75 // pred_fallthru
          _
      $region76: #{tpu_custom_call.1} parent=5 // pred_fallthru
        _
    $region6: #{tpu_custom_call.1} parent=1 // loop_footer
      %s27 = sadd.s32 1, %s23
    $region7: #{tpu_custom_call.1} parent=1 // loop_footer_branch
      %22 = sbr.rel target = $region3
    $region8: #{tpu_custom_call.1} parent=1 // loop_exit
      _
    %11742 = vsyncpa [#allocation4], 1
    %s11743 = scalar_lea.sflag [#allocation4], 1
    %11744 = vsyncpa %s11743, 1
    %11745 = vsyncpa [#allocation7], 1
    %s11746 = scalar_lea.sflag [#allocation7], 1
    %11747 = vsyncpa %s11746, 1
    %11748 = vsyncpa [#allocation10], 1
    %s11749 = scalar_lea.sflag [#allocation10], 1
    %11750 = vsyncpa %s11749, 1
    %11751 = vsyncpa [#allocation5], 1
    %s11752 = scalar_lea.sflag [#allocation5], 1
    %11753 = vsyncpa %s11752, 1

</llo_original>
